<compile_context>
chip_gen: v7x
topology: tpu7x:2x2x1
jax: 0.10.0
libtpu: 0.0.40
codegen_flags: <defaults>
</compile_context>

<pallas_src>
import functools

import jax
import jax.numpy as jnp
from jax import lax
from jax.experimental import pallas as pl
from jax.experimental.pallas import tpu as pltpu

EMBED_DIM = 512      # MultiheadAttention(embed_dim=512, num_heads=1)
LANE = 128
SUBLANE = 8
K_ALIGN = 256        # MXU-native contraction tile (multiple of 128, ok on v5e too)


def _round_up(x, m):
    return (x + m - 1) // m * m


# -----------------------------------------------------------------------------
# Fused kernel: encoder -> (optional) MHA residual refinement -> cosine logits
# One grid step = E_blk episodes.
# -----------------------------------------------------------------------------
def _fused_kernel(xs_ref, xq_ref, encw_ref, encb_ref, wqkv_ref, bqkv_ref,
                  wo_ref, bo_ref, avg_ref, kmask_ref,
                  logits_ref, fshot_ref, fquery_ref,
                  *, e_blk, ns_pad, nq_pad, apply_mha, temp):
    d = EMBED_DIM
    rows_s = e_blk * ns_pad
    rows_q = e_blk * nq_pad
    kp = xs_ref.shape[-1]

    xs = xs_ref[...].reshape(rows_s, kp)          # bf16 (E*Ns_p, Kp)
    xq = xq_ref[...].reshape(rows_q, kp)          # bf16 (E*Nq_p, Kp)

    # --- encoder: ONE fused (rows_s+rows_q, Kp) @ (Kp, 512) bf16 MXU pass ----
    x_all = jnp.concatenate([xs, xq], axis=0)
    f_all = jnp.dot(x_all, encw_ref[...],
                    preferred_element_type=jnp.float32) + encb_ref[...]
    f_shot = f_all[:rows_s]                       # (rows_s, D) f32
    f_query = f_all[rows_s:]                      # (rows_q, D) f32

    # --- single-head MHA refinement of queries + residual --------------------
    # Matches nn.MultiheadAttention(embed_dim=512, num_heads=1, dropout=0).
    # Weight contract: wqkv = in_proj_weight.T (columns [Wq|Wk|Wv]),
    #                  wo   = out_proj.weight.T.
    if apply_mha:
        w_q = wqkv_ref[:, :d]                     # (D, D)   bf16
        w_kv = wqkv_ref[:, d:]                    # (D, 2D)  bf16 (fused K|V)
        b_q = bqkv_ref[:, :d]                     # (1, D)   f32
        b_kv = bqkv_ref[:, d:]                    # (1, 2D)  f32

        # projections flattened over episodes -> full-width MXU matmuls
        q = jnp.dot(f_query.astype(jnp.bfloat16), w_q,
                    preferred_element_type=jnp.float32) + b_q       # (rows_q, D)
        kv = jnp.dot(f_shot.astype(jnp.bfloat16), w_kv,
                     preferred_element_type=jnp.float32) + b_kv     # (rows_s, 2D)

        qb = q.reshape(e_blk, nq_pad, d)
        kb = kv[:, :d].reshape(e_blk, ns_pad, d)
        vb = kv[:, d:].reshape(e_blk, ns_pad, d)

        scale = jnp.float32(1.0 / (float(d) ** 0.5))
        s = jnp.einsum('eqd,ekd->eqk', qb, kb,
                       preferred_element_type=jnp.float32) * scale  # (E,Nq,Ns)
        s = s + kmask_ref[...][None]        # -inf-like bias on padded shot cols
        m = jnp.max(s, axis=-1, keepdims=True)
        p = jnp.exp(s - m)
        p = p / jnp.sum(p, axis=-1, keepdims=True)   # exact softmax (f32)

        attn = jnp.einsum('eqk,ekd->eqd', p, vb,
                          preferred_element_type=jnp.float32)       # f32
        out = jnp.dot(attn.reshape(rows_q, d), wo_ref[...].astype(jnp.float32),
                      preferred_element_type=jnp.float32) + bo_ref[...]
        f_query = f_query + out

    # --- prototypes via precomputed averaging operand (resident input) -------
    nw_pad = avg_ref.shape[0]
    f_shot_b = f_shot.reshape(e_blk, ns_pad, d)
    f_query_b = f_query.reshape(e_blk, nq_pad, d)

    avg = jnp.broadcast_to(avg_ref[...], (e_blk, nw_pad, ns_pad))
    proto = jnp.einsum('ews,esd->ewd', avg, f_shot_b,
                       preferred_element_type=jnp.float32)          # (E, Wp, D)

    # --- cosine logits (lane-dense: Wp = 128) --------------------------------
    def l2norm(x):   # F.normalize(..., eps=1e-12) semantics, via EUP rsqrt
        ss = jnp.sum(x * x, axis=-1, keepdims=True)
        return x * lax.rsqrt(jnp.maximum(ss, jnp.float32(1e-24)))

    pn = l2norm(proto)
    qn = l2norm(f_query_b)
    logits = jnp.einsum('eqd,ewd->eqw', qn, pn,
                        preferred_element_type=jnp.float32) * jnp.float32(temp)

    logits_ref[...] = logits
    fshot_ref[...] = f_shot_b
    fquery_ref[...] = f_query_b


# -----------------------------------------------------------------------------
# Forward pass (method='cos', temp=10.0)
# -----------------------------------------------------------------------------
def meta_baseline_forward(x_shot, x_query, params, temp=10.0):
    shot_shape = x_shot.shape[:-3]      # (ep, n_way, n_shot)
    query_shape = x_query.shape[:-3]    # (ep, n_query)
    ep, n_way, n_shot = shot_shape
    n_query = query_shape[1]
    k_in = x_shot.shape[-3] * x_shot.shape[-2] * x_shot.shape[-1]
    ns = n_way * n_shot
    d = EMBED_DIM

    # padded / aligned geometry
    kp = _round_up(k_in, K_ALIGN)            # MXU-native contraction dim
    ns_pad = _round_up(ns, SUBLANE)          # sublane aligned shot rows
    nq_pad = _round_up(n_query, SUBLANE)     # sublane aligned query rows
    nw_pad = LANE                            # lane-dense logits store (128)

    # module only applies the MHA refinement when x_shot.size(0) is 1 or 4
    # (kept literally from the reference, even though it gates on batch size)
    apply_mha = ep in (1, 4)

    # --- episode blocking -----------------------------------------------------
    per_ep_bytes = (
        2 * (ns_pad + nq_pad) * kp * 2                         # 2x-buffered bf16 image blocks
        + 2 * (nq_pad * nw_pad + (ns_pad + nq_pad) * d) * 4    # 2x-buffered f32 outputs
        + 6 * (ns_pad + nq_pad) * d * 4)                       # f32 activation headroom
    e_cap = max(1, (24 << 20) // per_ep_bytes)                 # keep tiles v7x-safe
    # batch episodes per step, but keep >=2 grid steps when ep >= 2 so both
    # v7x TensorCores get work
    e_blk = 1 if ep == 1 else max(1, min(-(-ep // 2), e_cap))
    num_blocks = -(-ep // e_blk)
    ep_pad = num_blocks * e_blk

    # --- wrapper-side padding / layout plumbing (bf16 image DMA) --------------
    xs = x_shot.reshape(ep, ns, k_in).astype(jnp.bfloat16)
    xq = x_query.reshape(ep, n_query, k_in).astype(jnp.bfloat16)
    xs = jnp.pad(xs, ((0, ep_pad - ep), (0, ns_pad - ns), (0, kp - k_in)))
    xq = jnp.pad(xq, ((0, ep_pad - ep), (0, nq_pad - n_query), (0, kp - k_in)))

    enc_w = params["enc_w"]
    if enc_w.shape[0] != kp:
        enc_w = jnp.pad(enc_w, ((0, kp - enc_w.shape[0]), (0, 0)))

    # precomputed resident operands: class-averaging matrix + key padding mask
    row = jnp.arange(nw_pad, dtype=jnp.int32)[:, None]
    col = jnp.arange(ns_pad, dtype=jnp.int32)[None, :]
    avg = jnp.where((row < n_way) & (col < ns) & (col // n_shot == row),
                    jnp.float32(1.0 / n_shot), jnp.float32(0.0))
    kmask = jnp.where(jnp.arange(ns_pad, dtype=jnp.int32)[None, :] < ns,
                      jnp.float32(0.0), jnp.float32(-1e30))

    # --- cost estimate / VMEM budget ------------------------------------------
    rows = ep_pad * (ns_pad + nq_pad)
    flops = 2 * rows * kp * d
    if apply_mha:
        flops += 2 * ep_pad * nq_pad * d * d            # q proj
        flops += 2 * ep_pad * ns_pad * d * (2 * d)      # kv proj
        flops += 2 * ep_pad * nq_pad * ns_pad * d * 2   # scores + PV
        flops += 2 * ep_pad * nq_pad * d * d            # out proj
    flops += 2 * ep_pad * nw_pad * ns_pad * d           # prototypes
    flops += 2 * ep_pad * nq_pad * nw_pad * d           # cosine logits
    transc = ep_pad * (nq_pad * ns_pad + nq_pad + nw_pad)
    weight_bytes = (kp * d * 2 + d * 4 + d * 3 * d * 2 + 3 * d * 4
                    + d * d * 2 + d * 4 + nw_pad * ns_pad * 4 + ns_pad * 4)
    io_bytes = (ep_pad * (ns_pad + nq_pad) * kp * 2
                + ep_pad * (nq_pad * nw_pad + (ns_pad + nq_pad) * d) * 4)
    cost = pl.CostEstimate(flops=flops, transcendentals=transc,
                           bytes_accessed=weight_bytes + io_bytes)

    kernel = functools.partial(
        _fused_kernel, e_blk=e_blk, ns_pad=ns_pad, nq_pad=nq_pad,
        apply_mha=apply_mha, temp=float(temp))

    def run(single_buffer_weights):
        res_kw = ({"pipeline_mode": pl.Buffered(1)}
                  if single_buffer_weights else {})

        def resident(shape):   # constant index_map -> stays in VMEM across steps
            return pl.BlockSpec(shape, lambda e: (0, 0), **res_kw)

        def per_blk(r, c):     # per-episode-block activations / outputs
            return pl.BlockSpec((e_blk, r, c), lambda e: (e, 0, 0))

        vmem_need = (weight_bytes * (1 if single_buffer_weights else 2)
                     + per_ep_bytes * e_blk)
        vmem_limit = int(min(48 << 20, max(vmem_need + (4 << 20), 16 << 20)))

        return pl.pallas_call(
            kernel,
            out_shape=(
                jax.ShapeDtypeStruct((ep_pad, nq_pad, nw_pad), jnp.float32),
                jax.ShapeDtypeStruct((ep_pad, ns_pad, d), jnp.float32),
                jax.ShapeDtypeStruct((ep_pad, nq_pad, d), jnp.float32),
            ),
            grid=(num_blocks,),
            in_specs=[
                per_blk(ns_pad, kp),          # shot images  (bf16, padded)
                per_blk(nq_pad, kp),          # query images (bf16, padded)
                resident((kp, d)),            # enc_w  (bf16)
                resident((1, d)),             # enc_b  (f32)
                resident((d, 3 * d)),         # w_qkv  (bf16)  columns [Wq|Wk|Wv]
                resident((1, 3 * d)),         # b_qkv  (f32)
                resident((d, d)),             # wo     (bf16)
                resident((1, d)),             # bo     (f32)
                resident((nw_pad, ns_pad)),   # class-averaging operand (f32)
                resident((1, ns_pad)),        # key padding mask bias (f32)
            ],
            out_specs=[
                per_blk(nq_pad, nw_pad),      # logits (lane-dense, 128 wide)
                per_blk(ns_pad, d),           # xx_shot features
                per_blk(nq_pad, d),           # xx_query features (post-MHA)
            ],
            compiler_params=pltpu.CompilerParams(
                dimension_semantics=("parallel",),   # episode blocks across TCs
                vmem_limit_bytes=vmem_limit),
            cost_estimate=cost,
        )(xs, xq, enc_w, params["enc_b"], params["w_qkv"], params["b_qkv"],
          params["wo"], params["bo"], avg, kmask)

    try:
        logits, f_shot, f_query = run(single_buffer_weights=True)
    except Exception:
        # TODO(synk): pl.Buffered(1) single-buffering of resident weights is not
        # supported on this jax version; fall back to default double buffering.
        logits, f_shot, f_query = run(single_buffer_weights=False)

    logits = logits[:ep, :n_query, :n_way]
    xx_shot = f_shot[:ep, :ns].reshape(shot_shape + (d,))
    xx_query = f_query[:ep, :n_query].reshape(query_shape + (d,))
    return logits, xx_shot, xx_query


# -----------------------------------------------------------------------------
# Deterministic parameter init + demo
# -----------------------------------------------------------------------------
def init_params(key, in_dim, d=EMBED_DIM):
    ks = jax.random.split(key, 3)
    scale_enc = 1.0 / jnp.sqrt(jnp.float32(in_dim))
    scale_d = 1.0 / jnp.sqrt(jnp.float32(d))
    return {
        # weights stored in bf16 (halves weight DMA bytes); biases + all
        # accumulation / softmax / normalization stay in f32
        "enc_w": (jax.random.normal(ks[0], (in_dim, d), jnp.float32)
                  * scale_enc).astype(jnp.bfloat16),
        "enc_b": jnp.zeros((1, d), jnp.float32),
        # MHA in-proj stored transposed + fused: in_proj_weight.T = [Wq|Wk|Wv]
        "w_qkv": (jax.random.normal(ks[1], (d, 3 * d), jnp.float32)
                  * scale_d).astype(jnp.bfloat16),
        "b_qkv": jnp.zeros((1, 3 * d), jnp.float32),
        # out_proj.weight.T
        "wo": (jax.random.normal(ks[2], (d, d), jnp.float32)
               * scale_d).astype(jnp.bfloat16),
        "bo": jnp.zeros((1, d), jnp.float32),
    }


if __name__ == "__main__":
    key = jax.random.PRNGKey(0)
    k_shot, k_query, k_param = jax.random.split(key, 3)

    n_way, n_shot, n_query = 5, 2, 5
    C, H, W = 3, 8, 8
    params = init_params(k_param, in_dim=C * H * W)

    # ep=1 and ep=4 exercise both MHA-refinement branches of the module;
    # ep=3 exercises the no-MHA path and episode-block padding.
    for ep in (1, 3, 4):
        x_shot = jax.random.normal(
            k_shot, (ep, n_way, n_shot, C, H, W), jnp.float32)
        x_query = jax.random.normal(
            k_query, (ep, n_query, C, H, W), jnp.float32)

        logits, xx_shot, xx_query = meta_baseline_forward(
            x_shot, x_query, params, temp=10.0)
        jax.block_until_ready((logits, xx_shot, xx_query))

        assert logits.shape == (ep, n_query, n_way)
        assert xx_shot.shape == (ep, n_way, n_shot, EMBED_DIM)
        assert xx_query.shape == (ep, n_query, EMBED_DIM)
        assert bool(jnp.all(jnp.isfinite(logits)))

    print("KERNEL_OK")
</pallas_src>

<mosaic_0001>
module attributes {stable_mosaic.version = 11 : i64} {
  func.func @_fused_kernel(%arg0: i32, %arg1: memref<1x16x256xbf16, #tpu.memory_space<vmem>>, %arg2: memref<1x8x256xbf16, #tpu.memory_space<vmem>>, %arg3: memref<256x512xbf16, #tpu.memory_space<vmem>>, %arg4: memref<1x512xf32, #tpu.memory_space<vmem>>, %arg5: memref<512x1536xbf16, #tpu.memory_space<vmem>>, %arg6: memref<1x1536xf32, #tpu.memory_space<vmem>>, %arg7: memref<512x512xbf16, #tpu.memory_space<vmem>>, %arg8: memref<1x512xf32, #tpu.memory_space<vmem>>, %arg9: memref<128x16xf32, #tpu.memory_space<vmem>>, %arg10: memref<1x16xf32, #tpu.memory_space<vmem>>, %arg11: memref<1x8x128xf32, #tpu.memory_space<vmem>>, %arg12: memref<1x16x512xf32, #tpu.memory_space<vmem>>, %arg13: memref<1x8x512xf32, #tpu.memory_space<vmem>>) attributes {dimension_semantics = [#tpu.dimension_semantics<parallel>], iteration_bounds = array<i64: 1>, scalar_prefetch = 0 : i64, scratch_operands = 0 : i64, tpu.core_type = #tpu.core_type<tc>, window_params = [{transform_indices = @transform_0, window_bounds = array<i64: 1, 16, 256>}, {transform_indices = @transform_1, window_bounds = array<i64: 1, 8, 256>}, {pipeline_mode = #tpu.pipeline_mode<synchronous>, transform_indices = @transform_2, window_bounds = array<i64: 256, 512>}, {pipeline_mode = #tpu.pipeline_mode<synchronous>, transform_indices = @transform_3, window_bounds = array<i64: 1, 512>}, {pipeline_mode = #tpu.pipeline_mode<synchronous>, transform_indices = @transform_4, window_bounds = array<i64: 512, 1536>}, {pipeline_mode = #tpu.pipeline_mode<synchronous>, transform_indices = @transform_5, window_bounds = array<i64: 1, 1536>}, {pipeline_mode = #tpu.pipeline_mode<synchronous>, transform_indices = @transform_6, window_bounds = array<i64: 512, 512>}, {pipeline_mode = #tpu.pipeline_mode<synchronous>, transform_indices = @transform_7, window_bounds = array<i64: 1, 512>}, {pipeline_mode = #tpu.pipeline_mode<synchronous>, transform_indices = @transform_8, window_bounds = array<i64: 128, 16>}, {pipeline_mode = #tpu.pipeline_mode<synchronous>, transform_indices = @transform_9, window_bounds = array<i64: 1, 16>}, {transform_indices = @transform_10, window_bounds = array<i64: 1, 8, 128>}, {transform_indices = @transform_11, window_bounds = array<i64: 1, 16, 512>}, {transform_indices = @transform_12, window_bounds = array<i64: 1, 8, 512>}]} {
    %c0 = arith.constant 0 : index
    %c0_0 = arith.constant 0 : index
    %c0_1 = arith.constant 0 : index
    %0 = vector.load %arg1[%c0, %c0_0, %c0_1] : memref<1x16x256xbf16, #tpu.memory_space<vmem>>, vector<1x16x256xbf16>
    %1 = vector.shape_cast %0 : vector<1x16x256xbf16> to vector<16x256xbf16>
    %c0_2 = arith.constant 0 : index
    %c0_3 = arith.constant 0 : index
    %c0_4 = arith.constant 0 : index
    %2 = vector.load %arg2[%c0_2, %c0_3, %c0_4] : memref<1x8x256xbf16, #tpu.memory_space<vmem>>, vector<1x8x256xbf16>
    %3 = vector.shape_cast %2 : vector<1x8x256xbf16> to vector<8x256xbf16>
    %4 = tpu.concatenate %1, %3 in 0 : vector<16x256xbf16>, vector<8x256xbf16> -> vector<24x256xbf16>
    %c0_5 = arith.constant 0 : index
    %c0_6 = arith.constant 0 : index
    %5 = vector.load %arg3[%c0_5, %c0_6] : memref<256x512xbf16, #tpu.memory_space<vmem>>, vector<256x512xbf16>
    %cst = arith.constant dense<0.000000e+00> : vector<24x512xf32>
    %6 = tpu.matmul %4, %5, %cst {dimension_numbers = #tpu.dot_dimension_numbers<[1], [0], [0], [1], [0, 0, 1, 1], [], []>} : vector<24x256xbf16>, vector<256x512xbf16>, vector<24x512xf32> -> vector<24x512xf32>
    %c0_7 = arith.constant 0 : index
    %c0_8 = arith.constant 0 : index
    %7 = vector.load %arg4[%c0_7, %c0_8] : memref<1x512xf32, #tpu.memory_space<vmem>>, vector<1x512xf32>
    %8 = vector.broadcast %7 : vector<1x512xf32> to vector<24x512xf32>
    %9 = arith.addf %6, %8 : vector<24x512xf32>
    %10 = vector.extract_strided_slice %9 {offsets = [0, 0], sizes = [16, 512], strides = [1, 1]} : vector<24x512xf32> to vector<16x512xf32>
    %11 = vector.extract_strided_slice %9 {offsets = [16, 0], sizes = [8, 512], strides = [1, 1]} : vector<24x512xf32> to vector<8x512xf32>
    %c0_9 = arith.constant 0 : index
    %c0_10 = arith.constant 0 : index
    %12 = vector.load %arg5[%c0_9, %c0_10] : memref<512x1536xbf16, #tpu.memory_space<vmem>>, vector<512x512xbf16>
    %c0_11 = arith.constant 0 : index
    %c512 = arith.constant 512 : index
    %13 = vector.load %arg5[%c0_11, %c512] : memref<512x1536xbf16, #tpu.memory_space<vmem>>, vector<512x1024xbf16>
    %c0_12 = arith.constant 0 : index
    %c0_13 = arith.constant 0 : index
    %14 = vector.load %arg6[%c0_12, %c0_13] : memref<1x1536xf32, #tpu.memory_space<vmem>>, vector<1x512xf32>
    %c0_14 = arith.constant 0 : index
    %c512_15 = arith.constant 512 : index
    %15 = vector.load %arg6[%c0_14, %c512_15] : memref<1x1536xf32, #tpu.memory_space<vmem>>, vector<1x1024xf32>
    %16 = arith.truncf %11 : vector<8x512xf32> to vector<8x512xbf16>
    %cst_16 = arith.constant dense<0.000000e+00> : vector<8x512xf32>
    %17 = tpu.matmul %16, %12, %cst_16 {dimension_numbers = #tpu.dot_dimension_numbers<[1], [0], [0], [1], [0, 0, 1, 1], [], []>} : vector<8x512xbf16>, vector<512x512xbf16>, vector<8x512xf32> -> vector<8x512xf32>
    %18 = vector.broadcast %14 : vector<1x512xf32> to vector<8x512xf32>
    %19 = arith.addf %17, %18 : vector<8x512xf32>
    %20 = arith.truncf %10 : vector<16x512xf32> to vector<16x512xbf16>
    %cst_17 = arith.constant dense<0.000000e+00> : vector<16x1024xf32>
    %21 = tpu.matmul %20, %13, %cst_17 {dimension_numbers = #tpu.dot_dimension_numbers<[1], [0], [0], [1], [0, 0, 1, 1], [], []>} : vector<16x512xbf16>, vector<512x1024xbf16>, vector<16x1024xf32> -> vector<16x1024xf32>
    %22 = vector.broadcast %15 : vector<1x1024xf32> to vector<16x1024xf32>
    %23 = arith.addf %21, %22 : vector<16x1024xf32>
    %24 = vector.shape_cast %19 : vector<8x512xf32> to vector<1x8x512xf32>
    %25 = vector.extract_strided_slice %23 {offsets = [0, 0], sizes = [16, 512], strides = [1, 1]} : vector<16x1024xf32> to vector<16x512xf32>
    %26 = vector.shape_cast %25 : vector<16x512xf32> to vector<1x16x512xf32>
    %27 = vector.extract_strided_slice %23 {offsets = [0, 512], sizes = [16, 512], strides = [1, 1]} : vector<16x1024xf32> to vector<16x512xf32>
    %28 = vector.shape_cast %27 : vector<16x512xf32> to vector<1x16x512xf32>
    "tpu.trace_start"() <{level = 10 : i32, message = "eqd,ekd->eqk"}> : () -> ()
    %cst_18 = arith.constant dense<0.000000e+00> : vector<1x8x16xf32>
    %29 = tpu.matmul %24, %26, %cst_18 {dimension_numbers = #tpu.dot_dimension_numbers<[2], [2], [1], [1], [0, 0, 0, 1, 1, 1], [0], [0]>} : vector<1x8x512xf32>, vector<1x16x512xf32>, vector<1x8x16xf32> -> vector<1x8x16xf32>
    "tpu.trace_stop"() : () -> ()
    %cst_19 = arith.constant 0.0441941731 : f32
    %30 = vector.broadcast %cst_19 : f32 to vector<1x8x16xf32>
    %31 = arith.mulf %29, %30 : vector<1x8x16xf32>
    %c0_20 = arith.constant 0 : index
    %c0_21 = arith.constant 0 : index
    %32 = vector.load %arg10[%c0_20, %c0_21] : memref<1x16xf32, #tpu.memory_space<vmem>>, vector<1x16xf32>
    %33 = vector.shape_cast %32 : vector<1x16xf32> to vector<1x1x16xf32>
    %34 = vector.broadcast %33 : vector<1x1x16xf32> to vector<1x8x16xf32>
    %35 = arith.addf %31, %34 : vector<1x8x16xf32>
    %cst_22 = arith.constant dense<0xFF800000> : vector<1x8xf32>
    %36 = vector.multi_reduction <maximumf>, %35, %cst_22 [2] : vector<1x8x16xf32> to vector<1x8xf32>
    %37 = vector.shape_cast %36 : vector<1x8xf32> to vector<1x8x1xf32>
    %38 = vector.broadcast %37 : vector<1x8x1xf32> to vector<1x8x16xf32>
    %39 = arith.subf %35, %38 : vector<1x8x16xf32>
    %40 = math.exp %39 : vector<1x8x16xf32>
    %cst_23 = arith.constant dense<0.000000e+00> : vector<1x8xf32>
    %41 = vector.multi_reduction <add>, %40, %cst_23 [2] : vector<1x8x16xf32> to vector<1x8xf32>
    %42 = vector.shape_cast %41 : vector<1x8xf32> to vector<1x8x1xf32>
    %43 = vector.broadcast %42 : vector<1x8x1xf32> to vector<1x8x16xf32>
    %44 = arith.divf %40, %43 : vector<1x8x16xf32>
    "tpu.trace_start"() <{level = 10 : i32, message = "eqk,ekd->eqd"}> : () -> ()
    %cst_24 = arith.constant dense<0.000000e+00> : vector<1x8x512xf32>
    %45 = tpu.matmul %44, %28, %cst_24 {dimension_numbers = #tpu.dot_dimension_numbers<[2], [1], [1], [2], [0, 0, 0, 1, 1, 2], [0], [0]>} : vector<1x8x16xf32>, vector<1x16x512xf32>, vector<1x8x512xf32> -> vector<1x8x512xf32>
    "tpu.trace_stop"() : () -> ()
    %46 = vector.shape_cast %45 : vector<1x8x512xf32> to vector<8x512xf32>
    %c0_25 = arith.constant 0 : index
    %c0_26 = arith.constant 0 : index
    %47 = vector.load %arg7[%c0_25, %c0_26] : memref<512x512xbf16, #tpu.memory_space<vmem>>, vector<512x512xbf16>
    %48 = arith.extf %47 : vector<512x512xbf16> to vector<512x512xf32>
    %cst_27 = arith.constant dense<0.000000e+00> : vector<8x512xf32>
    %49 = tpu.matmul %46, %48, %cst_27 {dimension_numbers = #tpu.dot_dimension_numbers<[1], [0], [0], [1], [0, 0, 1, 1], [], []>} : vector<8x512xf32>, vector<512x512xf32>, vector<8x512xf32> -> vector<8x512xf32>
    %c0_28 = arith.constant 0 : index
    %c0_29 = arith.constant 0 : index
    %50 = vector.load %arg8[%c0_28, %c0_29] : memref<1x512xf32, #tpu.memory_space<vmem>>, vector<1x512xf32>
    %51 = vector.broadcast %50 : vector<1x512xf32> to vector<8x512xf32>
    %52 = arith.addf %49, %51 : vector<8x512xf32>
    %53 = arith.addf %11, %52 : vector<8x512xf32>
    %54 = vector.shape_cast %10 : vector<16x512xf32> to vector<1x16x512xf32>
    %55 = vector.shape_cast %53 : vector<8x512xf32> to vector<1x8x512xf32>
    %c0_30 = arith.constant 0 : index
    %c0_31 = arith.constant 0 : index
    %56 = vector.load %arg9[%c0_30, %c0_31] : memref<128x16xf32, #tpu.memory_space<vmem>>, vector<128x16xf32>
    %57 = vector.shape_cast %56 : vector<128x16xf32> to vector<1x128x16xf32>
    "tpu.trace_start"() <{level = 10 : i32, message = "ews,esd->ewd"}> : () -> ()
    %cst_32 = arith.constant dense<0.000000e+00> : vector<1x128x512xf32>
    %58 = tpu.matmul %57, %54, %cst_32 {dimension_numbers = #tpu.dot_dimension_numbers<[2], [1], [1], [2], [0, 0, 0, 1, 1, 2], [0], [0]>} : vector<1x128x16xf32>, vector<1x16x512xf32>, vector<1x128x512xf32> -> vector<1x128x512xf32>
    "tpu.trace_stop"() : () -> ()
    %59 = arith.mulf %58, %58 : vector<1x128x512xf32>
    %cst_33 = arith.constant dense<0.000000e+00> : vector<1x128xf32>
    %60 = vector.multi_reduction <add>, %59, %cst_33 [2] : vector<1x128x512xf32> to vector<1x128xf32>
    %61 = vector.shape_cast %60 : vector<1x128xf32> to vector<1x128x1xf32>
    %cst_34 = arith.constant 1.000000e-24 : f32
    %62 = vector.broadcast %cst_34 : f32 to vector<1x128x1xf32>
    %63 = arith.maximumf %61, %62 : vector<1x128x1xf32>
    %64 = math.rsqrt %63 : vector<1x128x1xf32>
    %65 = vector.broadcast %64 : vector<1x128x1xf32> to vector<1x128x512xf32>
    %66 = arith.mulf %58, %65 : vector<1x128x512xf32>
    %67 = arith.mulf %55, %55 : vector<1x8x512xf32>
    %cst_35 = arith.constant dense<0.000000e+00> : vector<1x8xf32>
    %68 = vector.multi_reduction <add>, %67, %cst_35 [2] : vector<1x8x512xf32> to vector<1x8xf32>
    %69 = vector.shape_cast %68 : vector<1x8xf32> to vector<1x8x1xf32>
    %cst_36 = arith.constant 1.000000e-24 : f32
    %70 = vector.broadcast %cst_36 : f32 to vector<1x8x1xf32>
    %71 = arith.maximumf %69, %70 : vector<1x8x1xf32>
    %72 = math.rsqrt %71 : vector<1x8x1xf32>
    %73 = vector.broadcast %72 : vector<1x8x1xf32> to vector<1x8x512xf32>
    %74 = arith.mulf %55, %73 : vector<1x8x512xf32>
    "tpu.trace_start"() <{level = 10 : i32, message = "eqd,ewd->eqw"}> : () -> ()
    %cst_37 = arith.constant dense<0.000000e+00> : vector<1x8x128xf32>
    %75 = tpu.matmul %74, %66, %cst_37 {dimension_numbers = #tpu.dot_dimension_numbers<[2], [2], [1], [1], [0, 0, 0, 1, 1, 1], [0], [0]>} : vector<1x8x512xf32>, vector<1x128x512xf32>, vector<1x8x128xf32> -> vector<1x8x128xf32>
    "tpu.trace_stop"() : () -> ()
    %cst_38 = arith.constant 1.000000e+01 : f32
    %76 = vector.broadcast %cst_38 : f32 to vector<1x8x128xf32>
    %77 = arith.mulf %75, %76 : vector<1x8x128xf32>
    %c0_39 = arith.constant 0 : index
    %c0_40 = arith.constant 0 : index
    %c0_41 = arith.constant 0 : index
    %78 = vector.load %arg11[%c0_39, %c0_40, %c0_41] : memref<1x8x128xf32, #tpu.memory_space<vmem>>, vector<1x8x128xf32>
    tpu.vector_store %arg11[%c0_39, %c0_40, %c0_41], %77 {strides = array<i32>} : memref<1x8x128xf32, #tpu.memory_space<vmem>>, vector<1x8x128xf32>,
    %c0_42 = arith.constant 0 : index
    %c0_43 = arith.constant 0 : index
    %c0_44 = arith.constant 0 : index
    %79 = vector.load %arg12[%c0_42, %c0_43, %c0_44] : memref<1x16x512xf32, #tpu.memory_space<vmem>>, vector<1x16x512xf32>
    tpu.vector_store %arg12[%c0_42, %c0_43, %c0_44], %54 {strides = array<i32>} : memref<1x16x512xf32, #tpu.memory_space<vmem>>, vector<1x16x512xf32>,
    %c0_45 = arith.constant 0 : index
    %c0_46 = arith.constant 0 : index
    %c0_47 = arith.constant 0 : index
    %80 = vector.load %arg13[%c0_45, %c0_46, %c0_47] : memref<1x8x512xf32, #tpu.memory_space<vmem>>, vector<1x8x512xf32>
    tpu.vector_store %arg13[%c0_45, %c0_46, %c0_47], %55 {strides = array<i32>} : memref<1x8x512xf32, #tpu.memory_space<vmem>>, vector<1x8x512xf32>,
    return
  }
  func.func @transform_0(%arg0: i32) -> (i32, i32, i32) {
    %c0_i32 = arith.constant 0 : i32
    %c0_i32_0 = arith.constant 0 : i32
    %c0_i32_1 = arith.constant 0 : i32
    return %arg0, %c0_i32, %c0_i32_0 : i32, i32, i32
  }
  func.func @transform_1(%arg0: i32) -> (i32, i32, i32) {
    %c0_i32 = arith.constant 0 : i32
    %c0_i32_0 = arith.constant 0 : i32
    %c0_i32_1 = arith.constant 0 : i32
    return %arg0, %c0_i32, %c0_i32_0 : i32, i32, i32
  }
  func.func @transform_2(%arg0: i32) -> (i32, i32) {
    %c0_i32 = arith.constant 0 : i32
    %c0_i32_0 = arith.constant 0 : i32
    %c0_i32_1 = arith.constant 0 : i32
    return %c0_i32, %c0_i32_0 : i32, i32
  }
  func.func @transform_3(%arg0: i32) -> (i32, i32) {
    %c0_i32 = arith.constant 0 : i32
    %c0_i32_0 = arith.constant 0 : i32
    %c0_i32_1 = arith.constant 0 : i32
    return %c0_i32, %c0_i32_0 : i32, i32
  }
  func.func @transform_4(%arg0: i32) -> (i32, i32) {
    %c0_i32 = arith.constant 0 : i32
    %c0_i32_0 = arith.constant 0 : i32
    %c0_i32_1 = arith.constant 0 : i32
    return %c0_i32, %c0_i32_0 : i32, i32
  }
  func.func @transform_5(%arg0: i32) -> (i32, i32) {
    %c0_i32 = arith.constant 0 : i32
    %c0_i32_0 = arith.constant 0 : i32
    %c0_i32_1 = arith.constant 0 : i32
    return %c0_i32, %c0_i32_0 : i32, i32
  }
  func.func @transform_6(%arg0: i32) -> (i32, i32) {
    %c0_i32 = arith.constant 0 : i32
    %c0_i32_0 = arith.constant 0 : i32
    %c0_i32_1 = arith.constant 0 : i32
    return %c0_i32, %c0_i32_0 : i32, i32
  }
  func.func @transform_7(%arg0: i32) -> (i32, i32) {
    %c0_i32 = arith.constant 0 : i32
    %c0_i32_0 = arith.constant 0 : i32
    %c0_i32_1 = arith.constant 0 : i32
    return %c0_i32, %c0_i32_0 : i32, i32
  }
  func.func @transform_8(%arg0: i32) -> (i32, i32) {
    %c0_i32 = arith.constant 0 : i32
    %c0_i32_0 = arith.constant 0 : i32
    %c0_i32_1 = arith.constant 0 : i32
    return %c0_i32, %c0_i32_0 : i32, i32
  }
  func.func @transform_9(%arg0: i32) -> (i32, i32) {
    %c0_i32 = arith.constant 0 : i32
    %c0_i32_0 = arith.constant 0 : i32
    %c0_i32_1 = arith.constant 0 : i32
    return %c0_i32, %c0_i32_0 : i32, i32
  }
  func.func @transform_10(%arg0: i32) -> (i32, i32, i32) {
    %c0_i32 = arith.constant 0 : i32
    %c0_i32_0 = arith.constant 0 : i32
    %c0_i32_1 = arith.constant 0 : i32
    return %arg0, %c0_i32, %c0_i32_0 : i32, i32, i32
  }
  func.func @transform_11(%arg0: i32) -> (i32, i32, i32) {
    %c0_i32 = arith.constant 0 : i32
    %c0_i32_0 = arith.constant 0 : i32
    %c0_i32_1 = arith.constant 0 : i32
    return %arg0, %c0_i32, %c0_i32_0 : i32, i32, i32
  }
  func.func @transform_12(%arg0: i32) -> (i32, i32, i32) {
    %c0_i32 = arith.constant 0 : i32
    %c0_i32_0 = arith.constant 0 : i32
    %c0_i32_1 = arith.constant 0 : i32
    return %arg0, %c0_i32, %c0_i32_0 : i32, i32, i32
  }
}

module attributes {stable_mosaic.version = 11 : i64} {
  func.func @_fused_kernel(%arg0: i32, %arg1: memref<1x16x256xbf16, #tpu.memory_space<vmem>>, %arg2: memref<1x8x256xbf16, #tpu.memory_space<vmem>>, %arg3: memref<256x512xbf16, #tpu.memory_space<vmem>>, %arg4: memref<1x512xf32, #tpu.memory_space<vmem>>, %arg5: memref<512x1536xbf16, #tpu.memory_space<vmem>>, %arg6: memref<1x1536xf32, #tpu.memory_space<vmem>>, %arg7: memref<512x512xbf16, #tpu.memory_space<vmem>>, %arg8: memref<1x512xf32, #tpu.memory_space<vmem>>, %arg9: memref<128x16xf32, #tpu.memory_space<vmem>>, %arg10: memref<1x16xf32, #tpu.memory_space<vmem>>, %arg11: memref<1x8x128xf32, #tpu.memory_space<vmem>>, %arg12: memref<1x16x512xf32, #tpu.memory_space<vmem>>, %arg13: memref<1x8x512xf32, #tpu.memory_space<vmem>>) attributes {dimension_semantics = [#tpu.dimension_semantics<parallel>], iteration_bounds = array<i64: 1>, scalar_prefetch = 0 : i64, scratch_operands = 0 : i64, tpu.core_type = #tpu.core_type<tc>, window_params = [{transform_indices = @transform_0, window_bounds = array<i64: 1, 16, 256>}, {transform_indices = @transform_1, window_bounds = array<i64: 1, 8, 256>}, {pipeline_mode = #tpu.pipeline_mode<synchronous>, transform_indices = @transform_2, window_bounds = array<i64: 256, 512>}, {pipeline_mode = #tpu.pipeline_mode<synchronous>, transform_indices = @transform_3, window_bounds = array<i64: 1, 512>}, {pipeline_mode = #tpu.pipeline_mode<synchronous>, transform_indices = @transform_4, window_bounds = array<i64: 512, 1536>}, {pipeline_mode = #tpu.pipeline_mode<synchronous>, transform_indices = @transform_5, window_bounds = array<i64: 1, 1536>}, {pipeline_mode = #tpu.pipeline_mode<synchronous>, transform_indices = @transform_6, window_bounds = array<i64: 512, 512>}, {pipeline_mode = #tpu.pipeline_mode<synchronous>, transform_indices = @transform_7, window_bounds = array<i64: 1, 512>}, {pipeline_mode = #tpu.pipeline_mode<synchronous>, transform_indices = @transform_8, window_bounds = array<i64: 128, 16>}, {pipeline_mode = #tpu.pipeline_mode<synchronous>, transform_indices = @transform_9, window_bounds = array<i64: 1, 16>}, {transform_indices = @transform_10, window_bounds = array<i64: 1, 8, 128>}, {transform_indices = @transform_11, window_bounds = array<i64: 1, 16, 512>}, {transform_indices = @transform_12, window_bounds = array<i64: 1, 8, 512>}]} {
    %c0 = arith.constant 0 : index
    %c0_0 = arith.constant 0 : index
    %c0_1 = arith.constant 0 : index
    %0 = vector.load %arg1[%c0, %c0_0, %c0_1] : memref<1x16x256xbf16, #tpu.memory_space<vmem>>, vector<1x16x256xbf16>
    %1 = vector.shape_cast %0 : vector<1x16x256xbf16> to vector<16x256xbf16>
    %c0_2 = arith.constant 0 : index
    %c0_3 = arith.constant 0 : index
    %c0_4 = arith.constant 0 : index
    %2 = vector.load %arg2[%c0_2, %c0_3, %c0_4] : memref<1x8x256xbf16, #tpu.memory_space<vmem>>, vector<1x8x256xbf16>
    %3 = vector.shape_cast %2 : vector<1x8x256xbf16> to vector<8x256xbf16>
    %4 = tpu.concatenate %1, %3 in 0 : vector<16x256xbf16>, vector<8x256xbf16> -> vector<24x256xbf16>
    %c0_5 = arith.constant 0 : index
    %c0_6 = arith.constant 0 : index
    %5 = vector.load %arg3[%c0_5, %c0_6] : memref<256x512xbf16, #tpu.memory_space<vmem>>, vector<256x512xbf16>
    %cst = arith.constant dense<0.000000e+00> : vector<24x512xf32>
    %6 = tpu.matmul %4, %5, %cst {dimension_numbers = #tpu.dot_dimension_numbers<[1], [0], [0], [1], [0, 0, 1, 1], [], []>} : vector<24x256xbf16>, vector<256x512xbf16>, vector<24x512xf32> -> vector<24x512xf32>
    %c0_7 = arith.constant 0 : index
    %c0_8 = arith.constant 0 : index
    %7 = vector.load %arg4[%c0_7, %c0_8] : memref<1x512xf32, #tpu.memory_space<vmem>>, vector<1x512xf32>
    %8 = vector.broadcast %7 : vector<1x512xf32> to vector<24x512xf32>
    %9 = arith.addf %6, %8 : vector<24x512xf32>
    %10 = vector.extract_strided_slice %9 {offsets = [0, 0], sizes = [16, 512], strides = [1, 1]} : vector<24x512xf32> to vector<16x512xf32>
    %11 = vector.extract_strided_slice %9 {offsets = [16, 0], sizes = [8, 512], strides = [1, 1]} : vector<24x512xf32> to vector<8x512xf32>
    %c0_9 = arith.constant 0 : index
    %c0_10 = arith.constant 0 : index
    %12 = vector.load %arg5[%c0_9, %c0_10] : memref<512x1536xbf16, #tpu.memory_space<vmem>>, vector<512x512xbf16>
    %c0_11 = arith.constant 0 : index
    %c512 = arith.constant 512 : index
    %13 = vector.load %arg5[%c0_11, %c512] : memref<512x1536xbf16, #tpu.memory_space<vmem>>, vector<512x1024xbf16>
    %c0_12 = arith.constant 0 : index
    %c0_13 = arith.constant 0 : index
    %14 = vector.load %arg6[%c0_12, %c0_13] : memref<1x1536xf32, #tpu.memory_space<vmem>>, vector<1x512xf32>
    %c0_14 = arith.constant 0 : index
    %c512_15 = arith.constant 512 : index
    %15 = vector.load %arg6[%c0_14, %c512_15] : memref<1x1536xf32, #tpu.memory_space<vmem>>, vector<1x1024xf32>
    %16 = arith.truncf %11 : vector<8x512xf32> to vector<8x512xbf16>
    %cst_16 = arith.constant dense<0.000000e+00> : vector<8x512xf32>
    %17 = tpu.matmul %16, %12, %cst_16 {dimension_numbers = #tpu.dot_dimension_numbers<[1], [0], [0], [1], [0, 0, 1, 1], [], []>} : vector<8x512xbf16>, vector<512x512xbf16>, vector<8x512xf32> -> vector<8x512xf32>
    %18 = vector.broadcast %14 : vector<1x512xf32> to vector<8x512xf32>
    %19 = arith.addf %17, %18 : vector<8x512xf32>
    %20 = arith.truncf %10 : vector<16x512xf32> to vector<16x512xbf16>
    %cst_17 = arith.constant dense<0.000000e+00> : vector<16x1024xf32>
    %21 = tpu.matmul %20, %13, %cst_17 {dimension_numbers = #tpu.dot_dimension_numbers<[1], [0], [0], [1], [0, 0, 1, 1], [], []>} : vector<16x512xbf16>, vector<512x1024xbf16>, vector<16x1024xf32> -> vector<16x1024xf32>
    %22 = vector.broadcast %15 : vector<1x1024xf32> to vector<16x1024xf32>
    %23 = arith.addf %21, %22 : vector<16x1024xf32>
    %24 = vector.shape_cast %19 : vector<8x512xf32> to vector<1x8x512xf32>
    %25 = vector.extract_strided_slice %23 {offsets = [0, 0], sizes = [16, 512], strides = [1, 1]} : vector<16x1024xf32> to vector<16x512xf32>
    %26 = vector.shape_cast %25 : vector<16x512xf32> to vector<1x16x512xf32>
    %27 = vector.extract_strided_slice %23 {offsets = [0, 512], sizes = [16, 512], strides = [1, 1]} : vector<16x1024xf32> to vector<16x512xf32>
    %28 = vector.shape_cast %27 : vector<16x512xf32> to vector<1x16x512xf32>
    "tpu.trace_start"() <{level = 10 : i32, message = "eqd,ekd->eqk"}> : () -> ()
    %cst_18 = arith.constant dense<0.000000e+00> : vector<1x8x16xf32>
    %29 = tpu.matmul %24, %26, %cst_18 {dimension_numbers = #tpu.dot_dimension_numbers<[2], [2], [1], [1], [0, 0, 0, 1, 1, 1], [0], [0]>} : vector<1x8x512xf32>, vector<1x16x512xf32>, vector<1x8x16xf32> -> vector<1x8x16xf32>
    "tpu.trace_stop"() : () -> ()
    %cst_19 = arith.constant 0.0441941731 : f32
    %30 = vector.broadcast %cst_19 : f32 to vector<1x8x16xf32>
    %31 = arith.mulf %29, %30 : vector<1x8x16xf32>
    %c0_20 = arith.constant 0 : index
    %c0_21 = arith.constant 0 : index
    %32 = vector.load %arg10[%c0_20, %c0_21] : memref<1x16xf32, #tpu.memory_space<vmem>>, vector<1x16xf32>
    %33 = vector.shape_cast %32 : vector<1x16xf32> to vector<1x1x16xf32>
    %34 = vector.broadcast %33 : vector<1x1x16xf32> to vector<1x8x16xf32>
    %35 = arith.addf %31, %34 : vector<1x8x16xf32>
    %cst_22 = arith.constant dense<0xFF800000> : vector<1x8xf32>
    %36 = vector.multi_reduction <maximumf>, %35, %cst_22 [2] : vector<1x8x16xf32> to vector<1x8xf32>
    %37 = vector.shape_cast %36 : vector<1x8xf32> to vector<1x8x1xf32>
    %38 = vector.broadcast %37 : vector<1x8x1xf32> to vector<1x8x16xf32>
    %39 = arith.subf %35, %38 : vector<1x8x16xf32>
    %40 = math.exp %39 : vector<1x8x16xf32>
    %cst_23 = arith.constant dense<0.000000e+00> : vector<1x8xf32>
    %41 = vector.multi_reduction <add>, %40, %cst_23 [2] : vector<1x8x16xf32> to vector<1x8xf32>
    %42 = vector.shape_cast %41 : vector<1x8xf32> to vector<1x8x1xf32>
    %43 = vector.broadcast %42 : vector<1x8x1xf32> to vector<1x8x16xf32>
    %44 = arith.divf %40, %43 : vector<1x8x16xf32>
    "tpu.trace_start"() <{level = 10 : i32, message = "eqk,ekd->eqd"}> : () -> ()
    %cst_24 = arith.constant dense<0.000000e+00> : vector<1x8x512xf32>
    %45 = tpu.matmul %44, %28, %cst_24 {dimension_numbers = #tpu.dot_dimension_numbers<[2], [1], [1], [2], [0, 0, 0, 1, 1, 2], [0], [0]>} : vector<1x8x16xf32>, vector<1x16x512xf32>, vector<1x8x512xf32> -> vector<1x8x512xf32>
    "tpu.trace_stop"() : () -> ()
    %46 = vector.shape_cast %45 : vector<1x8x512xf32> to vector<8x512xf32>
    %c0_25 = arith.constant 0 : index
    %c0_26 = arith.constant 0 : index
    %47 = vector.load %arg7[%c0_25, %c0_26] : memref<512x512xbf16, #tpu.memory_space<vmem>>, vector<512x512xbf16>
    %48 = arith.extf %47 : vector<512x512xbf16> to vector<512x512xf32>
    %cst_27 = arith.constant dense<0.000000e+00> : vector<8x512xf32>
    %49 = tpu.matmul %46, %48, %cst_27 {dimension_numbers = #tpu.dot_dimension_numbers<[1], [0], [0], [1], [0, 0, 1, 1], [], []>} : vector<8x512xf32>, vector<512x512xf32>, vector<8x512xf32> -> vector<8x512xf32>
    %c0_28 = arith.constant 0 : index
    %c0_29 = arith.constant 0 : index
    %50 = vector.load %arg8[%c0_28, %c0_29] : memref<1x512xf32, #tpu.memory_space<vmem>>, vector<1x512xf32>
    %51 = vector.broadcast %50 : vector<1x512xf32> to vector<8x512xf32>
    %52 = arith.addf %49, %51 : vector<8x512xf32>
    %53 = arith.addf %11, %52 : vector<8x512xf32>
    %54 = vector.shape_cast %10 : vector<16x512xf32> to vector<1x16x512xf32>
    %55 = vector.shape_cast %53 : vector<8x512xf32> to vector<1x8x512xf32>
    %c0_30 = arith.constant 0 : index
    %c0_31 = arith.constant 0 : index
    %56 = vector.load %arg9[%c0_30, %c0_31] : memref<128x16xf32, #tpu.memory_space<vmem>>, vector<128x16xf32>
    %57 = vector.shape_cast %56 : vector<128x16xf32> to vector<1x128x16xf32>
    "tpu.trace_start"() <{level = 10 : i32, message = "ews,esd->ewd"}> : () -> ()
    %cst_32 = arith.constant dense<0.000000e+00> : vector<1x128x512xf32>
    %58 = tpu.matmul %57, %54, %cst_32 {dimension_numbers = #tpu.dot_dimension_numbers<[2], [1], [1], [2], [0, 0, 0, 1, 1, 2], [0], [0]>} : vector<1x128x16xf32>, vector<1x16x512xf32>, vector<1x128x512xf32> -> vector<1x128x512xf32>
    "tpu.trace_stop"() : () -> ()
    %59 = arith.mulf %58, %58 : vector<1x128x512xf32>
    %cst_33 = arith.constant dense<0.000000e+00> : vector<1x128xf32>
    %60 = vector.multi_reduction <add>, %59, %cst_33 [2] : vector<1x128x512xf32> to vector<1x128xf32>
    %61 = vector.shape_cast %60 : vector<1x128xf32> to vector<1x128x1xf32>
    %cst_34 = arith.constant 1.000000e-24 : f32
    %62 = vector.broadcast %cst_34 : f32 to vector<1x128x1xf32>
    %63 = arith.maximumf %61, %62 : vector<1x128x1xf32>
    %64 = math.rsqrt %63 : vector<1x128x1xf32>
    %65 = vector.broadcast %64 : vector<1x128x1xf32> to vector<1x128x512xf32>
    %66 = arith.mulf %58, %65 : vector<1x128x512xf32>
    %67 = arith.mulf %55, %55 : vector<1x8x512xf32>
    %cst_35 = arith.constant dense<0.000000e+00> : vector<1x8xf32>
    %68 = vector.multi_reduction <add>, %67, %cst_35 [2] : vector<1x8x512xf32> to vector<1x8xf32>
    %69 = vector.shape_cast %68 : vector<1x8xf32> to vector<1x8x1xf32>
    %cst_36 = arith.constant 1.000000e-24 : f32
    %70 = vector.broadcast %cst_36 : f32 to vector<1x8x1xf32>
    %71 = arith.maximumf %69, %70 : vector<1x8x1xf32>
    %72 = math.rsqrt %71 : vector<1x8x1xf32>
    %73 = vector.broadcast %72 : vector<1x8x1xf32> to vector<1x8x512xf32>
    %74 = arith.mulf %55, %73 : vector<1x8x512xf32>
    "tpu.trace_start"() <{level = 10 : i32, message = "eqd,ewd->eqw"}> : () -> ()
    %cst_37 = arith.constant dense<0.000000e+00> : vector<1x8x128xf32>
    %75 = tpu.matmul %74, %66, %cst_37 {dimension_numbers = #tpu.dot_dimension_numbers<[2], [2], [1], [1], [0, 0, 0, 1, 1, 1], [0], [0]>} : vector<1x8x512xf32>, vector<1x128x512xf32>, vector<1x8x128xf32> -> vector<1x8x128xf32>
    "tpu.trace_stop"() : () -> ()
    %cst_38 = arith.constant 1.000000e+01 : f32
    %76 = vector.broadcast %cst_38 : f32 to vector<1x8x128xf32>
    %77 = arith.mulf %75, %76 : vector<1x8x128xf32>
    %c0_39 = arith.constant 0 : index
    %c0_40 = arith.constant 0 : index
    %c0_41 = arith.constant 0 : index
    %78 = vector.load %arg11[%c0_39, %c0_40, %c0_41] : memref<1x8x128xf32, #tpu.memory_space<vmem>>, vector<1x8x128xf32>
    tpu.vector_store %arg11[%c0_39, %c0_40, %c0_41], %77 {strides = array<i32>} : memref<1x8x128xf32, #tpu.memory_space<vmem>>, vector<1x8x128xf32>,
    %c0_42 = arith.constant 0 : index
    %c0_43 = arith.constant 0 : index
    %c0_44 = arith.constant 0 : index
    %79 = vector.load %arg12[%c0_42, %c0_43, %c0_44] : memref<1x16x512xf32, #tpu.memory_space<vmem>>, vector<1x16x512xf32>
    tpu.vector_store %arg12[%c0_42, %c0_43, %c0_44], %54 {strides = array<i32>} : memref<1x16x512xf32, #tpu.memory_space<vmem>>, vector<1x16x512xf32>,
    %c0_45 = arith.constant 0 : index
    %c0_46 = arith.constant 0 : index
    %c0_47 = arith.constant 0 : index
    %80 = vector.load %arg13[%c0_45, %c0_46, %c0_47] : memref<1x8x512xf32, #tpu.memory_space<vmem>>, vector<1x8x512xf32>
    tpu.vector_store %arg13[%c0_45, %c0_46, %c0_47], %55 {strides = array<i32>} : memref<1x8x512xf32, #tpu.memory_space<vmem>>, vector<1x8x512xf32>,
    return
  }
  func.func @transform_0(%arg0: i32) -> (i32, i32, i32) {
    %c0_i32 = arith.constant 0 : i32
    %c0_i32_0 = arith.constant 0 : i32
    %c0_i32_1 = arith.constant 0 : i32
    return %arg0, %c0_i32, %c0_i32_0 : i32, i32, i32
  }
  func.func @transform_1(%arg0: i32) -> (i32, i32, i32) {
    %c0_i32 = arith.constant 0 : i32
    %c0_i32_0 = arith.constant 0 : i32
    %c0_i32_1 = arith.constant 0 : i32
    return %arg0, %c0_i32, %c0_i32_0 : i32, i32, i32
  }
  func.func @transform_2(%arg0: i32) -> (i32, i32) {
    %c0_i32 = arith.constant 0 : i32
    %c0_i32_0 = arith.constant 0 : i32
    %c0_i32_1 = arith.constant 0 : i32
    return %c0_i32, %c0_i32_0 : i32, i32
  }
  func.func @transform_3(%arg0: i32) -> (i32, i32) {
    %c0_i32 = arith.constant 0 : i32
    %c0_i32_0 = arith.constant 0 : i32
    %c0_i32_1 = arith.constant 0 : i32
    return %c0_i32, %c0_i32_0 : i32, i32
  }
  func.func @transform_4(%arg0: i32) -> (i32, i32) {
    %c0_i32 = arith.constant 0 : i32
    %c0_i32_0 = arith.constant 0 : i32
    %c0_i32_1 = arith.constant 0 : i32
    return %c0_i32, %c0_i32_0 : i32, i32
  }
  func.func @transform_5(%arg0: i32) -> (i32, i32) {
    %c0_i32 = arith.constant 0 : i32
    %c0_i32_0 = arith.constant 0 : i32
    %c0_i32_1 = arith.constant 0 : i32
    return %c0_i32, %c0_i32_0 : i32, i32
  }
  func.func @transform_6(%arg0: i32) -> (i32, i32) {
    %c0_i32 = arith.constant 0 : i32
    %c0_i32_0 = arith.constant 0 : i32
    %c0_i32_1 = arith.constant 0 : i32
    return %c0_i32, %c0_i32_0 : i32, i32
  }
  func.func @transform_7(%arg0: i32) -> (i32, i32) {
    %c0_i32 = arith.constant 0 : i32
    %c0_i32_0 = arith.constant 0 : i32
    %c0_i32_1 = arith.constant 0 : i32
    return %c0_i32, %c0_i32_0 : i32, i32
  }
  func.func @transform_8(%arg0: i32) -> (i32, i32) {
    %c0_i32 = arith.constant 0 : i32
    %c0_i32_0 = arith.constant 0 : i32
    %c0_i32_1 = arith.constant 0 : i32
    return %c0_i32, %c0_i32_0 : i32, i32
  }
  func.func @transform_9(%arg0: i32) -> (i32, i32) {
    %c0_i32 = arith.constant 0 : i32
    %c0_i32_0 = arith.constant 0 : i32
    %c0_i32_1 = arith.constant 0 : i32
    return %c0_i32, %c0_i32_0 : i32, i32
  }
  func.func @transform_10(%arg0: i32) -> (i32, i32, i32) {
    %c0_i32 = arith.constant 0 : i32
    %c0_i32_0 = arith.constant 0 : i32
    %c0_i32_1 = arith.constant 0 : i32
    return %arg0, %c0_i32, %c0_i32_0 : i32, i32, i32
  }
  func.func @transform_11(%arg0: i32) -> (i32, i32, i32) {
    %c0_i32 = arith.constant 0 : i32
    %c0_i32_0 = arith.constant 0 : i32
    %c0_i32_1 = arith.constant 0 : i32
    return %arg0, %c0_i32, %c0_i32_0 : i32, i32, i32
  }
  func.func @transform_12(%arg0: i32) -> (i32, i32, i32) {
    %c0_i32 = arith.constant 0 : i32
    %c0_i32_0 = arith.constant 0 : i32
    %c0_i32_1 = arith.constant 0 : i32
    return %arg0, %c0_i32, %c0_i32_0 : i32, i32, i32
  }
}

</mosaic_0001>

<llo_original>
// kernel: tpu_custom_call.1
$region0: #{tpu_custom_call.1}
  #allocation0 [shape = 'u32[]', space=smem, size = 0x4, offset = 0x4, fixed_abs, tag = 'smem constant byte address 0x4 - core index']
  #allocation1 [shape = 'u32[144,128]{1,0:T(1,128)}', space=vmem, size = 0x12000, scoped, tag = 'internal scratch']
  %s0 = inlined_call_operand.hbm [shape: bf16[1,16,256], index: 0, kind: input, shape index: {}]
  %s1 = inlined_call_operand.hbm [shape: bf16[1,8,256], index: 1, kind: input, shape index: {}]
  %s2 = inlined_call_operand.hbm [shape: bf16[256,512], index: 2, kind: input, shape index: {}]
  %s3 = inlined_call_operand.hbm [shape: f32[1,512], index: 3, kind: input, shape index: {}]
  %s4 = inlined_call_operand.hbm [shape: bf16[512,1536], index: 4, kind: input, shape index: {}]
  %s5 = inlined_call_operand.hbm [shape: f32[1,1536], index: 5, kind: input, shape index: {}]
  %s6 = inlined_call_operand.hbm [shape: bf16[512,512], index: 6, kind: input, shape index: {}]
  %s7 = inlined_call_operand.hbm [shape: f32[1,512], index: 7, kind: input, shape index: {}]
  %s8 = inlined_call_operand.vmem [shape: f32[128,16], index: 8, kind: input, shape index: {}]
  %s9 = inlined_call_operand.hbm [shape: f32[1,16], index: 9, kind: input, shape index: {}]
  %s10 = inlined_call_operand.hbm [shape: f32[1,8,128], index: 10, kind: output, shape index: {0}]
  %s11 = inlined_call_operand.hbm [shape: f32[1,16,512], index: 11, kind: output, shape index: {1}]
  %s12 = inlined_call_operand.hbm [shape: f32[1,8,512], index: 12, kind: output, shape index: {2}]
  %13 = xla_tuple %s10, %s11, %s12
  %s14 = sld [smem:[#allocation0]]
  $region102: #{tpu_custom_call.1} parent=0
    _
  %s16 = ssub.s32 1, %s14
  %s17 = scalar_select 0, %s16, %s14
  $region1: #{tpu_custom_call.1} parent=0
    #allocation2 [shape = 'u8[8192]{0}', space=vmem, size = 0x2000, scoped, tag = 'input window, operand 0, single buffered']
    #allocation3 [shape = 's32[1]{0}', space=sflag, size = 0x4, scoped, tag = 'scoped memory for tpu_custom_call.1']
    #allocation4 [shape = 's32[1]{0}', space=sflag, size = 0x4, scoped, tag = 'scoped memory for tpu_custom_call.1']
    #allocation5 [shape = 'u8[4096]{0}', space=vmem, size = 0x1000, scoped, tag = 'input window, operand 1, single buffered']
    #allocation6 [shape = 's32[1]{0}', space=sflag, size = 0x4, scoped, tag = 'scoped memory for tpu_custom_call.1']
    #allocation7 [shape = 'u8[262144]{0}', space=vmem, size = 0x40000, scoped, tag = 'input window, operand 2, single buffered']
    #allocation8 [shape = 'u8[2048]{0}', space=vmem, size = 0x800, scoped, tag = 'input window, operand 3, single buffered']
    #allocation9 [shape = 's32[1]{0}', space=sflag, size = 0x4, scoped, tag = 'scoped memory for tpu_custom_call.1']
    #allocation10 [shape = 'u8[1572864]{0}', space=vmem, size = 0x180000, scoped, tag = 'input window, operand 4, single buffered']
    #allocation11 [shape = 'u8[6144]{0}', space=vmem, size = 0x1800, scoped, tag = 'input window, operand 5, single buffered']
    #allocation12 [shape = 's32[1]{0}', space=sflag, size = 0x4, scoped, tag = 'scoped memory for tpu_custom_call.1']
    #allocation13 [shape = 'u8[524288]{0}', space=vmem, size = 0x80000, scoped, tag = 'input window, operand 6, single buffered']
    #allocation14 [shape = 'u8[2048]{0}', space=vmem, size = 0x800, scoped, tag = 'input window, operand 7, single buffered']
    #allocation15 [shape = 's32[1]{0}', space=sflag, size = 0x4, scoped, tag = 'scoped memory for tpu_custom_call.1']
    #allocation16 [shape = 'u8[512]{0}', space=vmem, size = 0x400, scoped, tag = 'input window, operand 9, single buffered']
    #allocation17 [shape = 'u8[4096]{0}', space=vmem, size = 0x1000, scoped, tag = 'output window, operand 0, single buffered']
    #allocation18 [shape = 'u8[32768]{0}', space=vmem, size = 0x8000, scoped, tag = 'output window, operand 1, single buffered']
    #allocation19 [shape = 's32[1]{0}', space=sflag, size = 0x4, scoped, tag = 'scoped memory for tpu_custom_call.1']
    #allocation20 [shape = 'u8[16384]{0}', space=vmem, size = 0x4000, scoped, tag = 'output window, operand 2, single buffered']
    %18 = vsyncpa [#allocation3], 0
    %19 = vsyncpa [#allocation6], 0
    %20 = vsyncpa [#allocation9], 0
    %21 = vsyncpa [#allocation12], 0
    %22 = vsyncpa [#allocation15], 0
    %23 = vsyncpa [#allocation4], 0
    %24 = vsyncpa [#allocation19], 0
    // Predicated region
    $region2: #{tpu_custom_call.1} parent=1 // pred_check
      _
    $region3: #{tpu_custom_call.1} parent=1 // pred_check_branch
      %26 = sbr.rel (0) target = $region5
    $region4: #{tpu_custom_call.1} parent=1 // pred_region
      %s28 = ssub.s32 256, 256
      %29 = vsyncadd [#allocation3], %s28
      %s30 = sshll.u32 [#allocation2], 4
      %s31 = int_to_ptr.vmem [resolvable:$true] %s30
      %36 = dma.hbm_to_vmem [thread:$0]  %s0, 256, %s31, [#allocation3], 128, 128, 8
    $region5: #{tpu_custom_call.1} parent=1 // pred_fallthru
      _
    // Predicated region
    $region6: #{tpu_custom_call.1} parent=1 // pred_check
      _
    $region7: #{tpu_custom_call.1} parent=1 // pred_check_branch
      %38 = sbr.rel (0) target = $region9
    $region8: #{tpu_custom_call.1} parent=1 // pred_region
      %s40 = ssub.s32 128, 128
      %41 = vsyncadd [#allocation6], %s40
      %s43 = sshll.u32 [#allocation5], 4
      %s44 = int_to_ptr.vmem [resolvable:$true] %s43
      %46 = dma.hbm_to_vmem [thread:$0]  %s1, 128, %s44, [#allocation6]
    $region9: #{tpu_custom_call.1} parent=1 // pred_fallthru
      _
    // Predicated region
    $region10: #{tpu_custom_call.1} parent=1 // pred_check
      _
    $region11: #{tpu_custom_call.1} parent=1 // pred_check_branch
      %48 = sbr.rel (0) target = $region13
    $region12: #{tpu_custom_call.1} parent=1 // pred_region
      %s50 = ssub.s32 8192, 8192
      %51 = vsyncadd [#allocation6], %s50
      %s52 = sshll.u32 [#allocation7], 4
      %s53 = int_to_ptr.vmem [resolvable:$true] %s52
      %58 = dma.hbm_to_vmem [thread:$0]  %s2, 8192, %s53, [#allocation6], 256, 256, 16
    $region13: #{tpu_custom_call.1} parent=1 // pred_fallthru
      _
    // Predicated region
    $region14: #{tpu_custom_call.1} parent=1 // pred_check
      _
    $region15: #{tpu_custom_call.1} parent=1 // pred_check_branch
      %60 = sbr.rel (0) target = $region17
    $region16: #{tpu_custom_call.1} parent=1 // pred_region
      %s62 = ssub.s32 64, 64
      %63 = vsyncadd [#allocation9], %s62
      %s65 = sshll.u32 [#allocation8], 4
      %s66 = int_to_ptr.vmem [resolvable:$true] %s65
      %68 = dma.hbm_to_vmem [thread:$0]  %s3, 64, %s66, [#allocation9]
    $region17: #{tpu_custom_call.1} parent=1 // pred_fallthru
      _
    // Predicated region
    $region18: #{tpu_custom_call.1} parent=1 // pred_check
      _
    $region19: #{tpu_custom_call.1} parent=1 // pred_check_branch
      %70 = sbr.rel (0) target = $region21
    $region20: #{tpu_custom_call.1} parent=1 // pred_region
      %s72 = ssub.s32 49152, 49152
      %73 = vsyncadd [#allocation9], %s72
      %s74 = sshll.u32 [#allocation10], 4
      %s75 = int_to_ptr.vmem [resolvable:$true] %s74
      %80 = dma.hbm_to_vmem [thread:$0]  %s4, 49152, %s75, [#allocation9], 768, 768, 48
    $region21: #{tpu_custom_call.1} parent=1 // pred_fallthru
      _
    // Predicated region
    $region22: #{tpu_custom_call.1} parent=1 // pred_check
      _
    $region23: #{tpu_custom_call.1} parent=1 // pred_check_branch
      %82 = sbr.rel (0) target = $region25
    $region24: #{tpu_custom_call.1} parent=1 // pred_region
      %s84 = ssub.s32 192, 192
      %85 = vsyncadd [#allocation12], %s84
      %s87 = sshll.u32 [#allocation11], 4
      %s88 = int_to_ptr.vmem [resolvable:$true] %s87
      %90 = dma.hbm_to_vmem [thread:$0]  %s5, 192, %s88, [#allocation12]
    $region25: #{tpu_custom_call.1} parent=1 // pred_fallthru
      _
    // Predicated region
    $region26: #{tpu_custom_call.1} parent=1 // pred_check
      _
    $region27: #{tpu_custom_call.1} parent=1 // pred_check_branch
      %92 = sbr.rel (0) target = $region29
    $region28: #{tpu_custom_call.1} parent=1 // pred_region
      %s94 = ssub.s32 16384, 16384
      %95 = vsyncadd [#allocation12], %s94
      %s96 = sshll.u32 [#allocation13], 4
      %s97 = int_to_ptr.vmem [resolvable:$true] %s96
      %102 = dma.hbm_to_vmem [thread:$0]  %s6, 16384, %s97, [#allocation12], 256, 256, 16
    $region29: #{tpu_custom_call.1} parent=1 // pred_fallthru
      _
    // Predicated region
    $region30: #{tpu_custom_call.1} parent=1 // pred_check
      _
    $region31: #{tpu_custom_call.1} parent=1 // pred_check_branch
      %104 = sbr.rel (0) target = $region33
    $region32: #{tpu_custom_call.1} parent=1 // pred_region
      %s106 = ssub.s32 64, 64
      %107 = vsyncadd [#allocation15], %s106
      %s109 = sshll.u32 [#allocation14], 4
      %s110 = int_to_ptr.vmem [resolvable:$true] %s109
      %112 = dma.hbm_to_vmem [thread:$0]  %s7, 64, %s110, [#allocation15]
    $region33: #{tpu_custom_call.1} parent=1 // pred_fallthru
      _
    // Predicated region
    $region34: #{tpu_custom_call.1} parent=1 // pred_check
      _
    $region35: #{tpu_custom_call.1} parent=1 // pred_check_branch
      %114 = sbr.rel (0) target = $region37
    $region36: #{tpu_custom_call.1} parent=1 // pred_region
      _
    $region37: #{tpu_custom_call.1} parent=1 // pred_fallthru
      _
    // Predicated region
    $region38: #{tpu_custom_call.1} parent=1 // pred_check
      _
    $region39: #{tpu_custom_call.1} parent=1 // pred_check_branch
      %116 = sbr.rel (0) target = $region41
    $region40: #{tpu_custom_call.1} parent=1 // pred_region
      %s118 = ssub.s32 16, 16
      %119 = vsyncadd [#allocation15], %s118
      %s121 = sshll.u32 [#allocation16], 4
      %s122 = int_to_ptr.vmem [resolvable:$true] %s121
      %124 = dma.hbm_to_vmem [thread:$0]  %s9, 16, %s122, [#allocation15]
    $region41: #{tpu_custom_call.1} parent=1 // pred_fallthru
      _
    // Predicated region
    $region42: #{tpu_custom_call.1} parent=1 // pred_check
      _
    $region43: #{tpu_custom_call.1} parent=1 // pred_check_branch
      %126 = sbr.rel (0) target = $region45
    $region44: #{tpu_custom_call.1} parent=1 // pred_region
      %127 = dma.done [#allocation3], 256
    $region45: #{tpu_custom_call.1} parent=1 // pred_fallthru
      _
    // Predicated region
    $region46: #{tpu_custom_call.1} parent=1 // pred_check
      _
    $region47: #{tpu_custom_call.1} parent=1 // pred_check_branch
      %129 = sbr.rel (0) target = $region49
    $region48: #{tpu_custom_call.1} parent=1 // pred_region
      %130 = dma.done [#allocation6], 128
    $region49: #{tpu_custom_call.1} parent=1 // pred_fallthru
      _
    // Predicated region
    $region50: #{tpu_custom_call.1} parent=1 // pred_check
      _
    $region51: #{tpu_custom_call.1} parent=1 // pred_check_branch
      %132 = sbr.rel (0) target = $region53
    $region52: #{tpu_custom_call.1} parent=1 // pred_region
      %133 = dma.done [#allocation6], 8192
    $region53: #{tpu_custom_call.1} parent=1 // pred_fallthru
      _
    // Predicated region
    $region54: #{tpu_custom_call.1} parent=1 // pred_check
      _
    $region55: #{tpu_custom_call.1} parent=1 // pred_check_branch
      %135 = sbr.rel (0) target = $region57
    $region56: #{tpu_custom_call.1} parent=1 // pred_region
      %136 = dma.done [#allocation9], 64
    $region57: #{tpu_custom_call.1} parent=1 // pred_fallthru
      _
    // Predicated region
    $region58: #{tpu_custom_call.1} parent=1 // pred_check
      _
    $region59: #{tpu_custom_call.1} parent=1 // pred_check_branch
      %138 = sbr.rel (0) target = $region61
    $region60: #{tpu_custom_call.1} parent=1 // pred_region
      %139 = dma.done [#allocation9], 49152
    $region61: #{tpu_custom_call.1} parent=1 // pred_fallthru
      _
    // Predicated region
    $region62: #{tpu_custom_call.1} parent=1 // pred_check
      _
    $region63: #{tpu_custom_call.1} parent=1 // pred_check_branch
      %141 = sbr.rel (0) target = $region65
    $region64: #{tpu_custom_call.1} parent=1 // pred_region
      %142 = dma.done [#allocation12], 192
    $region65: #{tpu_custom_call.1} parent=1 // pred_fallthru
      _
    // Predicated region
    $region66: #{tpu_custom_call.1} parent=1 // pred_check
      _
    $region67: #{tpu_custom_call.1} parent=1 // pred_check_branch
      %144 = sbr.rel (0) target = $region69
    $region68: #{tpu_custom_call.1} parent=1 // pred_region
      %145 = dma.done [#allocation12], 16384
    $region69: #{tpu_custom_call.1} parent=1 // pred_fallthru
      _
    // Predicated region
    $region70: #{tpu_custom_call.1} parent=1 // pred_check
      _
    $region71: #{tpu_custom_call.1} parent=1 // pred_check_branch
      %147 = sbr.rel (0) target = $region73
    $region72: #{tpu_custom_call.1} parent=1 // pred_region
      %148 = dma.done [#allocation15], 64
    $region73: #{tpu_custom_call.1} parent=1 // pred_fallthru
      _
    // Predicated region
    $region74: #{tpu_custom_call.1} parent=1 // pred_check
      _
    $region75: #{tpu_custom_call.1} parent=1 // pred_check_branch
      %150 = sbr.rel (0) target = $region77
    $region76: #{tpu_custom_call.1} parent=1 // pred_region
      %151 = dma.done [#allocation15], 16
    $region77: #{tpu_custom_call.1} parent=1 // pred_fallthru
      _
    %v152 = vld [vmem:[#allocation2] sm:$0xff]
    %v153 = vld [vmem:[#allocation2 + $0x8] sm:$0xff]
    %v154 = vld [vmem:[#allocation5] sm:$0xff]
    %v157 = vunpack.c.l.b16 %v152
    %v158 = vunpack.c.h.b16 %v152
    %v159 = vunpack.c.l.b16 %v153
    %v160 = vunpack.c.h.b16 %v153
    %v161 = vpack.c.b16 %v159, %v157
    %v162 = vpack.c.b16 %v160, %v158
    %v166 = vunpack.c.l.b16 %v154
    %v167 = vunpack.c.h.b16 %v154
    %v168 = vpack.c.b16 %v166, %v166
    %v169 = vpack.c.b16 %v167, %v167
    %v172 = vld [vmem:[#allocation7] sm:$0xff]
    %v173 = vld [vmem:[#allocation7 + $0x8] sm:$0xff]
    %v174 = vld [vmem:[#allocation7 + $0x10] sm:$0xff]
    %v175 = vld [vmem:[#allocation7 + $0x18] sm:$0xff]
    %v176 = vld [vmem:[#allocation7 + $0x20] sm:$0xff]
    %v177 = vld [vmem:[#allocation7 + $0x28] sm:$0xff]
    %v178 = vld [vmem:[#allocation7 + $0x30] sm:$0xff]
    %v179 = vld [vmem:[#allocation7 + $0x38] sm:$0xff]
    %v180 = vld [vmem:[#allocation7 + $0x40] sm:$0xff]
    %v181 = vld [vmem:[#allocation7 + $0x48] sm:$0xff]
    %v182 = vld [vmem:[#allocation7 + $0x50] sm:$0xff]
    %v183 = vld [vmem:[#allocation7 + $0x58] sm:$0xff]
    %v184 = vld [vmem:[#allocation7 + $0x60] sm:$0xff]
    %v185 = vld [vmem:[#allocation7 + $0x68] sm:$0xff]
    %v186 = vld [vmem:[#allocation7 + $0x70] sm:$0xff]
    %v187 = vld [vmem:[#allocation7 + $0x78] sm:$0xff]
    %v188 = vld [vmem:[#allocation7 + $0x80] sm:$0xff]
    %v189 = vld [vmem:[#allocation7 + $0x88] sm:$0xff]
    %v190 = vld [vmem:[#allocation7 + $0x90] sm:$0xff]
    %v191 = vld [vmem:[#allocation7 + $0x98] sm:$0xff]
    %v192 = vld [vmem:[#allocation7 + $0xa0] sm:$0xff]
    %v193 = vld [vmem:[#allocation7 + $0xa8] sm:$0xff]
    %v194 = vld [vmem:[#allocation7 + $0xb0] sm:$0xff]
    %v195 = vld [vmem:[#allocation7 + $0xb8] sm:$0xff]
    %v196 = vld [vmem:[#allocation7 + $0xc0] sm:$0xff]
    %v197 = vld [vmem:[#allocation7 + $0xc8] sm:$0xff]
    %v198 = vld [vmem:[#allocation7 + $0xd0] sm:$0xff]
    %v199 = vld [vmem:[#allocation7 + $0xd8] sm:$0xff]
    %v200 = vld [vmem:[#allocation7 + $0xe0] sm:$0xff]
    %v201 = vld [vmem:[#allocation7 + $0xe8] sm:$0xff]
    %v202 = vld [vmem:[#allocation7 + $0xf0] sm:$0xff]
    %v203 = vld [vmem:[#allocation7 + $0xf8] sm:$0xff]
    %v204 = vld [vmem:[#allocation7 + $0x100] sm:$0xff]
    %v205 = vld [vmem:[#allocation7 + $0x108] sm:$0xff]
    %v206 = vld [vmem:[#allocation7 + $0x110] sm:$0xff]
    %v207 = vld [vmem:[#allocation7 + $0x118] sm:$0xff]
    %v208 = vld [vmem:[#allocation7 + $0x120] sm:$0xff]
    %v209 = vld [vmem:[#allocation7 + $0x128] sm:$0xff]
    %v210 = vld [vmem:[#allocation7 + $0x130] sm:$0xff]
    %v211 = vld [vmem:[#allocation7 + $0x138] sm:$0xff]
    %v212 = vld [vmem:[#allocation7 + $0x140] sm:$0xff]
    %v213 = vld [vmem:[#allocation7 + $0x148] sm:$0xff]
    %v214 = vld [vmem:[#allocation7 + $0x150] sm:$0xff]
    %v215 = vld [vmem:[#allocation7 + $0x158] sm:$0xff]
    %v216 = vld [vmem:[#allocation7 + $0x160] sm:$0xff]
    %v217 = vld [vmem:[#allocation7 + $0x168] sm:$0xff]
    %v218 = vld [vmem:[#allocation7 + $0x170] sm:$0xff]
    %v219 = vld [vmem:[#allocation7 + $0x178] sm:$0xff]
    %v220 = vld [vmem:[#allocation7 + $0x180] sm:$0xff]
    %v221 = vld [vmem:[#allocation7 + $0x188] sm:$0xff]
    %v222 = vld [vmem:[#allocation7 + $0x190] sm:$0xff]
    %v223 = vld [vmem:[#allocation7 + $0x198] sm:$0xff]
    %v224 = vld [vmem:[#allocation7 + $0x1a0] sm:$0xff]
    %v225 = vld [vmem:[#allocation7 + $0x1a8] sm:$0xff]
    %v226 = vld [vmem:[#allocation7 + $0x1b0] sm:$0xff]
    %v227 = vld [vmem:[#allocation7 + $0x1b8] sm:$0xff]
    %v228 = vld [vmem:[#allocation7 + $0x1c0] sm:$0xff]
    %v229 = vld [vmem:[#allocation7 + $0x1c8] sm:$0xff]
    %v230 = vld [vmem:[#allocation7 + $0x1d0] sm:$0xff]
    %v231 = vld [vmem:[#allocation7 + $0x1d8] sm:$0xff]
    %v232 = vld [vmem:[#allocation7 + $0x1e0] sm:$0xff]
    %v233 = vld [vmem:[#allocation7 + $0x1e8] sm:$0xff]
    %v234 = vld [vmem:[#allocation7 + $0x1f0] sm:$0xff]
    %v235 = vld [vmem:[#allocation7 + $0x1f8] sm:$0xff]
    %v236 = vld [vmem:[#allocation8] sm:$0xf]
    %v238 = vlaneseq
    %v239 = vshrl.u32 %v238, 7
    %v240 = vsub.s32 0, %v239
    %v241 = vrot.slane %v236, %v240
    %v242 = vlaneseq
    %v243 = vshrl.u32 %v242, 7
    %v244 = vsub.s32 1, %v243
    %v245 = vrot.slane %v236, %v244
    %v246 = vlaneseq
    %v247 = vshrl.u32 %v246, 7
    %v248 = vsub.s32 2, %v247
    %v249 = vrot.slane %v236, %v248
    %v250 = vlaneseq
    %v251 = vshrl.u32 %v250, 7
    %v252 = vsub.s32 3, %v251
    %v253 = vrot.slane %v236, %v252
    %v322 = vunpack.c.l.b16 %v172
    %v323 = vunpack.c.h.b16 %v172
    %v324 = vunpack.c.l.b16 %v173
    %v325 = vunpack.c.h.b16 %v173
    %v326 = vunpack.c.l.b16 %v174
    %v327 = vunpack.c.h.b16 %v174
    %v328 = vunpack.c.l.b16 %v175
    %v329 = vunpack.c.h.b16 %v175
    %v330 = vunpack.c.l.b16 %v176
    %v331 = vunpack.c.h.b16 %v176
    %v332 = vunpack.c.l.b16 %v177
    %v333 = vunpack.c.h.b16 %v177
    %v334 = vunpack.c.l.b16 %v178
    %v335 = vunpack.c.h.b16 %v178
    %v336 = vunpack.c.l.b16 %v179
    %v337 = vunpack.c.h.b16 %v179
    %v338 = vunpack.c.l.b16 %v180
    %v339 = vunpack.c.h.b16 %v180
    %v340 = vunpack.c.l.b16 %v181
    %v341 = vunpack.c.h.b16 %v181
    %v342 = vunpack.c.l.b16 %v182
    %v343 = vunpack.c.h.b16 %v182
    %v344 = vunpack.c.l.b16 %v183
    %v345 = vunpack.c.h.b16 %v183
    %v346 = vunpack.c.l.b16 %v184
    %v347 = vunpack.c.h.b16 %v184
    %v348 = vunpack.c.l.b16 %v185
    %v349 = vunpack.c.h.b16 %v185
    %v350 = vunpack.c.l.b16 %v186
    %v351 = vunpack.c.h.b16 %v186
    %v352 = vunpack.c.l.b16 %v187
    %v353 = vunpack.c.h.b16 %v187
    %v354 = vunpack.c.l.b16 %v188
    %v355 = vunpack.c.h.b16 %v188
    %v356 = vunpack.c.l.b16 %v189
    %v357 = vunpack.c.h.b16 %v189
    %v358 = vunpack.c.l.b16 %v190
    %v359 = vunpack.c.h.b16 %v190
    %v360 = vunpack.c.l.b16 %v191
    %v361 = vunpack.c.h.b16 %v191
    %v362 = vunpack.c.l.b16 %v192
    %v363 = vunpack.c.h.b16 %v192
    %v364 = vunpack.c.l.b16 %v193
    %v365 = vunpack.c.h.b16 %v193
    %v366 = vunpack.c.l.b16 %v194
    %v367 = vunpack.c.h.b16 %v194
    %v368 = vunpack.c.l.b16 %v195
    %v369 = vunpack.c.h.b16 %v195
    %v370 = vunpack.c.l.b16 %v196
    %v371 = vunpack.c.h.b16 %v196
    %v372 = vunpack.c.l.b16 %v197
    %v373 = vunpack.c.h.b16 %v197
    %v374 = vunpack.c.l.b16 %v198
    %v375 = vunpack.c.h.b16 %v198
    %v376 = vunpack.c.l.b16 %v199
    %v377 = vunpack.c.h.b16 %v199
    %v378 = vunpack.c.l.b16 %v200
    %v379 = vunpack.c.h.b16 %v200
    %v380 = vunpack.c.l.b16 %v201
    %v381 = vunpack.c.h.b16 %v201
    %v382 = vunpack.c.l.b16 %v202
    %v383 = vunpack.c.h.b16 %v202
    %v384 = vunpack.c.l.b16 %v203
    %v385 = vunpack.c.h.b16 %v203
    %v386 = vunpack.c.l.b16 %v204
    %v387 = vunpack.c.h.b16 %v204
    %v388 = vunpack.c.l.b16 %v205
    %v389 = vunpack.c.h.b16 %v205
    %v390 = vunpack.c.l.b16 %v206
    %v391 = vunpack.c.h.b16 %v206
    %v392 = vunpack.c.l.b16 %v207
    %v393 = vunpack.c.h.b16 %v207
    %v394 = vunpack.c.l.b16 %v208
    %v395 = vunpack.c.h.b16 %v208
    %v396 = vunpack.c.l.b16 %v209
    %v397 = vunpack.c.h.b16 %v209
    %v398 = vunpack.c.l.b16 %v210
    %v399 = vunpack.c.h.b16 %v210
    %v400 = vunpack.c.l.b16 %v211
    %v401 = vunpack.c.h.b16 %v211
    %v402 = vunpack.c.l.b16 %v212
    %v403 = vunpack.c.h.b16 %v212
    %v404 = vunpack.c.l.b16 %v213
    %v405 = vunpack.c.h.b16 %v213
    %v406 = vunpack.c.l.b16 %v214
    %v407 = vunpack.c.h.b16 %v214
    %v408 = vunpack.c.l.b16 %v215
    %v409 = vunpack.c.h.b16 %v215
    %v410 = vunpack.c.l.b16 %v216
    %v411 = vunpack.c.h.b16 %v216
    %v412 = vunpack.c.l.b16 %v217
    %v413 = vunpack.c.h.b16 %v217
    %v414 = vunpack.c.l.b16 %v218
    %v415 = vunpack.c.h.b16 %v218
    %v416 = vunpack.c.l.b16 %v219
    %v417 = vunpack.c.h.b16 %v219
    %v418 = vunpack.c.l.b16 %v220
    %v419 = vunpack.c.h.b16 %v220
    %v420 = vunpack.c.l.b16 %v221
    %v421 = vunpack.c.h.b16 %v221
    %v422 = vunpack.c.l.b16 %v222
    %v423 = vunpack.c.h.b16 %v222
    %v424 = vunpack.c.l.b16 %v223
    %v425 = vunpack.c.h.b16 %v223
    %v426 = vunpack.c.l.b16 %v224
    %v427 = vunpack.c.h.b16 %v224
    %v428 = vunpack.c.l.b16 %v225
    %v429 = vunpack.c.h.b16 %v225
    %v430 = vunpack.c.l.b16 %v226
    %v431 = vunpack.c.h.b16 %v226
    %v432 = vunpack.c.l.b16 %v227
    %v433 = vunpack.c.h.b16 %v227
    %v434 = vunpack.c.l.b16 %v228
    %v435 = vunpack.c.h.b16 %v228
    %v436 = vunpack.c.l.b16 %v229
    %v437 = vunpack.c.h.b16 %v229
    %v438 = vunpack.c.l.b16 %v230
    %v439 = vunpack.c.h.b16 %v230
    %v440 = vunpack.c.l.b16 %v231
    %v441 = vunpack.c.h.b16 %v231
    %v442 = vunpack.c.l.b16 %v232
    %v443 = vunpack.c.h.b16 %v232
    %v444 = vunpack.c.l.b16 %v233
    %v445 = vunpack.c.h.b16 %v233
    %v446 = vunpack.c.l.b16 %v234
    %v447 = vunpack.c.h.b16 %v234
    %v448 = vunpack.c.l.b16 %v235
    %v449 = vunpack.c.h.b16 %v235
    %v450 = vpack.c.b16 %v326, %v322
    %v451 = vpack.c.b16 %v327, %v323
    %v452 = vpack.c.b16 %v328, %v324
    %v453 = vpack.c.b16 %v329, %v325
    %v454 = vpack.c.b16 %v334, %v330
    %v455 = vpack.c.b16 %v335, %v331
    %v456 = vpack.c.b16 %v336, %v332
    %v457 = vpack.c.b16 %v337, %v333
    %v458 = vpack.c.b16 %v342, %v338
    %v459 = vpack.c.b16 %v343, %v339
    %v460 = vpack.c.b16 %v344, %v340
    %v461 = vpack.c.b16 %v345, %v341
    %v462 = vpack.c.b16 %v350, %v346
    %v463 = vpack.c.b16 %v351, %v347
    %v464 = vpack.c.b16 %v352, %v348
    %v465 = vpack.c.b16 %v353, %v349
    %v466 = vpack.c.b16 %v358, %v354
    %v467 = vpack.c.b16 %v359, %v355
    %v468 = vpack.c.b16 %v360, %v356
    %v469 = vpack.c.b16 %v361, %v357
    %v470 = vpack.c.b16 %v366, %v362
    %v471 = vpack.c.b16 %v367, %v363
    %v472 = vpack.c.b16 %v368, %v364
    %v473 = vpack.c.b16 %v369, %v365
    %v474 = vpack.c.b16 %v374, %v370
    %v475 = vpack.c.b16 %v375, %v371
    %v476 = vpack.c.b16 %v376, %v372
    %v477 = vpack.c.b16 %v377, %v373
    %v478 = vpack.c.b16 %v382, %v378
    %v479 = vpack.c.b16 %v383, %v379
    %v480 = vpack.c.b16 %v384, %v380
    %v481 = vpack.c.b16 %v385, %v381
    %v482 = vpack.c.b16 %v390, %v386
    %v483 = vpack.c.b16 %v391, %v387
    %v484 = vpack.c.b16 %v392, %v388
    %v485 = vpack.c.b16 %v393, %v389
    %v486 = vpack.c.b16 %v398, %v394
    %v487 = vpack.c.b16 %v399, %v395
    %v488 = vpack.c.b16 %v400, %v396
    %v489 = vpack.c.b16 %v401, %v397
    %v490 = vpack.c.b16 %v406, %v402
    %v491 = vpack.c.b16 %v407, %v403
    %v492 = vpack.c.b16 %v408, %v404
    %v493 = vpack.c.b16 %v409, %v405
    %v494 = vpack.c.b16 %v414, %v410
    %v495 = vpack.c.b16 %v415, %v411
    %v496 = vpack.c.b16 %v416, %v412
    %v497 = vpack.c.b16 %v417, %v413
    %v498 = vpack.c.b16 %v422, %v418
    %v499 = vpack.c.b16 %v423, %v419
    %v500 = vpack.c.b16 %v424, %v420
    %v501 = vpack.c.b16 %v425, %v421
    %v502 = vpack.c.b16 %v430, %v426
    %v503 = vpack.c.b16 %v431, %v427
    %v504 = vpack.c.b16 %v432, %v428
    %v505 = vpack.c.b16 %v433, %v429
    %v506 = vpack.c.b16 %v438, %v434
    %v507 = vpack.c.b16 %v439, %v435
    %v508 = vpack.c.b16 %v440, %v436
    %v509 = vpack.c.b16 %v441, %v437
    %v510 = vpack.c.b16 %v446, %v442
    %v511 = vpack.c.b16 %v447, %v443
    %v512 = vpack.c.b16 %v448, %v444
    %v513 = vpack.c.b16 %v449, %v445
    %578 = vmatprep.subr.bf16.mxu0 %v451
    %579 = vmatpush1.bf16.msra.mxu0 %v450
    %580 = vmatprep.subr.bf16.mxu0 %v455
    %581 = vmatpush1.bf16.msra.mxu0 %v454
    %582 = vmatprep.subr.bf16.mxu0 %v459
    %583 = vmatpush1.bf16.msra.mxu0 %v458
    %584 = vmatprep.subr.bf16.mxu0 %v463
    %585 = vmatpush1.bf16.msra.mxu0 %v462
    %586 = vmatprep.subr.bf16.mxu0 %v467
    %587 = vmatpush1.bf16.msra.mxu0 %v466
    %588 = vmatprep.subr.bf16.mxu0 %v471
    %589 = vmatpush1.bf16.msra.mxu0 %v470
    %590 = vmatprep.subr.bf16.mxu0 %v475
    %591 = vmatpush1.bf16.msra.mxu0 %v474
    %592 = vmatprep.subr.bf16.mxu0 %v479
    %593 = vmatpush1.bf16.msra.mxu0 %v478
    %594 = vmatprep.subr.bf16.mxu0 %v483
    %595 = vmatpush1.bf16.msra.mxu0 %v482
    %596 = vmatprep.subr.bf16.mxu0 %v487
    %597 = vmatpush1.bf16.msra.mxu0 %v486
    %598 = vmatprep.subr.bf16.mxu0 %v491
    %599 = vmatpush1.bf16.msra.mxu0 %v490
    %600 = vmatprep.subr.bf16.mxu0 %v495
    %601 = vmatpush1.bf16.msra.mxu0 %v494
    %602 = vmatprep.subr.bf16.mxu0 %v499
    %603 = vmatpush1.bf16.msra.mxu0 %v498
    %604 = vmatprep.subr.bf16.mxu0 %v503
    %605 = vmatpush1.bf16.msra.mxu0 %v502
    %606 = vmatprep.subr.bf16.mxu0 %v507
    %607 = vmatpush1.bf16.msra.mxu0 %v506
    %608 = vmatprep.subr.bf16.mxu0 %v511
    %609 = vmatpush1.bf16.msra.mxu0 %v510
    %610 = vmatprep.mubr.bf16.mxu0 %v162
    %611 = vmatmul.mubr.bf16.gmra.mrb[0].mxu0 %v161
    %v612 = vpop.f32.mrb[0].mxu0
    %v613 = vadd.f32 %v241, %v612
    %v614 = vpop.f32.mrb[0].mxu0
    %v615 = vadd.f32 %v245, %v614
    %v616 = vpop.f32.mrb[0].mxu0
    %v617 = vadd.f32 %v241, %v616
    %v618 = vpop.f32.mrb[0].mxu0
    %v619 = vadd.f32 %v245, %v618
    %620 = vmatprep.mubr.bf16.mxu0 %v169
    %621 = vmatmul.mubr.bf16.gmra.mrb[0].mxu0 %v168
    %v622 = vpop.f32.mrb[0].mxu0
    %v623 = vadd.f32 %v241, %v622
    %v624 = vpop.f32.mrb[0].mxu0
    %v625 = vadd.f32 %v245, %v624
    %v626 = vpop.f32.mrb[0].mxu0
    %v627 = vpop.f32.mrb[0].mxu0
    %628 = vdwg.mxu0
    %629 = vmatprep.subr.bf16.mxu0 %v453
    %630 = vmatpush1.bf16.msra.mxu0 %v452
    %631 = vmatprep.subr.bf16.mxu0 %v457
    %632 = vmatpush1.bf16.msra.mxu0 %v456
    %633 = vmatprep.subr.bf16.mxu0 %v461
    %634 = vmatpush1.bf16.msra.mxu0 %v460
    %635 = vmatprep.subr.bf16.mxu0 %v465
    %636 = vmatpush1.bf16.msra.mxu0 %v464
    %637 = vmatprep.subr.bf16.mxu0 %v469
    %638 = vmatpush1.bf16.msra.mxu0 %v468
    %639 = vmatprep.subr.bf16.mxu0 %v473
    %640 = vmatpush1.bf16.msra.mxu0 %v472
    %641 = vmatprep.subr.bf16.mxu0 %v477
    %642 = vmatpush1.bf16.msra.mxu0 %v476
    %643 = vmatprep.subr.bf16.mxu0 %v481
    %644 = vmatpush1.bf16.msra.mxu0 %v480
    %645 = vmatprep.subr.bf16.mxu0 %v485
    %646 = vmatpush1.bf16.msra.mxu0 %v484
    %647 = vmatprep.subr.bf16.mxu0 %v489
    %648 = vmatpush1.bf16.msra.mxu0 %v488
    %649 = vmatprep.subr.bf16.mxu0 %v493
    %650 = vmatpush1.bf16.msra.mxu0 %v492
    %651 = vmatprep.subr.bf16.mxu0 %v497
    %652 = vmatpush1.bf16.msra.mxu0 %v496
    %653 = vmatprep.subr.bf16.mxu0 %v501
    %654 = vmatpush1.bf16.msra.mxu0 %v500
    %655 = vmatprep.subr.bf16.mxu0 %v505
    %656 = vmatpush1.bf16.msra.mxu0 %v504
    %657 = vmatprep.subr.bf16.mxu0 %v509
    %658 = vmatpush1.bf16.msra.mxu0 %v508
    %659 = vmatprep.subr.bf16.mxu0 %v513
    %660 = vmatpush1.bf16.msra.mxu0 %v512
    %661 = vmatprep.mubr.bf16.mxu0 %v162
    %662 = vmatmul.mubr.bf16.gmra.mrb[0].mxu0 %v161
    %v663 = vpop.f32.mrb[0].mxu0
    %v664 = vadd.f32 %v249, %v663
    %v665 = vpop.f32.mrb[0].mxu0
    %v666 = vadd.f32 %v253, %v665
    %v667 = vpop.f32.mrb[0].mxu0
    %v668 = vadd.f32 %v249, %v667
    %v669 = vpop.f32.mrb[0].mxu0
    %v670 = vadd.f32 %v253, %v669
    %671 = vmatprep.mubr.bf16.mxu0 %v169
    %672 = vmatmul.mubr.bf16.gmra.mrb[0].mxu0 %v168
    %v673 = vpop.f32.mrb[0].mxu0
    %v674 = vadd.f32 %v249, %v673
    %v675 = vpop.f32.mrb[0].mxu0
    %v676 = vadd.f32 %v253, %v675
    %v677 = vpop.f32.mrb[0].mxu0
    %v678 = vpop.f32.mrb[0].mxu0
    %679 = vdwg.mxu0
    %v680 = vld [vmem:[#allocation10] sm:$0xff]
    %v681 = vld [vmem:[#allocation10 + $0x8] sm:$0xff]
    %v682 = vld [vmem:[#allocation10 + $0x30] sm:$0xff]
    %v683 = vld [vmem:[#allocation10 + $0x38] sm:$0xff]
    %v684 = vld [vmem:[#allocation10 + $0x60] sm:$0xff]
    %v685 = vld [vmem:[#allocation10 + $0x68] sm:$0xff]
    %v686 = vld [vmem:[#allocation10 + $0x90] sm:$0xff]
    %v687 = vld [vmem:[#allocation10 + $0x98] sm:$0xff]
    %v688 = vld [vmem:[#allocation10 + $0xc0] sm:$0xff]
    %v689 = vld [vmem:[#allocation10 + $0xc8] sm:$0xff]
    %v690 = vld [vmem:[#allocation10 + $0xf0] sm:$0xff]
    %v691 = vld [vmem:[#allocation10 + $0xf8] sm:$0xff]
    %v692 = vld [vmem:[#allocation10 + $0x120] sm:$0xff]
    %v693 = vld [vmem:[#allocation10 + $0x128] sm:$0xff]
    %v694 = vld [vmem:[#allocation10 + $0x150] sm:$0xff]
    %v695 = vld [vmem:[#allocation10 + $0x158] sm:$0xff]
    %v696 = vld [vmem:[#allocation10 + $0x180] sm:$0xff]
    %v697 = vld [vmem:[#allocation10 + $0x188] sm:$0xff]
    %v698 = vld [vmem:[#allocation10 + $0x1b0] sm:$0xff]
    %v699 = vld [vmem:[#allocation10 + $0x1b8] sm:$0xff]
    %v700 = vld [vmem:[#allocation10 + $0x1e0] sm:$0xff]
    %v701 = vld [vmem:[#allocation10 + $0x1e8] sm:$0xff]
    %v702 = vld [vmem:[#allocation10 + $0x210] sm:$0xff]
    %v703 = vld [vmem:[#allocation10 + $0x218] sm:$0xff]
    %v704 = vld [vmem:[#allocation10 + $0x240] sm:$0xff]
    %v705 = vld [vmem:[#allocation10 + $0x248] sm:$0xff]
    %v706 = vld [vmem:[#allocation10 + $0x270] sm:$0xff]
    %v707 = vld [vmem:[#allocation10 + $0x278] sm:$0xff]
    %v708 = vld [vmem:[#allocation10 + $0x2a0] sm:$0xff]
    %v709 = vld [vmem:[#allocation10 + $0x2a8] sm:$0xff]
    %v710 = vld [vmem:[#allocation10 + $0x2d0] sm:$0xff]
    %v711 = vld [vmem:[#allocation10 + $0x2d8] sm:$0xff]
    %v712 = vld [vmem:[#allocation10 + $0x300] sm:$0xff]
    %v713 = vld [vmem:[#allocation10 + $0x308] sm:$0xff]
    %v714 = vld [vmem:[#allocation10 + $0x330] sm:$0xff]
    %v715 = vld [vmem:[#allocation10 + $0x338] sm:$0xff]
    %v716 = vld [vmem:[#allocation10 + $0x360] sm:$0xff]
    %v717 = vld [vmem:[#allocation10 + $0x368] sm:$0xff]
    %v718 = vld [vmem:[#allocation10 + $0x390] sm:$0xff]
    %v719 = vld [vmem:[#allocation10 + $0x398] sm:$0xff]
    %v720 = vld [vmem:[#allocation10 + $0x3c0] sm:$0xff]
    %v721 = vld [vmem:[#allocation10 + $0x3c8] sm:$0xff]
    %v722 = vld [vmem:[#allocation10 + $0x3f0] sm:$0xff]
    %v723 = vld [vmem:[#allocation10 + $0x3f8] sm:$0xff]
    %v724 = vld [vmem:[#allocation10 + $0x420] sm:$0xff]
    %v725 = vld [vmem:[#allocation10 + $0x428] sm:$0xff]
    %v726 = vld [vmem:[#allocation10 + $0x450] sm:$0xff]
    %v727 = vld [vmem:[#allocation10 + $0x458] sm:$0xff]
    %v728 = vld [vmem:[#allocation10 + $0x480] sm:$0xff]
    %v729 = vld [vmem:[#allocation10 + $0x488] sm:$0xff]
    %v730 = vld [vmem:[#allocation10 + $0x4b0] sm:$0xff]
    %v731 = vld [vmem:[#allocation10 + $0x4b8] sm:$0xff]
    %v732 = vld [vmem:[#allocation10 + $0x4e0] sm:$0xff]
    %v733 = vld [vmem:[#allocation10 + $0x4e8] sm:$0xff]
    %v734 = vld [vmem:[#allocation10 + $0x510] sm:$0xff]
    %v735 = vld [vmem:[#allocation10 + $0x518] sm:$0xff]
    %v736 = vld [vmem:[#allocation10 + $0x540] sm:$0xff]
    %v737 = vld [vmem:[#allocation10 + $0x548] sm:$0xff]
    %v738 = vld [vmem:[#allocation10 + $0x570] sm:$0xff]
    %v739 = vld [vmem:[#allocation10 + $0x578] sm:$0xff]
    %v740 = vld [vmem:[#allocation10 + $0x5a0] sm:$0xff]
    %v741 = vld [vmem:[#allocation10 + $0x5a8] sm:$0xff]
    %v742 = vld [vmem:[#allocation10 + $0x5d0] sm:$0xff]
    %v743 = vld [vmem:[#allocation10 + $0x5d8] sm:$0xff]
    %v744 = vld [vmem:[#allocation10 + $0x600] sm:$0xff]
    %v745 = vld [vmem:[#allocation10 + $0x608] sm:$0xff]
    %v746 = vld [vmem:[#allocation10 + $0x630] sm:$0xff]
    %v747 = vld [vmem:[#allocation10 + $0x638] sm:$0xff]
    %v748 = vld [vmem:[#allocation10 + $0x660] sm:$0xff]
    %v749 = vld [vmem:[#allocation10 + $0x668] sm:$0xff]
    %v750 = vld [vmem:[#allocation10 + $0x690] sm:$0xff]
    %v751 = vld [vmem:[#allocation10 + $0x698] sm:$0xff]
    %v752 = vld [vmem:[#allocation10 + $0x6c0] sm:$0xff]
    %v753 = vld [vmem:[#allocation10 + $0x6c8] sm:$0xff]
    %v754 = vld [vmem:[#allocation10 + $0x6f0] sm:$0xff]
    %v755 = vld [vmem:[#allocation10 + $0x6f8] sm:$0xff]
    %v756 = vld [vmem:[#allocation10 + $0x720] sm:$0xff]
    %v757 = vld [vmem:[#allocation10 + $0x728] sm:$0xff]
    %v758 = vld [vmem:[#allocation10 + $0x750] sm:$0xff]
    %v759 = vld [vmem:[#allocation10 + $0x758] sm:$0xff]
    %v760 = vld [vmem:[#allocation10 + $0x780] sm:$0xff]
    %v761 = vld [vmem:[#allocation10 + $0x788] sm:$0xff]
    %v762 = vld [vmem:[#allocation10 + $0x7b0] sm:$0xff]
    %v763 = vld [vmem:[#allocation10 + $0x7b8] sm:$0xff]
    %v764 = vld [vmem:[#allocation10 + $0x7e0] sm:$0xff]
    %v765 = vld [vmem:[#allocation10 + $0x7e8] sm:$0xff]
    %v766 = vld [vmem:[#allocation10 + $0x810] sm:$0xff]
    %v767 = vld [vmem:[#allocation10 + $0x818] sm:$0xff]
    %v768 = vld [vmem:[#allocation10 + $0x840] sm:$0xff]
    %v769 = vld [vmem:[#allocation10 + $0x848] sm:$0xff]
    %v770 = vld [vmem:[#allocation10 + $0x870] sm:$0xff]
    %v771 = vld [vmem:[#allocation10 + $0x878] sm:$0xff]
    %v772 = vld [vmem:[#allocation10 + $0x8a0] sm:$0xff]
    %v773 = vld [vmem:[#allocation10 + $0x8a8] sm:$0xff]
    %v774 = vld [vmem:[#allocation10 + $0x8d0] sm:$0xff]
    %v775 = vld [vmem:[#allocation10 + $0x8d8] sm:$0xff]
    %v776 = vld [vmem:[#allocation10 + $0x900] sm:$0xff]
    %v777 = vld [vmem:[#allocation10 + $0x908] sm:$0xff]
    %v778 = vld [vmem:[#allocation10 + $0x930] sm:$0xff]
    %v779 = vld [vmem:[#allocation10 + $0x938] sm:$0xff]
    %v780 = vld [vmem:[#allocation10 + $0x960] sm:$0xff]
    %v781 = vld [vmem:[#allocation10 + $0x968] sm:$0xff]
    %v782 = vld [vmem:[#allocation10 + $0x990] sm:$0xff]
    %v783 = vld [vmem:[#allocation10 + $0x998] sm:$0xff]
    %v784 = vld [vmem:[#allocation10 + $0x9c0] sm:$0xff]
    %v785 = vld [vmem:[#allocation10 + $0x9c8] sm:$0xff]
    %v786 = vld [vmem:[#allocation10 + $0x9f0] sm:$0xff]
    %v787 = vld [vmem:[#allocation10 + $0x9f8] sm:$0xff]
    %v788 = vld [vmem:[#allocation10 + $0xa20] sm:$0xff]
    %v789 = vld [vmem:[#allocation10 + $0xa28] sm:$0xff]
    %v790 = vld [vmem:[#allocation10 + $0xa50] sm:$0xff]
    %v791 = vld [vmem:[#allocation10 + $0xa58] sm:$0xff]
    %v792 = vld [vmem:[#allocation10 + $0xa80] sm:$0xff]
    %v793 = vld [vmem:[#allocation10 + $0xa88] sm:$0xff]
    %v794 = vld [vmem:[#allocation10 + $0xab0] sm:$0xff]
    %v795 = vld [vmem:[#allocation10 + $0xab8] sm:$0xff]
    %v796 = vld [vmem:[#allocation10 + $0xae0] sm:$0xff]
    %v797 = vld [vmem:[#allocation10 + $0xae8] sm:$0xff]
    %v798 = vld [vmem:[#allocation10 + $0xb10] sm:$0xff]
    %v799 = vld [vmem:[#allocation10 + $0xb18] sm:$0xff]
    %v800 = vld [vmem:[#allocation10 + $0xb40] sm:$0xff]
    %v801 = vld [vmem:[#allocation10 + $0xb48] sm:$0xff]
    %v802 = vld [vmem:[#allocation10 + $0xb70] sm:$0xff]
    %v803 = vld [vmem:[#allocation10 + $0xb78] sm:$0xff]
    %v804 = vld [vmem:[#allocation10 + $0xba0] sm:$0xff]
    %v805 = vld [vmem:[#allocation10 + $0xba8] sm:$0xff]
    %v806 = vld [vmem:[#allocation10 + $0xbd0] sm:$0xff]
    %v807 = vld [vmem:[#allocation10 + $0xbd8] sm:$0xff]
    %v808 = vld [vmem:[#allocation10 + $0x10] sm:$0xff]
    %v809 = vld [vmem:[#allocation10 + $0x18] sm:$0xff]
    %v810 = vld [vmem:[#allocation10 + $0x20] sm:$0xff]
    %v811 = vld [vmem:[#allocation10 + $0x28] sm:$0xff]
    %v812 = vld [vmem:[#allocation10 + $0x40] sm:$0xff]
    %v813 = vld [vmem:[#allocation10 + $0x48] sm:$0xff]
    %v814 = vld [vmem:[#allocation10 + $0x50] sm:$0xff]
    %v815 = vld [vmem:[#allocation10 + $0x58] sm:$0xff]
    %v816 = vld [vmem:[#allocation10 + $0x70] sm:$0xff]
    %v817 = vld [vmem:[#allocation10 + $0x78] sm:$0xff]
    %v818 = vld [vmem:[#allocation10 + $0x80] sm:$0xff]
    %v819 = vld [vmem:[#allocation10 + $0x88] sm:$0xff]
    %v820 = vld [vmem:[#allocation10 + $0xa0] sm:$0xff]
    %v821 = vld [vmem:[#allocation10 + $0xa8] sm:$0xff]
    %v822 = vld [vmem:[#allocation10 + $0xb0] sm:$0xff]
    %v823 = vld [vmem:[#allocation10 + $0xb8] sm:$0xff]
    %v824 = vld [vmem:[#allocation10 + $0xd0] sm:$0xff]
    %v825 = vld [vmem:[#allocation10 + $0xd8] sm:$0xff]
    %v826 = vld [vmem:[#allocation10 + $0xe0] sm:$0xff]
    %v827 = vld [vmem:[#allocation10 + $0xe8] sm:$0xff]
    %v828 = vld [vmem:[#allocation10 + $0x100] sm:$0xff]
    %v829 = vld [vmem:[#allocation10 + $0x108] sm:$0xff]
    %v830 = vld [vmem:[#allocation10 + $0x110] sm:$0xff]
    %v831 = vld [vmem:[#allocation10 + $0x118] sm:$0xff]
    %v832 = vld [vmem:[#allocation10 + $0x130] sm:$0xff]
    %v833 = vld [vmem:[#allocation10 + $0x138] sm:$0xff]
    %v834 = vld [vmem:[#allocation10 + $0x140] sm:$0xff]
    %v835 = vld [vmem:[#allocation10 + $0x148] sm:$0xff]
    %v836 = vld [vmem:[#allocation10 + $0x160] sm:$0xff]
    %v837 = vld [vmem:[#allocation10 + $0x168] sm:$0xff]
    %v838 = vld [vmem:[#allocation10 + $0x170] sm:$0xff]
    %v839 = vld [vmem:[#allocation10 + $0x178] sm:$0xff]
    %v840 = vld [vmem:[#allocation10 + $0x190] sm:$0xff]
    %v841 = vld [vmem:[#allocation10 + $0x198] sm:$0xff]
    %v842 = vld [vmem:[#allocation10 + $0x1a0] sm:$0xff]
    %v843 = vld [vmem:[#allocation10 + $0x1a8] sm:$0xff]
    %v844 = vld [vmem:[#allocation10 + $0x1c0] sm:$0xff]
    %v845 = vld [vmem:[#allocation10 + $0x1c8] sm:$0xff]
    %v846 = vld [vmem:[#allocation10 + $0x1d0] sm:$0xff]
    %v847 = vld [vmem:[#allocation10 + $0x1d8] sm:$0xff]
    %v848 = vld [vmem:[#allocation10 + $0x1f0] sm:$0xff]
    %v849 = vld [vmem:[#allocation10 + $0x1f8] sm:$0xff]
    %v850 = vld [vmem:[#allocation10 + $0x200] sm:$0xff]
    %v851 = vld [vmem:[#allocation10 + $0x208] sm:$0xff]
    %v852 = vld [vmem:[#allocation10 + $0x220] sm:$0xff]
    %v853 = vld [vmem:[#allocation10 + $0x228] sm:$0xff]
    %v854 = vld [vmem:[#allocation10 + $0x230] sm:$0xff]
    %v855 = vld [vmem:[#allocation10 + $0x238] sm:$0xff]
    %v856 = vld [vmem:[#allocation10 + $0x250] sm:$0xff]
    %v857 = vld [vmem:[#allocation10 + $0x258] sm:$0xff]
    %v858 = vld [vmem:[#allocation10 + $0x260] sm:$0xff]
    %v859 = vld [vmem:[#allocation10 + $0x268] sm:$0xff]
    %v860 = vld [vmem:[#allocation10 + $0x280] sm:$0xff]
    %v861 = vld [vmem:[#allocation10 + $0x288] sm:$0xff]
    %v862 = vld [vmem:[#allocation10 + $0x290] sm:$0xff]
    %v863 = vld [vmem:[#allocation10 + $0x298] sm:$0xff]
    %v864 = vld [vmem:[#allocation10 + $0x2b0] sm:$0xff]
    %v865 = vld [vmem:[#allocation10 + $0x2b8] sm:$0xff]
    %v866 = vld [vmem:[#allocation10 + $0x2c0] sm:$0xff]
    %v867 = vld [vmem:[#allocation10 + $0x2c8] sm:$0xff]
    %v868 = vld [vmem:[#allocation10 + $0x2e0] sm:$0xff]
    %v869 = vld [vmem:[#allocation10 + $0x2e8] sm:$0xff]
    %v870 = vld [vmem:[#allocation10 + $0x2f0] sm:$0xff]
    %v871 = vld [vmem:[#allocation10 + $0x2f8] sm:$0xff]
    %v872 = vld [vmem:[#allocation10 + $0x310] sm:$0xff]
    %v873 = vld [vmem:[#allocation10 + $0x318] sm:$0xff]
    %v874 = vld [vmem:[#allocation10 + $0x320] sm:$0xff]
    %v875 = vld [vmem:[#allocation10 + $0x328] sm:$0xff]
    %v876 = vld [vmem:[#allocation10 + $0x340] sm:$0xff]
    %v877 = vld [vmem:[#allocation10 + $0x348] sm:$0xff]
    %v878 = vld [vmem:[#allocation10 + $0x350] sm:$0xff]
    %v879 = vld [vmem:[#allocation10 + $0x358] sm:$0xff]
    %v880 = vld [vmem:[#allocation10 + $0x370] sm:$0xff]
    %v881 = vld [vmem:[#allocation10 + $0x378] sm:$0xff]
    %v882 = vld [vmem:[#allocation10 + $0x380] sm:$0xff]
    %v883 = vld [vmem:[#allocation10 + $0x388] sm:$0xff]
    %v884 = vld [vmem:[#allocation10 + $0x3a0] sm:$0xff]
    %v885 = vld [vmem:[#allocation10 + $0x3a8] sm:$0xff]
    %v886 = vld [vmem:[#allocation10 + $0x3b0] sm:$0xff]
    %v887 = vld [vmem:[#allocation10 + $0x3b8] sm:$0xff]
    %v888 = vld [vmem:[#allocation10 + $0x3d0] sm:$0xff]
    %v889 = vld [vmem:[#allocation10 + $0x3d8] sm:$0xff]
    %v890 = vld [vmem:[#allocation10 + $0x3e0] sm:$0xff]
    %v891 = vld [vmem:[#allocation10 + $0x3e8] sm:$0xff]
    %v892 = vld [vmem:[#allocation10 + $0x400] sm:$0xff]
    %v893 = vld [vmem:[#allocation10 + $0x408] sm:$0xff]
    %v894 = vld [vmem:[#allocation10 + $0x410] sm:$0xff]
    %v895 = vld [vmem:[#allocation10 + $0x418] sm:$0xff]
    %v896 = vld [vmem:[#allocation10 + $0x430] sm:$0xff]
    %v897 = vld [vmem:[#allocation10 + $0x438] sm:$0xff]
    %v898 = vld [vmem:[#allocation10 + $0x440] sm:$0xff]
    %v899 = vld [vmem:[#allocation10 + $0x448] sm:$0xff]
    %v900 = vld [vmem:[#allocation10 + $0x460] sm:$0xff]
    %v901 = vld [vmem:[#allocation10 + $0x468] sm:$0xff]
    %v902 = vld [vmem:[#allocation10 + $0x470] sm:$0xff]
    %v903 = vld [vmem:[#allocation10 + $0x478] sm:$0xff]
    %v904 = vld [vmem:[#allocation10 + $0x490] sm:$0xff]
    %v905 = vld [vmem:[#allocation10 + $0x498] sm:$0xff]
    %v906 = vld [vmem:[#allocation10 + $0x4a0] sm:$0xff]
    %v907 = vld [vmem:[#allocation10 + $0x4a8] sm:$0xff]
    %v908 = vld [vmem:[#allocation10 + $0x4c0] sm:$0xff]
    %v909 = vld [vmem:[#allocation10 + $0x4c8] sm:$0xff]
    %v910 = vld [vmem:[#allocation10 + $0x4d0] sm:$0xff]
    %v911 = vld [vmem:[#allocation10 + $0x4d8] sm:$0xff]
    %v912 = vld [vmem:[#allocation10 + $0x4f0] sm:$0xff]
    %v913 = vld [vmem:[#allocation10 + $0x4f8] sm:$0xff]
    %v914 = vld [vmem:[#allocation10 + $0x500] sm:$0xff]
    %v915 = vld [vmem:[#allocation10 + $0x508] sm:$0xff]
    %v916 = vld [vmem:[#allocation10 + $0x520] sm:$0xff]
    %v917 = vld [vmem:[#allocation10 + $0x528] sm:$0xff]
    %v918 = vld [vmem:[#allocation10 + $0x530] sm:$0xff]
    %v919 = vld [vmem:[#allocation10 + $0x538] sm:$0xff]
    %v920 = vld [vmem:[#allocation10 + $0x550] sm:$0xff]
    %v921 = vld [vmem:[#allocation10 + $0x558] sm:$0xff]
    %v922 = vld [vmem:[#allocation10 + $0x560] sm:$0xff]
    %v923 = vld [vmem:[#allocation10 + $0x568] sm:$0xff]
    %v924 = vld [vmem:[#allocation10 + $0x580] sm:$0xff]
    %v925 = vld [vmem:[#allocation10 + $0x588] sm:$0xff]
    %v926 = vld [vmem:[#allocation10 + $0x590] sm:$0xff]
    %v927 = vld [vmem:[#allocation10 + $0x598] sm:$0xff]
    %v928 = vld [vmem:[#allocation10 + $0x5b0] sm:$0xff]
    %v929 = vld [vmem:[#allocation10 + $0x5b8] sm:$0xff]
    %v930 = vld [vmem:[#allocation10 + $0x5c0] sm:$0xff]
    %v931 = vld [vmem:[#allocation10 + $0x5c8] sm:$0xff]
    %v932 = vld [vmem:[#allocation10 + $0x5e0] sm:$0xff]
    %v933 = vld [vmem:[#allocation10 + $0x5e8] sm:$0xff]
    %v934 = vld [vmem:[#allocation10 + $0x5f0] sm:$0xff]
    %v935 = vld [vmem:[#allocation10 + $0x5f8] sm:$0xff]
    %v936 = vld [vmem:[#allocation10 + $0x610] sm:$0xff]
    %v937 = vld [vmem:[#allocation10 + $0x618] sm:$0xff]
    %v938 = vld [vmem:[#allocation10 + $0x620] sm:$0xff]
    %v939 = vld [vmem:[#allocation10 + $0x628] sm:$0xff]
    %v940 = vld [vmem:[#allocation10 + $0x640] sm:$0xff]
    %v941 = vld [vmem:[#allocation10 + $0x648] sm:$0xff]
    %v942 = vld [vmem:[#allocation10 + $0x650] sm:$0xff]
    %v943 = vld [vmem:[#allocation10 + $0x658] sm:$0xff]
    %v944 = vld [vmem:[#allocation10 + $0x670] sm:$0xff]
    %v945 = vld [vmem:[#allocation10 + $0x678] sm:$0xff]
    %v946 = vld [vmem:[#allocation10 + $0x680] sm:$0xff]
    %v947 = vld [vmem:[#allocation10 + $0x688] sm:$0xff]
    %v948 = vld [vmem:[#allocation10 + $0x6a0] sm:$0xff]
    %v949 = vld [vmem:[#allocation10 + $0x6a8] sm:$0xff]
    %v950 = vld [vmem:[#allocation10 + $0x6b0] sm:$0xff]
    %v951 = vld [vmem:[#allocation10 + $0x6b8] sm:$0xff]
    %v952 = vld [vmem:[#allocation10 + $0x6d0] sm:$0xff]
    %v953 = vld [vmem:[#allocation10 + $0x6d8] sm:$0xff]
    %v954 = vld [vmem:[#allocation10 + $0x6e0] sm:$0xff]
    %v955 = vld [vmem:[#allocation10 + $0x6e8] sm:$0xff]
    %v956 = vld [vmem:[#allocation10 + $0x700] sm:$0xff]
    %v957 = vld [vmem:[#allocation10 + $0x708] sm:$0xff]
    %v958 = vld [vmem:[#allocation10 + $0x710] sm:$0xff]
    %v959 = vld [vmem:[#allocation10 + $0x718] sm:$0xff]
    %v960 = vld [vmem:[#allocation10 + $0x730] sm:$0xff]
    %v961 = vld [vmem:[#allocation10 + $0x738] sm:$0xff]
    %v962 = vld [vmem:[#allocation10 + $0x740] sm:$0xff]
    %v963 = vld [vmem:[#allocation10 + $0x748] sm:$0xff]
    %v964 = vld [vmem:[#allocation10 + $0x760] sm:$0xff]
    %v965 = vld [vmem:[#allocation10 + $0x768] sm:$0xff]
    %v966 = vld [vmem:[#allocation10 + $0x770] sm:$0xff]
    %v967 = vld [vmem:[#allocation10 + $0x778] sm:$0xff]
    %v968 = vld [vmem:[#allocation10 + $0x790] sm:$0xff]
    %v969 = vld [vmem:[#allocation10 + $0x798] sm:$0xff]
    %v970 = vld [vmem:[#allocation10 + $0x7a0] sm:$0xff]
    %v971 = vld [vmem:[#allocation10 + $0x7a8] sm:$0xff]
    %v972 = vld [vmem:[#allocation10 + $0x7c0] sm:$0xff]
    %v973 = vld [vmem:[#allocation10 + $0x7c8] sm:$0xff]
    %v974 = vld [vmem:[#allocation10 + $0x7d0] sm:$0xff]
    %v975 = vld [vmem:[#allocation10 + $0x7d8] sm:$0xff]
    %v976 = vld [vmem:[#allocation10 + $0x7f0] sm:$0xff]
    %v977 = vld [vmem:[#allocation10 + $0x7f8] sm:$0xff]
    %v978 = vld [vmem:[#allocation10 + $0x800] sm:$0xff]
    %v979 = vld [vmem:[#allocation10 + $0x808] sm:$0xff]
    %v980 = vld [vmem:[#allocation10 + $0x820] sm:$0xff]
    %v981 = vld [vmem:[#allocation10 + $0x828] sm:$0xff]
    %v982 = vld [vmem:[#allocation10 + $0x830] sm:$0xff]
    %v983 = vld [vmem:[#allocation10 + $0x838] sm:$0xff]
    %v984 = vld [vmem:[#allocation10 + $0x850] sm:$0xff]
    %v985 = vld [vmem:[#allocation10 + $0x858] sm:$0xff]
    %v986 = vld [vmem:[#allocation10 + $0x860] sm:$0xff]
    %v987 = vld [vmem:[#allocation10 + $0x868] sm:$0xff]
    %v988 = vld [vmem:[#allocation10 + $0x880] sm:$0xff]
    %v989 = vld [vmem:[#allocation10 + $0x888] sm:$0xff]
    %v990 = vld [vmem:[#allocation10 + $0x890] sm:$0xff]
    %v991 = vld [vmem:[#allocation10 + $0x898] sm:$0xff]
    %v992 = vld [vmem:[#allocation10 + $0x8b0] sm:$0xff]
    %v993 = vld [vmem:[#allocation10 + $0x8b8] sm:$0xff]
    %v994 = vld [vmem:[#allocation10 + $0x8c0] sm:$0xff]
    %v995 = vld [vmem:[#allocation10 + $0x8c8] sm:$0xff]
    %v996 = vld [vmem:[#allocation10 + $0x8e0] sm:$0xff]
    %v997 = vld [vmem:[#allocation10 + $0x8e8] sm:$0xff]
    %v998 = vld [vmem:[#allocation10 + $0x8f0] sm:$0xff]
    %v999 = vld [vmem:[#allocation10 + $0x8f8] sm:$0xff]
    %v1000 = vld [vmem:[#allocation10 + $0x910] sm:$0xff]
    %v1001 = vld [vmem:[#allocation10 + $0x918] sm:$0xff]
    %v1002 = vld [vmem:[#allocation10 + $0x920] sm:$0xff]
    %v1003 = vld [vmem:[#allocation10 + $0x928] sm:$0xff]
    %v1004 = vld [vmem:[#allocation10 + $0x940] sm:$0xff]
    %v1005 = vld [vmem:[#allocation10 + $0x948] sm:$0xff]
    %v1006 = vld [vmem:[#allocation10 + $0x950] sm:$0xff]
    %v1007 = vld [vmem:[#allocation10 + $0x958] sm:$0xff]
    %v1008 = vld [vmem:[#allocation10 + $0x970] sm:$0xff]
    %v1009 = vld [vmem:[#allocation10 + $0x978] sm:$0xff]
    %v1010 = vld [vmem:[#allocation10 + $0x980] sm:$0xff]
    %v1011 = vld [vmem:[#allocation10 + $0x988] sm:$0xff]
    %v1012 = vld [vmem:[#allocation10 + $0x9a0] sm:$0xff]
    %v1013 = vld [vmem:[#allocation10 + $0x9a8] sm:$0xff]
    %v1014 = vld [vmem:[#allocation10 + $0x9b0] sm:$0xff]
    %v1015 = vld [vmem:[#allocation10 + $0x9b8] sm:$0xff]
    %v1016 = vld [vmem:[#allocation10 + $0x9d0] sm:$0xff]
    %v1017 = vld [vmem:[#allocation10 + $0x9d8] sm:$0xff]
    %v1018 = vld [vmem:[#allocation10 + $0x9e0] sm:$0xff]
    %v1019 = vld [vmem:[#allocation10 + $0x9e8] sm:$0xff]
    %v1020 = vld [vmem:[#allocation10 + $0xa00] sm:$0xff]
    %v1021 = vld [vmem:[#allocation10 + $0xa08] sm:$0xff]
    %v1022 = vld [vmem:[#allocation10 + $0xa10] sm:$0xff]
    %v1023 = vld [vmem:[#allocation10 + $0xa18] sm:$0xff]
    %v1024 = vld [vmem:[#allocation10 + $0xa30] sm:$0xff]
    %v1025 = vld [vmem:[#allocation10 + $0xa38] sm:$0xff]
    %v1026 = vld [vmem:[#allocation10 + $0xa40] sm:$0xff]
    %v1027 = vld [vmem:[#allocation10 + $0xa48] sm:$0xff]
    %v1028 = vld [vmem:[#allocation10 + $0xa60] sm:$0xff]
    %v1029 = vld [vmem:[#allocation10 + $0xa68] sm:$0xff]
    %v1030 = vld [vmem:[#allocation10 + $0xa70] sm:$0xff]
    %v1031 = vld [vmem:[#allocation10 + $0xa78] sm:$0xff]
    %v1032 = vld [vmem:[#allocation10 + $0xa90] sm:$0xff]
    %v1033 = vld [vmem:[#allocation10 + $0xa98] sm:$0xff]
    %v1034 = vld [vmem:[#allocation10 + $0xaa0] sm:$0xff]
    %v1035 = vld [vmem:[#allocation10 + $0xaa8] sm:$0xff]
    %v1036 = vld [vmem:[#allocation10 + $0xac0] sm:$0xff]
    %v1037 = vld [vmem:[#allocation10 + $0xac8] sm:$0xff]
    %v1038 = vld [vmem:[#allocation10 + $0xad0] sm:$0xff]
    %v1039 = vld [vmem:[#allocation10 + $0xad8] sm:$0xff]
    %v1040 = vld [vmem:[#allocation10 + $0xaf0] sm:$0xff]
    %v1041 = vld [vmem:[#allocation10 + $0xaf8] sm:$0xff]
    %v1042 = vld [vmem:[#allocation10 + $0xb00] sm:$0xff]
    %v1043 = vld [vmem:[#allocation10 + $0xb08] sm:$0xff]
    %v1044 = vld [vmem:[#allocation10 + $0xb20] sm:$0xff]
    %v1045 = vld [vmem:[#allocation10 + $0xb28] sm:$0xff]
    %v1046 = vld [vmem:[#allocation10 + $0xb30] sm:$0xff]
    %v1047 = vld [vmem:[#allocation10 + $0xb38] sm:$0xff]
    %v1048 = vld [vmem:[#allocation10 + $0xb50] sm:$0xff]
    %v1049 = vld [vmem:[#allocation10 + $0xb58] sm:$0xff]
    %v1050 = vld [vmem:[#allocation10 + $0xb60] sm:$0xff]
    %v1051 = vld [vmem:[#allocation10 + $0xb68] sm:$0xff]
    %v1052 = vld [vmem:[#allocation10 + $0xb80] sm:$0xff]
    %v1053 = vld [vmem:[#allocation10 + $0xb88] sm:$0xff]
    %v1054 = vld [vmem:[#allocation10 + $0xb90] sm:$0xff]
    %v1055 = vld [vmem:[#allocation10 + $0xb98] sm:$0xff]
    %v1056 = vld [vmem:[#allocation10 + $0xbb0] sm:$0xff]
    %v1057 = vld [vmem:[#allocation10 + $0xbb8] sm:$0xff]
    %v1058 = vld [vmem:[#allocation10 + $0xbc0] sm:$0xff]
    %v1059 = vld [vmem:[#allocation10 + $0xbc8] sm:$0xff]
    %v1060 = vld [vmem:[#allocation10 + $0xbe0] sm:$0xff]
    %v1061 = vld [vmem:[#allocation10 + $0xbe8] sm:$0xff]
    %v1062 = vld [vmem:[#allocation10 + $0xbf0] sm:$0xff]
    %v1063 = vld [vmem:[#allocation10 + $0xbf8] sm:$0xff]
    %v1064 = vld [vmem:[#allocation11] sm:$0xf]
    %v1065 = vld [vmem:[#allocation11 + $0x4] sm:$0xff]
    %v1066 = vpack.c.bf16 %v623, %v623
    %v1067 = vpack.c.bf16 %v625, %v625
    %v1068 = vpack.c.bf16 %v674, %v674
    %v1069 = vpack.c.bf16 %v676, %v676
    %v1071 = vlaneseq
    %v1072 = vshrl.u32 %v1071, 7
    %v1073 = vsub.s32 0, %v1072
    %v1074 = vrot.slane %v1064, %v1073
    %v1075 = vlaneseq
    %v1076 = vshrl.u32 %v1075, 7
    %v1077 = vsub.s32 1, %v1076
    %v1078 = vrot.slane %v1064, %v1077
    %v1079 = vlaneseq
    %v1080 = vshrl.u32 %v1079, 7
    %v1081 = vsub.s32 2, %v1080
    %v1082 = vrot.slane %v1064, %v1081
    %v1083 = vlaneseq
    %v1084 = vshrl.u32 %v1083, 7
    %v1085 = vsub.s32 3, %v1084
    %v1086 = vrot.slane %v1064, %v1085
    %v1219 = vunpack.c.l.b16 %v680
    %v1220 = vunpack.c.h.b16 %v680
    %v1221 = vunpack.c.l.b16 %v681
    %v1222 = vunpack.c.h.b16 %v681
    %v1223 = vunpack.c.l.b16 %v682
    %v1224 = vunpack.c.h.b16 %v682
    %v1225 = vunpack.c.l.b16 %v683
    %v1226 = vunpack.c.h.b16 %v683
    %v1227 = vunpack.c.l.b16 %v684
    %v1228 = vunpack.c.h.b16 %v684
    %v1229 = vunpack.c.l.b16 %v685
    %v1230 = vunpack.c.h.b16 %v685
    %v1231 = vunpack.c.l.b16 %v686
    %v1232 = vunpack.c.h.b16 %v686
    %v1233 = vunpack.c.l.b16 %v687
    %v1234 = vunpack.c.h.b16 %v687
    %v1235 = vunpack.c.l.b16 %v688
    %v1236 = vunpack.c.h.b16 %v688
    %v1237 = vunpack.c.l.b16 %v689
    %v1238 = vunpack.c.h.b16 %v689
    %v1239 = vunpack.c.l.b16 %v690
    %v1240 = vunpack.c.h.b16 %v690
    %v1241 = vunpack.c.l.b16 %v691
    %v1242 = vunpack.c.h.b16 %v691
    %v1243 = vunpack.c.l.b16 %v692
    %v1244 = vunpack.c.h.b16 %v692
    %v1245 = vunpack.c.l.b16 %v693
    %v1246 = vunpack.c.h.b16 %v693
    %v1247 = vunpack.c.l.b16 %v694
    %v1248 = vunpack.c.h.b16 %v694
    %v1249 = vunpack.c.l.b16 %v695
    %v1250 = vunpack.c.h.b16 %v695
    %v1251 = vunpack.c.l.b16 %v696
    %v1252 = vunpack.c.h.b16 %v696
    %v1253 = vunpack.c.l.b16 %v697
    %v1254 = vunpack.c.h.b16 %v697
    %v1255 = vunpack.c.l.b16 %v698
    %v1256 = vunpack.c.h.b16 %v698
    %v1257 = vunpack.c.l.b16 %v699
    %v1258 = vunpack.c.h.b16 %v699
    %v1259 = vunpack.c.l.b16 %v700
    %v1260 = vunpack.c.h.b16 %v700
    %v1261 = vunpack.c.l.b16 %v701
    %v1262 = vunpack.c.h.b16 %v701
    %v1263 = vunpack.c.l.b16 %v702
    %v1264 = vunpack.c.h.b16 %v702
    %v1265 = vunpack.c.l.b16 %v703
    %v1266 = vunpack.c.h.b16 %v703
    %v1267 = vunpack.c.l.b16 %v704
    %v1268 = vunpack.c.h.b16 %v704
    %v1269 = vunpack.c.l.b16 %v705
    %v1270 = vunpack.c.h.b16 %v705
    %v1271 = vunpack.c.l.b16 %v706
    %v1272 = vunpack.c.h.b16 %v706
    %v1273 = vunpack.c.l.b16 %v707
    %v1274 = vunpack.c.h.b16 %v707
    %v1275 = vunpack.c.l.b16 %v708
    %v1276 = vunpack.c.h.b16 %v708
    %v1277 = vunpack.c.l.b16 %v709
    %v1278 = vunpack.c.h.b16 %v709
    %v1279 = vunpack.c.l.b16 %v710
    %v1280 = vunpack.c.h.b16 %v710
    %v1281 = vunpack.c.l.b16 %v711
    %v1282 = vunpack.c.h.b16 %v711
    %v1283 = vunpack.c.l.b16 %v712
    %v1284 = vunpack.c.h.b16 %v712
    %v1285 = vunpack.c.l.b16 %v713
    %v1286 = vunpack.c.h.b16 %v713
    %v1287 = vunpack.c.l.b16 %v714
    %v1288 = vunpack.c.h.b16 %v714
    %v1289 = vunpack.c.l.b16 %v715
    %v1290 = vunpack.c.h.b16 %v715
    %v1291 = vunpack.c.l.b16 %v716
    %v1292 = vunpack.c.h.b16 %v716
    %v1293 = vunpack.c.l.b16 %v717
    %v1294 = vunpack.c.h.b16 %v717
    %v1295 = vunpack.c.l.b16 %v718
    %v1296 = vunpack.c.h.b16 %v718
    %v1297 = vunpack.c.l.b16 %v719
    %v1298 = vunpack.c.h.b16 %v719
    %v1299 = vunpack.c.l.b16 %v720
    %v1300 = vunpack.c.h.b16 %v720
    %v1301 = vunpack.c.l.b16 %v721
    %v1302 = vunpack.c.h.b16 %v721
    %v1303 = vunpack.c.l.b16 %v722
    %v1304 = vunpack.c.h.b16 %v722
    %v1305 = vunpack.c.l.b16 %v723
    %v1306 = vunpack.c.h.b16 %v723
    %v1307 = vunpack.c.l.b16 %v724
    %v1308 = vunpack.c.h.b16 %v724
    %v1309 = vunpack.c.l.b16 %v725
    %v1310 = vunpack.c.h.b16 %v725
    %v1311 = vunpack.c.l.b16 %v726
    %v1312 = vunpack.c.h.b16 %v726
    %v1313 = vunpack.c.l.b16 %v727
    %v1314 = vunpack.c.h.b16 %v727
    %v1315 = vunpack.c.l.b16 %v728
    %v1316 = vunpack.c.h.b16 %v728
    %v1317 = vunpack.c.l.b16 %v729
    %v1318 = vunpack.c.h.b16 %v729
    %v1319 = vunpack.c.l.b16 %v730
    %v1320 = vunpack.c.h.b16 %v730
    %v1321 = vunpack.c.l.b16 %v731
    %v1322 = vunpack.c.h.b16 %v731
    %v1323 = vunpack.c.l.b16 %v732
    %v1324 = vunpack.c.h.b16 %v732
    %v1325 = vunpack.c.l.b16 %v733
    %v1326 = vunpack.c.h.b16 %v733
    %v1327 = vunpack.c.l.b16 %v734
    %v1328 = vunpack.c.h.b16 %v734
    %v1329 = vunpack.c.l.b16 %v735
    %v1330 = vunpack.c.h.b16 %v735
    %v1331 = vunpack.c.l.b16 %v736
    %v1332 = vunpack.c.h.b16 %v736
    %v1333 = vunpack.c.l.b16 %v737
    %v1334 = vunpack.c.h.b16 %v737
    %v1335 = vunpack.c.l.b16 %v738
    %v1336 = vunpack.c.h.b16 %v738
    %v1337 = vunpack.c.l.b16 %v739
    %v1338 = vunpack.c.h.b16 %v739
    %v1339 = vunpack.c.l.b16 %v740
    %v1340 = vunpack.c.h.b16 %v740
    %v1341 = vunpack.c.l.b16 %v741
    %v1342 = vunpack.c.h.b16 %v741
    %v1343 = vunpack.c.l.b16 %v742
    %v1344 = vunpack.c.h.b16 %v742
    %v1345 = vunpack.c.l.b16 %v743
    %v1346 = vunpack.c.h.b16 %v743
    %v1347 = vunpack.c.l.b16 %v744
    %v1348 = vunpack.c.h.b16 %v744
    %v1349 = vunpack.c.l.b16 %v745
    %v1350 = vunpack.c.h.b16 %v745
    %v1351 = vunpack.c.l.b16 %v746
    %v1352 = vunpack.c.h.b16 %v746
    %v1353 = vunpack.c.l.b16 %v747
    %v1354 = vunpack.c.h.b16 %v747
    %v1355 = vunpack.c.l.b16 %v748
    %v1356 = vunpack.c.h.b16 %v748
    %v1357 = vunpack.c.l.b16 %v749
    %v1358 = vunpack.c.h.b16 %v749
    %v1359 = vunpack.c.l.b16 %v750
    %v1360 = vunpack.c.h.b16 %v750
    %v1361 = vunpack.c.l.b16 %v751
    %v1362 = vunpack.c.h.b16 %v751
    %v1363 = vunpack.c.l.b16 %v752
    %v1364 = vunpack.c.h.b16 %v752
    %v1365 = vunpack.c.l.b16 %v753
    %v1366 = vunpack.c.h.b16 %v753
    %v1367 = vunpack.c.l.b16 %v754
    %v1368 = vunpack.c.h.b16 %v754
    %v1369 = vunpack.c.l.b16 %v755
    %v1370 = vunpack.c.h.b16 %v755
    %v1371 = vunpack.c.l.b16 %v756
    %v1372 = vunpack.c.h.b16 %v756
    %v1373 = vunpack.c.l.b16 %v757
    %v1374 = vunpack.c.h.b16 %v757
    %v1375 = vunpack.c.l.b16 %v758
    %v1376 = vunpack.c.h.b16 %v758
    %v1377 = vunpack.c.l.b16 %v759
    %v1378 = vunpack.c.h.b16 %v759
    %v1379 = vunpack.c.l.b16 %v760
    %v1380 = vunpack.c.h.b16 %v760
    %v1381 = vunpack.c.l.b16 %v761
    %v1382 = vunpack.c.h.b16 %v761
    %v1383 = vunpack.c.l.b16 %v762
    %v1384 = vunpack.c.h.b16 %v762
    %v1385 = vunpack.c.l.b16 %v763
    %v1386 = vunpack.c.h.b16 %v763
    %v1387 = vunpack.c.l.b16 %v764
    %v1388 = vunpack.c.h.b16 %v764
    %v1389 = vunpack.c.l.b16 %v765
    %v1390 = vunpack.c.h.b16 %v765
    %v1391 = vunpack.c.l.b16 %v766
    %v1392 = vunpack.c.h.b16 %v766
    %v1393 = vunpack.c.l.b16 %v767
    %v1394 = vunpack.c.h.b16 %v767
    %v1395 = vunpack.c.l.b16 %v768
    %v1396 = vunpack.c.h.b16 %v768
    %v1397 = vunpack.c.l.b16 %v769
    %v1398 = vunpack.c.h.b16 %v769
    %v1399 = vunpack.c.l.b16 %v770
    %v1400 = vunpack.c.h.b16 %v770
    %v1401 = vunpack.c.l.b16 %v771
    %v1402 = vunpack.c.h.b16 %v771
    %v1403 = vunpack.c.l.b16 %v772
    %v1404 = vunpack.c.h.b16 %v772
    %v1405 = vunpack.c.l.b16 %v773
    %v1406 = vunpack.c.h.b16 %v773
    %v1407 = vunpack.c.l.b16 %v774
    %v1408 = vunpack.c.h.b16 %v774
    %v1409 = vunpack.c.l.b16 %v775
    %v1410 = vunpack.c.h.b16 %v775
    %v1411 = vunpack.c.l.b16 %v776
    %v1412 = vunpack.c.h.b16 %v776
    %v1413 = vunpack.c.l.b16 %v777
    %v1414 = vunpack.c.h.b16 %v777
    %v1415 = vunpack.c.l.b16 %v778
    %v1416 = vunpack.c.h.b16 %v778
    %v1417 = vunpack.c.l.b16 %v779
    %v1418 = vunpack.c.h.b16 %v779
    %v1419 = vunpack.c.l.b16 %v780
    %v1420 = vunpack.c.h.b16 %v780
    %v1421 = vunpack.c.l.b16 %v781
    %v1422 = vunpack.c.h.b16 %v781
    %v1423 = vunpack.c.l.b16 %v782
    %v1424 = vunpack.c.h.b16 %v782
    %v1425 = vunpack.c.l.b16 %v783
    %v1426 = vunpack.c.h.b16 %v783
    %v1427 = vunpack.c.l.b16 %v784
    %v1428 = vunpack.c.h.b16 %v784
    %v1429 = vunpack.c.l.b16 %v785
    %v1430 = vunpack.c.h.b16 %v785
    %v1431 = vunpack.c.l.b16 %v786
    %v1432 = vunpack.c.h.b16 %v786
    %v1433 = vunpack.c.l.b16 %v787
    %v1434 = vunpack.c.h.b16 %v787
    %v1435 = vunpack.c.l.b16 %v788
    %v1436 = vunpack.c.h.b16 %v788
    %v1437 = vunpack.c.l.b16 %v789
    %v1438 = vunpack.c.h.b16 %v789
    %v1439 = vunpack.c.l.b16 %v790
    %v1440 = vunpack.c.h.b16 %v790
    %v1441 = vunpack.c.l.b16 %v791
    %v1442 = vunpack.c.h.b16 %v791
    %v1443 = vunpack.c.l.b16 %v792
    %v1444 = vunpack.c.h.b16 %v792
    %v1445 = vunpack.c.l.b16 %v793
    %v1446 = vunpack.c.h.b16 %v793
    %v1447 = vunpack.c.l.b16 %v794
    %v1448 = vunpack.c.h.b16 %v794
    %v1449 = vunpack.c.l.b16 %v795
    %v1450 = vunpack.c.h.b16 %v795
    %v1451 = vunpack.c.l.b16 %v796
    %v1452 = vunpack.c.h.b16 %v796
    %v1453 = vunpack.c.l.b16 %v797
    %v1454 = vunpack.c.h.b16 %v797
    %v1455 = vunpack.c.l.b16 %v798
    %v1456 = vunpack.c.h.b16 %v798
    %v1457 = vunpack.c.l.b16 %v799
    %v1458 = vunpack.c.h.b16 %v799
    %v1459 = vunpack.c.l.b16 %v800
    %v1460 = vunpack.c.h.b16 %v800
    %v1461 = vunpack.c.l.b16 %v801
    %v1462 = vunpack.c.h.b16 %v801
    %v1463 = vunpack.c.l.b16 %v802
    %v1464 = vunpack.c.h.b16 %v802
    %v1465 = vunpack.c.l.b16 %v803
    %v1466 = vunpack.c.h.b16 %v803
    %v1467 = vunpack.c.l.b16 %v804
    %v1468 = vunpack.c.h.b16 %v804
    %v1469 = vunpack.c.l.b16 %v805
    %v1470 = vunpack.c.h.b16 %v805
    %v1471 = vunpack.c.l.b16 %v806
    %v1472 = vunpack.c.h.b16 %v806
    %v1473 = vunpack.c.l.b16 %v807
    %v1474 = vunpack.c.h.b16 %v807
    %v1475 = vpack.c.b16 %v1223, %v1219
    %v1476 = vpack.c.b16 %v1224, %v1220
    %v1477 = vpack.c.b16 %v1225, %v1221
    %v1478 = vpack.c.b16 %v1226, %v1222
    %v1479 = vpack.c.b16 %v1231, %v1227
    %v1480 = vpack.c.b16 %v1232, %v1228
    %v1481 = vpack.c.b16 %v1233, %v1229
    %v1482 = vpack.c.b16 %v1234, %v1230
    %v1483 = vpack.c.b16 %v1239, %v1235
    %v1484 = vpack.c.b16 %v1240, %v1236
    %v1485 = vpack.c.b16 %v1241, %v1237
    %v1486 = vpack.c.b16 %v1242, %v1238
    %v1487 = vpack.c.b16 %v1247, %v1243
    %v1488 = vpack.c.b16 %v1248, %v1244
    %v1489 = vpack.c.b16 %v1249, %v1245
    %v1490 = vpack.c.b16 %v1250, %v1246
    %v1491 = vpack.c.b16 %v1255, %v1251
    %v1492 = vpack.c.b16 %v1256, %v1252
    %v1493 = vpack.c.b16 %v1257, %v1253
    %v1494 = vpack.c.b16 %v1258, %v1254
    %v1495 = vpack.c.b16 %v1263, %v1259
    %v1496 = vpack.c.b16 %v1264, %v1260
    %v1497 = vpack.c.b16 %v1265, %v1261
    %v1498 = vpack.c.b16 %v1266, %v1262
    %v1499 = vpack.c.b16 %v1271, %v1267
    %v1500 = vpack.c.b16 %v1272, %v1268
    %v1501 = vpack.c.b16 %v1273, %v1269
    %v1502 = vpack.c.b16 %v1274, %v1270
    %v1503 = vpack.c.b16 %v1279, %v1275
    %v1504 = vpack.c.b16 %v1280, %v1276
    %v1505 = vpack.c.b16 %v1281, %v1277
    %v1506 = vpack.c.b16 %v1282, %v1278
    %v1507 = vpack.c.b16 %v1287, %v1283
    %v1508 = vpack.c.b16 %v1288, %v1284
    %v1509 = vpack.c.b16 %v1289, %v1285
    %v1510 = vpack.c.b16 %v1290, %v1286
    %v1511 = vpack.c.b16 %v1295, %v1291
    %v1512 = vpack.c.b16 %v1296, %v1292
    %v1513 = vpack.c.b16 %v1297, %v1293
    %v1514 = vpack.c.b16 %v1298, %v1294
    %v1515 = vpack.c.b16 %v1303, %v1299
    %v1516 = vpack.c.b16 %v1304, %v1300
    %v1517 = vpack.c.b16 %v1305, %v1301
    %v1518 = vpack.c.b16 %v1306, %v1302
    %v1519 = vpack.c.b16 %v1311, %v1307
    %v1520 = vpack.c.b16 %v1312, %v1308
    %v1521 = vpack.c.b16 %v1313, %v1309
    %v1522 = vpack.c.b16 %v1314, %v1310
    %v1523 = vpack.c.b16 %v1319, %v1315
    %v1524 = vpack.c.b16 %v1320, %v1316
    %v1525 = vpack.c.b16 %v1321, %v1317
    %v1526 = vpack.c.b16 %v1322, %v1318
    %v1527 = vpack.c.b16 %v1327, %v1323
    %v1528 = vpack.c.b16 %v1328, %v1324
    %v1529 = vpack.c.b16 %v1329, %v1325
    %v1530 = vpack.c.b16 %v1330, %v1326
    %v1531 = vpack.c.b16 %v1335, %v1331
    %v1532 = vpack.c.b16 %v1336, %v1332
    %v1533 = vpack.c.b16 %v1337, %v1333
    %v1534 = vpack.c.b16 %v1338, %v1334
    %v1535 = vpack.c.b16 %v1343, %v1339
    %v1536 = vpack.c.b16 %v1344, %v1340
    %v1537 = vpack.c.b16 %v1345, %v1341
    %v1538 = vpack.c.b16 %v1346, %v1342
    %v1539 = vpack.c.b16 %v1351, %v1347
    %v1540 = vpack.c.b16 %v1352, %v1348
    %v1541 = vpack.c.b16 %v1353, %v1349
    %v1542 = vpack.c.b16 %v1354, %v1350
    %v1543 = vpack.c.b16 %v1359, %v1355
    %v1544 = vpack.c.b16 %v1360, %v1356
    %v1545 = vpack.c.b16 %v1361, %v1357
    %v1546 = vpack.c.b16 %v1362, %v1358
    %v1547 = vpack.c.b16 %v1367, %v1363
    %v1548 = vpack.c.b16 %v1368, %v1364
    %v1549 = vpack.c.b16 %v1369, %v1365
    %v1550 = vpack.c.b16 %v1370, %v1366
    %v1551 = vpack.c.b16 %v1375, %v1371
    %v1552 = vpack.c.b16 %v1376, %v1372
    %v1553 = vpack.c.b16 %v1377, %v1373
    %v1554 = vpack.c.b16 %v1378, %v1374
    %v1555 = vpack.c.b16 %v1383, %v1379
    %v1556 = vpack.c.b16 %v1384, %v1380
    %v1557 = vpack.c.b16 %v1385, %v1381
    %v1558 = vpack.c.b16 %v1386, %v1382
    %v1559 = vpack.c.b16 %v1391, %v1387
    %v1560 = vpack.c.b16 %v1392, %v1388
    %v1561 = vpack.c.b16 %v1393, %v1389
    %v1562 = vpack.c.b16 %v1394, %v1390
    %v1563 = vpack.c.b16 %v1399, %v1395
    %v1564 = vpack.c.b16 %v1400, %v1396
    %v1565 = vpack.c.b16 %v1401, %v1397
    %v1566 = vpack.c.b16 %v1402, %v1398
    %v1567 = vpack.c.b16 %v1407, %v1403
    %v1568 = vpack.c.b16 %v1408, %v1404
    %v1569 = vpack.c.b16 %v1409, %v1405
    %v1570 = vpack.c.b16 %v1410, %v1406
    %v1571 = vpack.c.b16 %v1415, %v1411
    %v1572 = vpack.c.b16 %v1416, %v1412
    %v1573 = vpack.c.b16 %v1417, %v1413
    %v1574 = vpack.c.b16 %v1418, %v1414
    %v1575 = vpack.c.b16 %v1423, %v1419
    %v1576 = vpack.c.b16 %v1424, %v1420
    %v1577 = vpack.c.b16 %v1425, %v1421
    %v1578 = vpack.c.b16 %v1426, %v1422
    %v1579 = vpack.c.b16 %v1431, %v1427
    %v1580 = vpack.c.b16 %v1432, %v1428
    %v1581 = vpack.c.b16 %v1433, %v1429
    %v1582 = vpack.c.b16 %v1434, %v1430
    %v1583 = vpack.c.b16 %v1439, %v1435
    %v1584 = vpack.c.b16 %v1440, %v1436
    %v1585 = vpack.c.b16 %v1441, %v1437
    %v1586 = vpack.c.b16 %v1442, %v1438
    %v1587 = vpack.c.b16 %v1447, %v1443
    %v1588 = vpack.c.b16 %v1448, %v1444
    %v1589 = vpack.c.b16 %v1449, %v1445
    %v1590 = vpack.c.b16 %v1450, %v1446
    %v1591 = vpack.c.b16 %v1455, %v1451
    %v1592 = vpack.c.b16 %v1456, %v1452
    %v1593 = vpack.c.b16 %v1457, %v1453
    %v1594 = vpack.c.b16 %v1458, %v1454
    %v1595 = vpack.c.b16 %v1463, %v1459
    %v1596 = vpack.c.b16 %v1464, %v1460
    %v1597 = vpack.c.b16 %v1465, %v1461
    %v1598 = vpack.c.b16 %v1466, %v1462
    %v1599 = vpack.c.b16 %v1471, %v1467
    %v1600 = vpack.c.b16 %v1472, %v1468
    %v1601 = vpack.c.b16 %v1473, %v1469
    %v1602 = vpack.c.b16 %v1474, %v1470
    %1731 = vmatprep.subr.bf16.mxu0 %v1476
    %1732 = vmatpush1.bf16.msra.mxu0 %v1475
    %1733 = vmatprep.subr.bf16.mxu0 %v1480
    %1734 = vmatpush1.bf16.msra.mxu0 %v1479
    %1735 = vmatprep.subr.bf16.mxu0 %v1484
    %1736 = vmatpush1.bf16.msra.mxu0 %v1483
    %1737 = vmatprep.subr.bf16.mxu0 %v1488
    %1738 = vmatpush1.bf16.msra.mxu0 %v1487
    %1739 = vmatprep.subr.bf16.mxu0 %v1492
    %1740 = vmatpush1.bf16.msra.mxu0 %v1491
    %1741 = vmatprep.subr.bf16.mxu0 %v1496
    %1742 = vmatpush1.bf16.msra.mxu0 %v1495
    %1743 = vmatprep.subr.bf16.mxu0 %v1500
    %1744 = vmatpush1.bf16.msra.mxu0 %v1499
    %1745 = vmatprep.subr.bf16.mxu0 %v1504
    %1746 = vmatpush1.bf16.msra.mxu0 %v1503
    %1747 = vmatprep.subr.bf16.mxu0 %v1508
    %1748 = vmatpush1.bf16.msra.mxu0 %v1507
    %1749 = vmatprep.subr.bf16.mxu0 %v1512
    %1750 = vmatpush1.bf16.msra.mxu0 %v1511
    %1751 = vmatprep.subr.bf16.mxu0 %v1516
    %1752 = vmatpush1.bf16.msra.mxu0 %v1515
    %1753 = vmatprep.subr.bf16.mxu0 %v1520
    %1754 = vmatpush1.bf16.msra.mxu0 %v1519
    %1755 = vmatprep.subr.bf16.mxu0 %v1524
    %1756 = vmatpush1.bf16.msra.mxu0 %v1523
    %1757 = vmatprep.subr.bf16.mxu0 %v1528
    %1758 = vmatpush1.bf16.msra.mxu0 %v1527
    %1759 = vmatprep.subr.bf16.mxu0 %v1532
    %1760 = vmatpush1.bf16.msra.mxu0 %v1531
    %1761 = vmatprep.subr.bf16.mxu0 %v1536
    %1762 = vmatpush1.bf16.msra.mxu0 %v1535
    %1763 = vmatprep.mubr.bf16.mxu0 %v1067
    %1764 = vmatmul.mubr.bf16.gmra.mrb[0].mxu0 %v1066
    %v1765 = vpop.f32.mrb[0].mxu0
    %v1766 = vadd.f32 %v1074, %v1765
    %v1767 = vpop.f32.mrb[0].mxu0
    %v1768 = vadd.f32 %v1078, %v1767
    %v1769 = vpop.f32.mrb[0].mxu0
    %v1770 = vpop.f32.mrb[0].mxu0
    %1771 = vdwg.mxu0
    %1772 = vmatprep.subr.bf16.mxu0 %v1540
    %1773 = vmatpush1.bf16.msra.mxu0 %v1539
    %1774 = vmatprep.subr.bf16.mxu0 %v1544
    %1775 = vmatpush1.bf16.msra.mxu0 %v1543
    %1776 = vmatprep.subr.bf16.mxu0 %v1548
    %1777 = vmatpush1.bf16.msra.mxu0 %v1547
    %1778 = vmatprep.subr.bf16.mxu0 %v1552
    %1779 = vmatpush1.bf16.msra.mxu0 %v1551
    %1780 = vmatprep.subr.bf16.mxu0 %v1556
    %1781 = vmatpush1.bf16.msra.mxu0 %v1555
    %1782 = vmatprep.subr.bf16.mxu0 %v1560
    %1783 = vmatpush1.bf16.msra.mxu0 %v1559
    %1784 = vmatprep.subr.bf16.mxu0 %v1564
    %1785 = vmatpush1.bf16.msra.mxu0 %v1563
    %1786 = vmatprep.subr.bf16.mxu0 %v1568
    %1787 = vmatpush1.bf16.msra.mxu0 %v1567
    %1788 = vmatprep.subr.bf16.mxu0 %v1572
    %1789 = vmatpush1.bf16.msra.mxu0 %v1571
    %1790 = vmatprep.subr.bf16.mxu0 %v1576
    %1791 = vmatpush1.bf16.msra.mxu0 %v1575
    %1792 = vmatprep.subr.bf16.mxu0 %v1580
    %1793 = vmatpush1.bf16.msra.mxu0 %v1579
    %1794 = vmatprep.subr.bf16.mxu0 %v1584
    %1795 = vmatpush1.bf16.msra.mxu0 %v1583
    %1796 = vmatprep.subr.bf16.mxu0 %v1588
    %1797 = vmatpush1.bf16.msra.mxu0 %v1587
    %1798 = vmatprep.subr.bf16.mxu0 %v1592
    %1799 = vmatpush1.bf16.msra.mxu0 %v1591
    %1800 = vmatprep.subr.bf16.mxu0 %v1596
    %1801 = vmatpush1.bf16.msra.mxu0 %v1595
    %1802 = vmatprep.subr.bf16.mxu0 %v1600
    %1803 = vmatpush1.bf16.msra.mxu0 %v1599
    %1804 = vmatprep.mubr.bf16.mxu0 %v1069
    %1805 = vmatmul.mubr.bf16.gmra.mrb[0].mxu0 %v1068
    %v1806 = vpop.f32.mrb[0].mxu0
    %v1807 = vadd.f32 %v1766, %v1806
    %v1808 = vpop.f32.mrb[0].mxu0
    %v1809 = vadd.f32 %v1768, %v1808
    %v1810 = vpop.f32.mrb[0].mxu0
    %v1811 = vpop.f32.mrb[0].mxu0
    %1812 = vdwg.mxu0
    %1813 = vmatprep.subr.bf16.mxu0 %v1478
    %1814 = vmatpush1.bf16.msra.mxu0 %v1477
    %1815 = vmatprep.subr.bf16.mxu0 %v1482
    %1816 = vmatpush1.bf16.msra.mxu0 %v1481
    %1817 = vmatprep.subr.bf16.mxu0 %v1486
    %1818 = vmatpush1.bf16.msra.mxu0 %v1485
    %1819 = vmatprep.subr.bf16.mxu0 %v1490
    %1820 = vmatpush1.bf16.msra.mxu0 %v1489
    %1821 = vmatprep.subr.bf16.mxu0 %v1494
    %1822 = vmatpush1.bf16.msra.mxu0 %v1493
    %1823 = vmatprep.subr.bf16.mxu0 %v1498
    %1824 = vmatpush1.bf16.msra.mxu0 %v1497
    %1825 = vmatprep.subr.bf16.mxu0 %v1502
    %1826 = vmatpush1.bf16.msra.mxu0 %v1501
    %1827 = vmatprep.subr.bf16.mxu0 %v1506
    %1828 = vmatpush1.bf16.msra.mxu0 %v1505
    %1829 = vmatprep.subr.bf16.mxu0 %v1510
    %1830 = vmatpush1.bf16.msra.mxu0 %v1509
    %1831 = vmatprep.subr.bf16.mxu0 %v1514
    %1832 = vmatpush1.bf16.msra.mxu0 %v1513
    %1833 = vmatprep.subr.bf16.mxu0 %v1518
    %1834 = vmatpush1.bf16.msra.mxu0 %v1517
    %1835 = vmatprep.subr.bf16.mxu0 %v1522
    %1836 = vmatpush1.bf16.msra.mxu0 %v1521
    %1837 = vmatprep.subr.bf16.mxu0 %v1526
    %1838 = vmatpush1.bf16.msra.mxu0 %v1525
    %1839 = vmatprep.subr.bf16.mxu0 %v1530
    %1840 = vmatpush1.bf16.msra.mxu0 %v1529
    %1841 = vmatprep.subr.bf16.mxu0 %v1534
    %1842 = vmatpush1.bf16.msra.mxu0 %v1533
    %1843 = vmatprep.subr.bf16.mxu0 %v1538
    %1844 = vmatpush1.bf16.msra.mxu0 %v1537
    %1845 = vmatprep.mubr.bf16.mxu0 %v1067
    %1846 = vmatmul.mubr.bf16.gmra.mrb[0].mxu0 %v1066
    %v1847 = vpop.f32.mrb[0].mxu0
    %v1848 = vadd.f32 %v1082, %v1847
    %v1849 = vpop.f32.mrb[0].mxu0
    %v1850 = vadd.f32 %v1086, %v1849
    %v1851 = vpop.f32.mrb[0].mxu0
    %v1852 = vpop.f32.mrb[0].mxu0
    %1853 = vdwg.mxu0
    %1854 = vmatprep.subr.bf16.mxu0 %v1542
    %1855 = vmatpush1.bf16.msra.mxu0 %v1541
    %1856 = vmatprep.subr.bf16.mxu0 %v1546
    %1857 = vmatpush1.bf16.msra.mxu0 %v1545
    %1858 = vmatprep.subr.bf16.mxu0 %v1550
    %1859 = vmatpush1.bf16.msra.mxu0 %v1549
    %1860 = vmatprep.subr.bf16.mxu0 %v1554
    %1861 = vmatpush1.bf16.msra.mxu0 %v1553
    %1862 = vmatprep.subr.bf16.mxu0 %v1558
    %1863 = vmatpush1.bf16.msra.mxu0 %v1557
    %1864 = vmatprep.subr.bf16.mxu0 %v1562
    %1865 = vmatpush1.bf16.msra.mxu0 %v1561
    %1866 = vmatprep.subr.bf16.mxu0 %v1566
    %1867 = vmatpush1.bf16.msra.mxu0 %v1565
    %1868 = vmatprep.subr.bf16.mxu0 %v1570
    %1869 = vmatpush1.bf16.msra.mxu0 %v1569
    %1870 = vmatprep.subr.bf16.mxu0 %v1574
    %1871 = vmatpush1.bf16.msra.mxu0 %v1573
    %1872 = vmatprep.subr.bf16.mxu0 %v1578
    %1873 = vmatpush1.bf16.msra.mxu0 %v1577
    %1874 = vmatprep.subr.bf16.mxu0 %v1582
    %1875 = vmatpush1.bf16.msra.mxu0 %v1581
    %1876 = vmatprep.subr.bf16.mxu0 %v1586
    %1877 = vmatpush1.bf16.msra.mxu0 %v1585
    %1878 = vmatprep.subr.bf16.mxu0 %v1590
    %1879 = vmatpush1.bf16.msra.mxu0 %v1589
    %1880 = vmatprep.subr.bf16.mxu0 %v1594
    %1881 = vmatpush1.bf16.msra.mxu0 %v1593
    %1882 = vmatprep.subr.bf16.mxu0 %v1598
    %1883 = vmatpush1.bf16.msra.mxu0 %v1597
    %1884 = vmatprep.subr.bf16.mxu0 %v1602
    %1885 = vmatpush1.bf16.msra.mxu0 %v1601
    %1886 = vmatprep.mubr.bf16.mxu0 %v1069
    %1887 = vmatmul.mubr.bf16.gmra.mrb[0].mxu0 %v1068
    %v1888 = vpop.f32.mrb[0].mxu0
    %v1889 = vadd.f32 %v1848, %v1888
    %v1890 = vpop.f32.mrb[0].mxu0
    %v1891 = vadd.f32 %v1850, %v1890
    %v1892 = vpop.f32.mrb[0].mxu0
    %v1893 = vpop.f32.mrb[0].mxu0
    %1894 = vdwg.mxu0
    %v1895 = vpack.c.bf16 %v617, %v613
    %v1896 = vpack.c.bf16 %v619, %v615
    %v1897 = vpack.c.bf16 %v668, %v664
    %v1898 = vpack.c.bf16 %v670, %v666
    %v1900 = vlaneseq
    %v1901 = vshrl.u32 %v1900, 7
    %v1902 = vsub.s32 0, %v1901
    %v1903 = vrot.slane %v1065, %v1902
    %v1904 = vlaneseq
    %v1905 = vshrl.u32 %v1904, 7
    %v1906 = vsub.s32 1, %v1905
    %v1907 = vrot.slane %v1065, %v1906
    %v1908 = vlaneseq
    %v1909 = vshrl.u32 %v1908, 7
    %v1910 = vsub.s32 2, %v1909
    %v1911 = vrot.slane %v1065, %v1910
    %v1912 = vlaneseq
    %v1913 = vshrl.u32 %v1912, 7
    %v1914 = vsub.s32 3, %v1913
    %v1915 = vrot.slane %v1065, %v1914
    %v1916 = vlaneseq
    %v1917 = vshrl.u32 %v1916, 7
    %v1918 = vsub.s32 4, %v1917
    %v1919 = vrot.slane %v1065, %v1918
    %v1920 = vlaneseq
    %v1921 = vshrl.u32 %v1920, 7
    %v1922 = vsub.s32 5, %v1921
    %v1923 = vrot.slane %v1065, %v1922
    %v1924 = vlaneseq
    %v1925 = vshrl.u32 %v1924, 7
    %v1926 = vsub.s32 6, %v1925
    %v1927 = vrot.slane %v1065, %v1926
    %v1928 = vlaneseq
    %v1929 = vshrl.u32 %v1928, 7
    %v1930 = vsub.s32 7, %v1929
    %v1931 = vrot.slane %v1065, %v1930
    %v2196 = vunpack.c.l.b16 %v808
    %v2197 = vunpack.c.h.b16 %v808
    %v2198 = vunpack.c.l.b16 %v809
    %v2199 = vunpack.c.h.b16 %v809
    %v2200 = vunpack.c.l.b16 %v810
    %v2201 = vunpack.c.h.b16 %v810
    %v2202 = vunpack.c.l.b16 %v811
    %v2203 = vunpack.c.h.b16 %v811
    %v2204 = vunpack.c.l.b16 %v812
    %v2205 = vunpack.c.h.b16 %v812
    %v2206 = vunpack.c.l.b16 %v813
    %v2207 = vunpack.c.h.b16 %v813
    %v2208 = vunpack.c.l.b16 %v814
    %v2209 = vunpack.c.h.b16 %v814
    %v2210 = vunpack.c.l.b16 %v815
    %v2211 = vunpack.c.h.b16 %v815
    %v2212 = vunpack.c.l.b16 %v816
    %v2213 = vunpack.c.h.b16 %v816
    %v2214 = vunpack.c.l.b16 %v817
    %v2215 = vunpack.c.h.b16 %v817
    %v2216 = vunpack.c.l.b16 %v818
    %v2217 = vunpack.c.h.b16 %v818
    %v2218 = vunpack.c.l.b16 %v819
    %v2219 = vunpack.c.h.b16 %v819
    %v2220 = vunpack.c.l.b16 %v820
    %v2221 = vunpack.c.h.b16 %v820
    %v2222 = vunpack.c.l.b16 %v821
    %v2223 = vunpack.c.h.b16 %v821
    %v2224 = vunpack.c.l.b16 %v822
    %v2225 = vunpack.c.h.b16 %v822
    %v2226 = vunpack.c.l.b16 %v823
    %v2227 = vunpack.c.h.b16 %v823
    %v2228 = vunpack.c.l.b16 %v824
    %v2229 = vunpack.c.h.b16 %v824
    %v2230 = vunpack.c.l.b16 %v825
    %v2231 = vunpack.c.h.b16 %v825
    %v2232 = vunpack.c.l.b16 %v826
    %v2233 = vunpack.c.h.b16 %v826
    %v2234 = vunpack.c.l.b16 %v827
    %v2235 = vunpack.c.h.b16 %v827
    %v2236 = vunpack.c.l.b16 %v828
    %v2237 = vunpack.c.h.b16 %v828
    %v2238 = vunpack.c.l.b16 %v829
    %v2239 = vunpack.c.h.b16 %v829
    %v2240 = vunpack.c.l.b16 %v830
    %v2241 = vunpack.c.h.b16 %v830
    %v2242 = vunpack.c.l.b16 %v831
    %v2243 = vunpack.c.h.b16 %v831
    %v2244 = vunpack.c.l.b16 %v832
    %v2245 = vunpack.c.h.b16 %v832
    %v2246 = vunpack.c.l.b16 %v833
    %v2247 = vunpack.c.h.b16 %v833
    %v2248 = vunpack.c.l.b16 %v834
    %v2249 = vunpack.c.h.b16 %v834
    %v2250 = vunpack.c.l.b16 %v835
    %v2251 = vunpack.c.h.b16 %v835
    %v2252 = vunpack.c.l.b16 %v836
    %v2253 = vunpack.c.h.b16 %v836
    %v2254 = vunpack.c.l.b16 %v837
    %v2255 = vunpack.c.h.b16 %v837
    %v2256 = vunpack.c.l.b16 %v838
    %v2257 = vunpack.c.h.b16 %v838
    %v2258 = vunpack.c.l.b16 %v839
    %v2259 = vunpack.c.h.b16 %v839
    %v2260 = vunpack.c.l.b16 %v840
    %v2261 = vunpack.c.h.b16 %v840
    %v2262 = vunpack.c.l.b16 %v841
    %v2263 = vunpack.c.h.b16 %v841
    %v2264 = vunpack.c.l.b16 %v842
    %v2265 = vunpack.c.h.b16 %v842
    %v2266 = vunpack.c.l.b16 %v843
    %v2267 = vunpack.c.h.b16 %v843
    %v2268 = vunpack.c.l.b16 %v844
    %v2269 = vunpack.c.h.b16 %v844
    %v2270 = vunpack.c.l.b16 %v845
    %v2271 = vunpack.c.h.b16 %v845
    %v2272 = vunpack.c.l.b16 %v846
    %v2273 = vunpack.c.h.b16 %v846
    %v2274 = vunpack.c.l.b16 %v847
    %v2275 = vunpack.c.h.b16 %v847
    %v2276 = vunpack.c.l.b16 %v848
    %v2277 = vunpack.c.h.b16 %v848
    %v2278 = vunpack.c.l.b16 %v849
    %v2279 = vunpack.c.h.b16 %v849
    %v2280 = vunpack.c.l.b16 %v850
    %v2281 = vunpack.c.h.b16 %v850
    %v2282 = vunpack.c.l.b16 %v851
    %v2283 = vunpack.c.h.b16 %v851
    %v2284 = vunpack.c.l.b16 %v852
    %v2285 = vunpack.c.h.b16 %v852
    %v2286 = vunpack.c.l.b16 %v853
    %v2287 = vunpack.c.h.b16 %v853
    %v2288 = vunpack.c.l.b16 %v854
    %v2289 = vunpack.c.h.b16 %v854
    %v2290 = vunpack.c.l.b16 %v855
    %v2291 = vunpack.c.h.b16 %v855
    %v2292 = vunpack.c.l.b16 %v856
    %v2293 = vunpack.c.h.b16 %v856
    %v2294 = vunpack.c.l.b16 %v857
    %v2295 = vunpack.c.h.b16 %v857
    %v2296 = vunpack.c.l.b16 %v858
    %v2297 = vunpack.c.h.b16 %v858
    %v2298 = vunpack.c.l.b16 %v859
    %v2299 = vunpack.c.h.b16 %v859
    %v2300 = vunpack.c.l.b16 %v860
    %v2301 = vunpack.c.h.b16 %v860
    %v2302 = vunpack.c.l.b16 %v861
    %v2303 = vunpack.c.h.b16 %v861
    %v2304 = vunpack.c.l.b16 %v862
    %v2305 = vunpack.c.h.b16 %v862
    %v2306 = vunpack.c.l.b16 %v863
    %v2307 = vunpack.c.h.b16 %v863
    %v2308 = vunpack.c.l.b16 %v864
    %v2309 = vunpack.c.h.b16 %v864
    %v2310 = vunpack.c.l.b16 %v865
    %v2311 = vunpack.c.h.b16 %v865
    %v2312 = vunpack.c.l.b16 %v866
    %v2313 = vunpack.c.h.b16 %v866
    %v2314 = vunpack.c.l.b16 %v867
    %v2315 = vunpack.c.h.b16 %v867
    %v2316 = vunpack.c.l.b16 %v868
    %v2317 = vunpack.c.h.b16 %v868
    %v2318 = vunpack.c.l.b16 %v869
    %v2319 = vunpack.c.h.b16 %v869
    %v2320 = vunpack.c.l.b16 %v870
    %v2321 = vunpack.c.h.b16 %v870
    %v2322 = vunpack.c.l.b16 %v871
    %v2323 = vunpack.c.h.b16 %v871
    %v2324 = vunpack.c.l.b16 %v872
    %v2325 = vunpack.c.h.b16 %v872
    %v2326 = vunpack.c.l.b16 %v873
    %v2327 = vunpack.c.h.b16 %v873
    %v2328 = vunpack.c.l.b16 %v874
    %v2329 = vunpack.c.h.b16 %v874
    %v2330 = vunpack.c.l.b16 %v875
    %v2331 = vunpack.c.h.b16 %v875
    %v2332 = vunpack.c.l.b16 %v876
    %v2333 = vunpack.c.h.b16 %v876
    %v2334 = vunpack.c.l.b16 %v877
    %v2335 = vunpack.c.h.b16 %v877
    %v2336 = vunpack.c.l.b16 %v878
    %v2337 = vunpack.c.h.b16 %v878
    %v2338 = vunpack.c.l.b16 %v879
    %v2339 = vunpack.c.h.b16 %v879
    %v2340 = vunpack.c.l.b16 %v880
    %v2341 = vunpack.c.h.b16 %v880
    %v2342 = vunpack.c.l.b16 %v881
    %v2343 = vunpack.c.h.b16 %v881
    %v2344 = vunpack.c.l.b16 %v882
    %v2345 = vunpack.c.h.b16 %v882
    %v2346 = vunpack.c.l.b16 %v883
    %v2347 = vunpack.c.h.b16 %v883
    %v2348 = vunpack.c.l.b16 %v884
    %v2349 = vunpack.c.h.b16 %v884
    %v2350 = vunpack.c.l.b16 %v885
    %v2351 = vunpack.c.h.b16 %v885
    %v2352 = vunpack.c.l.b16 %v886
    %v2353 = vunpack.c.h.b16 %v886
    %v2354 = vunpack.c.l.b16 %v887
    %v2355 = vunpack.c.h.b16 %v887
    %v2356 = vunpack.c.l.b16 %v888
    %v2357 = vunpack.c.h.b16 %v888
    %v2358 = vunpack.c.l.b16 %v889
    %v2359 = vunpack.c.h.b16 %v889
    %v2360 = vunpack.c.l.b16 %v890
    %v2361 = vunpack.c.h.b16 %v890
    %v2362 = vunpack.c.l.b16 %v891
    %v2363 = vunpack.c.h.b16 %v891
    %v2364 = vunpack.c.l.b16 %v892
    %v2365 = vunpack.c.h.b16 %v892
    %v2366 = vunpack.c.l.b16 %v893
    %v2367 = vunpack.c.h.b16 %v893
    %v2368 = vunpack.c.l.b16 %v894
    %v2369 = vunpack.c.h.b16 %v894
    %v2370 = vunpack.c.l.b16 %v895
    %v2371 = vunpack.c.h.b16 %v895
    %v2372 = vunpack.c.l.b16 %v896
    %v2373 = vunpack.c.h.b16 %v896
    %v2374 = vunpack.c.l.b16 %v897
    %v2375 = vunpack.c.h.b16 %v897
    %v2376 = vunpack.c.l.b16 %v898
    %v2377 = vunpack.c.h.b16 %v898
    %v2378 = vunpack.c.l.b16 %v899
    %v2379 = vunpack.c.h.b16 %v899
    %v2380 = vunpack.c.l.b16 %v900
    %v2381 = vunpack.c.h.b16 %v900
    %v2382 = vunpack.c.l.b16 %v901
    %v2383 = vunpack.c.h.b16 %v901
    %v2384 = vunpack.c.l.b16 %v902
    %v2385 = vunpack.c.h.b16 %v902
    %v2386 = vunpack.c.l.b16 %v903
    %v2387 = vunpack.c.h.b16 %v903
    %v2388 = vunpack.c.l.b16 %v904
    %v2389 = vunpack.c.h.b16 %v904
    %v2390 = vunpack.c.l.b16 %v905
    %v2391 = vunpack.c.h.b16 %v905
    %v2392 = vunpack.c.l.b16 %v906
    %v2393 = vunpack.c.h.b16 %v906
    %v2394 = vunpack.c.l.b16 %v907
    %v2395 = vunpack.c.h.b16 %v907
    %v2396 = vunpack.c.l.b16 %v908
    %v2397 = vunpack.c.h.b16 %v908
    %v2398 = vunpack.c.l.b16 %v909
    %v2399 = vunpack.c.h.b16 %v909
    %v2400 = vunpack.c.l.b16 %v910
    %v2401 = vunpack.c.h.b16 %v910
    %v2402 = vunpack.c.l.b16 %v911
    %v2403 = vunpack.c.h.b16 %v911
    %v2404 = vunpack.c.l.b16 %v912
    %v2405 = vunpack.c.h.b16 %v912
    %v2406 = vunpack.c.l.b16 %v913
    %v2407 = vunpack.c.h.b16 %v913
    %v2408 = vunpack.c.l.b16 %v914
    %v2409 = vunpack.c.h.b16 %v914
    %v2410 = vunpack.c.l.b16 %v915
    %v2411 = vunpack.c.h.b16 %v915
    %v2412 = vunpack.c.l.b16 %v916
    %v2413 = vunpack.c.h.b16 %v916
    %v2414 = vunpack.c.l.b16 %v917
    %v2415 = vunpack.c.h.b16 %v917
    %v2416 = vunpack.c.l.b16 %v918
    %v2417 = vunpack.c.h.b16 %v918
    %v2418 = vunpack.c.l.b16 %v919
    %v2419 = vunpack.c.h.b16 %v919
    %v2420 = vunpack.c.l.b16 %v920
    %v2421 = vunpack.c.h.b16 %v920
    %v2422 = vunpack.c.l.b16 %v921
    %v2423 = vunpack.c.h.b16 %v921
    %v2424 = vunpack.c.l.b16 %v922
    %v2425 = vunpack.c.h.b16 %v922
    %v2426 = vunpack.c.l.b16 %v923
    %v2427 = vunpack.c.h.b16 %v923
    %v2428 = vunpack.c.l.b16 %v924
    %v2429 = vunpack.c.h.b16 %v924
    %v2430 = vunpack.c.l.b16 %v925
    %v2431 = vunpack.c.h.b16 %v925
    %v2432 = vunpack.c.l.b16 %v926
    %v2433 = vunpack.c.h.b16 %v926
    %v2434 = vunpack.c.l.b16 %v927
    %v2435 = vunpack.c.h.b16 %v927
    %v2436 = vunpack.c.l.b16 %v928
    %v2437 = vunpack.c.h.b16 %v928
    %v2438 = vunpack.c.l.b16 %v929
    %v2439 = vunpack.c.h.b16 %v929
    %v2440 = vunpack.c.l.b16 %v930
    %v2441 = vunpack.c.h.b16 %v930
    %v2442 = vunpack.c.l.b16 %v931
    %v2443 = vunpack.c.h.b16 %v931
    %v2444 = vunpack.c.l.b16 %v932
    %v2445 = vunpack.c.h.b16 %v932
    %v2446 = vunpack.c.l.b16 %v933
    %v2447 = vunpack.c.h.b16 %v933
    %v2448 = vunpack.c.l.b16 %v934
    %v2449 = vunpack.c.h.b16 %v934
    %v2450 = vunpack.c.l.b16 %v935
    %v2451 = vunpack.c.h.b16 %v935
    %v2452 = vunpack.c.l.b16 %v936
    %v2453 = vunpack.c.h.b16 %v936
    %v2454 = vunpack.c.l.b16 %v937
    %v2455 = vunpack.c.h.b16 %v937
    %v2456 = vunpack.c.l.b16 %v938
    %v2457 = vunpack.c.h.b16 %v938
    %v2458 = vunpack.c.l.b16 %v939
    %v2459 = vunpack.c.h.b16 %v939
    %v2460 = vunpack.c.l.b16 %v940
    %v2461 = vunpack.c.h.b16 %v940
    %v2462 = vunpack.c.l.b16 %v941
    %v2463 = vunpack.c.h.b16 %v941
    %v2464 = vunpack.c.l.b16 %v942
    %v2465 = vunpack.c.h.b16 %v942
    %v2466 = vunpack.c.l.b16 %v943
    %v2467 = vunpack.c.h.b16 %v943
    %v2468 = vunpack.c.l.b16 %v944
    %v2469 = vunpack.c.h.b16 %v944
    %v2470 = vunpack.c.l.b16 %v945
    %v2471 = vunpack.c.h.b16 %v945
    %v2472 = vunpack.c.l.b16 %v946
    %v2473 = vunpack.c.h.b16 %v946
    %v2474 = vunpack.c.l.b16 %v947
    %v2475 = vunpack.c.h.b16 %v947
    %v2476 = vunpack.c.l.b16 %v948
    %v2477 = vunpack.c.h.b16 %v948
    %v2478 = vunpack.c.l.b16 %v949
    %v2479 = vunpack.c.h.b16 %v949
    %v2480 = vunpack.c.l.b16 %v950
    %v2481 = vunpack.c.h.b16 %v950
    %v2482 = vunpack.c.l.b16 %v951
    %v2483 = vunpack.c.h.b16 %v951
    %v2484 = vunpack.c.l.b16 %v952
    %v2485 = vunpack.c.h.b16 %v952
    %v2486 = vunpack.c.l.b16 %v953
    %v2487 = vunpack.c.h.b16 %v953
    %v2488 = vunpack.c.l.b16 %v954
    %v2489 = vunpack.c.h.b16 %v954
    %v2490 = vunpack.c.l.b16 %v955
    %v2491 = vunpack.c.h.b16 %v955
    %v2492 = vunpack.c.l.b16 %v956
    %v2493 = vunpack.c.h.b16 %v956
    %v2494 = vunpack.c.l.b16 %v957
    %v2495 = vunpack.c.h.b16 %v957
    %v2496 = vunpack.c.l.b16 %v958
    %v2497 = vunpack.c.h.b16 %v958
    %v2498 = vunpack.c.l.b16 %v959
    %v2499 = vunpack.c.h.b16 %v959
    %v2500 = vunpack.c.l.b16 %v960
    %v2501 = vunpack.c.h.b16 %v960
    %v2502 = vunpack.c.l.b16 %v961
    %v2503 = vunpack.c.h.b16 %v961
    %v2504 = vunpack.c.l.b16 %v962
    %v2505 = vunpack.c.h.b16 %v962
    %v2506 = vunpack.c.l.b16 %v963
    %v2507 = vunpack.c.h.b16 %v963
    %v2508 = vunpack.c.l.b16 %v964
    %v2509 = vunpack.c.h.b16 %v964
    %v2510 = vunpack.c.l.b16 %v965
    %v2511 = vunpack.c.h.b16 %v965
    %v2512 = vunpack.c.l.b16 %v966
    %v2513 = vunpack.c.h.b16 %v966
    %v2514 = vunpack.c.l.b16 %v967
    %v2515 = vunpack.c.h.b16 %v967
    %v2516 = vunpack.c.l.b16 %v968
    %v2517 = vunpack.c.h.b16 %v968
    %v2518 = vunpack.c.l.b16 %v969
    %v2519 = vunpack.c.h.b16 %v969
    %v2520 = vunpack.c.l.b16 %v970
    %v2521 = vunpack.c.h.b16 %v970
    %v2522 = vunpack.c.l.b16 %v971
    %v2523 = vunpack.c.h.b16 %v971
    %v2524 = vunpack.c.l.b16 %v972
    %v2525 = vunpack.c.h.b16 %v972
    %v2526 = vunpack.c.l.b16 %v973
    %v2527 = vunpack.c.h.b16 %v973
    %v2528 = vunpack.c.l.b16 %v974
    %v2529 = vunpack.c.h.b16 %v974
    %v2530 = vunpack.c.l.b16 %v975
    %v2531 = vunpack.c.h.b16 %v975
    %v2532 = vunpack.c.l.b16 %v976
    %v2533 = vunpack.c.h.b16 %v976
    %v2534 = vunpack.c.l.b16 %v977
    %v2535 = vunpack.c.h.b16 %v977
    %v2536 = vunpack.c.l.b16 %v978
    %v2537 = vunpack.c.h.b16 %v978
    %v2538 = vunpack.c.l.b16 %v979
    %v2539 = vunpack.c.h.b16 %v979
    %v2540 = vunpack.c.l.b16 %v980
    %v2541 = vunpack.c.h.b16 %v980
    %v2542 = vunpack.c.l.b16 %v981
    %v2543 = vunpack.c.h.b16 %v981
    %v2544 = vunpack.c.l.b16 %v982
    %v2545 = vunpack.c.h.b16 %v982
    %v2546 = vunpack.c.l.b16 %v983
    %v2547 = vunpack.c.h.b16 %v983
    %v2548 = vunpack.c.l.b16 %v984
    %v2549 = vunpack.c.h.b16 %v984
    %v2550 = vunpack.c.l.b16 %v985
    %v2551 = vunpack.c.h.b16 %v985
    %v2552 = vunpack.c.l.b16 %v986
    %v2553 = vunpack.c.h.b16 %v986
    %v2554 = vunpack.c.l.b16 %v987
    %v2555 = vunpack.c.h.b16 %v987
    %v2556 = vunpack.c.l.b16 %v988
    %v2557 = vunpack.c.h.b16 %v988
    %v2558 = vunpack.c.l.b16 %v989
    %v2559 = vunpack.c.h.b16 %v989
    %v2560 = vunpack.c.l.b16 %v990
    %v2561 = vunpack.c.h.b16 %v990
    %v2562 = vunpack.c.l.b16 %v991
    %v2563 = vunpack.c.h.b16 %v991
    %v2564 = vunpack.c.l.b16 %v992
    %v2565 = vunpack.c.h.b16 %v992
    %v2566 = vunpack.c.l.b16 %v993
    %v2567 = vunpack.c.h.b16 %v993
    %v2568 = vunpack.c.l.b16 %v994
    %v2569 = vunpack.c.h.b16 %v994
    %v2570 = vunpack.c.l.b16 %v995
    %v2571 = vunpack.c.h.b16 %v995
    %v2572 = vunpack.c.l.b16 %v996
    %v2573 = vunpack.c.h.b16 %v996
    %v2574 = vunpack.c.l.b16 %v997
    %v2575 = vunpack.c.h.b16 %v997
    %v2576 = vunpack.c.l.b16 %v998
    %v2577 = vunpack.c.h.b16 %v998
    %v2578 = vunpack.c.l.b16 %v999
    %v2579 = vunpack.c.h.b16 %v999
    %v2580 = vunpack.c.l.b16 %v1000
    %v2581 = vunpack.c.h.b16 %v1000
    %v2582 = vunpack.c.l.b16 %v1001
    %v2583 = vunpack.c.h.b16 %v1001
    %v2584 = vunpack.c.l.b16 %v1002
    %v2585 = vunpack.c.h.b16 %v1002
    %v2586 = vunpack.c.l.b16 %v1003
    %v2587 = vunpack.c.h.b16 %v1003
    %v2588 = vunpack.c.l.b16 %v1004
    %v2589 = vunpack.c.h.b16 %v1004
    %v2590 = vunpack.c.l.b16 %v1005
    %v2591 = vunpack.c.h.b16 %v1005
    %v2592 = vunpack.c.l.b16 %v1006
    %v2593 = vunpack.c.h.b16 %v1006
    %v2594 = vunpack.c.l.b16 %v1007
    %v2595 = vunpack.c.h.b16 %v1007
    %v2596 = vunpack.c.l.b16 %v1008
    %v2597 = vunpack.c.h.b16 %v1008
    %v2598 = vunpack.c.l.b16 %v1009
    %v2599 = vunpack.c.h.b16 %v1009
    %v2600 = vunpack.c.l.b16 %v1010
    %v2601 = vunpack.c.h.b16 %v1010
    %v2602 = vunpack.c.l.b16 %v1011
    %v2603 = vunpack.c.h.b16 %v1011
    %v2604 = vunpack.c.l.b16 %v1012
    %v2605 = vunpack.c.h.b16 %v1012
    %v2606 = vunpack.c.l.b16 %v1013
    %v2607 = vunpack.c.h.b16 %v1013
    %v2608 = vunpack.c.l.b16 %v1014
    %v2609 = vunpack.c.h.b16 %v1014
    %v2610 = vunpack.c.l.b16 %v1015
    %v2611 = vunpack.c.h.b16 %v1015
    %v2612 = vunpack.c.l.b16 %v1016
    %v2613 = vunpack.c.h.b16 %v1016
    %v2614 = vunpack.c.l.b16 %v1017
    %v2615 = vunpack.c.h.b16 %v1017
    %v2616 = vunpack.c.l.b16 %v1018
    %v2617 = vunpack.c.h.b16 %v1018
    %v2618 = vunpack.c.l.b16 %v1019
    %v2619 = vunpack.c.h.b16 %v1019
    %v2620 = vunpack.c.l.b16 %v1020
    %v2621 = vunpack.c.h.b16 %v1020
    %v2622 = vunpack.c.l.b16 %v1021
    %v2623 = vunpack.c.h.b16 %v1021
    %v2624 = vunpack.c.l.b16 %v1022
    %v2625 = vunpack.c.h.b16 %v1022
    %v2626 = vunpack.c.l.b16 %v1023
    %v2627 = vunpack.c.h.b16 %v1023
    %v2628 = vunpack.c.l.b16 %v1024
    %v2629 = vunpack.c.h.b16 %v1024
    %v2630 = vunpack.c.l.b16 %v1025
    %v2631 = vunpack.c.h.b16 %v1025
    %v2632 = vunpack.c.l.b16 %v1026
    %v2633 = vunpack.c.h.b16 %v1026
    %v2634 = vunpack.c.l.b16 %v1027
    %v2635 = vunpack.c.h.b16 %v1027
    %v2636 = vunpack.c.l.b16 %v1028
    %v2637 = vunpack.c.h.b16 %v1028
    %v2638 = vunpack.c.l.b16 %v1029
    %v2639 = vunpack.c.h.b16 %v1029
    %v2640 = vunpack.c.l.b16 %v1030
    %v2641 = vunpack.c.h.b16 %v1030
    %v2642 = vunpack.c.l.b16 %v1031
    %v2643 = vunpack.c.h.b16 %v1031
    %v2644 = vunpack.c.l.b16 %v1032
    %v2645 = vunpack.c.h.b16 %v1032
    %v2646 = vunpack.c.l.b16 %v1033
    %v2647 = vunpack.c.h.b16 %v1033
    %v2648 = vunpack.c.l.b16 %v1034
    %v2649 = vunpack.c.h.b16 %v1034
    %v2650 = vunpack.c.l.b16 %v1035
    %v2651 = vunpack.c.h.b16 %v1035
    %v2652 = vunpack.c.l.b16 %v1036
    %v2653 = vunpack.c.h.b16 %v1036
    %v2654 = vunpack.c.l.b16 %v1037
    %v2655 = vunpack.c.h.b16 %v1037
    %v2656 = vunpack.c.l.b16 %v1038
    %v2657 = vunpack.c.h.b16 %v1038
    %v2658 = vunpack.c.l.b16 %v1039
    %v2659 = vunpack.c.h.b16 %v1039
    %v2660 = vunpack.c.l.b16 %v1040
    %v2661 = vunpack.c.h.b16 %v1040
    %v2662 = vunpack.c.l.b16 %v1041
    %v2663 = vunpack.c.h.b16 %v1041
    %v2664 = vunpack.c.l.b16 %v1042
    %v2665 = vunpack.c.h.b16 %v1042
    %v2666 = vunpack.c.l.b16 %v1043
    %v2667 = vunpack.c.h.b16 %v1043
    %v2668 = vunpack.c.l.b16 %v1044
    %v2669 = vunpack.c.h.b16 %v1044
    %v2670 = vunpack.c.l.b16 %v1045
    %v2671 = vunpack.c.h.b16 %v1045
    %v2672 = vunpack.c.l.b16 %v1046
    %v2673 = vunpack.c.h.b16 %v1046
    %v2674 = vunpack.c.l.b16 %v1047
    %v2675 = vunpack.c.h.b16 %v1047
    %v2676 = vunpack.c.l.b16 %v1048
    %v2677 = vunpack.c.h.b16 %v1048
    %v2678 = vunpack.c.l.b16 %v1049
    %v2679 = vunpack.c.h.b16 %v1049
    %v2680 = vunpack.c.l.b16 %v1050
    %v2681 = vunpack.c.h.b16 %v1050
    %v2682 = vunpack.c.l.b16 %v1051
    %v2683 = vunpack.c.h.b16 %v1051
    %v2684 = vunpack.c.l.b16 %v1052
    %v2685 = vunpack.c.h.b16 %v1052
    %v2686 = vunpack.c.l.b16 %v1053
    %v2687 = vunpack.c.h.b16 %v1053
    %v2688 = vunpack.c.l.b16 %v1054
    %v2689 = vunpack.c.h.b16 %v1054
    %v2690 = vunpack.c.l.b16 %v1055
    %v2691 = vunpack.c.h.b16 %v1055
    %v2692 = vunpack.c.l.b16 %v1056
    %v2693 = vunpack.c.h.b16 %v1056
    %v2694 = vunpack.c.l.b16 %v1057
    %v2695 = vunpack.c.h.b16 %v1057
    %v2696 = vunpack.c.l.b16 %v1058
    %v2697 = vunpack.c.h.b16 %v1058
    %v2698 = vunpack.c.l.b16 %v1059
    %v2699 = vunpack.c.h.b16 %v1059
    %v2700 = vunpack.c.l.b16 %v1060
    %v2701 = vunpack.c.h.b16 %v1060
    %v2702 = vunpack.c.l.b16 %v1061
    %v2703 = vunpack.c.h.b16 %v1061
    %v2704 = vunpack.c.l.b16 %v1062
    %v2705 = vunpack.c.h.b16 %v1062
    %v2706 = vunpack.c.l.b16 %v1063
    %v2707 = vunpack.c.h.b16 %v1063
    %v2708 = vpack.c.b16 %v2204, %v2196
    %v2709 = vpack.c.b16 %v2205, %v2197
    %v2710 = vpack.c.b16 %v2206, %v2198
    %v2711 = vpack.c.b16 %v2207, %v2199
    %v2712 = vpack.c.b16 %v2208, %v2200
    %v2713 = vpack.c.b16 %v2209, %v2201
    %v2714 = vpack.c.b16 %v2210, %v2202
    %v2715 = vpack.c.b16 %v2211, %v2203
    %v2716 = vpack.c.b16 %v2220, %v2212
    %v2717 = vpack.c.b16 %v2221, %v2213
    %v2718 = vpack.c.b16 %v2222, %v2214
    %v2719 = vpack.c.b16 %v2223, %v2215
    %v2720 = vpack.c.b16 %v2224, %v2216
    %v2721 = vpack.c.b16 %v2225, %v2217
    %v2722 = vpack.c.b16 %v2226, %v2218
    %v2723 = vpack.c.b16 %v2227, %v2219
    %v2724 = vpack.c.b16 %v2236, %v2228
    %v2725 = vpack.c.b16 %v2237, %v2229
    %v2726 = vpack.c.b16 %v2238, %v2230
    %v2727 = vpack.c.b16 %v2239, %v2231
    %v2728 = vpack.c.b16 %v2240, %v2232
    %v2729 = vpack.c.b16 %v2241, %v2233
    %v2730 = vpack.c.b16 %v2242, %v2234
    %v2731 = vpack.c.b16 %v2243, %v2235
    %v2732 = vpack.c.b16 %v2252, %v2244
    %v2733 = vpack.c.b16 %v2253, %v2245
    %v2734 = vpack.c.b16 %v2254, %v2246
    %v2735 = vpack.c.b16 %v2255, %v2247
    %v2736 = vpack.c.b16 %v2256, %v2248
    %v2737 = vpack.c.b16 %v2257, %v2249
    %v2738 = vpack.c.b16 %v2258, %v2250
    %v2739 = vpack.c.b16 %v2259, %v2251
    %v2740 = vpack.c.b16 %v2268, %v2260
    %v2741 = vpack.c.b16 %v2269, %v2261
    %v2742 = vpack.c.b16 %v2270, %v2262
    %v2743 = vpack.c.b16 %v2271, %v2263
    %v2744 = vpack.c.b16 %v2272, %v2264
    %v2745 = vpack.c.b16 %v2273, %v2265
    %v2746 = vpack.c.b16 %v2274, %v2266
    %v2747 = vpack.c.b16 %v2275, %v2267
    %v2748 = vpack.c.b16 %v2284, %v2276
    %v2749 = vpack.c.b16 %v2285, %v2277
    %v2750 = vpack.c.b16 %v2286, %v2278
    %v2751 = vpack.c.b16 %v2287, %v2279
    %v2752 = vpack.c.b16 %v2288, %v2280
    %v2753 = vpack.c.b16 %v2289, %v2281
    %v2754 = vpack.c.b16 %v2290, %v2282
    %v2755 = vpack.c.b16 %v2291, %v2283
    %v2756 = vpack.c.b16 %v2300, %v2292
    %v2757 = vpack.c.b16 %v2301, %v2293
    %v2758 = vpack.c.b16 %v2302, %v2294
    %v2759 = vpack.c.b16 %v2303, %v2295
    %v2760 = vpack.c.b16 %v2304, %v2296
    %v2761 = vpack.c.b16 %v2305, %v2297
    %v2762 = vpack.c.b16 %v2306, %v2298
    %v2763 = vpack.c.b16 %v2307, %v2299
    %v2764 = vpack.c.b16 %v2316, %v2308
    %v2765 = vpack.c.b16 %v2317, %v2309
    %v2766 = vpack.c.b16 %v2318, %v2310
    %v2767 = vpack.c.b16 %v2319, %v2311
    %v2768 = vpack.c.b16 %v2320, %v2312
    %v2769 = vpack.c.b16 %v2321, %v2313
    %v2770 = vpack.c.b16 %v2322, %v2314
    %v2771 = vpack.c.b16 %v2323, %v2315
    %v2772 = vpack.c.b16 %v2332, %v2324
    %v2773 = vpack.c.b16 %v2333, %v2325
    %v2774 = vpack.c.b16 %v2334, %v2326
    %v2775 = vpack.c.b16 %v2335, %v2327
    %v2776 = vpack.c.b16 %v2336, %v2328
    %v2777 = vpack.c.b16 %v2337, %v2329
    %v2778 = vpack.c.b16 %v2338, %v2330
    %v2779 = vpack.c.b16 %v2339, %v2331
    %v2780 = vpack.c.b16 %v2348, %v2340
    %v2781 = vpack.c.b16 %v2349, %v2341
    %v2782 = vpack.c.b16 %v2350, %v2342
    %v2783 = vpack.c.b16 %v2351, %v2343
    %v2784 = vpack.c.b16 %v2352, %v2344
    %v2785 = vpack.c.b16 %v2353, %v2345
    %v2786 = vpack.c.b16 %v2354, %v2346
    %v2787 = vpack.c.b16 %v2355, %v2347
    %v2788 = vpack.c.b16 %v2364, %v2356
    %v2789 = vpack.c.b16 %v2365, %v2357
    %v2790 = vpack.c.b16 %v2366, %v2358
    %v2791 = vpack.c.b16 %v2367, %v2359
    %v2792 = vpack.c.b16 %v2368, %v2360
    %v2793 = vpack.c.b16 %v2369, %v2361
    %v2794 = vpack.c.b16 %v2370, %v2362
    %v2795 = vpack.c.b16 %v2371, %v2363
    %v2796 = vpack.c.b16 %v2380, %v2372
    %v2797 = vpack.c.b16 %v2381, %v2373
    %v2798 = vpack.c.b16 %v2382, %v2374
    %v2799 = vpack.c.b16 %v2383, %v2375
    %v2800 = vpack.c.b16 %v2384, %v2376
    %v2801 = vpack.c.b16 %v2385, %v2377
    %v2802 = vpack.c.b16 %v2386, %v2378
    %v2803 = vpack.c.b16 %v2387, %v2379
    %v2804 = vpack.c.b16 %v2396, %v2388
    %v2805 = vpack.c.b16 %v2397, %v2389
    %v2806 = vpack.c.b16 %v2398, %v2390
    %v2807 = vpack.c.b16 %v2399, %v2391
    %v2808 = vpack.c.b16 %v2400, %v2392
    %v2809 = vpack.c.b16 %v2401, %v2393
    %v2810 = vpack.c.b16 %v2402, %v2394
    %v2811 = vpack.c.b16 %v2403, %v2395
    %v2812 = vpack.c.b16 %v2412, %v2404
    %v2813 = vpack.c.b16 %v2413, %v2405
    %v2814 = vpack.c.b16 %v2414, %v2406
    %v2815 = vpack.c.b16 %v2415, %v2407
    %v2816 = vpack.c.b16 %v2416, %v2408
    %v2817 = vpack.c.b16 %v2417, %v2409
    %v2818 = vpack.c.b16 %v2418, %v2410
    %v2819 = vpack.c.b16 %v2419, %v2411
    %v2820 = vpack.c.b16 %v2428, %v2420
    %v2821 = vpack.c.b16 %v2429, %v2421
    %v2822 = vpack.c.b16 %v2430, %v2422
    %v2823 = vpack.c.b16 %v2431, %v2423
    %v2824 = vpack.c.b16 %v2432, %v2424
    %v2825 = vpack.c.b16 %v2433, %v2425
    %v2826 = vpack.c.b16 %v2434, %v2426
    %v2827 = vpack.c.b16 %v2435, %v2427
    %v2828 = vpack.c.b16 %v2444, %v2436
    %v2829 = vpack.c.b16 %v2445, %v2437
    %v2830 = vpack.c.b16 %v2446, %v2438
    %v2831 = vpack.c.b16 %v2447, %v2439
    %v2832 = vpack.c.b16 %v2448, %v2440
    %v2833 = vpack.c.b16 %v2449, %v2441
    %v2834 = vpack.c.b16 %v2450, %v2442
    %v2835 = vpack.c.b16 %v2451, %v2443
    %v2836 = vpack.c.b16 %v2460, %v2452
    %v2837 = vpack.c.b16 %v2461, %v2453
    %v2838 = vpack.c.b16 %v2462, %v2454
    %v2839 = vpack.c.b16 %v2463, %v2455
    %v2840 = vpack.c.b16 %v2464, %v2456
    %v2841 = vpack.c.b16 %v2465, %v2457
    %v2842 = vpack.c.b16 %v2466, %v2458
    %v2843 = vpack.c.b16 %v2467, %v2459
    %v2844 = vpack.c.b16 %v2476, %v2468
    %v2845 = vpack.c.b16 %v2477, %v2469
    %v2846 = vpack.c.b16 %v2478, %v2470
    %v2847 = vpack.c.b16 %v2479, %v2471
    %v2848 = vpack.c.b16 %v2480, %v2472
    %v2849 = vpack.c.b16 %v2481, %v2473
    %v2850 = vpack.c.b16 %v2482, %v2474
    %v2851 = vpack.c.b16 %v2483, %v2475
    %v2852 = vpack.c.b16 %v2492, %v2484
    %v2853 = vpack.c.b16 %v2493, %v2485
    %v2854 = vpack.c.b16 %v2494, %v2486
    %v2855 = vpack.c.b16 %v2495, %v2487
    %v2856 = vpack.c.b16 %v2496, %v2488
    %v2857 = vpack.c.b16 %v2497, %v2489
    %v2858 = vpack.c.b16 %v2498, %v2490
    %v2859 = vpack.c.b16 %v2499, %v2491
    %v2860 = vpack.c.b16 %v2508, %v2500
    %v2861 = vpack.c.b16 %v2509, %v2501
    %v2862 = vpack.c.b16 %v2510, %v2502
    %v2863 = vpack.c.b16 %v2511, %v2503
    %v2864 = vpack.c.b16 %v2512, %v2504
    %v2865 = vpack.c.b16 %v2513, %v2505
    %v2866 = vpack.c.b16 %v2514, %v2506
    %v2867 = vpack.c.b16 %v2515, %v2507
    %v2868 = vpack.c.b16 %v2524, %v2516
    %v2869 = vpack.c.b16 %v2525, %v2517
    %v2870 = vpack.c.b16 %v2526, %v2518
    %v2871 = vpack.c.b16 %v2527, %v2519
    %v2872 = vpack.c.b16 %v2528, %v2520
    %v2873 = vpack.c.b16 %v2529, %v2521
    %v2874 = vpack.c.b16 %v2530, %v2522
    %v2875 = vpack.c.b16 %v2531, %v2523
    %v2876 = vpack.c.b16 %v2540, %v2532
    %v2877 = vpack.c.b16 %v2541, %v2533
    %v2878 = vpack.c.b16 %v2542, %v2534
    %v2879 = vpack.c.b16 %v2543, %v2535
    %v2880 = vpack.c.b16 %v2544, %v2536
    %v2881 = vpack.c.b16 %v2545, %v2537
    %v2882 = vpack.c.b16 %v2546, %v2538
    %v2883 = vpack.c.b16 %v2547, %v2539
    %v2884 = vpack.c.b16 %v2556, %v2548
    %v2885 = vpack.c.b16 %v2557, %v2549
    %v2886 = vpack.c.b16 %v2558, %v2550
    %v2887 = vpack.c.b16 %v2559, %v2551
    %v2888 = vpack.c.b16 %v2560, %v2552
    %v2889 = vpack.c.b16 %v2561, %v2553
    %v2890 = vpack.c.b16 %v2562, %v2554
    %v2891 = vpack.c.b16 %v2563, %v2555
    %v2892 = vpack.c.b16 %v2572, %v2564
    %v2893 = vpack.c.b16 %v2573, %v2565
    %v2894 = vpack.c.b16 %v2574, %v2566
    %v2895 = vpack.c.b16 %v2575, %v2567
    %v2896 = vpack.c.b16 %v2576, %v2568
    %v2897 = vpack.c.b16 %v2577, %v2569
    %v2898 = vpack.c.b16 %v2578, %v2570
    %v2899 = vpack.c.b16 %v2579, %v2571
    %v2900 = vpack.c.b16 %v2588, %v2580
    %v2901 = vpack.c.b16 %v2589, %v2581
    %v2902 = vpack.c.b16 %v2590, %v2582
    %v2903 = vpack.c.b16 %v2591, %v2583
    %v2904 = vpack.c.b16 %v2592, %v2584
    %v2905 = vpack.c.b16 %v2593, %v2585
    %v2906 = vpack.c.b16 %v2594, %v2586
    %v2907 = vpack.c.b16 %v2595, %v2587
    %v2908 = vpack.c.b16 %v2604, %v2596
    %v2909 = vpack.c.b16 %v2605, %v2597
    %v2910 = vpack.c.b16 %v2606, %v2598
    %v2911 = vpack.c.b16 %v2607, %v2599
    %v2912 = vpack.c.b16 %v2608, %v2600
    %v2913 = vpack.c.b16 %v2609, %v2601
    %v2914 = vpack.c.b16 %v2610, %v2602
    %v2915 = vpack.c.b16 %v2611, %v2603
    %v2916 = vpack.c.b16 %v2620, %v2612
    %v2917 = vpack.c.b16 %v2621, %v2613
    %v2918 = vpack.c.b16 %v2622, %v2614
    %v2919 = vpack.c.b16 %v2623, %v2615
    %v2920 = vpack.c.b16 %v2624, %v2616
    %v2921 = vpack.c.b16 %v2625, %v2617
    %v2922 = vpack.c.b16 %v2626, %v2618
    %v2923 = vpack.c.b16 %v2627, %v2619
    %v2924 = vpack.c.b16 %v2636, %v2628
    %v2925 = vpack.c.b16 %v2637, %v2629
    %v2926 = vpack.c.b16 %v2638, %v2630
    %v2927 = vpack.c.b16 %v2639, %v2631
    %v2928 = vpack.c.b16 %v2640, %v2632
    %v2929 = vpack.c.b16 %v2641, %v2633
    %v2930 = vpack.c.b16 %v2642, %v2634
    %v2931 = vpack.c.b16 %v2643, %v2635
    %v2932 = vpack.c.b16 %v2652, %v2644
    %v2933 = vpack.c.b16 %v2653, %v2645
    %v2934 = vpack.c.b16 %v2654, %v2646
    %v2935 = vpack.c.b16 %v2655, %v2647
    %v2936 = vpack.c.b16 %v2656, %v2648
    %v2937 = vpack.c.b16 %v2657, %v2649
    %v2938 = vpack.c.b16 %v2658, %v2650
    %v2939 = vpack.c.b16 %v2659, %v2651
    %v2940 = vpack.c.b16 %v2668, %v2660
    %v2941 = vpack.c.b16 %v2669, %v2661
    %v2942 = vpack.c.b16 %v2670, %v2662
    %v2943 = vpack.c.b16 %v2671, %v2663
    %v2944 = vpack.c.b16 %v2672, %v2664
    %v2945 = vpack.c.b16 %v2673, %v2665
    %v2946 = vpack.c.b16 %v2674, %v2666
    %v2947 = vpack.c.b16 %v2675, %v2667
    %v2948 = vpack.c.b16 %v2684, %v2676
    %v2949 = vpack.c.b16 %v2685, %v2677
    %v2950 = vpack.c.b16 %v2686, %v2678
    %v2951 = vpack.c.b16 %v2687, %v2679
    %v2952 = vpack.c.b16 %v2688, %v2680
    %v2953 = vpack.c.b16 %v2689, %v2681
    %v2954 = vpack.c.b16 %v2690, %v2682
    %v2955 = vpack.c.b16 %v2691, %v2683
    %v2956 = vpack.c.b16 %v2700, %v2692
    %v2957 = vpack.c.b16 %v2701, %v2693
    %v2958 = vpack.c.b16 %v2702, %v2694
    %v2959 = vpack.c.b16 %v2703, %v2695
    %v2960 = vpack.c.b16 %v2704, %v2696
    %v2961 = vpack.c.b16 %v2705, %v2697
    %v2962 = vpack.c.b16 %v2706, %v2698
    %v2963 = vpack.c.b16 %v2707, %v2699
    %3220 = vmatprep.subr.bf16.mxu0 %v2709
    %3221 = vmatpush1.bf16.msra.mxu0 %v2708
    %3222 = vmatprep.subr.bf16.mxu0 %v2717
    %3223 = vmatpush1.bf16.msra.mxu0 %v2716
    %3224 = vmatprep.subr.bf16.mxu0 %v2725
    %3225 = vmatpush1.bf16.msra.mxu0 %v2724
    %3226 = vmatprep.subr.bf16.mxu0 %v2733
    %3227 = vmatpush1.bf16.msra.mxu0 %v2732
    %3228 = vmatprep.subr.bf16.mxu0 %v2741
    %3229 = vmatpush1.bf16.msra.mxu0 %v2740
    %3230 = vmatprep.subr.bf16.mxu0 %v2749
    %3231 = vmatpush1.bf16.msra.mxu0 %v2748
    %3232 = vmatprep.subr.bf16.mxu0 %v2757
    %3233 = vmatpush1.bf16.msra.mxu0 %v2756
    %3234 = vmatprep.subr.bf16.mxu0 %v2765
    %3235 = vmatpush1.bf16.msra.mxu0 %v2764
    %3236 = vmatprep.subr.bf16.mxu0 %v2773
    %3237 = vmatpush1.bf16.msra.mxu0 %v2772
    %3238 = vmatprep.subr.bf16.mxu0 %v2781
    %3239 = vmatpush1.bf16.msra.mxu0 %v2780
    %3240 = vmatprep.subr.bf16.mxu0 %v2789
    %3241 = vmatpush1.bf16.msra.mxu0 %v2788
    %3242 = vmatprep.subr.bf16.mxu0 %v2797
    %3243 = vmatpush1.bf16.msra.mxu0 %v2796
    %3244 = vmatprep.subr.bf16.mxu0 %v2805
    %3245 = vmatpush1.bf16.msra.mxu0 %v2804
    %3246 = vmatprep.subr.bf16.mxu0 %v2813
    %3247 = vmatpush1.bf16.msra.mxu0 %v2812
    %3248 = vmatprep.subr.bf16.mxu0 %v2821
    %3249 = vmatpush1.bf16.msra.mxu0 %v2820
    %3250 = vmatprep.subr.bf16.mxu0 %v2829
    %3251 = vmatpush1.bf16.msra.mxu0 %v2828
    %3252 = vmatprep.mubr.bf16.mxu0 %v1896
    %3253 = vmatmul.mubr.bf16.gmra.mrb[0].mxu0 %v1895
    %v3254 = vpop.f32.mrb[0].mxu0
    %v3255 = vadd.f32 %v1903, %v3254
    %v3256 = vpop.f32.mrb[0].mxu0
    %v3257 = vadd.f32 %v1907, %v3256
    %v3258 = vpop.f32.mrb[0].mxu0
    %v3259 = vadd.f32 %v1903, %v3258
    %v3260 = vpop.f32.mrb[0].mxu0
    %v3261 = vadd.f32 %v1907, %v3260
    %3262 = vdwg.mxu0
    %3263 = vmatprep.subr.bf16.mxu0 %v2837
    %3264 = vmatpush1.bf16.msra.mxu0 %v2836
    %3265 = vmatprep.subr.bf16.mxu0 %v2845
    %3266 = vmatpush1.bf16.msra.mxu0 %v2844
    %3267 = vmatprep.subr.bf16.mxu0 %v2853
    %3268 = vmatpush1.bf16.msra.mxu0 %v2852
    %3269 = vmatprep.subr.bf16.mxu0 %v2861
    %3270 = vmatpush1.bf16.msra.mxu0 %v2860
    %3271 = vmatprep.subr.bf16.mxu0 %v2869
    %3272 = vmatpush1.bf16.msra.mxu0 %v2868
    %3273 = vmatprep.subr.bf16.mxu0 %v2877
    %3274 = vmatpush1.bf16.msra.mxu0 %v2876
    %3275 = vmatprep.subr.bf16.mxu0 %v2885
    %3276 = vmatpush1.bf16.msra.mxu0 %v2884
    %3277 = vmatprep.subr.bf16.mxu0 %v2893
    %3278 = vmatpush1.bf16.msra.mxu0 %v2892
    %3279 = vmatprep.subr.bf16.mxu0 %v2901
    %3280 = vmatpush1.bf16.msra.mxu0 %v2900
    %3281 = vmatprep.subr.bf16.mxu0 %v2909
    %3282 = vmatpush1.bf16.msra.mxu0 %v2908
    %3283 = vmatprep.subr.bf16.mxu0 %v2917
    %3284 = vmatpush1.bf16.msra.mxu0 %v2916
    %3285 = vmatprep.subr.bf16.mxu0 %v2925
    %3286 = vmatpush1.bf16.msra.mxu0 %v2924
    %3287 = vmatprep.subr.bf16.mxu0 %v2933
    %3288 = vmatpush1.bf16.msra.mxu0 %v2932
    %3289 = vmatprep.subr.bf16.mxu0 %v2941
    %3290 = vmatpush1.bf16.msra.mxu0 %v2940
    %3291 = vmatprep.subr.bf16.mxu0 %v2949
    %3292 = vmatpush1.bf16.msra.mxu0 %v2948
    %3293 = vmatprep.subr.bf16.mxu0 %v2957
    %3294 = vmatpush1.bf16.msra.mxu0 %v2956
    %3295 = vmatprep.mubr.bf16.mxu0 %v1898
    %3296 = vmatmul.mubr.bf16.gmra.mrb[0].mxu0 %v1897
    %v3297 = vpop.f32.mrb[0].mxu0
    %v3298 = vadd.f32 %v3255, %v3297
    %v3299 = vpop.f32.mrb[0].mxu0
    %v3300 = vadd.f32 %v3257, %v3299
    %v3301 = vpop.f32.mrb[0].mxu0
    %v3302 = vadd.f32 %v3259, %v3301
    %v3303 = vpop.f32.mrb[0].mxu0
    %v3304 = vadd.f32 %v3261, %v3303
    %3305 = vdwg.mxu0
    %3306 = vmatprep.subr.bf16.mxu0 %v2711
    %3307 = vmatpush1.bf16.msra.mxu0 %v2710
    %3308 = vmatprep.subr.bf16.mxu0 %v2719
    %3309 = vmatpush1.bf16.msra.mxu0 %v2718
    %3310 = vmatprep.subr.bf16.mxu0 %v2727
    %3311 = vmatpush1.bf16.msra.mxu0 %v2726
    %3312 = vmatprep.subr.bf16.mxu0 %v2735
    %3313 = vmatpush1.bf16.msra.mxu0 %v2734
    %3314 = vmatprep.subr.bf16.mxu0 %v2743
    %3315 = vmatpush1.bf16.msra.mxu0 %v2742
    %3316 = vmatprep.subr.bf16.mxu0 %v2751
    %3317 = vmatpush1.bf16.msra.mxu0 %v2750
    %3318 = vmatprep.subr.bf16.mxu0 %v2759
    %3319 = vmatpush1.bf16.msra.mxu0 %v2758
    %3320 = vmatprep.subr.bf16.mxu0 %v2767
    %3321 = vmatpush1.bf16.msra.mxu0 %v2766
    %3322 = vmatprep.subr.bf16.mxu0 %v2775
    %3323 = vmatpush1.bf16.msra.mxu0 %v2774
    %3324 = vmatprep.subr.bf16.mxu0 %v2783
    %3325 = vmatpush1.bf16.msra.mxu0 %v2782
    %3326 = vmatprep.subr.bf16.mxu0 %v2791
    %3327 = vmatpush1.bf16.msra.mxu0 %v2790
    %3328 = vmatprep.subr.bf16.mxu0 %v2799
    %3329 = vmatpush1.bf16.msra.mxu0 %v2798
    %3330 = vmatprep.subr.bf16.mxu0 %v2807
    %3331 = vmatpush1.bf16.msra.mxu0 %v2806
    %3332 = vmatprep.subr.bf16.mxu0 %v2815
    %3333 = vmatpush1.bf16.msra.mxu0 %v2814
    %3334 = vmatprep.subr.bf16.mxu0 %v2823
    %3335 = vmatpush1.bf16.msra.mxu0 %v2822
    %3336 = vmatprep.subr.bf16.mxu0 %v2831
    %3337 = vmatpush1.bf16.msra.mxu0 %v2830
    %3338 = vmatprep.mubr.bf16.mxu0 %v1896
    %3339 = vmatmul.mubr.bf16.gmra.mrb[0].mxu0 %v1895
    %v3340 = vpop.f32.mrb[0].mxu0
    %v3341 = vadd.f32 %v1911, %v3340
    %v3342 = vpop.f32.mrb[0].mxu0
    %v3343 = vadd.f32 %v1915, %v3342
    %v3344 = vpop.f32.mrb[0].mxu0
    %v3345 = vadd.f32 %v1911, %v3344
    %v3346 = vpop.f32.mrb[0].mxu0
    %v3347 = vadd.f32 %v1915, %v3346
    %3348 = vdwg.mxu0
    %3349 = vmatprep.subr.bf16.mxu0 %v2839
    %3350 = vmatpush1.bf16.msra.mxu0 %v2838
    %3351 = vmatprep.subr.bf16.mxu0 %v2847
    %3352 = vmatpush1.bf16.msra.mxu0 %v2846
    %3353 = vmatprep.subr.bf16.mxu0 %v2855
    %3354 = vmatpush1.bf16.msra.mxu0 %v2854
    %3355 = vmatprep.subr.bf16.mxu0 %v2863
    %3356 = vmatpush1.bf16.msra.mxu0 %v2862
    %3357 = vmatprep.subr.bf16.mxu0 %v2871
    %3358 = vmatpush1.bf16.msra.mxu0 %v2870
    %3359 = vmatprep.subr.bf16.mxu0 %v2879
    %3360 = vmatpush1.bf16.msra.mxu0 %v2878
    %3361 = vmatprep.subr.bf16.mxu0 %v2887
    %3362 = vmatpush1.bf16.msra.mxu0 %v2886
    %3363 = vmatprep.subr.bf16.mxu0 %v2895
    %3364 = vmatpush1.bf16.msra.mxu0 %v2894
    %3365 = vmatprep.subr.bf16.mxu0 %v2903
    %3366 = vmatpush1.bf16.msra.mxu0 %v2902
    %3367 = vmatprep.subr.bf16.mxu0 %v2911
    %3368 = vmatpush1.bf16.msra.mxu0 %v2910
    %3369 = vmatprep.subr.bf16.mxu0 %v2919
    %3370 = vmatpush1.bf16.msra.mxu0 %v2918
    %3371 = vmatprep.subr.bf16.mxu0 %v2927
    %3372 = vmatpush1.bf16.msra.mxu0 %v2926
    %3373 = vmatprep.subr.bf16.mxu0 %v2935
    %3374 = vmatpush1.bf16.msra.mxu0 %v2934
    %3375 = vmatprep.subr.bf16.mxu0 %v2943
    %3376 = vmatpush1.bf16.msra.mxu0 %v2942
    %3377 = vmatprep.subr.bf16.mxu0 %v2951
    %3378 = vmatpush1.bf16.msra.mxu0 %v2950
    %3379 = vmatprep.subr.bf16.mxu0 %v2959
    %3380 = vmatpush1.bf16.msra.mxu0 %v2958
    %3381 = vmatprep.mubr.bf16.mxu0 %v1898
    %3382 = vmatmul.mubr.bf16.gmra.mrb[0].mxu0 %v1897
    %v3383 = vpop.f32.mrb[0].mxu0
    %v3384 = vadd.f32 %v3341, %v3383
    %v3385 = vpop.f32.mrb[0].mxu0
    %v3386 = vadd.f32 %v3343, %v3385
    %v3387 = vpop.f32.mrb[0].mxu0
    %v3388 = vadd.f32 %v3345, %v3387
    %v3389 = vpop.f32.mrb[0].mxu0
    %v3390 = vadd.f32 %v3347, %v3389
    %3391 = vdwg.mxu0
    %3392 = vmatprep.subr.bf16.mxu0 %v2713
    %3393 = vmatpush1.bf16.msra.mxu0 %v2712
    %3394 = vmatprep.subr.bf16.mxu0 %v2721
    %3395 = vmatpush1.bf16.msra.mxu0 %v2720
    %3396 = vmatprep.subr.bf16.mxu0 %v2729
    %3397 = vmatpush1.bf16.msra.mxu0 %v2728
    %3398 = vmatprep.subr.bf16.mxu0 %v2737
    %3399 = vmatpush1.bf16.msra.mxu0 %v2736
    %3400 = vmatprep.subr.bf16.mxu0 %v2745
    %3401 = vmatpush1.bf16.msra.mxu0 %v2744
    %3402 = vmatprep.subr.bf16.mxu0 %v2753
    %3403 = vmatpush1.bf16.msra.mxu0 %v2752
    %3404 = vmatprep.subr.bf16.mxu0 %v2761
    %3405 = vmatpush1.bf16.msra.mxu0 %v2760
    %3406 = vmatprep.subr.bf16.mxu0 %v2769
    %3407 = vmatpush1.bf16.msra.mxu0 %v2768
    %3408 = vmatprep.subr.bf16.mxu0 %v2777
    %3409 = vmatpush1.bf16.msra.mxu0 %v2776
    %3410 = vmatprep.subr.bf16.mxu0 %v2785
    %3411 = vmatpush1.bf16.msra.mxu0 %v2784
    %3412 = vmatprep.subr.bf16.mxu0 %v2793
    %3413 = vmatpush1.bf16.msra.mxu0 %v2792
    %3414 = vmatprep.subr.bf16.mxu0 %v2801
    %3415 = vmatpush1.bf16.msra.mxu0 %v2800
    %3416 = vmatprep.subr.bf16.mxu0 %v2809
    %3417 = vmatpush1.bf16.msra.mxu0 %v2808
    %3418 = vmatprep.subr.bf16.mxu0 %v2817
    %3419 = vmatpush1.bf16.msra.mxu0 %v2816
    %3420 = vmatprep.subr.bf16.mxu0 %v2825
    %3421 = vmatpush1.bf16.msra.mxu0 %v2824
    %3422 = vmatprep.subr.bf16.mxu0 %v2833
    %3423 = vmatpush1.bf16.msra.mxu0 %v2832
    %3424 = vmatprep.mubr.bf16.mxu0 %v1896
    %3425 = vmatmul.mubr.bf16.gmra.mrb[0].mxu0 %v1895
    %v3426 = vpop.f32.mrb[0].mxu0
    %v3427 = vadd.f32 %v1919, %v3426
    %v3428 = vpop.f32.mrb[0].mxu0
    %v3429 = vadd.f32 %v1923, %v3428
    %v3430 = vpop.f32.mrb[0].mxu0
    %v3431 = vadd.f32 %v1919, %v3430
    %v3432 = vpop.f32.mrb[0].mxu0
    %v3433 = vadd.f32 %v1923, %v3432
    %3434 = vdwg.mxu0
    %3435 = vmatprep.subr.bf16.mxu0 %v2841
    %3436 = vmatpush1.bf16.msra.mxu0 %v2840
    %3437 = vmatprep.subr.bf16.mxu0 %v2849
    %3438 = vmatpush1.bf16.msra.mxu0 %v2848
    %3439 = vmatprep.subr.bf16.mxu0 %v2857
    %3440 = vmatpush1.bf16.msra.mxu0 %v2856
    %3441 = vmatprep.subr.bf16.mxu0 %v2865
    %3442 = vmatpush1.bf16.msra.mxu0 %v2864
    %3443 = vmatprep.subr.bf16.mxu0 %v2873
    %3444 = vmatpush1.bf16.msra.mxu0 %v2872
    %3445 = vmatprep.subr.bf16.mxu0 %v2881
    %3446 = vmatpush1.bf16.msra.mxu0 %v2880
    %3447 = vmatprep.subr.bf16.mxu0 %v2889
    %3448 = vmatpush1.bf16.msra.mxu0 %v2888
    %3449 = vmatprep.subr.bf16.mxu0 %v2897
    %3450 = vmatpush1.bf16.msra.mxu0 %v2896
    %3451 = vmatprep.subr.bf16.mxu0 %v2905
    %3452 = vmatpush1.bf16.msra.mxu0 %v2904
    %3453 = vmatprep.subr.bf16.mxu0 %v2913
    %3454 = vmatpush1.bf16.msra.mxu0 %v2912
    %3455 = vmatprep.subr.bf16.mxu0 %v2921
    %3456 = vmatpush1.bf16.msra.mxu0 %v2920
    %3457 = vmatprep.subr.bf16.mxu0 %v2929
    %3458 = vmatpush1.bf16.msra.mxu0 %v2928
    %3459 = vmatprep.subr.bf16.mxu0 %v2937
    %3460 = vmatpush1.bf16.msra.mxu0 %v2936
    %3461 = vmatprep.subr.bf16.mxu0 %v2945
    %3462 = vmatpush1.bf16.msra.mxu0 %v2944
    %3463 = vmatprep.subr.bf16.mxu0 %v2953
    %3464 = vmatpush1.bf16.msra.mxu0 %v2952
    %3465 = vmatprep.subr.bf16.mxu0 %v2961
    %3466 = vmatpush1.bf16.msra.mxu0 %v2960
    %3467 = vmatprep.mubr.bf16.mxu0 %v1898
    %3468 = vmatmul.mubr.bf16.gmra.mrb[0].mxu0 %v1897
    %v3469 = vpop.f32.mrb[0].mxu0
    %v3470 = vadd.f32 %v3427, %v3469
    %v3471 = vpop.f32.mrb[0].mxu0
    %v3472 = vadd.f32 %v3429, %v3471
    %v3473 = vpop.f32.mrb[0].mxu0
    %v3474 = vadd.f32 %v3431, %v3473
    %v3475 = vpop.f32.mrb[0].mxu0
    %v3476 = vadd.f32 %v3433, %v3475
    %3477 = vdwg.mxu0
    %3478 = vmatprep.subr.bf16.mxu0 %v2715
    %3479 = vmatpush1.bf16.msra.mxu0 %v2714
    %3480 = vmatprep.subr.bf16.mxu0 %v2723
    %3481 = vmatpush1.bf16.msra.mxu0 %v2722
    %3482 = vmatprep.subr.bf16.mxu0 %v2731
    %3483 = vmatpush1.bf16.msra.mxu0 %v2730
    %3484 = vmatprep.subr.bf16.mxu0 %v2739
    %3485 = vmatpush1.bf16.msra.mxu0 %v2738
    %3486 = vmatprep.subr.bf16.mxu0 %v2747
    %3487 = vmatpush1.bf16.msra.mxu0 %v2746
    %3488 = vmatprep.subr.bf16.mxu0 %v2755
    %3489 = vmatpush1.bf16.msra.mxu0 %v2754
    %3490 = vmatprep.subr.bf16.mxu0 %v2763
    %3491 = vmatpush1.bf16.msra.mxu0 %v2762
    %3492 = vmatprep.subr.bf16.mxu0 %v2771
    %3493 = vmatpush1.bf16.msra.mxu0 %v2770
    %3494 = vmatprep.subr.bf16.mxu0 %v2779
    %3495 = vmatpush1.bf16.msra.mxu0 %v2778
    %3496 = vmatprep.subr.bf16.mxu0 %v2787
    %3497 = vmatpush1.bf16.msra.mxu0 %v2786
    %3498 = vmatprep.subr.bf16.mxu0 %v2795
    %3499 = vmatpush1.bf16.msra.mxu0 %v2794
    %3500 = vmatprep.subr.bf16.mxu0 %v2803
    %3501 = vmatpush1.bf16.msra.mxu0 %v2802
    %3502 = vmatprep.subr.bf16.mxu0 %v2811
    %3503 = vmatpush1.bf16.msra.mxu0 %v2810
    %3504 = vmatprep.subr.bf16.mxu0 %v2819
    %3505 = vmatpush1.bf16.msra.mxu0 %v2818
    %3506 = vmatprep.subr.bf16.mxu0 %v2827
    %3507 = vmatpush1.bf16.msra.mxu0 %v2826
    %3508 = vmatprep.subr.bf16.mxu0 %v2835
    %3509 = vmatpush1.bf16.msra.mxu0 %v2834
    %3510 = vmatprep.mubr.bf16.mxu0 %v1896
    %3511 = vmatmul.mubr.bf16.gmra.mrb[0].mxu0 %v1895
    %v3512 = vpop.f32.mrb[0].mxu0
    %v3513 = vadd.f32 %v1927, %v3512
    %v3514 = vpop.f32.mrb[0].mxu0
    %v3515 = vadd.f32 %v1931, %v3514
    %v3516 = vpop.f32.mrb[0].mxu0
    %v3517 = vadd.f32 %v1927, %v3516
    %v3518 = vpop.f32.mrb[0].mxu0
    %v3519 = vadd.f32 %v1931, %v3518
    %3520 = vdwg.mxu0
    %3521 = vmatprep.subr.bf16.mxu0 %v2843
    %3522 = vmatpush1.bf16.msra.mxu0 %v2842
    %3523 = vmatprep.subr.bf16.mxu0 %v2851
    %3524 = vmatpush1.bf16.msra.mxu0 %v2850
    %3525 = vmatprep.subr.bf16.mxu0 %v2859
    %3526 = vmatpush1.bf16.msra.mxu0 %v2858
    %3527 = vmatprep.subr.bf16.mxu0 %v2867
    %3528 = vmatpush1.bf16.msra.mxu0 %v2866
    %3529 = vmatprep.subr.bf16.mxu0 %v2875
    %3530 = vmatpush1.bf16.msra.mxu0 %v2874
    %3531 = vmatprep.subr.bf16.mxu0 %v2883
    %3532 = vmatpush1.bf16.msra.mxu0 %v2882
    %3533 = vmatprep.subr.bf16.mxu0 %v2891
    %3534 = vmatpush1.bf16.msra.mxu0 %v2890
    %3535 = vmatprep.subr.bf16.mxu0 %v2899
    %3536 = vmatpush1.bf16.msra.mxu0 %v2898
    %3537 = vmatprep.subr.bf16.mxu0 %v2907
    %3538 = vmatpush1.bf16.msra.mxu0 %v2906
    %3539 = vmatprep.subr.bf16.mxu0 %v2915
    %3540 = vmatpush1.bf16.msra.mxu0 %v2914
    %3541 = vmatprep.subr.bf16.mxu0 %v2923
    %3542 = vmatpush1.bf16.msra.mxu0 %v2922
    %3543 = vmatprep.subr.bf16.mxu0 %v2931
    %3544 = vmatpush1.bf16.msra.mxu0 %v2930
    %3545 = vmatprep.subr.bf16.mxu0 %v2939
    %3546 = vmatpush1.bf16.msra.mxu0 %v2938
    %3547 = vmatprep.subr.bf16.mxu0 %v2947
    %3548 = vmatpush1.bf16.msra.mxu0 %v2946
    %3549 = vmatprep.subr.bf16.mxu0 %v2955
    %3550 = vmatpush1.bf16.msra.mxu0 %v2954
    %3551 = vmatprep.subr.bf16.mxu0 %v2963
    %3552 = vmatpush1.bf16.msra.mxu0 %v2962
    %3553 = vmatprep.mubr.bf16.mxu0 %v1898
    %3554 = vmatmul.mubr.bf16.gmra.mrb[0].mxu0 %v1897
    %v3555 = vpop.f32.mrb[0].mxu0
    %v3556 = vadd.f32 %v3513, %v3555
    %v3557 = vpop.f32.mrb[0].mxu0
    %v3558 = vadd.f32 %v3515, %v3557
    %v3559 = vpop.f32.mrb[0].mxu0
    %v3560 = vadd.f32 %v3517, %v3559
    %v3561 = vpop.f32.mrb[0].mxu0
    %v3562 = vadd.f32 %v3519, %v3561
    %3563 = vdwg.mxu0
    %3564 = vmatprep.subr.mxu0 %v3300
    %3565 = vmatpush1.xpose.msra.mxu0 %v3298
    %3566 = vmatprep.subr.mxu0 %v3304
    %3567 = vmatpush1.xpose.msra.mxu0 %v3302
    %3568 = vmatprep.subr.mxu0 0.0
    %3569 = vmatpush1.xpose.msra.mxu0 0.0
    %3570 = vmatprep.subr.mxu0 0.0
    %3571 = vmatpush1.xpose.msra.mxu0 0.0
    %3572 = vmatprep.subr.mxu0 0.0
    %3573 = vmatpush1.xpose.msra.mxu0 0.0
    %3574 = vmatprep.subr.mxu0 0.0
    %3575 = vmatpush1.xpose.msra.mxu0 0.0
    %3576 = vmatprep.subr.mxu0 0.0
    %3577 = vmatpush1.xpose.msra.mxu0 0.0
    %3578 = vmatprep.subr.mxu0 0.0
    %3579 = vmatpush1.xpose.msra.mxu0 0.0
    %3580 = vmatprep.subr.mxu0 0.0
    %3581 = vmatpush1.xpose.msra.mxu0 0.0
    %3582 = vmatprep.subr.mxu0 0.0
    %3583 = vmatpush1.xpose.msra.mxu0 0.0
    %3584 = vmatprep.subr.mxu0 0.0
    %3585 = vmatpush1.xpose.msra.mxu0 0.0
    %3586 = vmatprep.subr.mxu0 0.0
    %3587 = vmatpush1.xpose.msra.mxu0 0.0
    %3588 = vmatprep.subr.mxu0 0.0
    %3589 = vmatpush1.xpose.msra.mxu0 0.0
    %3590 = vmatprep.subr.mxu0 0.0
    %3591 = vmatpush1.xpose.msra.mxu0 0.0
    %3592 = vmatprep.subr.mxu0 0.0
    %3593 = vmatpush1.xpose.msra.mxu0 0.0
    %3594 = vmatprep.subr.mxu0 0.0
    %3595 = vmatpush1.xpose.msra.mxu0 0.0
    %3596 = vmatprep.subr.mxu0 0.0
    %3597 = vmatpush1.xpose.msra.mxu0 0.0
    %3598 = vmatprep.subr.mxu0 0.0
    %3599 = vmatpush1.xpose.msra.mxu0 0.0
    %3600 = vmatprep.subr.mxu0 0.0
    %3601 = vmatpush1.xpose.msra.mxu0 0.0
    %3602 = vmatprep.subr.mxu0 0.0
    %3603 = vmatpush1.xpose.msra.mxu0 0.0
    %3604 = vmatprep.subr.mxu0 0.0
    %3605 = vmatpush1.xpose.msra.mxu0 0.0
    %3606 = vmatprep.subr.mxu0 0.0
    %3607 = vmatpush1.xpose.msra.mxu0 0.0
    %3608 = vmatprep.subr.mxu0 0.0
    %3609 = vmatpush1.xpose.msra.mxu0 0.0
    %3610 = vmatprep.subr.mxu0 0.0
    %3611 = vmatpush1.xpose.msra.mxu0 0.0
    %3612 = vmatprep.subr.mxu0 0.0
    %3613 = vmatpush1.xpose.msra.mxu0 0.0
    %3614 = vmatprep.subr.mxu0 0.0
    %3615 = vmatpush1.xpose.msra.mxu0 0.0
    %3616 = vmatprep.subr.mxu0 0.0
    %3617 = vmatpush1.xpose.msra.mxu0 0.0
    %3618 = vmatprep.subr.mxu0 0.0
    %3619 = vmatpush1.xpose.msra.mxu0 0.0
    %3620 = vmatprep.subr.mxu0 0.0
    %3621 = vmatpush1.xpose.msra.mxu0 0.0
    %3622 = vmatprep.subr.mxu0 0.0
    %3623 = vmatpush1.xpose.msra.mxu0 0.0
    %3624 = vmatprep.subr.mxu0 0.0
    %3625 = vmatpush1.xpose.msra.mxu0 0.0
    %3626 = vmatprep.subr.mxu0 0.0
    %3627 = vmatpush1.xpose.msra.mxu0 0.0
    %3628 = vmatprep.mubr.f32.mxu0 %v1809
    %3629 = vmatmul.mubr.f32.gmra.mrb[0].mxu0 %v1807
    %v3630 = vpop.f32.mrb[0].mxu0
    %v3631 = vadd.f32 0.0, %v3630
    %v3632 = vpop.f32.mrb[0].mxu0
    %3633 = vdwg.mxu0
    %3634 = vmatprep.subr.mxu0 %v3386
    %3635 = vmatpush1.xpose.msra.mxu0 %v3384
    %3636 = vmatprep.subr.mxu0 %v3390
    %3637 = vmatpush1.xpose.msra.mxu0 %v3388
    %3638 = vmatprep.subr.mxu0 0.0
    %3639 = vmatpush1.xpose.msra.mxu0 0.0
    %3640 = vmatprep.subr.mxu0 0.0
    %3641 = vmatpush1.xpose.msra.mxu0 0.0
    %3642 = vmatprep.subr.mxu0 0.0
    %3643 = vmatpush1.xpose.msra.mxu0 0.0
    %3644 = vmatprep.subr.mxu0 0.0
    %3645 = vmatpush1.xpose.msra.mxu0 0.0
    %3646 = vmatprep.subr.mxu0 0.0
    %3647 = vmatpush1.xpose.msra.mxu0 0.0
    %3648 = vmatprep.subr.mxu0 0.0
    %3649 = vmatpush1.xpose.msra.mxu0 0.0
    %3650 = vmatprep.subr.mxu0 0.0
    %3651 = vmatpush1.xpose.msra.mxu0 0.0
    %3652 = vmatprep.subr.mxu0 0.0
    %3653 = vmatpush1.xpose.msra.mxu0 0.0
    %3654 = vmatprep.subr.mxu0 0.0
    %3655 = vmatpush1.xpose.msra.mxu0 0.0
    %3656 = vmatprep.subr.mxu0 0.0
    %3657 = vmatpush1.xpose.msra.mxu0 0.0
    %3658 = vmatprep.subr.mxu0 0.0
    %3659 = vmatpush1.xpose.msra.mxu0 0.0
    %3660 = vmatprep.subr.mxu0 0.0
    %3661 = vmatpush1.xpose.msra.mxu0 0.0
    %3662 = vmatprep.subr.mxu0 0.0
    %3663 = vmatpush1.xpose.msra.mxu0 0.0
    %3664 = vmatprep.subr.mxu0 0.0
    %3665 = vmatpush1.xpose.msra.mxu0 0.0
    %3666 = vmatprep.subr.mxu0 0.0
    %3667 = vmatpush1.xpose.msra.mxu0 0.0
    %3668 = vmatprep.subr.mxu0 0.0
    %3669 = vmatpush1.xpose.msra.mxu0 0.0
    %3670 = vmatprep.subr.mxu0 0.0
    %3671 = vmatpush1.xpose.msra.mxu0 0.0
    %3672 = vmatprep.subr.mxu0 0.0
    %3673 = vmatpush1.xpose.msra.mxu0 0.0
    %3674 = vmatprep.subr.mxu0 0.0
    %3675 = vmatpush1.xpose.msra.mxu0 0.0
    %3676 = vmatprep.subr.mxu0 0.0
    %3677 = vmatpush1.xpose.msra.mxu0 0.0
    %3678 = vmatprep.subr.mxu0 0.0
    %3679 = vmatpush1.xpose.msra.mxu0 0.0
    %3680 = vmatprep.subr.mxu0 0.0
    %3681 = vmatpush1.xpose.msra.mxu0 0.0
    %3682 = vmatprep.subr.mxu0 0.0
    %3683 = vmatpush1.xpose.msra.mxu0 0.0
    %3684 = vmatprep.subr.mxu0 0.0
    %3685 = vmatpush1.xpose.msra.mxu0 0.0
    %3686 = vmatprep.subr.mxu0 0.0
    %3687 = vmatpush1.xpose.msra.mxu0 0.0
    %3688 = vmatprep.subr.mxu0 0.0
    %3689 = vmatpush1.xpose.msra.mxu0 0.0
    %3690 = vmatprep.subr.mxu0 0.0
    %3691 = vmatpush1.xpose.msra.mxu0 0.0
    %3692 = vmatprep.subr.mxu0 0.0
    %3693 = vmatpush1.xpose.msra.mxu0 0.0
    %3694 = vmatprep.subr.mxu0 0.0
    %3695 = vmatpush1.xpose.msra.mxu0 0.0
    %3696 = vmatprep.subr.mxu0 0.0
    %3697 = vmatpush1.xpose.msra.mxu0 0.0
    %3698 = vmatprep.mubr.f32.mxu0 %v1891
    %3699 = vmatmul.mubr.f32.gmra.mrb[0].mxu0 %v1889
    %v3700 = vpop.f32.mrb[0].mxu0
    %v3701 = vadd.f32 %v3631, %v3700
    %v3702 = vpop.f32.mrb[0].mxu0
    %3703 = vdwg.mxu0
    %v3704 = vmul.f32 %v3701, 0.044194173
    %v3705 = vld [vmem:[#allocation16] sm:$0x1]
    %v3707 = vlaneseq
    %v3708 = vshrl.u32 %v3707, 7
    %v3709 = vsub.s32 0, %v3708
    %v3710 = vrot.slane %v3705, %v3709
    %v3712 = vadd.f32 %v3704, %v3710
    %vm3713 = vcmask 130048
    %v3714 = vsel %vm3713, %v3712, -inf
    %3715 = vmax.xlane.f32.xlu0 %v3714
    %v3716 = vpop.xlane.xlu0 %3715
    %v3717 = vsub.f32 %v3712, %v3716
    %v3718 = vmul.f32 %v3717, 1.442695
    %v3719 = vpow.pop %v3718
    %v3720 = vsel %vm3713, %v3719, 0.0
    %3721 = vadd.xlane.f32.xlu0 %v3720
    %v3722 = vpop.xlane.xlu0 %3721
    %v3723 = vrcp.pop %v3722
    %v3724 = vmul.f32 %v3719, %v3723
    %v3726 = vsel %vm3713, %v3724, 0
    %3728 = vmatprep.subr.mxu0 %v3472
    %3729 = vmatpush1.msra.mxu0 %v3470
    %3730 = vmatprep.subr.mxu0 %v3476
    %3731 = vmatpush1.msra.mxu0 %v3474
    %3732 = vmatprep.subr.mxu0 0.0
    %3733 = vmatpush1.msra.mxu0 0.0
    %3734 = vmatprep.subr.mxu0 0.0
    %3735 = vmatpush1.msra.mxu0 0.0
    %3736 = vmatprep.subr.mxu0 0.0
    %3737 = vmatpush1.msra.mxu0 0.0
    %3738 = vmatprep.subr.mxu0 0.0
    %3739 = vmatpush1.msra.mxu0 0.0
    %3740 = vmatprep.subr.mxu0 0.0
    %3741 = vmatpush1.msra.mxu0 0.0
    %3742 = vmatprep.subr.mxu0 0.0
    %3743 = vmatpush1.msra.mxu0 0.0
    %3744 = vmatprep.subr.mxu0 0.0
    %3745 = vmatpush1.msra.mxu0 0.0
    %3746 = vmatprep.subr.mxu0 0.0
    %3747 = vmatpush1.msra.mxu0 0.0
    %3748 = vmatprep.subr.mxu0 0.0
    %3749 = vmatpush1.msra.mxu0 0.0
    %3750 = vmatprep.subr.mxu0 0.0
    %3751 = vmatpush1.msra.mxu0 0.0
    %3752 = vmatprep.subr.mxu0 0.0
    %3753 = vmatpush1.msra.mxu0 0.0
    %3754 = vmatprep.subr.mxu0 0.0
    %3755 = vmatpush1.msra.mxu0 0.0
    %3756 = vmatprep.subr.mxu0 0.0
    %3757 = vmatpush1.msra.mxu0 0.0
    %3758 = vmatprep.subr.mxu0 0.0
    %3759 = vmatpush1.msra.mxu0 0.0
    %3760 = vmatprep.subr.mxu0 0.0
    %3761 = vmatpush1.msra.mxu0 0.0
    %3762 = vmatprep.subr.mxu0 0.0
    %3763 = vmatpush1.msra.mxu0 0.0
    %3764 = vmatprep.subr.mxu0 0.0
    %3765 = vmatpush1.msra.mxu0 0.0
    %3766 = vmatprep.subr.mxu0 0.0
    %3767 = vmatpush1.msra.mxu0 0.0
    %3768 = vmatprep.subr.mxu0 0.0
    %3769 = vmatpush1.msra.mxu0 0.0
    %3770 = vmatprep.subr.mxu0 0.0
    %3771 = vmatpush1.msra.mxu0 0.0
    %3772 = vmatprep.subr.mxu0 0.0
    %3773 = vmatpush1.msra.mxu0 0.0
    %3774 = vmatprep.subr.mxu0 0.0
    %3775 = vmatpush1.msra.mxu0 0.0
    %3776 = vmatprep.subr.mxu0 0.0
    %3777 = vmatpush1.msra.mxu0 0.0
    %3778 = vmatprep.subr.mxu0 0.0
    %3779 = vmatpush1.msra.mxu0 0.0
    %3780 = vmatprep.subr.mxu0 0.0
    %3781 = vmatpush1.msra.mxu0 0.0
    %3782 = vmatprep.subr.mxu0 0.0
    %3783 = vmatpush1.msra.mxu0 0.0
    %3784 = vmatprep.subr.mxu0 0.0
    %3785 = vmatpush1.msra.mxu0 0.0
    %3786 = vmatprep.subr.mxu0 0.0
    %3787 = vmatpush1.msra.mxu0 0.0
    %3788 = vmatprep.subr.mxu0 0.0
    %3789 = vmatpush1.msra.mxu0 0.0
    %3790 = vmatprep.subr.mxu0 0.0
    %3791 = vmatpush1.msra.mxu0 0.0
    %3792 = vmatprep.mubr.f32.mxu0 0.0
    %3793 = vmatmul.mubr.f32.gmra.mrb[0].mxu0 %v3726
    %v3794 = vpop.f32.mrb[0].mxu0
    %v3795 = vadd.f32 0.0, %v3794
    %v3796 = vpop.f32.mrb[0].mxu0
    %v3797 = vadd.f32 0.0, %v3796
    %3798 = vdwg.mxu0
    %3799 = vmatprep.subr.mxu0 %v3558
    %3800 = vmatpush1.msra.mxu0 %v3556
    %3801 = vmatprep.subr.mxu0 %v3562
    %3802 = vmatpush1.msra.mxu0 %v3560
    %3803 = vmatprep.subr.mxu0 0.0
    %3804 = vmatpush1.msra.mxu0 0.0
    %3805 = vmatprep.subr.mxu0 0.0
    %3806 = vmatpush1.msra.mxu0 0.0
    %3807 = vmatprep.subr.mxu0 0.0
    %3808 = vmatpush1.msra.mxu0 0.0
    %3809 = vmatprep.subr.mxu0 0.0
    %3810 = vmatpush1.msra.mxu0 0.0
    %3811 = vmatprep.subr.mxu0 0.0
    %3812 = vmatpush1.msra.mxu0 0.0
    %3813 = vmatprep.subr.mxu0 0.0
    %3814 = vmatpush1.msra.mxu0 0.0
    %3815 = vmatprep.subr.mxu0 0.0
    %3816 = vmatpush1.msra.mxu0 0.0
    %3817 = vmatprep.subr.mxu0 0.0
    %3818 = vmatpush1.msra.mxu0 0.0
    %3819 = vmatprep.subr.mxu0 0.0
    %3820 = vmatpush1.msra.mxu0 0.0
    %3821 = vmatprep.subr.mxu0 0.0
    %3822 = vmatpush1.msra.mxu0 0.0
    %3823 = vmatprep.subr.mxu0 0.0
    %3824 = vmatpush1.msra.mxu0 0.0
    %3825 = vmatprep.subr.mxu0 0.0
    %3826 = vmatpush1.msra.mxu0 0.0
    %3827 = vmatprep.subr.mxu0 0.0
    %3828 = vmatpush1.msra.mxu0 0.0
    %3829 = vmatprep.subr.mxu0 0.0
    %3830 = vmatpush1.msra.mxu0 0.0
    %3831 = vmatprep.subr.mxu0 0.0
    %3832 = vmatpush1.msra.mxu0 0.0
    %3833 = vmatprep.subr.mxu0 0.0
    %3834 = vmatpush1.msra.mxu0 0.0
    %3835 = vmatprep.subr.mxu0 0.0
    %3836 = vmatpush1.msra.mxu0 0.0
    %3837 = vmatprep.subr.mxu0 0.0
    %3838 = vmatpush1.msra.mxu0 0.0
    %3839 = vmatprep.subr.mxu0 0.0
    %3840 = vmatpush1.msra.mxu0 0.0
    %3841 = vmatprep.subr.mxu0 0.0
    %3842 = vmatpush1.msra.mxu0 0.0
    %3843 = vmatprep.subr.mxu0 0.0
    %3844 = vmatpush1.msra.mxu0 0.0
    %3845 = vmatprep.subr.mxu0 0.0
    %3846 = vmatpush1.msra.mxu0 0.0
    %3847 = vmatprep.subr.mxu0 0.0
    %3848 = vmatpush1.msra.mxu0 0.0
    %3849 = vmatprep.subr.mxu0 0.0
    %3850 = vmatpush1.msra.mxu0 0.0
    %3851 = vmatprep.subr.mxu0 0.0
    %3852 = vmatpush1.msra.mxu0 0.0
    %3853 = vmatprep.subr.mxu0 0.0
    %3854 = vmatpush1.msra.mxu0 0.0
    %3855 = vmatprep.subr.mxu0 0.0
    %3856 = vmatpush1.msra.mxu0 0.0
    %3857 = vmatprep.subr.mxu0 0.0
    %3858 = vmatpush1.msra.mxu0 0.0
    %3859 = vmatprep.subr.mxu0 0.0
    %3860 = vmatpush1.msra.mxu0 0.0
    %3861 = vmatprep.subr.mxu0 0.0
    %3862 = vmatpush1.msra.mxu0 0.0
    %3863 = vmatprep.mubr.f32.mxu0 0.0
    %3864 = vmatmul.mubr.f32.gmra.mrb[0].mxu0 %v3726
    %v3865 = vpop.f32.mrb[0].mxu0
    %v3866 = vadd.f32 0.0, %v3865
    %v3867 = vpop.f32.mrb[0].mxu0
    %v3868 = vadd.f32 0.0, %v3867
    %3869 = vdwg.mxu0
    %v3870 = vld [vmem:[#allocation13] sm:$0xff]
    %v3871 = vld [vmem:[#allocation13 + $0x8] sm:$0xff]
    %v3872 = vld [vmem:[#allocation13 + $0x10] sm:$0xff]
    %v3873 = vld [vmem:[#allocation13 + $0x18] sm:$0xff]
    %v3874 = vld [vmem:[#allocation13 + $0x20] sm:$0xff]
    %v3875 = vld [vmem:[#allocation13 + $0x28] sm:$0xff]
    %v3876 = vld [vmem:[#allocation13 + $0x30] sm:$0xff]
    %v3877 = vld [vmem:[#allocation13 + $0x38] sm:$0xff]
    %v3878 = vld [vmem:[#allocation13 + $0x40] sm:$0xff]
    %v3879 = vld [vmem:[#allocation13 + $0x48] sm:$0xff]
    %v3880 = vld [vmem:[#allocation13 + $0x50] sm:$0xff]
    %v3881 = vld [vmem:[#allocation13 + $0x58] sm:$0xff]
    %v3882 = vld [vmem:[#allocation13 + $0x60] sm:$0xff]
    %v3883 = vld [vmem:[#allocation13 + $0x68] sm:$0xff]
    %v3884 = vld [vmem:[#allocation13 + $0x70] sm:$0xff]
    %v3885 = vld [vmem:[#allocation13 + $0x78] sm:$0xff]
    %v3886 = vld [vmem:[#allocation13 + $0x80] sm:$0xff]
    %v3887 = vld [vmem:[#allocation13 + $0x88] sm:$0xff]
    %v3888 = vld [vmem:[#allocation13 + $0x90] sm:$0xff]
    %v3889 = vld [vmem:[#allocation13 + $0x98] sm:$0xff]
    %v3890 = vld [vmem:[#allocation13 + $0xa0] sm:$0xff]
    %v3891 = vld [vmem:[#allocation13 + $0xa8] sm:$0xff]
    %v3892 = vld [vmem:[#allocation13 + $0xb0] sm:$0xff]
    %v3893 = vld [vmem:[#allocation13 + $0xb8] sm:$0xff]
    %v3894 = vld [vmem:[#allocation13 + $0xc0] sm:$0xff]
    %v3895 = vld [vmem:[#allocation13 + $0xc8] sm:$0xff]
    %v3896 = vld [vmem:[#allocation13 + $0xd0] sm:$0xff]
    %v3897 = vld [vmem:[#allocation13 + $0xd8] sm:$0xff]
    %v3898 = vld [vmem:[#allocation13 + $0xe0] sm:$0xff]
    %v3899 = vld [vmem:[#allocation13 + $0xe8] sm:$0xff]
    %v3900 = vld [vmem:[#allocation13 + $0xf0] sm:$0xff]
    %v3901 = vld [vmem:[#allocation13 + $0xf8] sm:$0xff]
    %v3902 = vld [vmem:[#allocation13 + $0x100] sm:$0xff]
    %v3903 = vld [vmem:[#allocation13 + $0x108] sm:$0xff]
    %v3904 = vld [vmem:[#allocation13 + $0x110] sm:$0xff]
    %v3905 = vld [vmem:[#allocation13 + $0x118] sm:$0xff]
    %v3906 = vld [vmem:[#allocation13 + $0x120] sm:$0xff]
    %v3907 = vld [vmem:[#allocation13 + $0x128] sm:$0xff]
    %v3908 = vld [vmem:[#allocation13 + $0x130] sm:$0xff]
    %v3909 = vld [vmem:[#allocation13 + $0x138] sm:$0xff]
    %v3910 = vld [vmem:[#allocation13 + $0x140] sm:$0xff]
    %v3911 = vld [vmem:[#allocation13 + $0x148] sm:$0xff]
    %v3912 = vld [vmem:[#allocation13 + $0x150] sm:$0xff]
    %v3913 = vld [vmem:[#allocation13 + $0x158] sm:$0xff]
    %v3914 = vld [vmem:[#allocation13 + $0x160] sm:$0xff]
    %v3915 = vld [vmem:[#allocation13 + $0x168] sm:$0xff]
    %v3916 = vld [vmem:[#allocation13 + $0x170] sm:$0xff]
    %v3917 = vld [vmem:[#allocation13 + $0x178] sm:$0xff]
    %v3918 = vld [vmem:[#allocation13 + $0x180] sm:$0xff]
    %v3919 = vld [vmem:[#allocation13 + $0x188] sm:$0xff]
    %v3920 = vld [vmem:[#allocation13 + $0x190] sm:$0xff]
    %v3921 = vld [vmem:[#allocation13 + $0x198] sm:$0xff]
    %v3922 = vld [vmem:[#allocation13 + $0x1a0] sm:$0xff]
    %v3923 = vld [vmem:[#allocation13 + $0x1a8] sm:$0xff]
    %v3924 = vld [vmem:[#allocation13 + $0x1b0] sm:$0xff]
    %v3925 = vld [vmem:[#allocation13 + $0x1b8] sm:$0xff]
    %v3926 = vld [vmem:[#allocation13 + $0x1c0] sm:$0xff]
    %v3927 = vld [vmem:[#allocation13 + $0x1c8] sm:$0xff]
    %v3928 = vld [vmem:[#allocation13 + $0x1d0] sm:$0xff]
    %v3929 = vld [vmem:[#allocation13 + $0x1d8] sm:$0xff]
    %v3930 = vld [vmem:[#allocation13 + $0x1e0] sm:$0xff]
    %v3931 = vld [vmem:[#allocation13 + $0x1e8] sm:$0xff]
    %v3932 = vld [vmem:[#allocation13 + $0x1f0] sm:$0xff]
    %v3933 = vld [vmem:[#allocation13 + $0x1f8] sm:$0xff]
    %v3934 = vld [vmem:[#allocation13 + $0x200] sm:$0xff]
    %v3935 = vld [vmem:[#allocation13 + $0x208] sm:$0xff]
    %v3936 = vld [vmem:[#allocation13 + $0x210] sm:$0xff]
    %v3937 = vld [vmem:[#allocation13 + $0x218] sm:$0xff]
    %v3938 = vld [vmem:[#allocation13 + $0x220] sm:$0xff]
    %v3939 = vld [vmem:[#allocation13 + $0x228] sm:$0xff]
    %v3940 = vld [vmem:[#allocation13 + $0x230] sm:$0xff]
    %v3941 = vld [vmem:[#allocation13 + $0x238] sm:$0xff]
    %v3942 = vld [vmem:[#allocation13 + $0x240] sm:$0xff]
    %v3943 = vld [vmem:[#allocation13 + $0x248] sm:$0xff]
    %v3944 = vld [vmem:[#allocation13 + $0x250] sm:$0xff]
    %v3945 = vld [vmem:[#allocation13 + $0x258] sm:$0xff]
    %v3946 = vld [vmem:[#allocation13 + $0x260] sm:$0xff]
    %v3947 = vld [vmem:[#allocation13 + $0x268] sm:$0xff]
    %v3948 = vld [vmem:[#allocation13 + $0x270] sm:$0xff]
    %v3949 = vld [vmem:[#allocation13 + $0x278] sm:$0xff]
    %v3950 = vld [vmem:[#allocation13 + $0x280] sm:$0xff]
    %v3951 = vld [vmem:[#allocation13 + $0x288] sm:$0xff]
    %v3952 = vld [vmem:[#allocation13 + $0x290] sm:$0xff]
    %v3953 = vld [vmem:[#allocation13 + $0x298] sm:$0xff]
    %v3954 = vld [vmem:[#allocation13 + $0x2a0] sm:$0xff]
    %v3955 = vld [vmem:[#allocation13 + $0x2a8] sm:$0xff]
    %v3956 = vld [vmem:[#allocation13 + $0x2b0] sm:$0xff]
    %v3957 = vld [vmem:[#allocation13 + $0x2b8] sm:$0xff]
    %v3958 = vld [vmem:[#allocation13 + $0x2c0] sm:$0xff]
    %v3959 = vld [vmem:[#allocation13 + $0x2c8] sm:$0xff]
    %v3960 = vld [vmem:[#allocation13 + $0x2d0] sm:$0xff]
    %v3961 = vld [vmem:[#allocation13 + $0x2d8] sm:$0xff]
    %v3962 = vld [vmem:[#allocation13 + $0x2e0] sm:$0xff]
    %v3963 = vld [vmem:[#allocation13 + $0x2e8] sm:$0xff]
    %v3964 = vld [vmem:[#allocation13 + $0x2f0] sm:$0xff]
    %v3965 = vld [vmem:[#allocation13 + $0x2f8] sm:$0xff]
    %v3966 = vld [vmem:[#allocation13 + $0x300] sm:$0xff]
    %v3967 = vld [vmem:[#allocation13 + $0x308] sm:$0xff]
    %v3968 = vld [vmem:[#allocation13 + $0x310] sm:$0xff]
    %v3969 = vld [vmem:[#allocation13 + $0x318] sm:$0xff]
    %v3970 = vld [vmem:[#allocation13 + $0x320] sm:$0xff]
    %v3971 = vld [vmem:[#allocation13 + $0x328] sm:$0xff]
    %v3972 = vld [vmem:[#allocation13 + $0x330] sm:$0xff]
    %v3973 = vld [vmem:[#allocation13 + $0x338] sm:$0xff]
    %v3974 = vld [vmem:[#allocation13 + $0x340] sm:$0xff]
    %v3975 = vld [vmem:[#allocation13 + $0x348] sm:$0xff]
    %v3976 = vld [vmem:[#allocation13 + $0x350] sm:$0xff]
    %v3977 = vld [vmem:[#allocation13 + $0x358] sm:$0xff]
    %v3978 = vld [vmem:[#allocation13 + $0x360] sm:$0xff]
    %v3979 = vld [vmem:[#allocation13 + $0x368] sm:$0xff]
    %v3980 = vld [vmem:[#allocation13 + $0x370] sm:$0xff]
    %v3981 = vld [vmem:[#allocation13 + $0x378] sm:$0xff]
    %v3982 = vld [vmem:[#allocation13 + $0x380] sm:$0xff]
    %v3983 = vld [vmem:[#allocation13 + $0x388] sm:$0xff]
    %v3984 = vld [vmem:[#allocation13 + $0x390] sm:$0xff]
    %v3985 = vld [vmem:[#allocation13 + $0x398] sm:$0xff]
    %v3986 = vld [vmem:[#allocation13 + $0x3a0] sm:$0xff]
    %v3987 = vld [vmem:[#allocation13 + $0x3a8] sm:$0xff]
    %v3988 = vld [vmem:[#allocation13 + $0x3b0] sm:$0xff]
    %v3989 = vld [vmem:[#allocation13 + $0x3b8] sm:$0xff]
    %v3990 = vld [vmem:[#allocation13 + $0x3c0] sm:$0xff]
    %v3991 = vld [vmem:[#allocation13 + $0x3c8] sm:$0xff]
    %v3992 = vld [vmem:[#allocation13 + $0x3d0] sm:$0xff]
    %v3993 = vld [vmem:[#allocation13 + $0x3d8] sm:$0xff]
    %v3994 = vld [vmem:[#allocation13 + $0x3e0] sm:$0xff]
    %v3995 = vld [vmem:[#allocation13 + $0x3e8] sm:$0xff]
    %v3996 = vld [vmem:[#allocation13 + $0x3f0] sm:$0xff]
    %v3997 = vld [vmem:[#allocation13 + $0x3f8] sm:$0xff]
    %v3998 = vunpack.c.l.bf16 %v3870
    %v3999 = vunpack.c.h.bf16 %v3870
    %v4000 = vunpack.c.l.bf16 %v3871
    %v4001 = vunpack.c.h.bf16 %v3871
    %v4002 = vunpack.c.l.bf16 %v3872
    %v4003 = vunpack.c.h.bf16 %v3872
    %v4004 = vunpack.c.l.bf16 %v3873
    %v4005 = vunpack.c.h.bf16 %v3873
    %v4006 = vunpack.c.l.bf16 %v3874
    %v4007 = vunpack.c.h.bf16 %v3874
    %v4008 = vunpack.c.l.bf16 %v3875
    %v4009 = vunpack.c.h.bf16 %v3875
    %v4010 = vunpack.c.l.bf16 %v3876
    %v4011 = vunpack.c.h.bf16 %v3876
    %v4012 = vunpack.c.l.bf16 %v3877
    %v4013 = vunpack.c.h.bf16 %v3877
    %v4014 = vunpack.c.l.bf16 %v3878
    %v4015 = vunpack.c.h.bf16 %v3878
    %v4016 = vunpack.c.l.bf16 %v3879
    %v4017 = vunpack.c.h.bf16 %v3879
    %v4018 = vunpack.c.l.bf16 %v3880
    %v4019 = vunpack.c.h.bf16 %v3880
    %v4020 = vunpack.c.l.bf16 %v3881
    %v4021 = vunpack.c.h.bf16 %v3881
    %v4022 = vunpack.c.l.bf16 %v3882
    %v4023 = vunpack.c.h.bf16 %v3882
    %v4024 = vunpack.c.l.bf16 %v3883
    %v4025 = vunpack.c.h.bf16 %v3883
    %v4026 = vunpack.c.l.bf16 %v3884
    %v4027 = vunpack.c.h.bf16 %v3884
    %v4028 = vunpack.c.l.bf16 %v3885
    %v4029 = vunpack.c.h.bf16 %v3885
    %v4030 = vunpack.c.l.bf16 %v3886
    %v4031 = vunpack.c.h.bf16 %v3886
    %v4032 = vunpack.c.l.bf16 %v3887
    %v4033 = vunpack.c.h.bf16 %v3887
    %v4034 = vunpack.c.l.bf16 %v3888
    %v4035 = vunpack.c.h.bf16 %v3888
    %v4036 = vunpack.c.l.bf16 %v3889
    %v4037 = vunpack.c.h.bf16 %v3889
    %v4038 = vunpack.c.l.bf16 %v3890
    %v4039 = vunpack.c.h.bf16 %v3890
    %v4040 = vunpack.c.l.bf16 %v3891
    %v4041 = vunpack.c.h.bf16 %v3891
    %v4042 = vunpack.c.l.bf16 %v3892
    %v4043 = vunpack.c.h.bf16 %v3892
    %v4044 = vunpack.c.l.bf16 %v3893
    %v4045 = vunpack.c.h.bf16 %v3893
    %v4046 = vunpack.c.l.bf16 %v3894
    %v4047 = vunpack.c.h.bf16 %v3894
    %v4048 = vunpack.c.l.bf16 %v3895
    %v4049 = vunpack.c.h.bf16 %v3895
    %v4050 = vunpack.c.l.bf16 %v3896
    %v4051 = vunpack.c.h.bf16 %v3896
    %v4052 = vunpack.c.l.bf16 %v3897
    %v4053 = vunpack.c.h.bf16 %v3897
    %v4054 = vunpack.c.l.bf16 %v3898
    %v4055 = vunpack.c.h.bf16 %v3898
    %v4056 = vunpack.c.l.bf16 %v3899
    %v4057 = vunpack.c.h.bf16 %v3899
    %v4058 = vunpack.c.l.bf16 %v3900
    %v4059 = vunpack.c.h.bf16 %v3900
    %v4060 = vunpack.c.l.bf16 %v3901
    %v4061 = vunpack.c.h.bf16 %v3901
    %v4062 = vunpack.c.l.bf16 %v3902
    %v4063 = vunpack.c.h.bf16 %v3902
    %v4064 = vunpack.c.l.bf16 %v3903
    %v4065 = vunpack.c.h.bf16 %v3903
    %v4066 = vunpack.c.l.bf16 %v3904
    %v4067 = vunpack.c.h.bf16 %v3904
    %v4068 = vunpack.c.l.bf16 %v3905
    %v4069 = vunpack.c.h.bf16 %v3905
    %v4070 = vunpack.c.l.bf16 %v3906
    %v4071 = vunpack.c.h.bf16 %v3906
    %v4072 = vunpack.c.l.bf16 %v3907
    %v4073 = vunpack.c.h.bf16 %v3907
    %v4074 = vunpack.c.l.bf16 %v3908
    %v4075 = vunpack.c.h.bf16 %v3908
    %v4076 = vunpack.c.l.bf16 %v3909
    %v4077 = vunpack.c.h.bf16 %v3909
    %v4078 = vunpack.c.l.bf16 %v3910
    %v4079 = vunpack.c.h.bf16 %v3910
    %v4080 = vunpack.c.l.bf16 %v3911
    %v4081 = vunpack.c.h.bf16 %v3911
    %v4082 = vunpack.c.l.bf16 %v3912
    %v4083 = vunpack.c.h.bf16 %v3912
    %v4084 = vunpack.c.l.bf16 %v3913
    %v4085 = vunpack.c.h.bf16 %v3913
    %v4086 = vunpack.c.l.bf16 %v3914
    %v4087 = vunpack.c.h.bf16 %v3914
    %v4088 = vunpack.c.l.bf16 %v3915
    %v4089 = vunpack.c.h.bf16 %v3915
    %v4090 = vunpack.c.l.bf16 %v3916
    %v4091 = vunpack.c.h.bf16 %v3916
    %v4092 = vunpack.c.l.bf16 %v3917
    %v4093 = vunpack.c.h.bf16 %v3917
    %v4094 = vunpack.c.l.bf16 %v3918
    %v4095 = vunpack.c.h.bf16 %v3918
    %v4096 = vunpack.c.l.bf16 %v3919
    %v4097 = vunpack.c.h.bf16 %v3919
    %v4098 = vunpack.c.l.bf16 %v3920
    %v4099 = vunpack.c.h.bf16 %v3920
    %v4100 = vunpack.c.l.bf16 %v3921
    %v4101 = vunpack.c.h.bf16 %v3921
    %v4102 = vunpack.c.l.bf16 %v3922
    %v4103 = vunpack.c.h.bf16 %v3922
    %v4104 = vunpack.c.l.bf16 %v3923
    %v4105 = vunpack.c.h.bf16 %v3923
    %v4106 = vunpack.c.l.bf16 %v3924
    %v4107 = vunpack.c.h.bf16 %v3924
    %v4108 = vunpack.c.l.bf16 %v3925
    %v4109 = vunpack.c.h.bf16 %v3925
    %v4110 = vunpack.c.l.bf16 %v3926
    %v4111 = vunpack.c.h.bf16 %v3926
    %v4112 = vunpack.c.l.bf16 %v3927
    %v4113 = vunpack.c.h.bf16 %v3927
    %v4114 = vunpack.c.l.bf16 %v3928
    %v4115 = vunpack.c.h.bf16 %v3928
    %v4116 = vunpack.c.l.bf16 %v3929
    %v4117 = vunpack.c.h.bf16 %v3929
    %v4118 = vunpack.c.l.bf16 %v3930
    %v4119 = vunpack.c.h.bf16 %v3930
    %v4120 = vunpack.c.l.bf16 %v3931
    %v4121 = vunpack.c.h.bf16 %v3931
    %v4122 = vunpack.c.l.bf16 %v3932
    %v4123 = vunpack.c.h.bf16 %v3932
    %v4124 = vunpack.c.l.bf16 %v3933
    %v4125 = vunpack.c.h.bf16 %v3933
    %v4126 = vunpack.c.l.bf16 %v3934
    %v4127 = vunpack.c.h.bf16 %v3934
    %v4128 = vunpack.c.l.bf16 %v3935
    %v4129 = vunpack.c.h.bf16 %v3935
    %v4130 = vunpack.c.l.bf16 %v3936
    %v4131 = vunpack.c.h.bf16 %v3936
    %v4132 = vunpack.c.l.bf16 %v3937
    %v4133 = vunpack.c.h.bf16 %v3937
    %v4134 = vunpack.c.l.bf16 %v3938
    %v4135 = vunpack.c.h.bf16 %v3938
    %v4136 = vunpack.c.l.bf16 %v3939
    %v4137 = vunpack.c.h.bf16 %v3939
    %v4138 = vunpack.c.l.bf16 %v3940
    %v4139 = vunpack.c.h.bf16 %v3940
    %v4140 = vunpack.c.l.bf16 %v3941
    %v4141 = vunpack.c.h.bf16 %v3941
    %v4142 = vunpack.c.l.bf16 %v3942
    %v4143 = vunpack.c.h.bf16 %v3942
    %v4144 = vunpack.c.l.bf16 %v3943
    %v4145 = vunpack.c.h.bf16 %v3943
    %v4146 = vunpack.c.l.bf16 %v3944
    %v4147 = vunpack.c.h.bf16 %v3944
    %v4148 = vunpack.c.l.bf16 %v3945
    %v4149 = vunpack.c.h.bf16 %v3945
    %v4150 = vunpack.c.l.bf16 %v3946
    %v4151 = vunpack.c.h.bf16 %v3946
    %v4152 = vunpack.c.l.bf16 %v3947
    %v4153 = vunpack.c.h.bf16 %v3947
    %v4154 = vunpack.c.l.bf16 %v3948
    %v4155 = vunpack.c.h.bf16 %v3948
    %v4156 = vunpack.c.l.bf16 %v3949
    %v4157 = vunpack.c.h.bf16 %v3949
    %v4158 = vunpack.c.l.bf16 %v3950
    %v4159 = vunpack.c.h.bf16 %v3950
    %v4160 = vunpack.c.l.bf16 %v3951
    %v4161 = vunpack.c.h.bf16 %v3951
    %v4162 = vunpack.c.l.bf16 %v3952
    %v4163 = vunpack.c.h.bf16 %v3952
    %v4164 = vunpack.c.l.bf16 %v3953
    %v4165 = vunpack.c.h.bf16 %v3953
    %v4166 = vunpack.c.l.bf16 %v3954
    %v4167 = vunpack.c.h.bf16 %v3954
    %v4168 = vunpack.c.l.bf16 %v3955
    %v4169 = vunpack.c.h.bf16 %v3955
    %v4170 = vunpack.c.l.bf16 %v3956
    %v4171 = vunpack.c.h.bf16 %v3956
    %v4172 = vunpack.c.l.bf16 %v3957
    %v4173 = vunpack.c.h.bf16 %v3957
    %v4174 = vunpack.c.l.bf16 %v3958
    %v4175 = vunpack.c.h.bf16 %v3958
    %v4176 = vunpack.c.l.bf16 %v3959
    %v4177 = vunpack.c.h.bf16 %v3959
    %v4178 = vunpack.c.l.bf16 %v3960
    %v4179 = vunpack.c.h.bf16 %v3960
    %v4180 = vunpack.c.l.bf16 %v3961
    %v4181 = vunpack.c.h.bf16 %v3961
    %v4182 = vunpack.c.l.bf16 %v3962
    %v4183 = vunpack.c.h.bf16 %v3962
    %v4184 = vunpack.c.l.bf16 %v3963
    %v4185 = vunpack.c.h.bf16 %v3963
    %v4186 = vunpack.c.l.bf16 %v3964
    %v4187 = vunpack.c.h.bf16 %v3964
    %v4188 = vunpack.c.l.bf16 %v3965
    %v4189 = vunpack.c.h.bf16 %v3965
    %v4190 = vunpack.c.l.bf16 %v3966
    %v4191 = vunpack.c.h.bf16 %v3966
    %v4192 = vunpack.c.l.bf16 %v3967
    %v4193 = vunpack.c.h.bf16 %v3967
    %v4194 = vunpack.c.l.bf16 %v3968
    %v4195 = vunpack.c.h.bf16 %v3968
    %v4196 = vunpack.c.l.bf16 %v3969
    %v4197 = vunpack.c.h.bf16 %v3969
    %v4198 = vunpack.c.l.bf16 %v3970
    %v4199 = vunpack.c.h.bf16 %v3970
    %v4200 = vunpack.c.l.bf16 %v3971
    %v4201 = vunpack.c.h.bf16 %v3971
    %v4202 = vunpack.c.l.bf16 %v3972
    %v4203 = vunpack.c.h.bf16 %v3972
    %v4204 = vunpack.c.l.bf16 %v3973
    %v4205 = vunpack.c.h.bf16 %v3973
    %v4206 = vunpack.c.l.bf16 %v3974
    %v4207 = vunpack.c.h.bf16 %v3974
    %v4208 = vunpack.c.l.bf16 %v3975
    %v4209 = vunpack.c.h.bf16 %v3975
    %v4210 = vunpack.c.l.bf16 %v3976
    %v4211 = vunpack.c.h.bf16 %v3976
    %v4212 = vunpack.c.l.bf16 %v3977
    %v4213 = vunpack.c.h.bf16 %v3977
    %v4214 = vunpack.c.l.bf16 %v3978
    %v4215 = vunpack.c.h.bf16 %v3978
    %v4216 = vunpack.c.l.bf16 %v3979
    %v4217 = vunpack.c.h.bf16 %v3979
    %v4218 = vunpack.c.l.bf16 %v3980
    %v4219 = vunpack.c.h.bf16 %v3980
    %v4220 = vunpack.c.l.bf16 %v3981
    %v4221 = vunpack.c.h.bf16 %v3981
    %v4222 = vunpack.c.l.bf16 %v3982
    %v4223 = vunpack.c.h.bf16 %v3982
    %v4224 = vunpack.c.l.bf16 %v3983
    %v4225 = vunpack.c.h.bf16 %v3983
    %v4226 = vunpack.c.l.bf16 %v3984
    %v4227 = vunpack.c.h.bf16 %v3984
    %v4228 = vunpack.c.l.bf16 %v3985
    %v4229 = vunpack.c.h.bf16 %v3985
    %v4230 = vunpack.c.l.bf16 %v3986
    %v4231 = vunpack.c.h.bf16 %v3986
    %v4232 = vunpack.c.l.bf16 %v3987
    %v4233 = vunpack.c.h.bf16 %v3987
    %v4234 = vunpack.c.l.bf16 %v3988
    %v4235 = vunpack.c.h.bf16 %v3988
    %v4236 = vunpack.c.l.bf16 %v3989
    %v4237 = vunpack.c.h.bf16 %v3989
    %v4238 = vunpack.c.l.bf16 %v3990
    %v4239 = vunpack.c.h.bf16 %v3990
    %v4240 = vunpack.c.l.bf16 %v3991
    %v4241 = vunpack.c.h.bf16 %v3991
    %v4242 = vunpack.c.l.bf16 %v3992
    %v4243 = vunpack.c.h.bf16 %v3992
    %v4244 = vunpack.c.l.bf16 %v3993
    %v4245 = vunpack.c.h.bf16 %v3993
    %v4246 = vunpack.c.l.bf16 %v3994
    %v4247 = vunpack.c.h.bf16 %v3994
    %v4248 = vunpack.c.l.bf16 %v3995
    %v4249 = vunpack.c.h.bf16 %v3995
    %v4250 = vunpack.c.l.bf16 %v3996
    %v4251 = vunpack.c.h.bf16 %v3996
    %v4252 = vunpack.c.l.bf16 %v3997
    %v4253 = vunpack.c.h.bf16 %v3997
    %v4254 = vld [vmem:[#allocation14] sm:$0xf]
    %v4256 = vlaneseq
    %v4257 = vshrl.u32 %v4256, 7
    %v4258 = vsub.s32 0, %v4257
    %v4259 = vrot.slane %v4254, %v4258
    %v4260 = vlaneseq
    %v4261 = vshrl.u32 %v4260, 7
    %v4262 = vsub.s32 1, %v4261
    %v4263 = vrot.slane %v4254, %v4262
    %v4264 = vlaneseq
    %v4265 = vshrl.u32 %v4264, 7
    %v4266 = vsub.s32 2, %v4265
    %v4267 = vrot.slane %v4254, %v4266
    %v4268 = vlaneseq
    %v4269 = vshrl.u32 %v4268, 7
    %v4270 = vsub.s32 3, %v4269
    %v4271 = vrot.slane %v4254, %v4270
    %4276 = vmatprep.subr.mxu0 %v3999
    %4277 = vmatpush1.msra.mxu0 %v3998
    %4278 = vmatprep.subr.mxu0 %v4003
    %4279 = vmatpush1.msra.mxu0 %v4002
    %4280 = vmatprep.subr.mxu0 %v4007
    %4281 = vmatpush1.msra.mxu0 %v4006
    %4282 = vmatprep.subr.mxu0 %v4011
    %4283 = vmatpush1.msra.mxu0 %v4010
    %4284 = vmatprep.subr.mxu0 %v4015
    %4285 = vmatpush1.msra.mxu0 %v4014
    %4286 = vmatprep.subr.mxu0 %v4019
    %4287 = vmatpush1.msra.mxu0 %v4018
    %4288 = vmatprep.subr.mxu0 %v4023
    %4289 = vmatpush1.msra.mxu0 %v4022
    %4290 = vmatprep.subr.mxu0 %v4027
    %4291 = vmatpush1.msra.mxu0 %v4026
    %4292 = vmatprep.subr.mxu0 %v4031
    %4293 = vmatpush1.msra.mxu0 %v4030
    %4294 = vmatprep.subr.mxu0 %v4035
    %4295 = vmatpush1.msra.mxu0 %v4034
    %4296 = vmatprep.subr.mxu0 %v4039
    %4297 = vmatpush1.msra.mxu0 %v4038
    %4298 = vmatprep.subr.mxu0 %v4043
    %4299 = vmatpush1.msra.mxu0 %v4042
    %4300 = vmatprep.subr.mxu0 %v4047
    %4301 = vmatpush1.msra.mxu0 %v4046
    %4302 = vmatprep.subr.mxu0 %v4051
    %4303 = vmatpush1.msra.mxu0 %v4050
    %4304 = vmatprep.subr.mxu0 %v4055
    %4305 = vmatpush1.msra.mxu0 %v4054
    %4306 = vmatprep.subr.mxu0 %v4059
    %4307 = vmatpush1.msra.mxu0 %v4058
    %4308 = vmatprep.subr.mxu0 %v4063
    %4309 = vmatpush1.msra.mxu0 %v4062
    %4310 = vmatprep.subr.mxu0 %v4067
    %4311 = vmatpush1.msra.mxu0 %v4066
    %4312 = vmatprep.subr.mxu0 %v4071
    %4313 = vmatpush1.msra.mxu0 %v4070
    %4314 = vmatprep.subr.mxu0 %v4075
    %4315 = vmatpush1.msra.mxu0 %v4074
    %4316 = vmatprep.subr.mxu0 %v4079
    %4317 = vmatpush1.msra.mxu0 %v4078
    %4318 = vmatprep.subr.mxu0 %v4083
    %4319 = vmatpush1.msra.mxu0 %v4082
    %4320 = vmatprep.subr.mxu0 %v4087
    %4321 = vmatpush1.msra.mxu0 %v4086
    %4322 = vmatprep.subr.mxu0 %v4091
    %4323 = vmatpush1.msra.mxu0 %v4090
    %4324 = vmatprep.subr.mxu0 %v4095
    %4325 = vmatpush1.msra.mxu0 %v4094
    %4326 = vmatprep.subr.mxu0 %v4099
    %4327 = vmatpush1.msra.mxu0 %v4098
    %4328 = vmatprep.subr.mxu0 %v4103
    %4329 = vmatpush1.msra.mxu0 %v4102
    %4330 = vmatprep.subr.mxu0 %v4107
    %4331 = vmatpush1.msra.mxu0 %v4106
    %4332 = vmatprep.subr.mxu0 %v4111
    %4333 = vmatpush1.msra.mxu0 %v4110
    %4334 = vmatprep.subr.mxu0 %v4115
    %4335 = vmatpush1.msra.mxu0 %v4114
    %4336 = vmatprep.subr.mxu0 %v4119
    %4337 = vmatpush1.msra.mxu0 %v4118
    %4338 = vmatprep.subr.mxu0 %v4123
    %4339 = vmatpush1.msra.mxu0 %v4122
    %4340 = vmatprep.mubr.f32.mxu0 %v3797
    %4341 = vmatmul.mubr.f32.gmra.mrb[0].mxu0 %v3795
    %v4342 = vpop.f32.mrb[0].mxu0
    %v4343 = vadd.f32 %v4259, %v4342
    %v4344 = vpop.f32.mrb[0].mxu0
    %v4345 = vadd.f32 %v4263, %v4344
    %4346 = vdwg.mxu0
    %4347 = vmatprep.subr.mxu0 %v4127
    %4348 = vmatpush1.msra.mxu0 %v4126
    %4349 = vmatprep.subr.mxu0 %v4131
    %4350 = vmatpush1.msra.mxu0 %v4130
    %4351 = vmatprep.subr.mxu0 %v4135
    %4352 = vmatpush1.msra.mxu0 %v4134
    %4353 = vmatprep.subr.mxu0 %v4139
    %4354 = vmatpush1.msra.mxu0 %v4138
    %4355 = vmatprep.subr.mxu0 %v4143
    %4356 = vmatpush1.msra.mxu0 %v4142
    %4357 = vmatprep.subr.mxu0 %v4147
    %4358 = vmatpush1.msra.mxu0 %v4146
    %4359 = vmatprep.subr.mxu0 %v4151
    %4360 = vmatpush1.msra.mxu0 %v4150
    %4361 = vmatprep.subr.mxu0 %v4155
    %4362 = vmatpush1.msra.mxu0 %v4154
    %4363 = vmatprep.subr.mxu0 %v4159
    %4364 = vmatpush1.msra.mxu0 %v4158
    %4365 = vmatprep.subr.mxu0 %v4163
    %4366 = vmatpush1.msra.mxu0 %v4162
    %4367 = vmatprep.subr.mxu0 %v4167
    %4368 = vmatpush1.msra.mxu0 %v4166
    %4369 = vmatprep.subr.mxu0 %v4171
    %4370 = vmatpush1.msra.mxu0 %v4170
    %4371 = vmatprep.subr.mxu0 %v4175
    %4372 = vmatpush1.msra.mxu0 %v4174
    %4373 = vmatprep.subr.mxu0 %v4179
    %4374 = vmatpush1.msra.mxu0 %v4178
    %4375 = vmatprep.subr.mxu0 %v4183
    %4376 = vmatpush1.msra.mxu0 %v4182
    %4377 = vmatprep.subr.mxu0 %v4187
    %4378 = vmatpush1.msra.mxu0 %v4186
    %4379 = vmatprep.subr.mxu0 %v4191
    %4380 = vmatpush1.msra.mxu0 %v4190
    %4381 = vmatprep.subr.mxu0 %v4195
    %4382 = vmatpush1.msra.mxu0 %v4194
    %4383 = vmatprep.subr.mxu0 %v4199
    %4384 = vmatpush1.msra.mxu0 %v4198
    %4385 = vmatprep.subr.mxu0 %v4203
    %4386 = vmatpush1.msra.mxu0 %v4202
    %4387 = vmatprep.subr.mxu0 %v4207
    %4388 = vmatpush1.msra.mxu0 %v4206
    %4389 = vmatprep.subr.mxu0 %v4211
    %4390 = vmatpush1.msra.mxu0 %v4210
    %4391 = vmatprep.subr.mxu0 %v4215
    %4392 = vmatpush1.msra.mxu0 %v4214
    %4393 = vmatprep.subr.mxu0 %v4219
    %4394 = vmatpush1.msra.mxu0 %v4218
    %4395 = vmatprep.subr.mxu0 %v4223
    %4396 = vmatpush1.msra.mxu0 %v4222
    %4397 = vmatprep.subr.mxu0 %v4227
    %4398 = vmatpush1.msra.mxu0 %v4226
    %4399 = vmatprep.subr.mxu0 %v4231
    %4400 = vmatpush1.msra.mxu0 %v4230
    %4401 = vmatprep.subr.mxu0 %v4235
    %4402 = vmatpush1.msra.mxu0 %v4234
    %4403 = vmatprep.subr.mxu0 %v4239
    %4404 = vmatpush1.msra.mxu0 %v4238
    %4405 = vmatprep.subr.mxu0 %v4243
    %4406 = vmatpush1.msra.mxu0 %v4242
    %4407 = vmatprep.subr.mxu0 %v4247
    %4408 = vmatpush1.msra.mxu0 %v4246
    %4409 = vmatprep.subr.mxu0 %v4251
    %4410 = vmatpush1.msra.mxu0 %v4250
    %4411 = vmatprep.mubr.f32.mxu0 %v3868
    %4412 = vmatmul.mubr.f32.gmra.mrb[0].mxu0 %v3866
    %v4413 = vpop.f32.mrb[0].mxu0
    %v4414 = vadd.f32 %v4343, %v4413
    %v4415 = vpop.f32.mrb[0].mxu0
    %v4416 = vadd.f32 %v4345, %v4415
    %4417 = vdwg.mxu0
    %4418 = vmatprep.subr.mxu0 %v4001
    %4419 = vmatpush1.msra.mxu0 %v4000
    %4420 = vmatprep.subr.mxu0 %v4005
    %4421 = vmatpush1.msra.mxu0 %v4004
    %4422 = vmatprep.subr.mxu0 %v4009
    %4423 = vmatpush1.msra.mxu0 %v4008
    %4424 = vmatprep.subr.mxu0 %v4013
    %4425 = vmatpush1.msra.mxu0 %v4012
    %4426 = vmatprep.subr.mxu0 %v4017
    %4427 = vmatpush1.msra.mxu0 %v4016
    %4428 = vmatprep.subr.mxu0 %v4021
    %4429 = vmatpush1.msra.mxu0 %v4020
    %4430 = vmatprep.subr.mxu0 %v4025
    %4431 = vmatpush1.msra.mxu0 %v4024
    %4432 = vmatprep.subr.mxu0 %v4029
    %4433 = vmatpush1.msra.mxu0 %v4028
    %4434 = vmatprep.subr.mxu0 %v4033
    %4435 = vmatpush1.msra.mxu0 %v4032
    %4436 = vmatprep.subr.mxu0 %v4037
    %4437 = vmatpush1.msra.mxu0 %v4036
    %4438 = vmatprep.subr.mxu0 %v4041
    %4439 = vmatpush1.msra.mxu0 %v4040
    %4440 = vmatprep.subr.mxu0 %v4045
    %4441 = vmatpush1.msra.mxu0 %v4044
    %4442 = vmatprep.subr.mxu0 %v4049
    %4443 = vmatpush1.msra.mxu0 %v4048
    %4444 = vmatprep.subr.mxu0 %v4053
    %4445 = vmatpush1.msra.mxu0 %v4052
    %4446 = vmatprep.subr.mxu0 %v4057
    %4447 = vmatpush1.msra.mxu0 %v4056
    %4448 = vmatprep.subr.mxu0 %v4061
    %4449 = vmatpush1.msra.mxu0 %v4060
    %4450 = vmatprep.subr.mxu0 %v4065
    %4451 = vmatpush1.msra.mxu0 %v4064
    %4452 = vmatprep.subr.mxu0 %v4069
    %4453 = vmatpush1.msra.mxu0 %v4068
    %4454 = vmatprep.subr.mxu0 %v4073
    %4455 = vmatpush1.msra.mxu0 %v4072
    %4456 = vmatprep.subr.mxu0 %v4077
    %4457 = vmatpush1.msra.mxu0 %v4076
    %4458 = vmatprep.subr.mxu0 %v4081
    %4459 = vmatpush1.msra.mxu0 %v4080
    %4460 = vmatprep.subr.mxu0 %v4085
    %4461 = vmatpush1.msra.mxu0 %v4084
    %4462 = vmatprep.subr.mxu0 %v4089
    %4463 = vmatpush1.msra.mxu0 %v4088
    %4464 = vmatprep.subr.mxu0 %v4093
    %4465 = vmatpush1.msra.mxu0 %v4092
    %4466 = vmatprep.subr.mxu0 %v4097
    %4467 = vmatpush1.msra.mxu0 %v4096
    %4468 = vmatprep.subr.mxu0 %v4101
    %4469 = vmatpush1.msra.mxu0 %v4100
    %4470 = vmatprep.subr.mxu0 %v4105
    %4471 = vmatpush1.msra.mxu0 %v4104
    %4472 = vmatprep.subr.mxu0 %v4109
    %4473 = vmatpush1.msra.mxu0 %v4108
    %4474 = vmatprep.subr.mxu0 %v4113
    %4475 = vmatpush1.msra.mxu0 %v4112
    %4476 = vmatprep.subr.mxu0 %v4117
    %4477 = vmatpush1.msra.mxu0 %v4116
    %4478 = vmatprep.subr.mxu0 %v4121
    %4479 = vmatpush1.msra.mxu0 %v4120
    %4480 = vmatprep.subr.mxu0 %v4125
    %4481 = vmatpush1.msra.mxu0 %v4124
    %4482 = vmatprep.mubr.f32.mxu0 %v3797
    %4483 = vmatmul.mubr.f32.gmra.mrb[0].mxu0 %v3795
    %v4484 = vpop.f32.mrb[0].mxu0
    %v4485 = vadd.f32 %v4267, %v4484
    %v4486 = vpop.f32.mrb[0].mxu0
    %v4487 = vadd.f32 %v4271, %v4486
    %4488 = vdwg.mxu0
    %4489 = vmatprep.subr.mxu0 %v4129
    %4490 = vmatpush1.msra.mxu0 %v4128
    %4491 = vmatprep.subr.mxu0 %v4133
    %4492 = vmatpush1.msra.mxu0 %v4132
    %4493 = vmatprep.subr.mxu0 %v4137
    %4494 = vmatpush1.msra.mxu0 %v4136
    %4495 = vmatprep.subr.mxu0 %v4141
    %4496 = vmatpush1.msra.mxu0 %v4140
    %4497 = vmatprep.subr.mxu0 %v4145
    %4498 = vmatpush1.msra.mxu0 %v4144
    %4499 = vmatprep.subr.mxu0 %v4149
    %4500 = vmatpush1.msra.mxu0 %v4148
    %4501 = vmatprep.subr.mxu0 %v4153
    %4502 = vmatpush1.msra.mxu0 %v4152
    %4503 = vmatprep.subr.mxu0 %v4157
    %4504 = vmatpush1.msra.mxu0 %v4156
    %4505 = vmatprep.subr.mxu0 %v4161
    %4506 = vmatpush1.msra.mxu0 %v4160
    %4507 = vmatprep.subr.mxu0 %v4165
    %4508 = vmatpush1.msra.mxu0 %v4164
    %4509 = vmatprep.subr.mxu0 %v4169
    %4510 = vmatpush1.msra.mxu0 %v4168
    %4511 = vmatprep.subr.mxu0 %v4173
    %4512 = vmatpush1.msra.mxu0 %v4172
    %4513 = vmatprep.subr.mxu0 %v4177
    %4514 = vmatpush1.msra.mxu0 %v4176
    %4515 = vmatprep.subr.mxu0 %v4181
    %4516 = vmatpush1.msra.mxu0 %v4180
    %4517 = vmatprep.subr.mxu0 %v4185
    %4518 = vmatpush1.msra.mxu0 %v4184
    %4519 = vmatprep.subr.mxu0 %v4189
    %4520 = vmatpush1.msra.mxu0 %v4188
    %4521 = vmatprep.subr.mxu0 %v4193
    %4522 = vmatpush1.msra.mxu0 %v4192
    %4523 = vmatprep.subr.mxu0 %v4197
    %4524 = vmatpush1.msra.mxu0 %v4196
    %4525 = vmatprep.subr.mxu0 %v4201
    %4526 = vmatpush1.msra.mxu0 %v4200
    %4527 = vmatprep.subr.mxu0 %v4205
    %4528 = vmatpush1.msra.mxu0 %v4204
    %4529 = vmatprep.subr.mxu0 %v4209
    %4530 = vmatpush1.msra.mxu0 %v4208
    %4531 = vmatprep.subr.mxu0 %v4213
    %4532 = vmatpush1.msra.mxu0 %v4212
    %4533 = vmatprep.subr.mxu0 %v4217
    %4534 = vmatpush1.msra.mxu0 %v4216
    %4535 = vmatprep.subr.mxu0 %v4221
    %4536 = vmatpush1.msra.mxu0 %v4220
    %4537 = vmatprep.subr.mxu0 %v4225
    %4538 = vmatpush1.msra.mxu0 %v4224
    %4539 = vmatprep.subr.mxu0 %v4229
    %4540 = vmatpush1.msra.mxu0 %v4228
    %4541 = vmatprep.subr.mxu0 %v4233
    %4542 = vmatpush1.msra.mxu0 %v4232
    %4543 = vmatprep.subr.mxu0 %v4237
    %4544 = vmatpush1.msra.mxu0 %v4236
    %4545 = vmatprep.subr.mxu0 %v4241
    %4546 = vmatpush1.msra.mxu0 %v4240
    %4547 = vmatprep.subr.mxu0 %v4245
    %4548 = vmatpush1.msra.mxu0 %v4244
    %4549 = vmatprep.subr.mxu0 %v4249
    %4550 = vmatpush1.msra.mxu0 %v4248
    %4551 = vmatprep.subr.mxu0 %v4253
    %4552 = vmatpush1.msra.mxu0 %v4252
    %4553 = vmatprep.mubr.f32.mxu0 %v3868
    %4554 = vmatmul.mubr.f32.gmra.mrb[0].mxu0 %v3866
    %v4555 = vpop.f32.mrb[0].mxu0
    %v4556 = vadd.f32 %v4485, %v4555
    %v4557 = vpop.f32.mrb[0].mxu0
    %v4558 = vadd.f32 %v4487, %v4557
    %4559 = vdwg.mxu0
    %v4560 = vadd.f32 %v623, %v4414
    %v4561 = vadd.f32 %v625, %v4416
    %v4562 = vadd.f32 %v674, %v4556
    %v4563 = vadd.f32 %v676, %v4558
    %v4564 = vld [vmem:[%s8] sm:$0xff]
    %v4565 = vld [vmem:[%s8 + $0x8] sm:$0xff]
    %v4566 = vld [vmem:[%s8 + $0x10] sm:$0xff]
    %v4567 = vld [vmem:[%s8 + $0x18] sm:$0xff]
    %v4568 = vld [vmem:[%s8 + $0x20] sm:$0xff]
    %v4569 = vld [vmem:[%s8 + $0x28] sm:$0xff]
    %v4570 = vld [vmem:[%s8 + $0x30] sm:$0xff]
    %v4571 = vld [vmem:[%s8 + $0x38] sm:$0xff]
    %v4572 = vld [vmem:[%s8 + $0x40] sm:$0xff]
    %v4573 = vld [vmem:[%s8 + $0x48] sm:$0xff]
    %v4574 = vld [vmem:[%s8 + $0x50] sm:$0xff]
    %v4575 = vld [vmem:[%s8 + $0x58] sm:$0xff]
    %v4576 = vld [vmem:[%s8 + $0x60] sm:$0xff]
    %v4577 = vld [vmem:[%s8 + $0x68] sm:$0xff]
    %v4578 = vld [vmem:[%s8 + $0x70] sm:$0xff]
    %v4579 = vld [vmem:[%s8 + $0x78] sm:$0xff]
    %v4581 = vsel %vm3713, %v4564, 0
    %v4584 = vsel %vm3713, %v4565, 0
    %v4587 = vsel %vm3713, %v4566, 0
    %v4590 = vsel %vm3713, %v4567, 0
    %v4593 = vsel %vm3713, %v4568, 0
    %v4596 = vsel %vm3713, %v4569, 0
    %v4599 = vsel %vm3713, %v4570, 0
    %v4602 = vsel %vm3713, %v4571, 0
    %v4605 = vsel %vm3713, %v4572, 0
    %v4608 = vsel %vm3713, %v4573, 0
    %v4611 = vsel %vm3713, %v4574, 0
    %v4614 = vsel %vm3713, %v4575, 0
    %v4617 = vsel %vm3713, %v4576, 0
    %v4620 = vsel %vm3713, %v4577, 0
    %v4623 = vsel %vm3713, %v4578, 0
    %v4626 = vsel %vm3713, %v4579, 0
    %4628 = vmatprep.subr.mxu0 %v615
    %4629 = vmatpush1.msra.mxu0 %v613
    %4630 = vmatprep.subr.mxu0 %v619
    %4631 = vmatpush1.msra.mxu0 %v617
    %4632 = vmatprep.subr.mxu0 0.0
    %4633 = vmatpush1.msra.mxu0 0.0
    %4634 = vmatprep.subr.mxu0 0.0
    %4635 = vmatpush1.msra.mxu0 0.0
    %4636 = vmatprep.subr.mxu0 0.0
    %4637 = vmatpush1.msra.mxu0 0.0
    %4638 = vmatprep.subr.mxu0 0.0
    %4639 = vmatpush1.msra.mxu0 0.0
    %4640 = vmatprep.subr.mxu0 0.0
    %4641 = vmatpush1.msra.mxu0 0.0
    %4642 = vmatprep.subr.mxu0 0.0
    %4643 = vmatpush1.msra.mxu0 0.0
    %4644 = vmatprep.subr.mxu0 0.0
    %4645 = vmatpush1.msra.mxu0 0.0
    %4646 = vmatprep.subr.mxu0 0.0
    %4647 = vmatpush1.msra.mxu0 0.0
    %4648 = vmatprep.subr.mxu0 0.0
    %4649 = vmatpush1.msra.mxu0 0.0
    %4650 = vmatprep.subr.mxu0 0.0
    %4651 = vmatpush1.msra.mxu0 0.0
    %4652 = vmatprep.subr.mxu0 0.0
    %4653 = vmatpush1.msra.mxu0 0.0
    %4654 = vmatprep.subr.mxu0 0.0
    %4655 = vmatpush1.msra.mxu0 0.0
    %4656 = vmatprep.subr.mxu0 0.0
    %4657 = vmatpush1.msra.mxu0 0.0
    %4658 = vmatprep.subr.mxu0 0.0
    %4659 = vmatpush1.msra.mxu0 0.0
    %4660 = vmatprep.subr.mxu0 0.0
    %4661 = vmatpush1.msra.mxu0 0.0
    %4662 = vmatprep.subr.mxu0 0.0
    %4663 = vmatpush1.msra.mxu0 0.0
    %4664 = vmatprep.subr.mxu0 0.0
    %4665 = vmatpush1.msra.mxu0 0.0
    %4666 = vmatprep.subr.mxu0 0.0
    %4667 = vmatpush1.msra.mxu0 0.0
    %4668 = vmatprep.subr.mxu0 0.0
    %4669 = vmatpush1.msra.mxu0 0.0
    %4670 = vmatprep.subr.mxu0 0.0
    %4671 = vmatpush1.msra.mxu0 0.0
    %4672 = vmatprep.subr.mxu0 0.0
    %4673 = vmatpush1.msra.mxu0 0.0
    %4674 = vmatprep.subr.mxu0 0.0
    %4675 = vmatpush1.msra.mxu0 0.0
    %4676 = vmatprep.subr.mxu0 0.0
    %4677 = vmatpush1.msra.mxu0 0.0
    %4678 = vmatprep.subr.mxu0 0.0
    %4679 = vmatpush1.msra.mxu0 0.0
    %4680 = vmatprep.subr.mxu0 0.0
    %4681 = vmatpush1.msra.mxu0 0.0
    %4682 = vmatprep.subr.mxu0 0.0
    %4683 = vmatpush1.msra.mxu0 0.0
    %4684 = vmatprep.subr.mxu0 0.0
    %4685 = vmatpush1.msra.mxu0 0.0
    %4686 = vmatprep.subr.mxu0 0.0
    %4687 = vmatpush1.msra.mxu0 0.0
    %4688 = vmatprep.subr.mxu0 0.0
    %4689 = vmatpush1.msra.mxu0 0.0
    %4690 = vmatprep.subr.mxu0 0.0
    %4691 = vmatpush1.msra.mxu0 0.0
    %4692 = vmatprep.mubr.f32.mxu0 0.0
    %4693 = vmatmul.mubr.f32.gmra.mrb[0].mxu0 %v4581
    %v4694 = vpop.f32.mrb[0].mxu0
    %v4695 = vadd.f32 0.0, %v4694
    %v4696 = vpop.f32.mrb[0].mxu0
    %v4697 = vadd.f32 0.0, %v4696
    %4698 = vmatprep.mubr.f32.mxu0 0.0
    %4699 = vmatmul.mubr.f32.gmra.mrb[0].mxu0 %v4584
    %v4700 = vpop.f32.mrb[0].mxu0
    %v4701 = vadd.f32 0.0, %v4700
    %v4702 = vpop.f32.mrb[0].mxu0
    %v4703 = vadd.f32 0.0, %v4702
    %4704 = vmatprep.mubr.f32.mxu0 0.0
    %4705 = vmatmul.mubr.f32.gmra.mrb[0].mxu0 %v4587
    %v4706 = vpop.f32.mrb[0].mxu0
    %v4707 = vadd.f32 0.0, %v4706
    %v4708 = vpop.f32.mrb[0].mxu0
    %v4709 = vadd.f32 0.0, %v4708
    %4710 = vmatprep.mubr.f32.mxu0 0.0
    %4711 = vmatmul.mubr.f32.gmra.mrb[0].mxu0 %v4590
    %v4712 = vpop.f32.mrb[0].mxu0
    %v4713 = vadd.f32 0.0, %v4712
    %v4714 = vpop.f32.mrb[0].mxu0
    %v4715 = vadd.f32 0.0, %v4714
    %4716 = vmatprep.mubr.f32.mxu0 0.0
    %4717 = vmatmul.mubr.f32.gmra.mrb[0].mxu0 %v4593
    %v4718 = vpop.f32.mrb[0].mxu0
    %v4719 = vadd.f32 0.0, %v4718
    %v4720 = vpop.f32.mrb[0].mxu0
    %v4721 = vadd.f32 0.0, %v4720
    %4722 = vmatprep.mubr.f32.mxu0 0.0
    %4723 = vmatmul.mubr.f32.gmra.mrb[0].mxu0 %v4596
    %v4724 = vpop.f32.mrb[0].mxu0
    %v4725 = vadd.f32 0.0, %v4724
    %v4726 = vpop.f32.mrb[0].mxu0
    %v4727 = vadd.f32 0.0, %v4726
    %4728 = vmatprep.mubr.f32.mxu0 0.0
    %4729 = vmatmul.mubr.f32.gmra.mrb[0].mxu0 %v4599
    %v4730 = vpop.f32.mrb[0].mxu0
    %v4731 = vadd.f32 0.0, %v4730
    %v4732 = vpop.f32.mrb[0].mxu0
    %v4733 = vadd.f32 0.0, %v4732
    %4734 = vmatprep.mubr.f32.mxu0 0.0
    %4735 = vmatmul.mubr.f32.gmra.mrb[0].mxu0 %v4602
    %v4736 = vpop.f32.mrb[0].mxu0
    %v4737 = vadd.f32 0.0, %v4736
    %v4738 = vpop.f32.mrb[0].mxu0
    %v4739 = vadd.f32 0.0, %v4738
    %4740 = vmatprep.mubr.f32.mxu0 0.0
    %4741 = vmatmul.mubr.f32.gmra.mrb[0].mxu0 %v4605
    %v4742 = vpop.f32.mrb[0].mxu0
    %v4743 = vadd.f32 0.0, %v4742
    %v4744 = vpop.f32.mrb[0].mxu0
    %v4745 = vadd.f32 0.0, %v4744
    %4746 = vmatprep.mubr.f32.mxu0 0.0
    %4747 = vmatmul.mubr.f32.gmra.mrb[0].mxu0 %v4608
    %v4748 = vpop.f32.mrb[0].mxu0
    %v4749 = vadd.f32 0.0, %v4748
    %v4750 = vpop.f32.mrb[0].mxu0
    %v4751 = vadd.f32 0.0, %v4750
    %4752 = vmatprep.mubr.f32.mxu0 0.0
    %4753 = vmatmul.mubr.f32.gmra.mrb[0].mxu0 %v4611
    %v4754 = vpop.f32.mrb[0].mxu0
    %v4755 = vadd.f32 0.0, %v4754
    %v4756 = vpop.f32.mrb[0].mxu0
    %v4757 = vadd.f32 0.0, %v4756
    %4758 = vmatprep.mubr.f32.mxu0 0.0
    %4759 = vmatmul.mubr.f32.gmra.mrb[0].mxu0 %v4614
    %v4760 = vpop.f32.mrb[0].mxu0
    %v4761 = vadd.f32 0.0, %v4760
    %v4762 = vpop.f32.mrb[0].mxu0
    %v4763 = vadd.f32 0.0, %v4762
    %4764 = vmatprep.mubr.f32.mxu0 0.0
    %4765 = vmatmul.mubr.f32.gmra.mrb[0].mxu0 %v4617
    %v4766 = vpop.f32.mrb[0].mxu0
    %v4767 = vadd.f32 0.0, %v4766
    %v4768 = vpop.f32.mrb[0].mxu0
    %v4769 = vadd.f32 0.0, %v4768
    %4770 = vmatprep.mubr.f32.mxu0 0.0
    %4771 = vmatmul.mubr.f32.gmra.mrb[0].mxu0 %v4620
    %v4772 = vpop.f32.mrb[0].mxu0
    %v4773 = vadd.f32 0.0, %v4772
    %v4774 = vpop.f32.mrb[0].mxu0
    %v4775 = vadd.f32 0.0, %v4774
    %4776 = vmatprep.mubr.f32.mxu0 0.0
    %4777 = vmatmul.mubr.f32.gmra.mrb[0].mxu0 %v4623
    %v4778 = vpop.f32.mrb[0].mxu0
    %v4779 = vadd.f32 0.0, %v4778
    %v4780 = vpop.f32.mrb[0].mxu0
    %v4781 = vadd.f32 0.0, %v4780
    %4782 = vmatprep.mubr.f32.mxu0 0.0
    %4783 = vmatmul.mubr.f32.gmra.mrb[0].mxu0 %v4626
    %v4784 = vpop.f32.mrb[0].mxu0
    %v4785 = vadd.f32 0.0, %v4784
    %v4786 = vpop.f32.mrb[0].mxu0
    %v4787 = vadd.f32 0.0, %v4786
    %4788 = vdwg.mxu0
    %4789 = vmatprep.subr.mxu0 %v666
    %4790 = vmatpush1.msra.mxu0 %v664
    %4791 = vmatprep.subr.mxu0 %v670
    %4792 = vmatpush1.msra.mxu0 %v668
    %4793 = vmatprep.subr.mxu0 0.0
    %4794 = vmatpush1.msra.mxu0 0.0
    %4795 = vmatprep.subr.mxu0 0.0
    %4796 = vmatpush1.msra.mxu0 0.0
    %4797 = vmatprep.subr.mxu0 0.0
    %4798 = vmatpush1.msra.mxu0 0.0
    %4799 = vmatprep.subr.mxu0 0.0
    %4800 = vmatpush1.msra.mxu0 0.0
    %4801 = vmatprep.subr.mxu0 0.0
    %4802 = vmatpush1.msra.mxu0 0.0
    %4803 = vmatprep.subr.mxu0 0.0
    %4804 = vmatpush1.msra.mxu0 0.0
    %4805 = vmatprep.subr.mxu0 0.0
    %4806 = vmatpush1.msra.mxu0 0.0
    %4807 = vmatprep.subr.mxu0 0.0
    %4808 = vmatpush1.msra.mxu0 0.0
    %4809 = vmatprep.subr.mxu0 0.0
    %4810 = vmatpush1.msra.mxu0 0.0
    %4811 = vmatprep.subr.mxu0 0.0
    %4812 = vmatpush1.msra.mxu0 0.0
    %4813 = vmatprep.subr.mxu0 0.0
    %4814 = vmatpush1.msra.mxu0 0.0
    %4815 = vmatprep.subr.mxu0 0.0
    %4816 = vmatpush1.msra.mxu0 0.0
    %4817 = vmatprep.subr.mxu0 0.0
    %4818 = vmatpush1.msra.mxu0 0.0
    %4819 = vmatprep.subr.mxu0 0.0
    %4820 = vmatpush1.msra.mxu0 0.0
    %4821 = vmatprep.subr.mxu0 0.0
    %4822 = vmatpush1.msra.mxu0 0.0
    %4823 = vmatprep.subr.mxu0 0.0
    %4824 = vmatpush1.msra.mxu0 0.0
    %4825 = vmatprep.subr.mxu0 0.0
    %4826 = vmatpush1.msra.mxu0 0.0
    %4827 = vmatprep.subr.mxu0 0.0
    %4828 = vmatpush1.msra.mxu0 0.0
    %4829 = vmatprep.subr.mxu0 0.0
    %4830 = vmatpush1.msra.mxu0 0.0
    %4831 = vmatprep.subr.mxu0 0.0
    %4832 = vmatpush1.msra.mxu0 0.0
    %4833 = vmatprep.subr.mxu0 0.0
    %4834 = vmatpush1.msra.mxu0 0.0
    %4835 = vmatprep.subr.mxu0 0.0
    %4836 = vmatpush1.msra.mxu0 0.0
    %4837 = vmatprep.subr.mxu0 0.0
    %4838 = vmatpush1.msra.mxu0 0.0
    %4839 = vmatprep.subr.mxu0 0.0
    %4840 = vmatpush1.msra.mxu0 0.0
    %4841 = vmatprep.subr.mxu0 0.0
    %4842 = vmatpush1.msra.mxu0 0.0
    %4843 = vmatprep.subr.mxu0 0.0
    %4844 = vmatpush1.msra.mxu0 0.0
    %4845 = vmatprep.subr.mxu0 0.0
    %4846 = vmatpush1.msra.mxu0 0.0
    %4847 = vmatprep.subr.mxu0 0.0
    %4848 = vmatpush1.msra.mxu0 0.0
    %4849 = vmatprep.subr.mxu0 0.0
    %4850 = vmatpush1.msra.mxu0 0.0
    %4851 = vmatprep.subr.mxu0 0.0
    %4852 = vmatpush1.msra.mxu0 0.0
    %4853 = vmatprep.mubr.f32.mxu0 0.0
    %4854 = vmatmul.mubr.f32.gmra.mrb[0].mxu0 %v4581
    %v4855 = vpop.f32.mrb[0].mxu0
    %v4856 = vadd.f32 0.0, %v4855
    %v4857 = vpop.f32.mrb[0].mxu0
    %v4858 = vadd.f32 0.0, %v4857
    %4859 = vmatprep.mubr.f32.mxu0 0.0
    %4860 = vmatmul.mubr.f32.gmra.mrb[0].mxu0 %v4584
    %v4861 = vpop.f32.mrb[0].mxu0
    %v4862 = vadd.f32 0.0, %v4861
    %v4863 = vpop.f32.mrb[0].mxu0
    %v4864 = vadd.f32 0.0, %v4863
    %4865 = vmatprep.mubr.f32.mxu0 0.0
    %4866 = vmatmul.mubr.f32.gmra.mrb[0].mxu0 %v4587
    %v4867 = vpop.f32.mrb[0].mxu0
    %v4868 = vadd.f32 0.0, %v4867
    %v4869 = vpop.f32.mrb[0].mxu0
    %v4870 = vadd.f32 0.0, %v4869
    %4871 = vmatprep.mubr.f32.mxu0 0.0
    %4872 = vmatmul.mubr.f32.gmra.mrb[0].mxu0 %v4590
    %v4873 = vpop.f32.mrb[0].mxu0
    %v4874 = vadd.f32 0.0, %v4873
    %v4875 = vpop.f32.mrb[0].mxu0
    %v4876 = vadd.f32 0.0, %v4875
    %4877 = vmatprep.mubr.f32.mxu0 0.0
    %4878 = vmatmul.mubr.f32.gmra.mrb[0].mxu0 %v4593
    %v4879 = vpop.f32.mrb[0].mxu0
    %v4880 = vadd.f32 0.0, %v4879
    %v4881 = vpop.f32.mrb[0].mxu0
    %v4882 = vadd.f32 0.0, %v4881
    %4883 = vmatprep.mubr.f32.mxu0 0.0
    %4884 = vmatmul.mubr.f32.gmra.mrb[0].mxu0 %v4596
    %v4885 = vpop.f32.mrb[0].mxu0
    %v4886 = vadd.f32 0.0, %v4885
    %v4887 = vpop.f32.mrb[0].mxu0
    %v4888 = vadd.f32 0.0, %v4887
    %4889 = vmatprep.mubr.f32.mxu0 0.0
    %4890 = vmatmul.mubr.f32.gmra.mrb[0].mxu0 %v4599
    %v4891 = vpop.f32.mrb[0].mxu0
    %v4892 = vadd.f32 0.0, %v4891
    %v4893 = vpop.f32.mrb[0].mxu0
    %v4894 = vadd.f32 0.0, %v4893
    %4895 = vmatprep.mubr.f32.mxu0 0.0
    %4896 = vmatmul.mubr.f32.gmra.mrb[0].mxu0 %v4602
    %v4897 = vpop.f32.mrb[0].mxu0
    %v4898 = vadd.f32 0.0, %v4897
    %v4899 = vpop.f32.mrb[0].mxu0
    %v4900 = vadd.f32 0.0, %v4899
    %4901 = vmatprep.mubr.f32.mxu0 0.0
    %4902 = vmatmul.mubr.f32.gmra.mrb[0].mxu0 %v4605
    %v4903 = vpop.f32.mrb[0].mxu0
    %v4904 = vadd.f32 0.0, %v4903
    %v4905 = vpop.f32.mrb[0].mxu0
    %v4906 = vadd.f32 0.0, %v4905
    %4907 = vmatprep.mubr.f32.mxu0 0.0
    %4908 = vmatmul.mubr.f32.gmra.mrb[0].mxu0 %v4608
    %v4909 = vpop.f32.mrb[0].mxu0
    %v4910 = vadd.f32 0.0, %v4909
    %v4911 = vpop.f32.mrb[0].mxu0
    %v4912 = vadd.f32 0.0, %v4911
    %4913 = vmatprep.mubr.f32.mxu0 0.0
    %4914 = vmatmul.mubr.f32.gmra.mrb[0].mxu0 %v4611
    %v4915 = vpop.f32.mrb[0].mxu0
    %v4916 = vadd.f32 0.0, %v4915
    %v4917 = vpop.f32.mrb[0].mxu0
    %v4918 = vadd.f32 0.0, %v4917
    %4919 = vmatprep.mubr.f32.mxu0 0.0
    %4920 = vmatmul.mubr.f32.gmra.mrb[0].mxu0 %v4614
    %v4921 = vpop.f32.mrb[0].mxu0
    %v4922 = vadd.f32 0.0, %v4921
    %v4923 = vpop.f32.mrb[0].mxu0
    %v4924 = vadd.f32 0.0, %v4923
    %4925 = vmatprep.mubr.f32.mxu0 0.0
    %4926 = vmatmul.mubr.f32.gmra.mrb[0].mxu0 %v4617
    %v4927 = vpop.f32.mrb[0].mxu0
    %v4928 = vadd.f32 0.0, %v4927
    %v4929 = vpop.f32.mrb[0].mxu0
    %v4930 = vadd.f32 0.0, %v4929
    %4931 = vmatprep.mubr.f32.mxu0 0.0
    %4932 = vmatmul.mubr.f32.gmra.mrb[0].mxu0 %v4620
    %v4933 = vpop.f32.mrb[0].mxu0
    %v4934 = vadd.f32 0.0, %v4933
    %v4935 = vpop.f32.mrb[0].mxu0
    %v4936 = vadd.f32 0.0, %v4935
    %4937 = vmatprep.mubr.f32.mxu0 0.0
    %4938 = vmatmul.mubr.f32.gmra.mrb[0].mxu0 %v4623
    %v4939 = vpop.f32.mrb[0].mxu0
    %v4940 = vadd.f32 0.0, %v4939
    %v4941 = vpop.f32.mrb[0].mxu0
    %v4942 = vadd.f32 0.0, %v4941
    %4943 = vmatprep.mubr.f32.mxu0 0.0
    %4944 = vmatmul.mubr.f32.gmra.mrb[0].mxu0 %v4626
    %v4945 = vpop.f32.mrb[0].mxu0
    %v4946 = vadd.f32 0.0, %v4945
    %v4947 = vpop.f32.mrb[0].mxu0
    %v4948 = vadd.f32 0.0, %v4947
    %4949 = vdwg.mxu0
    %v4950 = vmul.f32 %v4695, %v4695
    %v4951 = vmul.f32 %v4697, %v4697
    %v4952 = vmul.f32 %v4856, %v4856
    %v4953 = vmul.f32 %v4858, %v4858
    %v4954 = vmul.f32 %v4701, %v4701
    %v4955 = vmul.f32 %v4703, %v4703
    %v4956 = vmul.f32 %v4862, %v4862
    %v4957 = vmul.f32 %v4864, %v4864
    %v4958 = vmul.f32 %v4707, %v4707
    %v4959 = vmul.f32 %v4709, %v4709
    %v4960 = vmul.f32 %v4868, %v4868
    %v4961 = vmul.f32 %v4870, %v4870
    %v4962 = vmul.f32 %v4713, %v4713
    %v4963 = vmul.f32 %v4715, %v4715
    %v4964 = vmul.f32 %v4874, %v4874
    %v4965 = vmul.f32 %v4876, %v4876
    %v4966 = vmul.f32 %v4719, %v4719
    %v4967 = vmul.f32 %v4721, %v4721
    %v4968 = vmul.f32 %v4880, %v4880
    %v4969 = vmul.f32 %v4882, %v4882
    %v4970 = vmul.f32 %v4725, %v4725
    %v4971 = vmul.f32 %v4727, %v4727
    %v4972 = vmul.f32 %v4886, %v4886
    %v4973 = vmul.f32 %v4888, %v4888
    %v4974 = vmul.f32 %v4731, %v4731
    %v4975 = vmul.f32 %v4733, %v4733
    %v4976 = vmul.f32 %v4892, %v4892
    %v4977 = vmul.f32 %v4894, %v4894
    %v4978 = vmul.f32 %v4737, %v4737
    %v4979 = vmul.f32 %v4739, %v4739
    %v4980 = vmul.f32 %v4898, %v4898
    %v4981 = vmul.f32 %v4900, %v4900
    %v4982 = vmul.f32 %v4743, %v4743
    %v4983 = vmul.f32 %v4745, %v4745
    %v4984 = vmul.f32 %v4904, %v4904
    %v4985 = vmul.f32 %v4906, %v4906
    %v4986 = vmul.f32 %v4749, %v4749
    %v4987 = vmul.f32 %v4751, %v4751
    %v4988 = vmul.f32 %v4910, %v4910
    %v4989 = vmul.f32 %v4912, %v4912
    %v4990 = vmul.f32 %v4755, %v4755
    %v4991 = vmul.f32 %v4757, %v4757
    %v4992 = vmul.f32 %v4916, %v4916
    %v4993 = vmul.f32 %v4918, %v4918
    %v4994 = vmul.f32 %v4761, %v4761
    %v4995 = vmul.f32 %v4763, %v4763
    %v4996 = vmul.f32 %v4922, %v4922
    %v4997 = vmul.f32 %v4924, %v4924
    %v4998 = vmul.f32 %v4767, %v4767
    %v4999 = vmul.f32 %v4769, %v4769
    %v5000 = vmul.f32 %v4928, %v4928
    %v5001 = vmul.f32 %v4930, %v4930
    %v5002 = vmul.f32 %v4773, %v4773
    %v5003 = vmul.f32 %v4775, %v4775
    %v5004 = vmul.f32 %v4934, %v4934
    %v5005 = vmul.f32 %v4936, %v4936
    %v5006 = vmul.f32 %v4779, %v4779
    %v5007 = vmul.f32 %v4781, %v4781
    %v5008 = vmul.f32 %v4940, %v4940
    %v5009 = vmul.f32 %v4942, %v4942
    %v5010 = vmul.f32 %v4785, %v4785
    %v5011 = vmul.f32 %v4787, %v4787
    %v5012 = vmul.f32 %v4946, %v4946
    %v5013 = vmul.f32 %v4948, %v4948
    %v5014 = vadd.f32 %v4950, %v4951
    %v5015 = vadd.f32 %v5014, %v4952
    %v5016 = vadd.f32 %v5015, %v4953
    %5017 = vadd.xlane.f32.xlu0 %v5016
    %v5018 = vpop.xlane.xlu0 %5017
    %v5019 = vadd.f32 %v4954, %v4955
    %v5020 = vadd.f32 %v5019, %v4956
    %v5021 = vadd.f32 %v5020, %v4957
    %5022 = vadd.xlane.f32.xlu0 %v5021
    %v5023 = vpop.xlane.xlu0 %5022
    %v5024 = vadd.f32 %v4958, %v4959
    %v5025 = vadd.f32 %v5024, %v4960
    %v5026 = vadd.f32 %v5025, %v4961
    %5027 = vadd.xlane.f32.xlu0 %v5026
    %v5028 = vpop.xlane.xlu0 %5027
    %v5029 = vadd.f32 %v4962, %v4963
    %v5030 = vadd.f32 %v5029, %v4964
    %v5031 = vadd.f32 %v5030, %v4965
    %5032 = vadd.xlane.f32.xlu0 %v5031
    %v5033 = vpop.xlane.xlu0 %5032
    %v5034 = vadd.f32 %v4966, %v4967
    %v5035 = vadd.f32 %v5034, %v4968
    %v5036 = vadd.f32 %v5035, %v4969
    %5037 = vadd.xlane.f32.xlu0 %v5036
    %v5038 = vpop.xlane.xlu0 %5037
    %v5039 = vadd.f32 %v4970, %v4971
    %v5040 = vadd.f32 %v5039, %v4972
    %v5041 = vadd.f32 %v5040, %v4973
    %5042 = vadd.xlane.f32.xlu0 %v5041
    %v5043 = vpop.xlane.xlu0 %5042
    %v5044 = vadd.f32 %v4974, %v4975
    %v5045 = vadd.f32 %v5044, %v4976
    %v5046 = vadd.f32 %v5045, %v4977
    %5047 = vadd.xlane.f32.xlu0 %v5046
    %v5048 = vpop.xlane.xlu0 %5047
    %v5049 = vadd.f32 %v4978, %v4979
    %v5050 = vadd.f32 %v5049, %v4980
    %v5051 = vadd.f32 %v5050, %v4981
    %5052 = vadd.xlane.f32.xlu0 %v5051
    %v5053 = vpop.xlane.xlu0 %5052
    %v5054 = vadd.f32 %v4982, %v4983
    %v5055 = vadd.f32 %v5054, %v4984
    %v5056 = vadd.f32 %v5055, %v4985
    %5057 = vadd.xlane.f32.xlu0 %v5056
    %v5058 = vpop.xlane.xlu0 %5057
    %v5059 = vadd.f32 %v4986, %v4987
    %v5060 = vadd.f32 %v5059, %v4988
    %v5061 = vadd.f32 %v5060, %v4989
    %5062 = vadd.xlane.f32.xlu0 %v5061
    %v5063 = vpop.xlane.xlu0 %5062
    %v5064 = vadd.f32 %v4990, %v4991
    %v5065 = vadd.f32 %v5064, %v4992
    %v5066 = vadd.f32 %v5065, %v4993
    %5067 = vadd.xlane.f32.xlu0 %v5066
    %v5068 = vpop.xlane.xlu0 %5067
    %v5069 = vadd.f32 %v4994, %v4995
    %v5070 = vadd.f32 %v5069, %v4996
    %v5071 = vadd.f32 %v5070, %v4997
    %5072 = vadd.xlane.f32.xlu0 %v5071
    %v5073 = vpop.xlane.xlu0 %5072
    %v5074 = vadd.f32 %v4998, %v4999
    %v5075 = vadd.f32 %v5074, %v5000
    %v5076 = vadd.f32 %v5075, %v5001
    %5077 = vadd.xlane.f32.xlu0 %v5076
    %v5078 = vpop.xlane.xlu0 %5077
    %v5079 = vadd.f32 %v5002, %v5003
    %v5080 = vadd.f32 %v5079, %v5004
    %v5081 = vadd.f32 %v5080, %v5005
    %5082 = vadd.xlane.f32.xlu0 %v5081
    %v5083 = vpop.xlane.xlu0 %5082
    %v5084 = vadd.f32 %v5006, %v5007
    %v5085 = vadd.f32 %v5084, %v5008
    %v5086 = vadd.f32 %v5085, %v5009
    %5087 = vadd.xlane.f32.xlu0 %v5086
    %v5088 = vpop.xlane.xlu0 %5087
    %v5089 = vadd.f32 %v5010, %v5011
    %v5090 = vadd.f32 %v5089, %v5012
    %v5091 = vadd.f32 %v5090, %v5013
    %5092 = vadd.xlane.f32.xlu0 %v5091
    %v5093 = vpop.xlane.xlu0 %5092
    %v5094 = vmax.f32 %v5018, 1e-24
    %v5095 = vmax.f32 %v5023, 1e-24
    %v5096 = vmax.f32 %v5028, 1e-24
    %v5097 = vmax.f32 %v5033, 1e-24
    %v5098 = vmax.f32 %v5038, 1e-24
    %v5099 = vmax.f32 %v5043, 1e-24
    %v5100 = vmax.f32 %v5048, 1e-24
    %v5101 = vmax.f32 %v5053, 1e-24
    %v5102 = vmax.f32 %v5058, 1e-24
    %v5103 = vmax.f32 %v5063, 1e-24
    %v5104 = vmax.f32 %v5068, 1e-24
    %v5105 = vmax.f32 %v5073, 1e-24
    %v5106 = vmax.f32 %v5078, 1e-24
    %v5107 = vmax.f32 %v5083, 1e-24
    %v5108 = vmax.f32 %v5088, 1e-24
    %v5109 = vmax.f32 %v5093, 1e-24
    %v5110 = vrsqrt.pop %v5094
    %v5111 = vrsqrt.pop %v5095
    %v5112 = vrsqrt.pop %v5096
    %v5113 = vrsqrt.pop %v5097
    %v5114 = vrsqrt.pop %v5098
    %v5115 = vrsqrt.pop %v5099
    %v5116 = vrsqrt.pop %v5100
    %v5117 = vrsqrt.pop %v5101
    %v5118 = vrsqrt.pop %v5102
    %v5119 = vrsqrt.pop %v5103
    %v5120 = vrsqrt.pop %v5104
    %v5121 = vrsqrt.pop %v5105
    %v5122 = vrsqrt.pop %v5106
    %v5123 = vrsqrt.pop %v5107
    %v5124 = vrsqrt.pop %v5108
    %v5125 = vrsqrt.pop %v5109
    %v5126 = vmul.f32 %v4695, %v5110
    %v5127 = vmul.f32 %v4697, %v5110
    %v5128 = vmul.f32 %v4856, %v5110
    %v5129 = vmul.f32 %v4858, %v5110
    %v5130 = vmul.f32 %v4701, %v5111
    %v5131 = vmul.f32 %v4703, %v5111
    %v5132 = vmul.f32 %v4862, %v5111
    %v5133 = vmul.f32 %v4864, %v5111
    %v5134 = vmul.f32 %v4707, %v5112
    %v5135 = vmul.f32 %v4709, %v5112
    %v5136 = vmul.f32 %v4868, %v5112
    %v5137 = vmul.f32 %v4870, %v5112
    %v5138 = vmul.f32 %v4713, %v5113
    %v5139 = vmul.f32 %v4715, %v5113
    %v5140 = vmul.f32 %v4874, %v5113
    %v5141 = vmul.f32 %v4876, %v5113
    %v5142 = vmul.f32 %v4719, %v5114
    %v5143 = vmul.f32 %v4721, %v5114
    %v5144 = vmul.f32 %v4880, %v5114
    %v5145 = vmul.f32 %v4882, %v5114
    %v5146 = vmul.f32 %v4725, %v5115
    %v5147 = vmul.f32 %v4727, %v5115
    %v5148 = vmul.f32 %v4886, %v5115
    %v5149 = vmul.f32 %v4888, %v5115
    %v5150 = vmul.f32 %v4731, %v5116
    %v5151 = vmul.f32 %v4733, %v5116
    %v5152 = vmul.f32 %v4892, %v5116
    %v5153 = vmul.f32 %v4894, %v5116
    %v5154 = vmul.f32 %v4737, %v5117
    %v5155 = vmul.f32 %v4739, %v5117
    %v5156 = vmul.f32 %v4898, %v5117
    %v5157 = vmul.f32 %v4900, %v5117
    %v5158 = vmul.f32 %v4743, %v5118
    %v5159 = vmul.f32 %v4745, %v5118
    %v5160 = vmul.f32 %v4904, %v5118
    %v5161 = vmul.f32 %v4906, %v5118
    %v5162 = vmul.f32 %v4749, %v5119
    %v5163 = vmul.f32 %v4751, %v5119
    %v5164 = vmul.f32 %v4910, %v5119
    %v5165 = vmul.f32 %v4912, %v5119
    %v5166 = vmul.f32 %v4755, %v5120
    %v5167 = vmul.f32 %v4757, %v5120
    %v5168 = vmul.f32 %v4916, %v5120
    %v5169 = vmul.f32 %v4918, %v5120
    %v5170 = vmul.f32 %v4761, %v5121
    %v5171 = vmul.f32 %v4763, %v5121
    %v5172 = vmul.f32 %v4922, %v5121
    %v5173 = vmul.f32 %v4924, %v5121
    %v5174 = vmul.f32 %v4767, %v5122
    %v5175 = vmul.f32 %v4769, %v5122
    %v5176 = vmul.f32 %v4928, %v5122
    %v5177 = vmul.f32 %v4930, %v5122
    %v5178 = vmul.f32 %v4773, %v5123
    %v5179 = vmul.f32 %v4775, %v5123
    %v5180 = vmul.f32 %v4934, %v5123
    %v5181 = vmul.f32 %v4936, %v5123
    %v5182 = vmul.f32 %v4779, %v5124
    %v5183 = vmul.f32 %v4781, %v5124
    %v5184 = vmul.f32 %v4940, %v5124
    %v5185 = vmul.f32 %v4942, %v5124
    %v5186 = vmul.f32 %v4785, %v5125
    %v5187 = vmul.f32 %v4787, %v5125
    %v5188 = vmul.f32 %v4946, %v5125
    %v5189 = vmul.f32 %v4948, %v5125
    %v5190 = vmul.f32 %v4560, %v4560
    %v5191 = vmul.f32 %v4561, %v4561
    %v5192 = vmul.f32 %v4562, %v4562
    %v5193 = vmul.f32 %v4563, %v4563
    %v5194 = vadd.f32 %v5190, %v5191
    %v5195 = vadd.f32 %v5194, %v5192
    %v5196 = vadd.f32 %v5195, %v5193
    %5197 = vadd.xlane.f32.xlu0 %v5196
    %v5198 = vpop.xlane.xlu0 %5197
    %v5199 = vmax.f32 %v5198, 1e-24
    %v5200 = vrsqrt.pop %v5199
    %v5201 = vmul.f32 %v4560, %v5200
    %v5202 = vmul.f32 %v4561, %v5200
    %v5203 = vmul.f32 %v4562, %v5200
    %v5204 = vmul.f32 %v4563, %v5200
    %5205 = vmatprep.subr.mxu0 %v5127
    %5206 = vmatpush1.xpose.msra.mxu0 %v5126
    %5207 = vmatprep.subr.mxu0 %v5131
    %5208 = vmatpush1.xpose.msra.mxu0 %v5130
    %5209 = vmatprep.subr.mxu0 %v5135
    %5210 = vmatpush1.xpose.msra.mxu0 %v5134
    %5211 = vmatprep.subr.mxu0 %v5139
    %5212 = vmatpush1.xpose.msra.mxu0 %v5138
    %5213 = vmatprep.subr.mxu0 %v5143
    %5214 = vmatpush1.xpose.msra.mxu0 %v5142
    %5215 = vmatprep.subr.mxu0 %v5147
    %5216 = vmatpush1.xpose.msra.mxu0 %v5146
    %5217 = vmatprep.subr.mxu0 %v5151
    %5218 = vmatpush1.xpose.msra.mxu0 %v5150
    %5219 = vmatprep.subr.mxu0 %v5155
    %5220 = vmatpush1.xpose.msra.mxu0 %v5154
    %5221 = vmatprep.subr.mxu0 %v5159
    %5222 = vmatpush1.xpose.msra.mxu0 %v5158
    %5223 = vmatprep.subr.mxu0 %v5163
    %5224 = vmatpush1.xpose.msra.mxu0 %v5162
    %5225 = vmatprep.subr.mxu0 %v5167
    %5226 = vmatpush1.xpose.msra.mxu0 %v5166
    %5227 = vmatprep.subr.mxu0 %v5171
    %5228 = vmatpush1.xpose.msra.mxu0 %v5170
    %5229 = vmatprep.subr.mxu0 %v5175
    %5230 = vmatpush1.xpose.msra.mxu0 %v5174
    %5231 = vmatprep.subr.mxu0 %v5179
    %5232 = vmatpush1.xpose.msra.mxu0 %v5178
    %5233 = vmatprep.subr.mxu0 %v5183
    %5234 = vmatpush1.xpose.msra.mxu0 %v5182
    %5235 = vmatprep.subr.mxu0 %v5187
    %5236 = vmatpush1.xpose.msra.mxu0 %v5186
    %5237 = vmatprep.subr.mxu0 0.0
    %5238 = vmatpush1.xpose.msra.mxu0 0.0
    %5239 = vmatprep.subr.mxu0 0.0
    %5240 = vmatpush1.xpose.msra.mxu0 0.0
    %5241 = vmatprep.subr.mxu0 0.0
    %5242 = vmatpush1.xpose.msra.mxu0 0.0
    %5243 = vmatprep.subr.mxu0 0.0
    %5244 = vmatpush1.xpose.msra.mxu0 0.0
    %5245 = vmatprep.subr.mxu0 0.0
    %5246 = vmatpush1.xpose.msra.mxu0 0.0
    %5247 = vmatprep.subr.mxu0 0.0
    %5248 = vmatpush1.xpose.msra.mxu0 0.0
    %5249 = vmatprep.subr.mxu0 0.0
    %5250 = vmatpush1.xpose.msra.mxu0 0.0
    %5251 = vmatprep.subr.mxu0 0.0
    %5252 = vmatpush1.xpose.msra.mxu0 0.0
    %5253 = vmatprep.subr.mxu0 0.0
    %5254 = vmatpush1.xpose.msra.mxu0 0.0
    %5255 = vmatprep.subr.mxu0 0.0
    %5256 = vmatpush1.xpose.msra.mxu0 0.0
    %5257 = vmatprep.subr.mxu0 0.0
    %5258 = vmatpush1.xpose.msra.mxu0 0.0
    %5259 = vmatprep.subr.mxu0 0.0
    %5260 = vmatpush1.xpose.msra.mxu0 0.0
    %5261 = vmatprep.subr.mxu0 0.0
    %5262 = vmatpush1.xpose.msra.mxu0 0.0
    %5263 = vmatprep.subr.mxu0 0.0
    %5264 = vmatpush1.xpose.msra.mxu0 0.0
    %5265 = vmatprep.subr.mxu0 0.0
    %5266 = vmatpush1.xpose.msra.mxu0 0.0
    %5267 = vmatprep.subr.mxu0 0.0
    %5268 = vmatpush1.xpose.msra.mxu0 0.0
    %5269 = vmatprep.mubr.f32.mxu0 %v5202
    %5270 = vmatmul.mubr.f32.gmra.mrb[0].mxu0 %v5201
    %v5271 = vpop.f32.mrb[0].mxu0
    %v5272 = vadd.f32 0.0, %v5271
    %v5273 = vpop.f32.mrb[0].mxu0
    %5274 = vdwg.mxu0
    %5275 = vmatprep.subr.mxu0 %v5129
    %5276 = vmatpush1.xpose.msra.mxu0 %v5128
    %5277 = vmatprep.subr.mxu0 %v5133
    %5278 = vmatpush1.xpose.msra.mxu0 %v5132
    %5279 = vmatprep.subr.mxu0 %v5137
    %5280 = vmatpush1.xpose.msra.mxu0 %v5136
    %5281 = vmatprep.subr.mxu0 %v5141
    %5282 = vmatpush1.xpose.msra.mxu0 %v5140
    %5283 = vmatprep.subr.mxu0 %v5145
    %5284 = vmatpush1.xpose.msra.mxu0 %v5144
    %5285 = vmatprep.subr.mxu0 %v5149
    %5286 = vmatpush1.xpose.msra.mxu0 %v5148
    %5287 = vmatprep.subr.mxu0 %v5153
    %5288 = vmatpush1.xpose.msra.mxu0 %v5152
    %5289 = vmatprep.subr.mxu0 %v5157
    %5290 = vmatpush1.xpose.msra.mxu0 %v5156
    %5291 = vmatprep.subr.mxu0 %v5161
    %5292 = vmatpush1.xpose.msra.mxu0 %v5160
    %5293 = vmatprep.subr.mxu0 %v5165
    %5294 = vmatpush1.xpose.msra.mxu0 %v5164
    %5295 = vmatprep.subr.mxu0 %v5169
    %5296 = vmatpush1.xpose.msra.mxu0 %v5168
    %5297 = vmatprep.subr.mxu0 %v5173
    %5298 = vmatpush1.xpose.msra.mxu0 %v5172
    %5299 = vmatprep.subr.mxu0 %v5177
    %5300 = vmatpush1.xpose.msra.mxu0 %v5176
    %5301 = vmatprep.subr.mxu0 %v5181
    %5302 = vmatpush1.xpose.msra.mxu0 %v5180
    %5303 = vmatprep.subr.mxu0 %v5185
    %5304 = vmatpush1.xpose.msra.mxu0 %v5184
    %5305 = vmatprep.subr.mxu0 %v5189
    %5306 = vmatpush1.xpose.msra.mxu0 %v5188
    %5307 = vmatprep.subr.mxu0 0.0
    %5308 = vmatpush1.xpose.msra.mxu0 0.0
    %5309 = vmatprep.subr.mxu0 0.0
    %5310 = vmatpush1.xpose.msra.mxu0 0.0
    %5311 = vmatprep.subr.mxu0 0.0
    %5312 = vmatpush1.xpose.msra.mxu0 0.0
    %5313 = vmatprep.subr.mxu0 0.0
    %5314 = vmatpush1.xpose.msra.mxu0 0.0
    %5315 = vmatprep.subr.mxu0 0.0
    %5316 = vmatpush1.xpose.msra.mxu0 0.0
    %5317 = vmatprep.subr.mxu0 0.0
    %5318 = vmatpush1.xpose.msra.mxu0 0.0
    %5319 = vmatprep.subr.mxu0 0.0
    %5320 = vmatpush1.xpose.msra.mxu0 0.0
    %5321 = vmatprep.subr.mxu0 0.0
    %5322 = vmatpush1.xpose.msra.mxu0 0.0
    %5323 = vmatprep.subr.mxu0 0.0
    %5324 = vmatpush1.xpose.msra.mxu0 0.0
    %5325 = vmatprep.subr.mxu0 0.0
    %5326 = vmatpush1.xpose.msra.mxu0 0.0
    %5327 = vmatprep.subr.mxu0 0.0
    %5328 = vmatpush1.xpose.msra.mxu0 0.0
    %5329 = vmatprep.subr.mxu0 0.0
    %5330 = vmatpush1.xpose.msra.mxu0 0.0
    %5331 = vmatprep.subr.mxu0 0.0
    %5332 = vmatpush1.xpose.msra.mxu0 0.0
    %5333 = vmatprep.subr.mxu0 0.0
    %5334 = vmatpush1.xpose.msra.mxu0 0.0
    %5335 = vmatprep.subr.mxu0 0.0
    %5336 = vmatpush1.xpose.msra.mxu0 0.0
    %5337 = vmatprep.subr.mxu0 0.0
    %5338 = vmatpush1.xpose.msra.mxu0 0.0
    %5339 = vmatprep.mubr.f32.mxu0 %v5204
    %5340 = vmatmul.mubr.f32.gmra.mrb[0].mxu0 %v5203
    %v5341 = vpop.f32.mrb[0].mxu0
    %v5342 = vadd.f32 %v5272, %v5341
    %v5343 = vpop.f32.mrb[0].mxu0
    %5344 = vdwg.mxu0
    %v5345 = vmul.f32 %v5342, 10.0
    %5346 = vst [vmem:[#allocation17] sm:$0xff] %v5345
    %5347 = vst [vmem:[#allocation18] sm:$0xff] %v613
    %5348 = vst [vmem:[#allocation18 + $0x8] sm:$0xff] %v615
    %5349 = vst [vmem:[#allocation18 + $0x10] sm:$0xff] %v664
    %5350 = vst [vmem:[#allocation18 + $0x18] sm:$0xff] %v666
    %5351 = vst [vmem:[#allocation18 + $0x20] sm:$0xff] %v617
    %5352 = vst [vmem:[#allocation18 + $0x28] sm:$0xff] %v619
    %5353 = vst [vmem:[#allocation18 + $0x30] sm:$0xff] %v668
    %5354 = vst [vmem:[#allocation18 + $0x38] sm:$0xff] %v670
    %5355 = vst [vmem:[#allocation20] sm:$0xff] %v4560
    %5356 = vst [vmem:[#allocation20 + $0x8] sm:$0xff] %v4561
    %5357 = vst [vmem:[#allocation20 + $0x10] sm:$0xff] %v4562
    %5358 = vst [vmem:[#allocation20 + $0x18] sm:$0xff] %v4563
    // Predicated region
    $region78: #{tpu_custom_call.1} parent=1 // pred_check
      _
    $region79: #{tpu_custom_call.1} parent=1 // pred_check_branch
      %5360 = sbr.rel (0) target = $region81
    $region80: #{tpu_custom_call.1} parent=1 // pred_region
      %s5362 = ssub.s32 128, 128
      %5363 = vsyncadd [#allocation4], %s5362
      %s5365 = sshll.u32 [#allocation17], 4
      %s5366 = int_to_ptr.vmem [resolvable:$true] %s5365
      %5368 = dma.vmem_to_hbm [thread:$0]  %s5366, 128, %s10, [#allocation4]
    $region81: #{tpu_custom_call.1} parent=1 // pred_fallthru
      _
    // Predicated region
    $region82: #{tpu_custom_call.1} parent=1 // pred_check
      _
    $region83: #{tpu_custom_call.1} parent=1 // pred_check_branch
      %5370 = sbr.rel (0) target = $region85
    $region84: #{tpu_custom_call.1} parent=1 // pred_region
      %s5372 = ssub.s32 1024, 1024
      %5373 = vsyncadd [#allocation19], %s5372
      %s5374 = sshll.u32 [#allocation18], 4
      %s5375 = int_to_ptr.vmem [resolvable:$true] %s5374
      %5380 = dma.vmem_to_hbm [thread:$0]  %s5375, 1024, %s11, [#allocation19], 512, 512, 32
    $region85: #{tpu_custom_call.1} parent=1 // pred_fallthru
      _
    // Predicated region
    $region86: #{tpu_custom_call.1} parent=1 // pred_check
      _
    $region87: #{tpu_custom_call.1} parent=1 // pred_check_branch
      %5382 = sbr.rel (0) target = $region89
    $region88: #{tpu_custom_call.1} parent=1 // pred_region
      %s5384 = ssub.s32 512, 512
      %5385 = vsyncadd [#allocation19], %s5384
      %s5387 = sshll.u32 [#allocation20], 4
      %s5388 = int_to_ptr.vmem [resolvable:$true] %s5387
      %5390 = dma.vmem_to_hbm [thread:$0]  %s5388, 512, %s12, [#allocation19]
    $region89: #{tpu_custom_call.1} parent=1 // pred_fallthru
      _
    // Predicated region
    $region90: #{tpu_custom_call.1} parent=1 // pred_check
      _
    $region91: #{tpu_custom_call.1} parent=1 // pred_check_branch
      %5392 = sbr.rel (0) target = $region93
    $region92: #{tpu_custom_call.1} parent=1 // pred_region
      %5393 = dma.done [#allocation4], 128
    $region93: #{tpu_custom_call.1} parent=1 // pred_fallthru
      _
    // Predicated region
    $region94: #{tpu_custom_call.1} parent=1 // pred_check
      _
    $region95: #{tpu_custom_call.1} parent=1 // pred_check_branch
      %5395 = sbr.rel (0) target = $region97
    $region96: #{tpu_custom_call.1} parent=1 // pred_region
      %5396 = dma.done [#allocation19], 1024
    $region97: #{tpu_custom_call.1} parent=1 // pred_fallthru
      _
    // Predicated region
    $region98: #{tpu_custom_call.1} parent=1 // pred_check
      _
    $region99: #{tpu_custom_call.1} parent=1 // pred_check_branch
      %5398 = sbr.rel (0) target = $region101
    $region100: #{tpu_custom_call.1} parent=1 // pred_region
      %5399 = dma.done [#allocation19], 512
    $region101: #{tpu_custom_call.1} parent=1 // pred_fallthru
      _
    %5400 = vsyncpa [#allocation3], 1
    %5401 = vsyncpa [#allocation6], 1
    %5402 = vsyncpa [#allocation9], 1
    %5403 = vsyncpa [#allocation12], 1
    %5404 = vsyncpa [#allocation15], 1
    %5405 = vsyncpa [#allocation4], 1
    %5406 = vsyncpa [#allocation19], 1

// kernel: tpu_custom_call.1
$region0: #{tpu_custom_call.1}
  #allocation0 [shape = 'u32[]', space=smem, size = 0x4, offset = 0x4, fixed_abs, tag = 'smem constant byte address 0x4 - core index']
  #allocation1 [shape = 'u32[144,128]{1,0:T(1,128)}', space=vmem, size = 0x12000, scoped, tag = 'internal scratch']
  %s0 = inlined_call_operand.hbm [shape: bf16[1,16,256], index: 0, kind: input, shape index: {}]
  %s1 = inlined_call_operand.hbm [shape: bf16[1,8,256], index: 1, kind: input, shape index: {}]
  %s2 = inlined_call_operand.hbm [shape: bf16[256,512], index: 2, kind: input, shape index: {}]
  %s3 = inlined_call_operand.hbm [shape: f32[1,512], index: 3, kind: input, shape index: {}]
  %s4 = inlined_call_operand.hbm [shape: bf16[512,1536], index: 4, kind: input, shape index: {}]
  %s5 = inlined_call_operand.hbm [shape: f32[1,1536], index: 5, kind: input, shape index: {}]
  %s6 = inlined_call_operand.hbm [shape: bf16[512,512], index: 6, kind: input, shape index: {}]
  %s7 = inlined_call_operand.hbm [shape: f32[1,512], index: 7, kind: input, shape index: {}]
  %s8 = inlined_call_operand.vmem [shape: f32[128,16], index: 8, kind: input, shape index: {}]
  %s9 = inlined_call_operand.hbm [shape: f32[1,16], index: 9, kind: input, shape index: {}]
  %s10 = inlined_call_operand.hbm [shape: f32[1,8,128], index: 10, kind: output, shape index: {0}]
  %s11 = inlined_call_operand.hbm [shape: f32[1,16,512], index: 11, kind: output, shape index: {1}]
  %s12 = inlined_call_operand.hbm [shape: f32[1,8,512], index: 12, kind: output, shape index: {2}]
  %13 = xla_tuple %s10, %s11, %s12
  %s14 = sld [smem:[#allocation0]]
  $region102: #{tpu_custom_call.1} parent=0
    _
  %s16 = ssub.s32 1, %s14
  %s17 = scalar_select 0, %s16, %s14
  $region1: #{tpu_custom_call.1} parent=0
    #allocation2 [shape = 'u8[8192]{0}', space=vmem, size = 0x2000, scoped, tag = 'input window, operand 0, single buffered']
    #allocation3 [shape = 's32[1]{0}', space=sflag, size = 0x4, scoped, tag = 'scoped memory for tpu_custom_call.1']
    #allocation4 [shape = 's32[1]{0}', space=sflag, size = 0x4, scoped, tag = 'scoped memory for tpu_custom_call.1']
    #allocation5 [shape = 'u8[4096]{0}', space=vmem, size = 0x1000, scoped, tag = 'input window, operand 1, single buffered']
    #allocation6 [shape = 's32[1]{0}', space=sflag, size = 0x4, scoped, tag = 'scoped memory for tpu_custom_call.1']
    #allocation7 [shape = 'u8[262144]{0}', space=vmem, size = 0x40000, scoped, tag = 'input window, operand 2, single buffered']
    #allocation8 [shape = 'u8[2048]{0}', space=vmem, size = 0x800, scoped, tag = 'input window, operand 3, single buffered']
    #allocation9 [shape = 's32[1]{0}', space=sflag, size = 0x4, scoped, tag = 'scoped memory for tpu_custom_call.1']
    #allocation10 [shape = 'u8[1572864]{0}', space=vmem, size = 0x180000, scoped, tag = 'input window, operand 4, single buffered']
    #allocation11 [shape = 'u8[6144]{0}', space=vmem, size = 0x1800, scoped, tag = 'input window, operand 5, single buffered']
    #allocation12 [shape = 's32[1]{0}', space=sflag, size = 0x4, scoped, tag = 'scoped memory for tpu_custom_call.1']
    #allocation13 [shape = 'u8[524288]{0}', space=vmem, size = 0x80000, scoped, tag = 'input window, operand 6, single buffered']
    #allocation14 [shape = 'u8[2048]{0}', space=vmem, size = 0x800, scoped, tag = 'input window, operand 7, single buffered']
    #allocation15 [shape = 's32[1]{0}', space=sflag, size = 0x4, scoped, tag = 'scoped memory for tpu_custom_call.1']
    #allocation16 [shape = 'u8[512]{0}', space=vmem, size = 0x400, scoped, tag = 'input window, operand 9, single buffered']
    #allocation17 [shape = 'u8[4096]{0}', space=vmem, size = 0x1000, scoped, tag = 'output window, operand 0, single buffered']
    #allocation18 [shape = 'u8[32768]{0}', space=vmem, size = 0x8000, scoped, tag = 'output window, operand 1, single buffered']
    #allocation19 [shape = 's32[1]{0}', space=sflag, size = 0x4, scoped, tag = 'scoped memory for tpu_custom_call.1']
    #allocation20 [shape = 'u8[16384]{0}', space=vmem, size = 0x4000, scoped, tag = 'output window, operand 2, single buffered']
    %18 = vsyncpa [#allocation3], 0
    %19 = vsyncpa [#allocation6], 0
    %20 = vsyncpa [#allocation9], 0
    %21 = vsyncpa [#allocation12], 0
    %22 = vsyncpa [#allocation15], 0
    %23 = vsyncpa [#allocation4], 0
    %24 = vsyncpa [#allocation19], 0
    // Predicated region
    $region2: #{tpu_custom_call.1} parent=1 // pred_check
      _
    $region3: #{tpu_custom_call.1} parent=1 // pred_check_branch
      %26 = sbr.rel (0) target = $region5
    $region4: #{tpu_custom_call.1} parent=1 // pred_region
      %s28 = ssub.s32 256, 256
      %29 = vsyncadd [#allocation3], %s28
      %s30 = sshll.u32 [#allocation2], 4
      %s31 = int_to_ptr.vmem [resolvable:$true] %s30
      %36 = dma.hbm_to_vmem [thread:$0]  %s0, 256, %s31, [#allocation3], 128, 128, 8
    $region5: #{tpu_custom_call.1} parent=1 // pred_fallthru
      _
    // Predicated region
    $region6: #{tpu_custom_call.1} parent=1 // pred_check
      _
    $region7: #{tpu_custom_call.1} parent=1 // pred_check_branch
      %38 = sbr.rel (0) target = $region9
    $region8: #{tpu_custom_call.1} parent=1 // pred_region
      %s40 = ssub.s32 128, 128
      %41 = vsyncadd [#allocation6], %s40
      %s43 = sshll.u32 [#allocation5], 4
      %s44 = int_to_ptr.vmem [resolvable:$true] %s43
      %46 = dma.hbm_to_vmem [thread:$0]  %s1, 128, %s44, [#allocation6]
    $region9: #{tpu_custom_call.1} parent=1 // pred_fallthru
      _
    // Predicated region
    $region10: #{tpu_custom_call.1} parent=1 // pred_check
      _
    $region11: #{tpu_custom_call.1} parent=1 // pred_check_branch
      %48 = sbr.rel (0) target = $region13
    $region12: #{tpu_custom_call.1} parent=1 // pred_region
      %s50 = ssub.s32 8192, 8192
      %51 = vsyncadd [#allocation6], %s50
      %s52 = sshll.u32 [#allocation7], 4
      %s53 = int_to_ptr.vmem [resolvable:$true] %s52
      %58 = dma.hbm_to_vmem [thread:$0]  %s2, 8192, %s53, [#allocation6], 256, 256, 16
    $region13: #{tpu_custom_call.1} parent=1 // pred_fallthru
      _
    // Predicated region
    $region14: #{tpu_custom_call.1} parent=1 // pred_check
      _
    $region15: #{tpu_custom_call.1} parent=1 // pred_check_branch
      %60 = sbr.rel (0) target = $region17
    $region16: #{tpu_custom_call.1} parent=1 // pred_region
      %s62 = ssub.s32 64, 64
      %63 = vsyncadd [#allocation9], %s62
      %s65 = sshll.u32 [#allocation8], 4
      %s66 = int_to_ptr.vmem [resolvable:$true] %s65
      %68 = dma.hbm_to_vmem [thread:$0]  %s3, 64, %s66, [#allocation9]
    $region17: #{tpu_custom_call.1} parent=1 // pred_fallthru
      _
    // Predicated region
    $region18: #{tpu_custom_call.1} parent=1 // pred_check
      _
    $region19: #{tpu_custom_call.1} parent=1 // pred_check_branch
      %70 = sbr.rel (0) target = $region21
    $region20: #{tpu_custom_call.1} parent=1 // pred_region
      %s72 = ssub.s32 49152, 49152
      %73 = vsyncadd [#allocation9], %s72
      %s74 = sshll.u32 [#allocation10], 4
      %s75 = int_to_ptr.vmem [resolvable:$true] %s74
      %80 = dma.hbm_to_vmem [thread:$0]  %s4, 49152, %s75, [#allocation9], 768, 768, 48
    $region21: #{tpu_custom_call.1} parent=1 // pred_fallthru
      _
    // Predicated region
    $region22: #{tpu_custom_call.1} parent=1 // pred_check
      _
    $region23: #{tpu_custom_call.1} parent=1 // pred_check_branch
      %82 = sbr.rel (0) target = $region25
    $region24: #{tpu_custom_call.1} parent=1 // pred_region
      %s84 = ssub.s32 192, 192
      %85 = vsyncadd [#allocation12], %s84
      %s87 = sshll.u32 [#allocation11], 4
      %s88 = int_to_ptr.vmem [resolvable:$true] %s87
      %90 = dma.hbm_to_vmem [thread:$0]  %s5, 192, %s88, [#allocation12]
    $region25: #{tpu_custom_call.1} parent=1 // pred_fallthru
      _
    // Predicated region
    $region26: #{tpu_custom_call.1} parent=1 // pred_check
      _
    $region27: #{tpu_custom_call.1} parent=1 // pred_check_branch
      %92 = sbr.rel (0) target = $region29
    $region28: #{tpu_custom_call.1} parent=1 // pred_region
      %s94 = ssub.s32 16384, 16384
      %95 = vsyncadd [#allocation12], %s94
      %s96 = sshll.u32 [#allocation13], 4
      %s97 = int_to_ptr.vmem [resolvable:$true] %s96
      %102 = dma.hbm_to_vmem [thread:$0]  %s6, 16384, %s97, [#allocation12], 256, 256, 16
    $region29: #{tpu_custom_call.1} parent=1 // pred_fallthru
      _
    // Predicated region
    $region30: #{tpu_custom_call.1} parent=1 // pred_check
      _
    $region31: #{tpu_custom_call.1} parent=1 // pred_check_branch
      %104 = sbr.rel (0) target = $region33
    $region32: #{tpu_custom_call.1} parent=1 // pred_region
      %s106 = ssub.s32 64, 64
      %107 = vsyncadd [#allocation15], %s106
      %s109 = sshll.u32 [#allocation14], 4
      %s110 = int_to_ptr.vmem [resolvable:$true] %s109
      %112 = dma.hbm_to_vmem [thread:$0]  %s7, 64, %s110, [#allocation15]
    $region33: #{tpu_custom_call.1} parent=1 // pred_fallthru
      _
    // Predicated region
    $region34: #{tpu_custom_call.1} parent=1 // pred_check
      _
    $region35: #{tpu_custom_call.1} parent=1 // pred_check_branch
      %114 = sbr.rel (0) target = $region37
    $region36: #{tpu_custom_call.1} parent=1 // pred_region
      _
    $region37: #{tpu_custom_call.1} parent=1 // pred_fallthru
      _
    // Predicated region
    $region38: #{tpu_custom_call.1} parent=1 // pred_check
      _
    $region39: #{tpu_custom_call.1} parent=1 // pred_check_branch
      %116 = sbr.rel (0) target = $region41
    $region40: #{tpu_custom_call.1} parent=1 // pred_region
      %s118 = ssub.s32 16, 16
      %119 = vsyncadd [#allocation15], %s118
      %s121 = sshll.u32 [#allocation16], 4
      %s122 = int_to_ptr.vmem [resolvable:$true] %s121
      %124 = dma.hbm_to_vmem [thread:$0]  %s9, 16, %s122, [#allocation15]
    $region41: #{tpu_custom_call.1} parent=1 // pred_fallthru
      _
    // Predicated region
    $region42: #{tpu_custom_call.1} parent=1 // pred_check
      _
    $region43: #{tpu_custom_call.1} parent=1 // pred_check_branch
      %126 = sbr.rel (0) target = $region45
    $region44: #{tpu_custom_call.1} parent=1 // pred_region
      %127 = dma.done [#allocation3], 256
    $region45: #{tpu_custom_call.1} parent=1 // pred_fallthru
      _
    // Predicated region
    $region46: #{tpu_custom_call.1} parent=1 // pred_check
      _
    $region47: #{tpu_custom_call.1} parent=1 // pred_check_branch
      %129 = sbr.rel (0) target = $region49
    $region48: #{tpu_custom_call.1} parent=1 // pred_region
      %130 = dma.done [#allocation6], 128
    $region49: #{tpu_custom_call.1} parent=1 // pred_fallthru
      _
    // Predicated region
    $region50: #{tpu_custom_call.1} parent=1 // pred_check
      _
    $region51: #{tpu_custom_call.1} parent=1 // pred_check_branch
      %132 = sbr.rel (0) target = $region53
    $region52: #{tpu_custom_call.1} parent=1 // pred_region
      %133 = dma.done [#allocation6], 8192
    $region53: #{tpu_custom_call.1} parent=1 // pred_fallthru
      _
    // Predicated region
    $region54: #{tpu_custom_call.1} parent=1 // pred_check
      _
    $region55: #{tpu_custom_call.1} parent=1 // pred_check_branch
      %135 = sbr.rel (0) target = $region57
    $region56: #{tpu_custom_call.1} parent=1 // pred_region
      %136 = dma.done [#allocation9], 64
    $region57: #{tpu_custom_call.1} parent=1 // pred_fallthru
      _
    // Predicated region
    $region58: #{tpu_custom_call.1} parent=1 // pred_check
      _
    $region59: #{tpu_custom_call.1} parent=1 // pred_check_branch
      %138 = sbr.rel (0) target = $region61
    $region60: #{tpu_custom_call.1} parent=1 // pred_region
      %139 = dma.done [#allocation9], 49152
    $region61: #{tpu_custom_call.1} parent=1 // pred_fallthru
      _
    // Predicated region
    $region62: #{tpu_custom_call.1} parent=1 // pred_check
      _
    $region63: #{tpu_custom_call.1} parent=1 // pred_check_branch
      %141 = sbr.rel (0) target = $region65
    $region64: #{tpu_custom_call.1} parent=1 // pred_region
      %142 = dma.done [#allocation12], 192
    $region65: #{tpu_custom_call.1} parent=1 // pred_fallthru
      _
    // Predicated region
    $region66: #{tpu_custom_call.1} parent=1 // pred_check
      _
    $region67: #{tpu_custom_call.1} parent=1 // pred_check_branch
      %144 = sbr.rel (0) target = $region69
    $region68: #{tpu_custom_call.1} parent=1 // pred_region
      %145 = dma.done [#allocation12], 16384
    $region69: #{tpu_custom_call.1} parent=1 // pred_fallthru
      _
    // Predicated region
    $region70: #{tpu_custom_call.1} parent=1 // pred_check
      _
    $region71: #{tpu_custom_call.1} parent=1 // pred_check_branch
      %147 = sbr.rel (0) target = $region73
    $region72: #{tpu_custom_call.1} parent=1 // pred_region
      %148 = dma.done [#allocation15], 64
    $region73: #{tpu_custom_call.1} parent=1 // pred_fallthru
      _
    // Predicated region
    $region74: #{tpu_custom_call.1} parent=1 // pred_check
      _
    $region75: #{tpu_custom_call.1} parent=1 // pred_check_branch
      %150 = sbr.rel (0) target = $region77
    $region76: #{tpu_custom_call.1} parent=1 // pred_region
      %151 = dma.done [#allocation15], 16
    $region77: #{tpu_custom_call.1} parent=1 // pred_fallthru
      _
    %v152 = vld [vmem:[#allocation2] sm:$0xff]
    %v153 = vld [vmem:[#allocation2 + $0x8] sm:$0xff]
    %v154 = vld [vmem:[#allocation5] sm:$0xff]
    %v157 = vunpack.c.l.b16 %v152
    %v158 = vunpack.c.h.b16 %v152
    %v159 = vunpack.c.l.b16 %v153
    %v160 = vunpack.c.h.b16 %v153
    %v161 = vpack.c.b16 %v159, %v157
    %v162 = vpack.c.b16 %v160, %v158
    %v166 = vunpack.c.l.b16 %v154
    %v167 = vunpack.c.h.b16 %v154
    %v168 = vpack.c.b16 %v166, %v166
    %v169 = vpack.c.b16 %v167, %v167
    %v172 = vld [vmem:[#allocation7] sm:$0xff]
    %v173 = vld [vmem:[#allocation7 + $0x8] sm:$0xff]
    %v174 = vld [vmem:[#allocation7 + $0x10] sm:$0xff]
    %v175 = vld [vmem:[#allocation7 + $0x18] sm:$0xff]
    %v176 = vld [vmem:[#allocation7 + $0x20] sm:$0xff]
    %v177 = vld [vmem:[#allocation7 + $0x28] sm:$0xff]
    %v178 = vld [vmem:[#allocation7 + $0x30] sm:$0xff]
    %v179 = vld [vmem:[#allocation7 + $0x38] sm:$0xff]
    %v180 = vld [vmem:[#allocation7 + $0x40] sm:$0xff]
    %v181 = vld [vmem:[#allocation7 + $0x48] sm:$0xff]
    %v182 = vld [vmem:[#allocation7 + $0x50] sm:$0xff]
    %v183 = vld [vmem:[#allocation7 + $0x58] sm:$0xff]
    %v184 = vld [vmem:[#allocation7 + $0x60] sm:$0xff]
    %v185 = vld [vmem:[#allocation7 + $0x68] sm:$0xff]
    %v186 = vld [vmem:[#allocation7 + $0x70] sm:$0xff]
    %v187 = vld [vmem:[#allocation7 + $0x78] sm:$0xff]
    %v188 = vld [vmem:[#allocation7 + $0x80] sm:$0xff]
    %v189 = vld [vmem:[#allocation7 + $0x88] sm:$0xff]
    %v190 = vld [vmem:[#allocation7 + $0x90] sm:$0xff]
    %v191 = vld [vmem:[#allocation7 + $0x98] sm:$0xff]
    %v192 = vld [vmem:[#allocation7 + $0xa0] sm:$0xff]
    %v193 = vld [vmem:[#allocation7 + $0xa8] sm:$0xff]
    %v194 = vld [vmem:[#allocation7 + $0xb0] sm:$0xff]
    %v195 = vld [vmem:[#allocation7 + $0xb8] sm:$0xff]
    %v196 = vld [vmem:[#allocation7 + $0xc0] sm:$0xff]
    %v197 = vld [vmem:[#allocation7 + $0xc8] sm:$0xff]
    %v198 = vld [vmem:[#allocation7 + $0xd0] sm:$0xff]
    %v199 = vld [vmem:[#allocation7 + $0xd8] sm:$0xff]
    %v200 = vld [vmem:[#allocation7 + $0xe0] sm:$0xff]
    %v201 = vld [vmem:[#allocation7 + $0xe8] sm:$0xff]
    %v202 = vld [vmem:[#allocation7 + $0xf0] sm:$0xff]
    %v203 = vld [vmem:[#allocation7 + $0xf8] sm:$0xff]
    %v204 = vld [vmem:[#allocation7 + $0x100] sm:$0xff]
    %v205 = vld [vmem:[#allocation7 + $0x108] sm:$0xff]
    %v206 = vld [vmem:[#allocation7 + $0x110] sm:$0xff]
    %v207 = vld [vmem:[#allocation7 + $0x118] sm:$0xff]
    %v208 = vld [vmem:[#allocation7 + $0x120] sm:$0xff]
    %v209 = vld [vmem:[#allocation7 + $0x128] sm:$0xff]
    %v210 = vld [vmem:[#allocation7 + $0x130] sm:$0xff]
    %v211 = vld [vmem:[#allocation7 + $0x138] sm:$0xff]
    %v212 = vld [vmem:[#allocation7 + $0x140] sm:$0xff]
    %v213 = vld [vmem:[#allocation7 + $0x148] sm:$0xff]
    %v214 = vld [vmem:[#allocation7 + $0x150] sm:$0xff]
    %v215 = vld [vmem:[#allocation7 + $0x158] sm:$0xff]
    %v216 = vld [vmem:[#allocation7 + $0x160] sm:$0xff]
    %v217 = vld [vmem:[#allocation7 + $0x168] sm:$0xff]
    %v218 = vld [vmem:[#allocation7 + $0x170] sm:$0xff]
    %v219 = vld [vmem:[#allocation7 + $0x178] sm:$0xff]
    %v220 = vld [vmem:[#allocation7 + $0x180] sm:$0xff]
    %v221 = vld [vmem:[#allocation7 + $0x188] sm:$0xff]
    %v222 = vld [vmem:[#allocation7 + $0x190] sm:$0xff]
    %v223 = vld [vmem:[#allocation7 + $0x198] sm:$0xff]
    %v224 = vld [vmem:[#allocation7 + $0x1a0] sm:$0xff]
    %v225 = vld [vmem:[#allocation7 + $0x1a8] sm:$0xff]
    %v226 = vld [vmem:[#allocation7 + $0x1b0] sm:$0xff]
    %v227 = vld [vmem:[#allocation7 + $0x1b8] sm:$0xff]
    %v228 = vld [vmem:[#allocation7 + $0x1c0] sm:$0xff]
    %v229 = vld [vmem:[#allocation7 + $0x1c8] sm:$0xff]
    %v230 = vld [vmem:[#allocation7 + $0x1d0] sm:$0xff]
    %v231 = vld [vmem:[#allocation7 + $0x1d8] sm:$0xff]
    %v232 = vld [vmem:[#allocation7 + $0x1e0] sm:$0xff]
    %v233 = vld [vmem:[#allocation7 + $0x1e8] sm:$0xff]
    %v234 = vld [vmem:[#allocation7 + $0x1f0] sm:$0xff]
    %v235 = vld [vmem:[#allocation7 + $0x1f8] sm:$0xff]
    %v236 = vld [vmem:[#allocation8] sm:$0xf]
    %v238 = vlaneseq
    %v239 = vshrl.u32 %v238, 7
    %v240 = vsub.s32 0, %v239
    %v241 = vrot.slane %v236, %v240
    %v242 = vlaneseq
    %v243 = vshrl.u32 %v242, 7
    %v244 = vsub.s32 1, %v243
    %v245 = vrot.slane %v236, %v244
    %v246 = vlaneseq
    %v247 = vshrl.u32 %v246, 7
    %v248 = vsub.s32 2, %v247
    %v249 = vrot.slane %v236, %v248
    %v250 = vlaneseq
    %v251 = vshrl.u32 %v250, 7
    %v252 = vsub.s32 3, %v251
    %v253 = vrot.slane %v236, %v252
    %v322 = vunpack.c.l.b16 %v172
    %v323 = vunpack.c.h.b16 %v172
    %v324 = vunpack.c.l.b16 %v173
    %v325 = vunpack.c.h.b16 %v173
    %v326 = vunpack.c.l.b16 %v174
    %v327 = vunpack.c.h.b16 %v174
    %v328 = vunpack.c.l.b16 %v175
    %v329 = vunpack.c.h.b16 %v175
    %v330 = vunpack.c.l.b16 %v176
    %v331 = vunpack.c.h.b16 %v176
    %v332 = vunpack.c.l.b16 %v177
    %v333 = vunpack.c.h.b16 %v177
    %v334 = vunpack.c.l.b16 %v178
    %v335 = vunpack.c.h.b16 %v178
    %v336 = vunpack.c.l.b16 %v179
    %v337 = vunpack.c.h.b16 %v179
    %v338 = vunpack.c.l.b16 %v180
    %v339 = vunpack.c.h.b16 %v180
    %v340 = vunpack.c.l.b16 %v181
    %v341 = vunpack.c.h.b16 %v181
    %v342 = vunpack.c.l.b16 %v182
    %v343 = vunpack.c.h.b16 %v182
    %v344 = vunpack.c.l.b16 %v183
    %v345 = vunpack.c.h.b16 %v183
    %v346 = vunpack.c.l.b16 %v184
    %v347 = vunpack.c.h.b16 %v184
    %v348 = vunpack.c.l.b16 %v185
    %v349 = vunpack.c.h.b16 %v185
    %v350 = vunpack.c.l.b16 %v186
    %v351 = vunpack.c.h.b16 %v186
    %v352 = vunpack.c.l.b16 %v187
    %v353 = vunpack.c.h.b16 %v187
    %v354 = vunpack.c.l.b16 %v188
    %v355 = vunpack.c.h.b16 %v188
    %v356 = vunpack.c.l.b16 %v189
    %v357 = vunpack.c.h.b16 %v189
    %v358 = vunpack.c.l.b16 %v190
    %v359 = vunpack.c.h.b16 %v190
    %v360 = vunpack.c.l.b16 %v191
    %v361 = vunpack.c.h.b16 %v191
    %v362 = vunpack.c.l.b16 %v192
    %v363 = vunpack.c.h.b16 %v192
    %v364 = vunpack.c.l.b16 %v193
    %v365 = vunpack.c.h.b16 %v193
    %v366 = vunpack.c.l.b16 %v194
    %v367 = vunpack.c.h.b16 %v194
    %v368 = vunpack.c.l.b16 %v195
    %v369 = vunpack.c.h.b16 %v195
    %v370 = vunpack.c.l.b16 %v196
    %v371 = vunpack.c.h.b16 %v196
    %v372 = vunpack.c.l.b16 %v197
    %v373 = vunpack.c.h.b16 %v197
    %v374 = vunpack.c.l.b16 %v198
    %v375 = vunpack.c.h.b16 %v198
    %v376 = vunpack.c.l.b16 %v199
    %v377 = vunpack.c.h.b16 %v199
    %v378 = vunpack.c.l.b16 %v200
    %v379 = vunpack.c.h.b16 %v200
    %v380 = vunpack.c.l.b16 %v201
    %v381 = vunpack.c.h.b16 %v201
    %v382 = vunpack.c.l.b16 %v202
    %v383 = vunpack.c.h.b16 %v202
    %v384 = vunpack.c.l.b16 %v203
    %v385 = vunpack.c.h.b16 %v203
    %v386 = vunpack.c.l.b16 %v204
    %v387 = vunpack.c.h.b16 %v204
    %v388 = vunpack.c.l.b16 %v205
    %v389 = vunpack.c.h.b16 %v205
    %v390 = vunpack.c.l.b16 %v206
    %v391 = vunpack.c.h.b16 %v206
    %v392 = vunpack.c.l.b16 %v207
    %v393 = vunpack.c.h.b16 %v207
    %v394 = vunpack.c.l.b16 %v208
    %v395 = vunpack.c.h.b16 %v208
    %v396 = vunpack.c.l.b16 %v209
    %v397 = vunpack.c.h.b16 %v209
    %v398 = vunpack.c.l.b16 %v210
    %v399 = vunpack.c.h.b16 %v210
    %v400 = vunpack.c.l.b16 %v211
    %v401 = vunpack.c.h.b16 %v211
    %v402 = vunpack.c.l.b16 %v212
    %v403 = vunpack.c.h.b16 %v212
    %v404 = vunpack.c.l.b16 %v213
    %v405 = vunpack.c.h.b16 %v213
    %v406 = vunpack.c.l.b16 %v214
    %v407 = vunpack.c.h.b16 %v214
    %v408 = vunpack.c.l.b16 %v215
    %v409 = vunpack.c.h.b16 %v215
    %v410 = vunpack.c.l.b16 %v216
    %v411 = vunpack.c.h.b16 %v216
    %v412 = vunpack.c.l.b16 %v217
    %v413 = vunpack.c.h.b16 %v217
    %v414 = vunpack.c.l.b16 %v218
    %v415 = vunpack.c.h.b16 %v218
    %v416 = vunpack.c.l.b16 %v219
    %v417 = vunpack.c.h.b16 %v219
    %v418 = vunpack.c.l.b16 %v220
    %v419 = vunpack.c.h.b16 %v220
    %v420 = vunpack.c.l.b16 %v221
    %v421 = vunpack.c.h.b16 %v221
    %v422 = vunpack.c.l.b16 %v222
    %v423 = vunpack.c.h.b16 %v222
    %v424 = vunpack.c.l.b16 %v223
    %v425 = vunpack.c.h.b16 %v223
    %v426 = vunpack.c.l.b16 %v224
    %v427 = vunpack.c.h.b16 %v224
    %v428 = vunpack.c.l.b16 %v225
    %v429 = vunpack.c.h.b16 %v225
    %v430 = vunpack.c.l.b16 %v226
    %v431 = vunpack.c.h.b16 %v226
    %v432 = vunpack.c.l.b16 %v227
    %v433 = vunpack.c.h.b16 %v227
    %v434 = vunpack.c.l.b16 %v228
    %v435 = vunpack.c.h.b16 %v228
    %v436 = vunpack.c.l.b16 %v229
    %v437 = vunpack.c.h.b16 %v229
    %v438 = vunpack.c.l.b16 %v230
    %v439 = vunpack.c.h.b16 %v230
    %v440 = vunpack.c.l.b16 %v231
    %v441 = vunpack.c.h.b16 %v231
    %v442 = vunpack.c.l.b16 %v232
    %v443 = vunpack.c.h.b16 %v232
    %v444 = vunpack.c.l.b16 %v233
    %v445 = vunpack.c.h.b16 %v233
    %v446 = vunpack.c.l.b16 %v234
    %v447 = vunpack.c.h.b16 %v234
    %v448 = vunpack.c.l.b16 %v235
    %v449 = vunpack.c.h.b16 %v235
    %v450 = vpack.c.b16 %v326, %v322
    %v451 = vpack.c.b16 %v327, %v323
    %v452 = vpack.c.b16 %v328, %v324
    %v453 = vpack.c.b16 %v329, %v325
    %v454 = vpack.c.b16 %v334, %v330
    %v455 = vpack.c.b16 %v335, %v331
    %v456 = vpack.c.b16 %v336, %v332
    %v457 = vpack.c.b16 %v337, %v333
    %v458 = vpack.c.b16 %v342, %v338
    %v459 = vpack.c.b16 %v343, %v339
    %v460 = vpack.c.b16 %v344, %v340
    %v461 = vpack.c.b16 %v345, %v341
    %v462 = vpack.c.b16 %v350, %v346
    %v463 = vpack.c.b16 %v351, %v347
    %v464 = vpack.c.b16 %v352, %v348
    %v465 = vpack.c.b16 %v353, %v349
    %v466 = vpack.c.b16 %v358, %v354
    %v467 = vpack.c.b16 %v359, %v355
    %v468 = vpack.c.b16 %v360, %v356
    %v469 = vpack.c.b16 %v361, %v357
    %v470 = vpack.c.b16 %v366, %v362
    %v471 = vpack.c.b16 %v367, %v363
    %v472 = vpack.c.b16 %v368, %v364
    %v473 = vpack.c.b16 %v369, %v365
    %v474 = vpack.c.b16 %v374, %v370
    %v475 = vpack.c.b16 %v375, %v371
    %v476 = vpack.c.b16 %v376, %v372
    %v477 = vpack.c.b16 %v377, %v373
    %v478 = vpack.c.b16 %v382, %v378
    %v479 = vpack.c.b16 %v383, %v379
    %v480 = vpack.c.b16 %v384, %v380
    %v481 = vpack.c.b16 %v385, %v381
    %v482 = vpack.c.b16 %v390, %v386
    %v483 = vpack.c.b16 %v391, %v387
    %v484 = vpack.c.b16 %v392, %v388
    %v485 = vpack.c.b16 %v393, %v389
    %v486 = vpack.c.b16 %v398, %v394
    %v487 = vpack.c.b16 %v399, %v395
    %v488 = vpack.c.b16 %v400, %v396
    %v489 = vpack.c.b16 %v401, %v397
    %v490 = vpack.c.b16 %v406, %v402
    %v491 = vpack.c.b16 %v407, %v403
    %v492 = vpack.c.b16 %v408, %v404
    %v493 = vpack.c.b16 %v409, %v405
    %v494 = vpack.c.b16 %v414, %v410
    %v495 = vpack.c.b16 %v415, %v411
    %v496 = vpack.c.b16 %v416, %v412
    %v497 = vpack.c.b16 %v417, %v413
    %v498 = vpack.c.b16 %v422, %v418
    %v499 = vpack.c.b16 %v423, %v419
    %v500 = vpack.c.b16 %v424, %v420
    %v501 = vpack.c.b16 %v425, %v421
    %v502 = vpack.c.b16 %v430, %v426
    %v503 = vpack.c.b16 %v431, %v427
    %v504 = vpack.c.b16 %v432, %v428
    %v505 = vpack.c.b16 %v433, %v429
    %v506 = vpack.c.b16 %v438, %v434
    %v507 = vpack.c.b16 %v439, %v435
    %v508 = vpack.c.b16 %v440, %v436
    %v509 = vpack.c.b16 %v441, %v437
    %v510 = vpack.c.b16 %v446, %v442
    %v511 = vpack.c.b16 %v447, %v443
    %v512 = vpack.c.b16 %v448, %v444
    %v513 = vpack.c.b16 %v449, %v445
    %578 = vmatprep.subr.bf16.mxu0 %v451
    %579 = vmatpush1.bf16.msra.mxu0 %v450
    %580 = vmatprep.subr.bf16.mxu0 %v455
    %581 = vmatpush1.bf16.msra.mxu0 %v454
    %582 = vmatprep.subr.bf16.mxu0 %v459
    %583 = vmatpush1.bf16.msra.mxu0 %v458
    %584 = vmatprep.subr.bf16.mxu0 %v463
    %585 = vmatpush1.bf16.msra.mxu0 %v462
    %586 = vmatprep.subr.bf16.mxu0 %v467
    %587 = vmatpush1.bf16.msra.mxu0 %v466
    %588 = vmatprep.subr.bf16.mxu0 %v471
    %589 = vmatpush1.bf16.msra.mxu0 %v470
    %590 = vmatprep.subr.bf16.mxu0 %v475
    %591 = vmatpush1.bf16.msra.mxu0 %v474
    %592 = vmatprep.subr.bf16.mxu0 %v479
    %593 = vmatpush1.bf16.msra.mxu0 %v478
    %594 = vmatprep.subr.bf16.mxu0 %v483
    %595 = vmatpush1.bf16.msra.mxu0 %v482
    %596 = vmatprep.subr.bf16.mxu0 %v487
    %597 = vmatpush1.bf16.msra.mxu0 %v486
    %598 = vmatprep.subr.bf16.mxu0 %v491
    %599 = vmatpush1.bf16.msra.mxu0 %v490
    %600 = vmatprep.subr.bf16.mxu0 %v495
    %601 = vmatpush1.bf16.msra.mxu0 %v494
    %602 = vmatprep.subr.bf16.mxu0 %v499
    %603 = vmatpush1.bf16.msra.mxu0 %v498
    %604 = vmatprep.subr.bf16.mxu0 %v503
    %605 = vmatpush1.bf16.msra.mxu0 %v502
    %606 = vmatprep.subr.bf16.mxu0 %v507
    %607 = vmatpush1.bf16.msra.mxu0 %v506
    %608 = vmatprep.subr.bf16.mxu0 %v511
    %609 = vmatpush1.bf16.msra.mxu0 %v510
    %610 = vmatprep.mubr.bf16.mxu0 %v162
    %611 = vmatmul.mubr.bf16.gmra.mrb[0].mxu0 %v161
    %v612 = vpop.f32.mrb[0].mxu0
    %v613 = vadd.f32 %v241, %v612
    %v614 = vpop.f32.mrb[0].mxu0
    %v615 = vadd.f32 %v245, %v614
    %v616 = vpop.f32.mrb[0].mxu0
    %v617 = vadd.f32 %v241, %v616
    %v618 = vpop.f32.mrb[0].mxu0
    %v619 = vadd.f32 %v245, %v618
    %620 = vmatprep.mubr.bf16.mxu0 %v169
    %621 = vmatmul.mubr.bf16.gmra.mrb[0].mxu0 %v168
    %v622 = vpop.f32.mrb[0].mxu0
    %v623 = vadd.f32 %v241, %v622
    %v624 = vpop.f32.mrb[0].mxu0
    %v625 = vadd.f32 %v245, %v624
    %v626 = vpop.f32.mrb[0].mxu0
    %v627 = vpop.f32.mrb[0].mxu0
    %628 = vdwg.mxu0
    %629 = vmatprep.subr.bf16.mxu0 %v453
    %630 = vmatpush1.bf16.msra.mxu0 %v452
    %631 = vmatprep.subr.bf16.mxu0 %v457
    %632 = vmatpush1.bf16.msra.mxu0 %v456
    %633 = vmatprep.subr.bf16.mxu0 %v461
    %634 = vmatpush1.bf16.msra.mxu0 %v460
    %635 = vmatprep.subr.bf16.mxu0 %v465
    %636 = vmatpush1.bf16.msra.mxu0 %v464
    %637 = vmatprep.subr.bf16.mxu0 %v469
    %638 = vmatpush1.bf16.msra.mxu0 %v468
    %639 = vmatprep.subr.bf16.mxu0 %v473
    %640 = vmatpush1.bf16.msra.mxu0 %v472
    %641 = vmatprep.subr.bf16.mxu0 %v477
    %642 = vmatpush1.bf16.msra.mxu0 %v476
    %643 = vmatprep.subr.bf16.mxu0 %v481
    %644 = vmatpush1.bf16.msra.mxu0 %v480
    %645 = vmatprep.subr.bf16.mxu0 %v485
    %646 = vmatpush1.bf16.msra.mxu0 %v484
    %647 = vmatprep.subr.bf16.mxu0 %v489
    %648 = vmatpush1.bf16.msra.mxu0 %v488
    %649 = vmatprep.subr.bf16.mxu0 %v493
    %650 = vmatpush1.bf16.msra.mxu0 %v492
    %651 = vmatprep.subr.bf16.mxu0 %v497
    %652 = vmatpush1.bf16.msra.mxu0 %v496
    %653 = vmatprep.subr.bf16.mxu0 %v501
    %654 = vmatpush1.bf16.msra.mxu0 %v500
    %655 = vmatprep.subr.bf16.mxu0 %v505
    %656 = vmatpush1.bf16.msra.mxu0 %v504
    %657 = vmatprep.subr.bf16.mxu0 %v509
    %658 = vmatpush1.bf16.msra.mxu0 %v508
    %659 = vmatprep.subr.bf16.mxu0 %v513
    %660 = vmatpush1.bf16.msra.mxu0 %v512
    %661 = vmatprep.mubr.bf16.mxu0 %v162
    %662 = vmatmul.mubr.bf16.gmra.mrb[0].mxu0 %v161
    %v663 = vpop.f32.mrb[0].mxu0
    %v664 = vadd.f32 %v249, %v663
    %v665 = vpop.f32.mrb[0].mxu0
    %v666 = vadd.f32 %v253, %v665
    %v667 = vpop.f32.mrb[0].mxu0
    %v668 = vadd.f32 %v249, %v667
    %v669 = vpop.f32.mrb[0].mxu0
    %v670 = vadd.f32 %v253, %v669
    %671 = vmatprep.mubr.bf16.mxu0 %v169
    %672 = vmatmul.mubr.bf16.gmra.mrb[0].mxu0 %v168
    %v673 = vpop.f32.mrb[0].mxu0
    %v674 = vadd.f32 %v249, %v673
    %v675 = vpop.f32.mrb[0].mxu0
    %v676 = vadd.f32 %v253, %v675
    %v677 = vpop.f32.mrb[0].mxu0
    %v678 = vpop.f32.mrb[0].mxu0
    %679 = vdwg.mxu0
    %v680 = vld [vmem:[#allocation10] sm:$0xff]
    %v681 = vld [vmem:[#allocation10 + $0x8] sm:$0xff]
    %v682 = vld [vmem:[#allocation10 + $0x30] sm:$0xff]
    %v683 = vld [vmem:[#allocation10 + $0x38] sm:$0xff]
    %v684 = vld [vmem:[#allocation10 + $0x60] sm:$0xff]
    %v685 = vld [vmem:[#allocation10 + $0x68] sm:$0xff]
    %v686 = vld [vmem:[#allocation10 + $0x90] sm:$0xff]
    %v687 = vld [vmem:[#allocation10 + $0x98] sm:$0xff]
    %v688 = vld [vmem:[#allocation10 + $0xc0] sm:$0xff]
    %v689 = vld [vmem:[#allocation10 + $0xc8] sm:$0xff]
    %v690 = vld [vmem:[#allocation10 + $0xf0] sm:$0xff]
    %v691 = vld [vmem:[#allocation10 + $0xf8] sm:$0xff]
    %v692 = vld [vmem:[#allocation10 + $0x120] sm:$0xff]
    %v693 = vld [vmem:[#allocation10 + $0x128] sm:$0xff]
    %v694 = vld [vmem:[#allocation10 + $0x150] sm:$0xff]
    %v695 = vld [vmem:[#allocation10 + $0x158] sm:$0xff]
    %v696 = vld [vmem:[#allocation10 + $0x180] sm:$0xff]
    %v697 = vld [vmem:[#allocation10 + $0x188] sm:$0xff]
    %v698 = vld [vmem:[#allocation10 + $0x1b0] sm:$0xff]
    %v699 = vld [vmem:[#allocation10 + $0x1b8] sm:$0xff]
    %v700 = vld [vmem:[#allocation10 + $0x1e0] sm:$0xff]
    %v701 = vld [vmem:[#allocation10 + $0x1e8] sm:$0xff]
    %v702 = vld [vmem:[#allocation10 + $0x210] sm:$0xff]
    %v703 = vld [vmem:[#allocation10 + $0x218] sm:$0xff]
    %v704 = vld [vmem:[#allocation10 + $0x240] sm:$0xff]
    %v705 = vld [vmem:[#allocation10 + $0x248] sm:$0xff]
    %v706 = vld [vmem:[#allocation10 + $0x270] sm:$0xff]
    %v707 = vld [vmem:[#allocation10 + $0x278] sm:$0xff]
    %v708 = vld [vmem:[#allocation10 + $0x2a0] sm:$0xff]
    %v709 = vld [vmem:[#allocation10 + $0x2a8] sm:$0xff]
    %v710 = vld [vmem:[#allocation10 + $0x2d0] sm:$0xff]
    %v711 = vld [vmem:[#allocation10 + $0x2d8] sm:$0xff]
    %v712 = vld [vmem:[#allocation10 + $0x300] sm:$0xff]
    %v713 = vld [vmem:[#allocation10 + $0x308] sm:$0xff]
    %v714 = vld [vmem:[#allocation10 + $0x330] sm:$0xff]
    %v715 = vld [vmem:[#allocation10 + $0x338] sm:$0xff]
    %v716 = vld [vmem:[#allocation10 + $0x360] sm:$0xff]
    %v717 = vld [vmem:[#allocation10 + $0x368] sm:$0xff]
    %v718 = vld [vmem:[#allocation10 + $0x390] sm:$0xff]
    %v719 = vld [vmem:[#allocation10 + $0x398] sm:$0xff]
    %v720 = vld [vmem:[#allocation10 + $0x3c0] sm:$0xff]
    %v721 = vld [vmem:[#allocation10 + $0x3c8] sm:$0xff]
    %v722 = vld [vmem:[#allocation10 + $0x3f0] sm:$0xff]
    %v723 = vld [vmem:[#allocation10 + $0x3f8] sm:$0xff]
    %v724 = vld [vmem:[#allocation10 + $0x420] sm:$0xff]
    %v725 = vld [vmem:[#allocation10 + $0x428] sm:$0xff]
    %v726 = vld [vmem:[#allocation10 + $0x450] sm:$0xff]
    %v727 = vld [vmem:[#allocation10 + $0x458] sm:$0xff]
    %v728 = vld [vmem:[#allocation10 + $0x480] sm:$0xff]
    %v729 = vld [vmem:[#allocation10 + $0x488] sm:$0xff]
    %v730 = vld [vmem:[#allocation10 + $0x4b0] sm:$0xff]
    %v731 = vld [vmem:[#allocation10 + $0x4b8] sm:$0xff]
    %v732 = vld [vmem:[#allocation10 + $0x4e0] sm:$0xff]
    %v733 = vld [vmem:[#allocation10 + $0x4e8] sm:$0xff]
    %v734 = vld [vmem:[#allocation10 + $0x510] sm:$0xff]
    %v735 = vld [vmem:[#allocation10 + $0x518] sm:$0xff]
    %v736 = vld [vmem:[#allocation10 + $0x540] sm:$0xff]
    %v737 = vld [vmem:[#allocation10 + $0x548] sm:$0xff]
    %v738 = vld [vmem:[#allocation10 + $0x570] sm:$0xff]
    %v739 = vld [vmem:[#allocation10 + $0x578] sm:$0xff]
    %v740 = vld [vmem:[#allocation10 + $0x5a0] sm:$0xff]
    %v741 = vld [vmem:[#allocation10 + $0x5a8] sm:$0xff]
    %v742 = vld [vmem:[#allocation10 + $0x5d0] sm:$0xff]
    %v743 = vld [vmem:[#allocation10 + $0x5d8] sm:$0xff]
    %v744 = vld [vmem:[#allocation10 + $0x600] sm:$0xff]
    %v745 = vld [vmem:[#allocation10 + $0x608] sm:$0xff]
    %v746 = vld [vmem:[#allocation10 + $0x630] sm:$0xff]
    %v747 = vld [vmem:[#allocation10 + $0x638] sm:$0xff]
    %v748 = vld [vmem:[#allocation10 + $0x660] sm:$0xff]
    %v749 = vld [vmem:[#allocation10 + $0x668] sm:$0xff]
    %v750 = vld [vmem:[#allocation10 + $0x690] sm:$0xff]
    %v751 = vld [vmem:[#allocation10 + $0x698] sm:$0xff]
    %v752 = vld [vmem:[#allocation10 + $0x6c0] sm:$0xff]
    %v753 = vld [vmem:[#allocation10 + $0x6c8] sm:$0xff]
    %v754 = vld [vmem:[#allocation10 + $0x6f0] sm:$0xff]
    %v755 = vld [vmem:[#allocation10 + $0x6f8] sm:$0xff]
    %v756 = vld [vmem:[#allocation10 + $0x720] sm:$0xff]
    %v757 = vld [vmem:[#allocation10 + $0x728] sm:$0xff]
    %v758 = vld [vmem:[#allocation10 + $0x750] sm:$0xff]
    %v759 = vld [vmem:[#allocation10 + $0x758] sm:$0xff]
    %v760 = vld [vmem:[#allocation10 + $0x780] sm:$0xff]
    %v761 = vld [vmem:[#allocation10 + $0x788] sm:$0xff]
    %v762 = vld [vmem:[#allocation10 + $0x7b0] sm:$0xff]
    %v763 = vld [vmem:[#allocation10 + $0x7b8] sm:$0xff]
    %v764 = vld [vmem:[#allocation10 + $0x7e0] sm:$0xff]
    %v765 = vld [vmem:[#allocation10 + $0x7e8] sm:$0xff]
    %v766 = vld [vmem:[#allocation10 + $0x810] sm:$0xff]
    %v767 = vld [vmem:[#allocation10 + $0x818] sm:$0xff]
    %v768 = vld [vmem:[#allocation10 + $0x840] sm:$0xff]
    %v769 = vld [vmem:[#allocation10 + $0x848] sm:$0xff]
    %v770 = vld [vmem:[#allocation10 + $0x870] sm:$0xff]
    %v771 = vld [vmem:[#allocation10 + $0x878] sm:$0xff]
    %v772 = vld [vmem:[#allocation10 + $0x8a0] sm:$0xff]
    %v773 = vld [vmem:[#allocation10 + $0x8a8] sm:$0xff]
    %v774 = vld [vmem:[#allocation10 + $0x8d0] sm:$0xff]
    %v775 = vld [vmem:[#allocation10 + $0x8d8] sm:$0xff]
    %v776 = vld [vmem:[#allocation10 + $0x900] sm:$0xff]
    %v777 = vld [vmem:[#allocation10 + $0x908] sm:$0xff]
    %v778 = vld [vmem:[#allocation10 + $0x930] sm:$0xff]
    %v779 = vld [vmem:[#allocation10 + $0x938] sm:$0xff]
    %v780 = vld [vmem:[#allocation10 + $0x960] sm:$0xff]
    %v781 = vld [vmem:[#allocation10 + $0x968] sm:$0xff]
    %v782 = vld [vmem:[#allocation10 + $0x990] sm:$0xff]
    %v783 = vld [vmem:[#allocation10 + $0x998] sm:$0xff]
    %v784 = vld [vmem:[#allocation10 + $0x9c0] sm:$0xff]
    %v785 = vld [vmem:[#allocation10 + $0x9c8] sm:$0xff]
    %v786 = vld [vmem:[#allocation10 + $0x9f0] sm:$0xff]
    %v787 = vld [vmem:[#allocation10 + $0x9f8] sm:$0xff]
    %v788 = vld [vmem:[#allocation10 + $0xa20] sm:$0xff]
    %v789 = vld [vmem:[#allocation10 + $0xa28] sm:$0xff]
    %v790 = vld [vmem:[#allocation10 + $0xa50] sm:$0xff]
    %v791 = vld [vmem:[#allocation10 + $0xa58] sm:$0xff]
    %v792 = vld [vmem:[#allocation10 + $0xa80] sm:$0xff]
    %v793 = vld [vmem:[#allocation10 + $0xa88] sm:$0xff]
    %v794 = vld [vmem:[#allocation10 + $0xab0] sm:$0xff]
    %v795 = vld [vmem:[#allocation10 + $0xab8] sm:$0xff]
    %v796 = vld [vmem:[#allocation10 + $0xae0] sm:$0xff]
    %v797 = vld [vmem:[#allocation10 + $0xae8] sm:$0xff]
    %v798 = vld [vmem:[#allocation10 + $0xb10] sm:$0xff]
    %v799 = vld [vmem:[#allocation10 + $0xb18] sm:$0xff]
    %v800 = vld [vmem:[#allocation10 + $0xb40] sm:$0xff]
    %v801 = vld [vmem:[#allocation10 + $0xb48] sm:$0xff]
    %v802 = vld [vmem:[#allocation10 + $0xb70] sm:$0xff]
    %v803 = vld [vmem:[#allocation10 + $0xb78] sm:$0xff]
    %v804 = vld [vmem:[#allocation10 + $0xba0] sm:$0xff]
    %v805 = vld [vmem:[#allocation10 + $0xba8] sm:$0xff]
    %v806 = vld [vmem:[#allocation10 + $0xbd0] sm:$0xff]
    %v807 = vld [vmem:[#allocation10 + $0xbd8] sm:$0xff]
    %v808 = vld [vmem:[#allocation10 + $0x10] sm:$0xff]
    %v809 = vld [vmem:[#allocation10 + $0x18] sm:$0xff]
    %v810 = vld [vmem:[#allocation10 + $0x20] sm:$0xff]
    %v811 = vld [vmem:[#allocation10 + $0x28] sm:$0xff]
    %v812 = vld [vmem:[#allocation10 + $0x40] sm:$0xff]
    %v813 = vld [vmem:[#allocation10 + $0x48] sm:$0xff]
    %v814 = vld [vmem:[#allocation10 + $0x50] sm:$0xff]
    %v815 = vld [vmem:[#allocation10 + $0x58] sm:$0xff]
    %v816 = vld [vmem:[#allocation10 + $0x70] sm:$0xff]
    %v817 = vld [vmem:[#allocation10 + $0x78] sm:$0xff]
    %v818 = vld [vmem:[#allocation10 + $0x80] sm:$0xff]
    %v819 = vld [vmem:[#allocation10 + $0x88] sm:$0xff]
    %v820 = vld [vmem:[#allocation10 + $0xa0] sm:$0xff]
    %v821 = vld [vmem:[#allocation10 + $0xa8] sm:$0xff]
    %v822 = vld [vmem:[#allocation10 + $0xb0] sm:$0xff]
    %v823 = vld [vmem:[#allocation10 + $0xb8] sm:$0xff]
    %v824 = vld [vmem:[#allocation10 + $0xd0] sm:$0xff]
    %v825 = vld [vmem:[#allocation10 + $0xd8] sm:$0xff]
    %v826 = vld [vmem:[#allocation10 + $0xe0] sm:$0xff]
    %v827 = vld [vmem:[#allocation10 + $0xe8] sm:$0xff]
    %v828 = vld [vmem:[#allocation10 + $0x100] sm:$0xff]
    %v829 = vld [vmem:[#allocation10 + $0x108] sm:$0xff]
    %v830 = vld [vmem:[#allocation10 + $0x110] sm:$0xff]
    %v831 = vld [vmem:[#allocation10 + $0x118] sm:$0xff]
    %v832 = vld [vmem:[#allocation10 + $0x130] sm:$0xff]
    %v833 = vld [vmem:[#allocation10 + $0x138] sm:$0xff]
    %v834 = vld [vmem:[#allocation10 + $0x140] sm:$0xff]
    %v835 = vld [vmem:[#allocation10 + $0x148] sm:$0xff]
    %v836 = vld [vmem:[#allocation10 + $0x160] sm:$0xff]
    %v837 = vld [vmem:[#allocation10 + $0x168] sm:$0xff]
    %v838 = vld [vmem:[#allocation10 + $0x170] sm:$0xff]
    %v839 = vld [vmem:[#allocation10 + $0x178] sm:$0xff]
    %v840 = vld [vmem:[#allocation10 + $0x190] sm:$0xff]
    %v841 = vld [vmem:[#allocation10 + $0x198] sm:$0xff]
    %v842 = vld [vmem:[#allocation10 + $0x1a0] sm:$0xff]
    %v843 = vld [vmem:[#allocation10 + $0x1a8] sm:$0xff]
    %v844 = vld [vmem:[#allocation10 + $0x1c0] sm:$0xff]
    %v845 = vld [vmem:[#allocation10 + $0x1c8] sm:$0xff]
    %v846 = vld [vmem:[#allocation10 + $0x1d0] sm:$0xff]
    %v847 = vld [vmem:[#allocation10 + $0x1d8] sm:$0xff]
    %v848 = vld [vmem:[#allocation10 + $0x1f0] sm:$0xff]
    %v849 = vld [vmem:[#allocation10 + $0x1f8] sm:$0xff]
    %v850 = vld [vmem:[#allocation10 + $0x200] sm:$0xff]
    %v851 = vld [vmem:[#allocation10 + $0x208] sm:$0xff]
    %v852 = vld [vmem:[#allocation10 + $0x220] sm:$0xff]
    %v853 = vld [vmem:[#allocation10 + $0x228] sm:$0xff]
    %v854 = vld [vmem:[#allocation10 + $0x230] sm:$0xff]
    %v855 = vld [vmem:[#allocation10 + $0x238] sm:$0xff]
    %v856 = vld [vmem:[#allocation10 + $0x250] sm:$0xff]
    %v857 = vld [vmem:[#allocation10 + $0x258] sm:$0xff]
    %v858 = vld [vmem:[#allocation10 + $0x260] sm:$0xff]
    %v859 = vld [vmem:[#allocation10 + $0x268] sm:$0xff]
    %v860 = vld [vmem:[#allocation10 + $0x280] sm:$0xff]
    %v861 = vld [vmem:[#allocation10 + $0x288] sm:$0xff]
    %v862 = vld [vmem:[#allocation10 + $0x290] sm:$0xff]
    %v863 = vld [vmem:[#allocation10 + $0x298] sm:$0xff]
    %v864 = vld [vmem:[#allocation10 + $0x2b0] sm:$0xff]
    %v865 = vld [vmem:[#allocation10 + $0x2b8] sm:$0xff]
    %v866 = vld [vmem:[#allocation10 + $0x2c0] sm:$0xff]
    %v867 = vld [vmem:[#allocation10 + $0x2c8] sm:$0xff]
    %v868 = vld [vmem:[#allocation10 + $0x2e0] sm:$0xff]
    %v869 = vld [vmem:[#allocation10 + $0x2e8] sm:$0xff]
    %v870 = vld [vmem:[#allocation10 + $0x2f0] sm:$0xff]
    %v871 = vld [vmem:[#allocation10 + $0x2f8] sm:$0xff]
    %v872 = vld [vmem:[#allocation10 + $0x310] sm:$0xff]
    %v873 = vld [vmem:[#allocation10 + $0x318] sm:$0xff]
    %v874 = vld [vmem:[#allocation10 + $0x320] sm:$0xff]
    %v875 = vld [vmem:[#allocation10 + $0x328] sm:$0xff]
    %v876 = vld [vmem:[#allocation10 + $0x340] sm:$0xff]
    %v877 = vld [vmem:[#allocation10 + $0x348] sm:$0xff]
    %v878 = vld [vmem:[#allocation10 + $0x350] sm:$0xff]
    %v879 = vld [vmem:[#allocation10 + $0x358] sm:$0xff]
    %v880 = vld [vmem:[#allocation10 + $0x370] sm:$0xff]
    %v881 = vld [vmem:[#allocation10 + $0x378] sm:$0xff]
    %v882 = vld [vmem:[#allocation10 + $0x380] sm:$0xff]
    %v883 = vld [vmem:[#allocation10 + $0x388] sm:$0xff]
    %v884 = vld [vmem:[#allocation10 + $0x3a0] sm:$0xff]
    %v885 = vld [vmem:[#allocation10 + $0x3a8] sm:$0xff]
    %v886 = vld [vmem:[#allocation10 + $0x3b0] sm:$0xff]
    %v887 = vld [vmem:[#allocation10 + $0x3b8] sm:$0xff]
    %v888 = vld [vmem:[#allocation10 + $0x3d0] sm:$0xff]
    %v889 = vld [vmem:[#allocation10 + $0x3d8] sm:$0xff]
    %v890 = vld [vmem:[#allocation10 + $0x3e0] sm:$0xff]
    %v891 = vld [vmem:[#allocation10 + $0x3e8] sm:$0xff]
    %v892 = vld [vmem:[#allocation10 + $0x400] sm:$0xff]
    %v893 = vld [vmem:[#allocation10 + $0x408] sm:$0xff]
    %v894 = vld [vmem:[#allocation10 + $0x410] sm:$0xff]
    %v895 = vld [vmem:[#allocation10 + $0x418] sm:$0xff]
    %v896 = vld [vmem:[#allocation10 + $0x430] sm:$0xff]
    %v897 = vld [vmem:[#allocation10 + $0x438] sm:$0xff]
    %v898 = vld [vmem:[#allocation10 + $0x440] sm:$0xff]
    %v899 = vld [vmem:[#allocation10 + $0x448] sm:$0xff]
    %v900 = vld [vmem:[#allocation10 + $0x460] sm:$0xff]
    %v901 = vld [vmem:[#allocation10 + $0x468] sm:$0xff]
    %v902 = vld [vmem:[#allocation10 + $0x470] sm:$0xff]
    %v903 = vld [vmem:[#allocation10 + $0x478] sm:$0xff]
    %v904 = vld [vmem:[#allocation10 + $0x490] sm:$0xff]
    %v905 = vld [vmem:[#allocation10 + $0x498] sm:$0xff]
    %v906 = vld [vmem:[#allocation10 + $0x4a0] sm:$0xff]
    %v907 = vld [vmem:[#allocation10 + $0x4a8] sm:$0xff]
    %v908 = vld [vmem:[#allocation10 + $0x4c0] sm:$0xff]
    %v909 = vld [vmem:[#allocation10 + $0x4c8] sm:$0xff]
    %v910 = vld [vmem:[#allocation10 + $0x4d0] sm:$0xff]
    %v911 = vld [vmem:[#allocation10 + $0x4d8] sm:$0xff]
    %v912 = vld [vmem:[#allocation10 + $0x4f0] sm:$0xff]
    %v913 = vld [vmem:[#allocation10 + $0x4f8] sm:$0xff]
    %v914 = vld [vmem:[#allocation10 + $0x500] sm:$0xff]
    %v915 = vld [vmem:[#allocation10 + $0x508] sm:$0xff]
    %v916 = vld [vmem:[#allocation10 + $0x520] sm:$0xff]
    %v917 = vld [vmem:[#allocation10 + $0x528] sm:$0xff]
    %v918 = vld [vmem:[#allocation10 + $0x530] sm:$0xff]
    %v919 = vld [vmem:[#allocation10 + $0x538] sm:$0xff]
    %v920 = vld [vmem:[#allocation10 + $0x550] sm:$0xff]
    %v921 = vld [vmem:[#allocation10 + $0x558] sm:$0xff]
    %v922 = vld [vmem:[#allocation10 + $0x560] sm:$0xff]
    %v923 = vld [vmem:[#allocation10 + $0x568] sm:$0xff]
    %v924 = vld [vmem:[#allocation10 + $0x580] sm:$0xff]
    %v925 = vld [vmem:[#allocation10 + $0x588] sm:$0xff]
    %v926 = vld [vmem:[#allocation10 + $0x590] sm:$0xff]
    %v927 = vld [vmem:[#allocation10 + $0x598] sm:$0xff]
    %v928 = vld [vmem:[#allocation10 + $0x5b0] sm:$0xff]
    %v929 = vld [vmem:[#allocation10 + $0x5b8] sm:$0xff]
    %v930 = vld [vmem:[#allocation10 + $0x5c0] sm:$0xff]
    %v931 = vld [vmem:[#allocation10 + $0x5c8] sm:$0xff]
    %v932 = vld [vmem:[#allocation10 + $0x5e0] sm:$0xff]
    %v933 = vld [vmem:[#allocation10 + $0x5e8] sm:$0xff]
    %v934 = vld [vmem:[#allocation10 + $0x5f0] sm:$0xff]
    %v935 = vld [vmem:[#allocation10 + $0x5f8] sm:$0xff]
    %v936 = vld [vmem:[#allocation10 + $0x610] sm:$0xff]
    %v937 = vld [vmem:[#allocation10 + $0x618] sm:$0xff]
    %v938 = vld [vmem:[#allocation10 + $0x620] sm:$0xff]
    %v939 = vld [vmem:[#allocation10 + $0x628] sm:$0xff]
    %v940 = vld [vmem:[#allocation10 + $0x640] sm:$0xff]
    %v941 = vld [vmem:[#allocation10 + $0x648] sm:$0xff]
    %v942 = vld [vmem:[#allocation10 + $0x650] sm:$0xff]
    %v943 = vld [vmem:[#allocation10 + $0x658] sm:$0xff]
    %v944 = vld [vmem:[#allocation10 + $0x670] sm:$0xff]
    %v945 = vld [vmem:[#allocation10 + $0x678] sm:$0xff]
    %v946 = vld [vmem:[#allocation10 + $0x680] sm:$0xff]
    %v947 = vld [vmem:[#allocation10 + $0x688] sm:$0xff]
    %v948 = vld [vmem:[#allocation10 + $0x6a0] sm:$0xff]
    %v949 = vld [vmem:[#allocation10 + $0x6a8] sm:$0xff]
    %v950 = vld [vmem:[#allocation10 + $0x6b0] sm:$0xff]
    %v951 = vld [vmem:[#allocation10 + $0x6b8] sm:$0xff]
    %v952 = vld [vmem:[#allocation10 + $0x6d0] sm:$0xff]
    %v953 = vld [vmem:[#allocation10 + $0x6d8] sm:$0xff]
    %v954 = vld [vmem:[#allocation10 + $0x6e0] sm:$0xff]
    %v955 = vld [vmem:[#allocation10 + $0x6e8] sm:$0xff]
    %v956 = vld [vmem:[#allocation10 + $0x700] sm:$0xff]
    %v957 = vld [vmem:[#allocation10 + $0x708] sm:$0xff]
    %v958 = vld [vmem:[#allocation10 + $0x710] sm:$0xff]
    %v959 = vld [vmem:[#allocation10 + $0x718] sm:$0xff]
    %v960 = vld [vmem:[#allocation10 + $0x730] sm:$0xff]
    %v961 = vld [vmem:[#allocation10 + $0x738] sm:$0xff]
    %v962 = vld [vmem:[#allocation10 + $0x740] sm:$0xff]
    %v963 = vld [vmem:[#allocation10 + $0x748] sm:$0xff]
    %v964 = vld [vmem:[#allocation10 + $0x760] sm:$0xff]
    %v965 = vld [vmem:[#allocation10 + $0x768] sm:$0xff]
    %v966 = vld [vmem:[#allocation10 + $0x770] sm:$0xff]
    %v967 = vld [vmem:[#allocation10 + $0x778] sm:$0xff]
    %v968 = vld [vmem:[#allocation10 + $0x790] sm:$0xff]
    %v969 = vld [vmem:[#allocation10 + $0x798] sm:$0xff]
    %v970 = vld [vmem:[#allocation10 + $0x7a0] sm:$0xff]
    %v971 = vld [vmem:[#allocation10 + $0x7a8] sm:$0xff]
    %v972 = vld [vmem:[#allocation10 + $0x7c0] sm:$0xff]
    %v973 = vld [vmem:[#allocation10 + $0x7c8] sm:$0xff]
    %v974 = vld [vmem:[#allocation10 + $0x7d0] sm:$0xff]
    %v975 = vld [vmem:[#allocation10 + $0x7d8] sm:$0xff]
    %v976 = vld [vmem:[#allocation10 + $0x7f0] sm:$0xff]
    %v977 = vld [vmem:[#allocation10 + $0x7f8] sm:$0xff]
    %v978 = vld [vmem:[#allocation10 + $0x800] sm:$0xff]
    %v979 = vld [vmem:[#allocation10 + $0x808] sm:$0xff]
    %v980 = vld [vmem:[#allocation10 + $0x820] sm:$0xff]
    %v981 = vld [vmem:[#allocation10 + $0x828] sm:$0xff]
    %v982 = vld [vmem:[#allocation10 + $0x830] sm:$0xff]
    %v983 = vld [vmem:[#allocation10 + $0x838] sm:$0xff]
    %v984 = vld [vmem:[#allocation10 + $0x850] sm:$0xff]
    %v985 = vld [vmem:[#allocation10 + $0x858] sm:$0xff]
    %v986 = vld [vmem:[#allocation10 + $0x860] sm:$0xff]
    %v987 = vld [vmem:[#allocation10 + $0x868] sm:$0xff]
    %v988 = vld [vmem:[#allocation10 + $0x880] sm:$0xff]
    %v989 = vld [vmem:[#allocation10 + $0x888] sm:$0xff]
    %v990 = vld [vmem:[#allocation10 + $0x890] sm:$0xff]
    %v991 = vld [vmem:[#allocation10 + $0x898] sm:$0xff]
    %v992 = vld [vmem:[#allocation10 + $0x8b0] sm:$0xff]
    %v993 = vld [vmem:[#allocation10 + $0x8b8] sm:$0xff]
    %v994 = vld [vmem:[#allocation10 + $0x8c0] sm:$0xff]
    %v995 = vld [vmem:[#allocation10 + $0x8c8] sm:$0xff]
    %v996 = vld [vmem:[#allocation10 + $0x8e0] sm:$0xff]
    %v997 = vld [vmem:[#allocation10 + $0x8e8] sm:$0xff]
    %v998 = vld [vmem:[#allocation10 + $0x8f0] sm:$0xff]
    %v999 = vld [vmem:[#allocation10 + $0x8f8] sm:$0xff]
    %v1000 = vld [vmem:[#allocation10 + $0x910] sm:$0xff]
    %v1001 = vld [vmem:[#allocation10 + $0x918] sm:$0xff]
    %v1002 = vld [vmem:[#allocation10 + $0x920] sm:$0xff]
    %v1003 = vld [vmem:[#allocation10 + $0x928] sm:$0xff]
    %v1004 = vld [vmem:[#allocation10 + $0x940] sm:$0xff]
    %v1005 = vld [vmem:[#allocation10 + $0x948] sm:$0xff]
    %v1006 = vld [vmem:[#allocation10 + $0x950] sm:$0xff]
    %v1007 = vld [vmem:[#allocation10 + $0x958] sm:$0xff]
    %v1008 = vld [vmem:[#allocation10 + $0x970] sm:$0xff]
    %v1009 = vld [vmem:[#allocation10 + $0x978] sm:$0xff]
    %v1010 = vld [vmem:[#allocation10 + $0x980] sm:$0xff]
    %v1011 = vld [vmem:[#allocation10 + $0x988] sm:$0xff]
    %v1012 = vld [vmem:[#allocation10 + $0x9a0] sm:$0xff]
    %v1013 = vld [vmem:[#allocation10 + $0x9a8] sm:$0xff]
    %v1014 = vld [vmem:[#allocation10 + $0x9b0] sm:$0xff]
    %v1015 = vld [vmem:[#allocation10 + $0x9b8] sm:$0xff]
    %v1016 = vld [vmem:[#allocation10 + $0x9d0] sm:$0xff]
    %v1017 = vld [vmem:[#allocation10 + $0x9d8] sm:$0xff]
    %v1018 = vld [vmem:[#allocation10 + $0x9e0] sm:$0xff]
    %v1019 = vld [vmem:[#allocation10 + $0x9e8] sm:$0xff]
    %v1020 = vld [vmem:[#allocation10 + $0xa00] sm:$0xff]
    %v1021 = vld [vmem:[#allocation10 + $0xa08] sm:$0xff]
    %v1022 = vld [vmem:[#allocation10 + $0xa10] sm:$0xff]
    %v1023 = vld [vmem:[#allocation10 + $0xa18] sm:$0xff]
    %v1024 = vld [vmem:[#allocation10 + $0xa30] sm:$0xff]
    %v1025 = vld [vmem:[#allocation10 + $0xa38] sm:$0xff]
    %v1026 = vld [vmem:[#allocation10 + $0xa40] sm:$0xff]
    %v1027 = vld [vmem:[#allocation10 + $0xa48] sm:$0xff]
    %v1028 = vld [vmem:[#allocation10 + $0xa60] sm:$0xff]
    %v1029 = vld [vmem:[#allocation10 + $0xa68] sm:$0xff]
    %v1030 = vld [vmem:[#allocation10 + $0xa70] sm:$0xff]
    %v1031 = vld [vmem:[#allocation10 + $0xa78] sm:$0xff]
    %v1032 = vld [vmem:[#allocation10 + $0xa90] sm:$0xff]
    %v1033 = vld [vmem:[#allocation10 + $0xa98] sm:$0xff]
    %v1034 = vld [vmem:[#allocation10 + $0xaa0] sm:$0xff]
    %v1035 = vld [vmem:[#allocation10 + $0xaa8] sm:$0xff]
    %v1036 = vld [vmem:[#allocation10 + $0xac0] sm:$0xff]
    %v1037 = vld [vmem:[#allocation10 + $0xac8] sm:$0xff]
    %v1038 = vld [vmem:[#allocation10 + $0xad0] sm:$0xff]
    %v1039 = vld [vmem:[#allocation10 + $0xad8] sm:$0xff]
    %v1040 = vld [vmem:[#allocation10 + $0xaf0] sm:$0xff]
    %v1041 = vld [vmem:[#allocation10 + $0xaf8] sm:$0xff]
    %v1042 = vld [vmem:[#allocation10 + $0xb00] sm:$0xff]
    %v1043 = vld [vmem:[#allocation10 + $0xb08] sm:$0xff]
    %v1044 = vld [vmem:[#allocation10 + $0xb20] sm:$0xff]
    %v1045 = vld [vmem:[#allocation10 + $0xb28] sm:$0xff]
    %v1046 = vld [vmem:[#allocation10 + $0xb30] sm:$0xff]
    %v1047 = vld [vmem:[#allocation10 + $0xb38] sm:$0xff]
    %v1048 = vld [vmem:[#allocation10 + $0xb50] sm:$0xff]
    %v1049 = vld [vmem:[#allocation10 + $0xb58] sm:$0xff]
    %v1050 = vld [vmem:[#allocation10 + $0xb60] sm:$0xff]
    %v1051 = vld [vmem:[#allocation10 + $0xb68] sm:$0xff]
    %v1052 = vld [vmem:[#allocation10 + $0xb80] sm:$0xff]
    %v1053 = vld [vmem:[#allocation10 + $0xb88] sm:$0xff]
    %v1054 = vld [vmem:[#allocation10 + $0xb90] sm:$0xff]
    %v1055 = vld [vmem:[#allocation10 + $0xb98] sm:$0xff]
    %v1056 = vld [vmem:[#allocation10 + $0xbb0] sm:$0xff]
    %v1057 = vld [vmem:[#allocation10 + $0xbb8] sm:$0xff]
    %v1058 = vld [vmem:[#allocation10 + $0xbc0] sm:$0xff]
    %v1059 = vld [vmem:[#allocation10 + $0xbc8] sm:$0xff]
    %v1060 = vld [vmem:[#allocation10 + $0xbe0] sm:$0xff]
    %v1061 = vld [vmem:[#allocation10 + $0xbe8] sm:$0xff]
    %v1062 = vld [vmem:[#allocation10 + $0xbf0] sm:$0xff]
    %v1063 = vld [vmem:[#allocation10 + $0xbf8] sm:$0xff]
    %v1064 = vld [vmem:[#allocation11] sm:$0xf]
    %v1065 = vld [vmem:[#allocation11 + $0x4] sm:$0xff]
    %v1066 = vpack.c.bf16 %v623, %v623
    %v1067 = vpack.c.bf16 %v625, %v625
    %v1068 = vpack.c.bf16 %v674, %v674
    %v1069 = vpack.c.bf16 %v676, %v676
    %v1071 = vlaneseq
    %v1072 = vshrl.u32 %v1071, 7
    %v1073 = vsub.s32 0, %v1072
    %v1074 = vrot.slane %v1064, %v1073
    %v1075 = vlaneseq
    %v1076 = vshrl.u32 %v1075, 7
    %v1077 = vsub.s32 1, %v1076
    %v1078 = vrot.slane %v1064, %v1077
    %v1079 = vlaneseq
    %v1080 = vshrl.u32 %v1079, 7
    %v1081 = vsub.s32 2, %v1080
    %v1082 = vrot.slane %v1064, %v1081
    %v1083 = vlaneseq
    %v1084 = vshrl.u32 %v1083, 7
    %v1085 = vsub.s32 3, %v1084
    %v1086 = vrot.slane %v1064, %v1085
    %v1219 = vunpack.c.l.b16 %v680
    %v1220 = vunpack.c.h.b16 %v680
    %v1221 = vunpack.c.l.b16 %v681
    %v1222 = vunpack.c.h.b16 %v681
    %v1223 = vunpack.c.l.b16 %v682
    %v1224 = vunpack.c.h.b16 %v682
    %v1225 = vunpack.c.l.b16 %v683
    %v1226 = vunpack.c.h.b16 %v683
    %v1227 = vunpack.c.l.b16 %v684
    %v1228 = vunpack.c.h.b16 %v684
    %v1229 = vunpack.c.l.b16 %v685
    %v1230 = vunpack.c.h.b16 %v685
    %v1231 = vunpack.c.l.b16 %v686
    %v1232 = vunpack.c.h.b16 %v686
    %v1233 = vunpack.c.l.b16 %v687
    %v1234 = vunpack.c.h.b16 %v687
    %v1235 = vunpack.c.l.b16 %v688
    %v1236 = vunpack.c.h.b16 %v688
    %v1237 = vunpack.c.l.b16 %v689
    %v1238 = vunpack.c.h.b16 %v689
    %v1239 = vunpack.c.l.b16 %v690
    %v1240 = vunpack.c.h.b16 %v690
    %v1241 = vunpack.c.l.b16 %v691
    %v1242 = vunpack.c.h.b16 %v691
    %v1243 = vunpack.c.l.b16 %v692
    %v1244 = vunpack.c.h.b16 %v692
    %v1245 = vunpack.c.l.b16 %v693
    %v1246 = vunpack.c.h.b16 %v693
    %v1247 = vunpack.c.l.b16 %v694
    %v1248 = vunpack.c.h.b16 %v694
    %v1249 = vunpack.c.l.b16 %v695
    %v1250 = vunpack.c.h.b16 %v695
    %v1251 = vunpack.c.l.b16 %v696
    %v1252 = vunpack.c.h.b16 %v696
    %v1253 = vunpack.c.l.b16 %v697
    %v1254 = vunpack.c.h.b16 %v697
    %v1255 = vunpack.c.l.b16 %v698
    %v1256 = vunpack.c.h.b16 %v698
    %v1257 = vunpack.c.l.b16 %v699
    %v1258 = vunpack.c.h.b16 %v699
    %v1259 = vunpack.c.l.b16 %v700
    %v1260 = vunpack.c.h.b16 %v700
    %v1261 = vunpack.c.l.b16 %v701
    %v1262 = vunpack.c.h.b16 %v701
    %v1263 = vunpack.c.l.b16 %v702
    %v1264 = vunpack.c.h.b16 %v702
    %v1265 = vunpack.c.l.b16 %v703
    %v1266 = vunpack.c.h.b16 %v703
    %v1267 = vunpack.c.l.b16 %v704
    %v1268 = vunpack.c.h.b16 %v704
    %v1269 = vunpack.c.l.b16 %v705
    %v1270 = vunpack.c.h.b16 %v705
    %v1271 = vunpack.c.l.b16 %v706
    %v1272 = vunpack.c.h.b16 %v706
    %v1273 = vunpack.c.l.b16 %v707
    %v1274 = vunpack.c.h.b16 %v707
    %v1275 = vunpack.c.l.b16 %v708
    %v1276 = vunpack.c.h.b16 %v708
    %v1277 = vunpack.c.l.b16 %v709
    %v1278 = vunpack.c.h.b16 %v709
    %v1279 = vunpack.c.l.b16 %v710
    %v1280 = vunpack.c.h.b16 %v710
    %v1281 = vunpack.c.l.b16 %v711
    %v1282 = vunpack.c.h.b16 %v711
    %v1283 = vunpack.c.l.b16 %v712
    %v1284 = vunpack.c.h.b16 %v712
    %v1285 = vunpack.c.l.b16 %v713
    %v1286 = vunpack.c.h.b16 %v713
    %v1287 = vunpack.c.l.b16 %v714
    %v1288 = vunpack.c.h.b16 %v714
    %v1289 = vunpack.c.l.b16 %v715
    %v1290 = vunpack.c.h.b16 %v715
    %v1291 = vunpack.c.l.b16 %v716
    %v1292 = vunpack.c.h.b16 %v716
    %v1293 = vunpack.c.l.b16 %v717
    %v1294 = vunpack.c.h.b16 %v717
    %v1295 = vunpack.c.l.b16 %v718
    %v1296 = vunpack.c.h.b16 %v718
    %v1297 = vunpack.c.l.b16 %v719
    %v1298 = vunpack.c.h.b16 %v719
    %v1299 = vunpack.c.l.b16 %v720
    %v1300 = vunpack.c.h.b16 %v720
    %v1301 = vunpack.c.l.b16 %v721
    %v1302 = vunpack.c.h.b16 %v721
    %v1303 = vunpack.c.l.b16 %v722
    %v1304 = vunpack.c.h.b16 %v722
    %v1305 = vunpack.c.l.b16 %v723
    %v1306 = vunpack.c.h.b16 %v723
    %v1307 = vunpack.c.l.b16 %v724
    %v1308 = vunpack.c.h.b16 %v724
    %v1309 = vunpack.c.l.b16 %v725
    %v1310 = vunpack.c.h.b16 %v725
    %v1311 = vunpack.c.l.b16 %v726
    %v1312 = vunpack.c.h.b16 %v726
    %v1313 = vunpack.c.l.b16 %v727
    %v1314 = vunpack.c.h.b16 %v727
    %v1315 = vunpack.c.l.b16 %v728
    %v1316 = vunpack.c.h.b16 %v728
    %v1317 = vunpack.c.l.b16 %v729
    %v1318 = vunpack.c.h.b16 %v729
    %v1319 = vunpack.c.l.b16 %v730
    %v1320 = vunpack.c.h.b16 %v730
    %v1321 = vunpack.c.l.b16 %v731
    %v1322 = vunpack.c.h.b16 %v731
    %v1323 = vunpack.c.l.b16 %v732
    %v1324 = vunpack.c.h.b16 %v732
    %v1325 = vunpack.c.l.b16 %v733
    %v1326 = vunpack.c.h.b16 %v733
    %v1327 = vunpack.c.l.b16 %v734
    %v1328 = vunpack.c.h.b16 %v734
    %v1329 = vunpack.c.l.b16 %v735
    %v1330 = vunpack.c.h.b16 %v735
    %v1331 = vunpack.c.l.b16 %v736
    %v1332 = vunpack.c.h.b16 %v736
    %v1333 = vunpack.c.l.b16 %v737
    %v1334 = vunpack.c.h.b16 %v737
    %v1335 = vunpack.c.l.b16 %v738
    %v1336 = vunpack.c.h.b16 %v738
    %v1337 = vunpack.c.l.b16 %v739
    %v1338 = vunpack.c.h.b16 %v739
    %v1339 = vunpack.c.l.b16 %v740
    %v1340 = vunpack.c.h.b16 %v740
    %v1341 = vunpack.c.l.b16 %v741
    %v1342 = vunpack.c.h.b16 %v741
    %v1343 = vunpack.c.l.b16 %v742
    %v1344 = vunpack.c.h.b16 %v742
    %v1345 = vunpack.c.l.b16 %v743
    %v1346 = vunpack.c.h.b16 %v743
    %v1347 = vunpack.c.l.b16 %v744
    %v1348 = vunpack.c.h.b16 %v744
    %v1349 = vunpack.c.l.b16 %v745
    %v1350 = vunpack.c.h.b16 %v745
    %v1351 = vunpack.c.l.b16 %v746
    %v1352 = vunpack.c.h.b16 %v746
    %v1353 = vunpack.c.l.b16 %v747
    %v1354 = vunpack.c.h.b16 %v747
    %v1355 = vunpack.c.l.b16 %v748
    %v1356 = vunpack.c.h.b16 %v748
    %v1357 = vunpack.c.l.b16 %v749
    %v1358 = vunpack.c.h.b16 %v749
    %v1359 = vunpack.c.l.b16 %v750
    %v1360 = vunpack.c.h.b16 %v750
    %v1361 = vunpack.c.l.b16 %v751
    %v1362 = vunpack.c.h.b16 %v751
    %v1363 = vunpack.c.l.b16 %v752
    %v1364 = vunpack.c.h.b16 %v752
    %v1365 = vunpack.c.l.b16 %v753
    %v1366 = vunpack.c.h.b16 %v753
    %v1367 = vunpack.c.l.b16 %v754
    %v1368 = vunpack.c.h.b16 %v754
    %v1369 = vunpack.c.l.b16 %v755
    %v1370 = vunpack.c.h.b16 %v755
    %v1371 = vunpack.c.l.b16 %v756
    %v1372 = vunpack.c.h.b16 %v756
    %v1373 = vunpack.c.l.b16 %v757
    %v1374 = vunpack.c.h.b16 %v757
    %v1375 = vunpack.c.l.b16 %v758
    %v1376 = vunpack.c.h.b16 %v758
    %v1377 = vunpack.c.l.b16 %v759
    %v1378 = vunpack.c.h.b16 %v759
    %v1379 = vunpack.c.l.b16 %v760
    %v1380 = vunpack.c.h.b16 %v760
    %v1381 = vunpack.c.l.b16 %v761
    %v1382 = vunpack.c.h.b16 %v761
    %v1383 = vunpack.c.l.b16 %v762
    %v1384 = vunpack.c.h.b16 %v762
    %v1385 = vunpack.c.l.b16 %v763
    %v1386 = vunpack.c.h.b16 %v763
    %v1387 = vunpack.c.l.b16 %v764
    %v1388 = vunpack.c.h.b16 %v764
    %v1389 = vunpack.c.l.b16 %v765
    %v1390 = vunpack.c.h.b16 %v765
    %v1391 = vunpack.c.l.b16 %v766
    %v1392 = vunpack.c.h.b16 %v766
    %v1393 = vunpack.c.l.b16 %v767
    %v1394 = vunpack.c.h.b16 %v767
    %v1395 = vunpack.c.l.b16 %v768
    %v1396 = vunpack.c.h.b16 %v768
    %v1397 = vunpack.c.l.b16 %v769
    %v1398 = vunpack.c.h.b16 %v769
    %v1399 = vunpack.c.l.b16 %v770
    %v1400 = vunpack.c.h.b16 %v770
    %v1401 = vunpack.c.l.b16 %v771
    %v1402 = vunpack.c.h.b16 %v771
    %v1403 = vunpack.c.l.b16 %v772
    %v1404 = vunpack.c.h.b16 %v772
    %v1405 = vunpack.c.l.b16 %v773
    %v1406 = vunpack.c.h.b16 %v773
    %v1407 = vunpack.c.l.b16 %v774
    %v1408 = vunpack.c.h.b16 %v774
    %v1409 = vunpack.c.l.b16 %v775
    %v1410 = vunpack.c.h.b16 %v775
    %v1411 = vunpack.c.l.b16 %v776
    %v1412 = vunpack.c.h.b16 %v776
    %v1413 = vunpack.c.l.b16 %v777
    %v1414 = vunpack.c.h.b16 %v777
    %v1415 = vunpack.c.l.b16 %v778
    %v1416 = vunpack.c.h.b16 %v778
    %v1417 = vunpack.c.l.b16 %v779
    %v1418 = vunpack.c.h.b16 %v779
    %v1419 = vunpack.c.l.b16 %v780
    %v1420 = vunpack.c.h.b16 %v780
    %v1421 = vunpack.c.l.b16 %v781
    %v1422 = vunpack.c.h.b16 %v781
    %v1423 = vunpack.c.l.b16 %v782
    %v1424 = vunpack.c.h.b16 %v782
    %v1425 = vunpack.c.l.b16 %v783
    %v1426 = vunpack.c.h.b16 %v783
    %v1427 = vunpack.c.l.b16 %v784
    %v1428 = vunpack.c.h.b16 %v784
    %v1429 = vunpack.c.l.b16 %v785
    %v1430 = vunpack.c.h.b16 %v785
    %v1431 = vunpack.c.l.b16 %v786
    %v1432 = vunpack.c.h.b16 %v786
    %v1433 = vunpack.c.l.b16 %v787
    %v1434 = vunpack.c.h.b16 %v787
    %v1435 = vunpack.c.l.b16 %v788
    %v1436 = vunpack.c.h.b16 %v788
    %v1437 = vunpack.c.l.b16 %v789
    %v1438 = vunpack.c.h.b16 %v789
    %v1439 = vunpack.c.l.b16 %v790
    %v1440 = vunpack.c.h.b16 %v790
    %v1441 = vunpack.c.l.b16 %v791
    %v1442 = vunpack.c.h.b16 %v791
    %v1443 = vunpack.c.l.b16 %v792
    %v1444 = vunpack.c.h.b16 %v792
    %v1445 = vunpack.c.l.b16 %v793
    %v1446 = vunpack.c.h.b16 %v793
    %v1447 = vunpack.c.l.b16 %v794
    %v1448 = vunpack.c.h.b16 %v794
    %v1449 = vunpack.c.l.b16 %v795
    %v1450 = vunpack.c.h.b16 %v795
    %v1451 = vunpack.c.l.b16 %v796
    %v1452 = vunpack.c.h.b16 %v796
    %v1453 = vunpack.c.l.b16 %v797
    %v1454 = vunpack.c.h.b16 %v797
    %v1455 = vunpack.c.l.b16 %v798
    %v1456 = vunpack.c.h.b16 %v798
    %v1457 = vunpack.c.l.b16 %v799
    %v1458 = vunpack.c.h.b16 %v799
    %v1459 = vunpack.c.l.b16 %v800
    %v1460 = vunpack.c.h.b16 %v800
    %v1461 = vunpack.c.l.b16 %v801
    %v1462 = vunpack.c.h.b16 %v801
    %v1463 = vunpack.c.l.b16 %v802
    %v1464 = vunpack.c.h.b16 %v802
    %v1465 = vunpack.c.l.b16 %v803
    %v1466 = vunpack.c.h.b16 %v803
    %v1467 = vunpack.c.l.b16 %v804
    %v1468 = vunpack.c.h.b16 %v804
    %v1469 = vunpack.c.l.b16 %v805
    %v1470 = vunpack.c.h.b16 %v805
    %v1471 = vunpack.c.l.b16 %v806
    %v1472 = vunpack.c.h.b16 %v806
    %v1473 = vunpack.c.l.b16 %v807
    %v1474 = vunpack.c.h.b16 %v807
    %v1475 = vpack.c.b16 %v1223, %v1219
    %v1476 = vpack.c.b16 %v1224, %v1220
    %v1477 = vpack.c.b16 %v1225, %v1221
    %v1478 = vpack.c.b16 %v1226, %v1222
    %v1479 = vpack.c.b16 %v1231, %v1227
    %v1480 = vpack.c.b16 %v1232, %v1228
    %v1481 = vpack.c.b16 %v1233, %v1229
    %v1482 = vpack.c.b16 %v1234, %v1230
    %v1483 = vpack.c.b16 %v1239, %v1235
    %v1484 = vpack.c.b16 %v1240, %v1236
    %v1485 = vpack.c.b16 %v1241, %v1237
    %v1486 = vpack.c.b16 %v1242, %v1238
    %v1487 = vpack.c.b16 %v1247, %v1243
    %v1488 = vpack.c.b16 %v1248, %v1244
    %v1489 = vpack.c.b16 %v1249, %v1245
    %v1490 = vpack.c.b16 %v1250, %v1246
    %v1491 = vpack.c.b16 %v1255, %v1251
    %v1492 = vpack.c.b16 %v1256, %v1252
    %v1493 = vpack.c.b16 %v1257, %v1253
    %v1494 = vpack.c.b16 %v1258, %v1254
    %v1495 = vpack.c.b16 %v1263, %v1259
    %v1496 = vpack.c.b16 %v1264, %v1260
    %v1497 = vpack.c.b16 %v1265, %v1261
    %v1498 = vpack.c.b16 %v1266, %v1262
    %v1499 = vpack.c.b16 %v1271, %v1267
    %v1500 = vpack.c.b16 %v1272, %v1268
    %v1501 = vpack.c.b16 %v1273, %v1269
    %v1502 = vpack.c.b16 %v1274, %v1270
    %v1503 = vpack.c.b16 %v1279, %v1275
    %v1504 = vpack.c.b16 %v1280, %v1276
    %v1505 = vpack.c.b16 %v1281, %v1277
    %v1506 = vpack.c.b16 %v1282, %v1278
    %v1507 = vpack.c.b16 %v1287, %v1283
    %v1508 = vpack.c.b16 %v1288, %v1284
    %v1509 = vpack.c.b16 %v1289, %v1285
    %v1510 = vpack.c.b16 %v1290, %v1286
    %v1511 = vpack.c.b16 %v1295, %v1291
    %v1512 = vpack.c.b16 %v1296, %v1292
    %v1513 = vpack.c.b16 %v1297, %v1293
    %v1514 = vpack.c.b16 %v1298, %v1294
    %v1515 = vpack.c.b16 %v1303, %v1299
    %v1516 = vpack.c.b16 %v1304, %v1300
    %v1517 = vpack.c.b16 %v1305, %v1301
    %v1518 = vpack.c.b16 %v1306, %v1302
    %v1519 = vpack.c.b16 %v1311, %v1307
    %v1520 = vpack.c.b16 %v1312, %v1308
    %v1521 = vpack.c.b16 %v1313, %v1309
    %v1522 = vpack.c.b16 %v1314, %v1310
    %v1523 = vpack.c.b16 %v1319, %v1315
    %v1524 = vpack.c.b16 %v1320, %v1316
    %v1525 = vpack.c.b16 %v1321, %v1317
    %v1526 = vpack.c.b16 %v1322, %v1318
    %v1527 = vpack.c.b16 %v1327, %v1323
    %v1528 = vpack.c.b16 %v1328, %v1324
    %v1529 = vpack.c.b16 %v1329, %v1325
    %v1530 = vpack.c.b16 %v1330, %v1326
    %v1531 = vpack.c.b16 %v1335, %v1331
    %v1532 = vpack.c.b16 %v1336, %v1332
    %v1533 = vpack.c.b16 %v1337, %v1333
    %v1534 = vpack.c.b16 %v1338, %v1334
    %v1535 = vpack.c.b16 %v1343, %v1339
    %v1536 = vpack.c.b16 %v1344, %v1340
    %v1537 = vpack.c.b16 %v1345, %v1341
    %v1538 = vpack.c.b16 %v1346, %v1342
    %v1539 = vpack.c.b16 %v1351, %v1347
    %v1540 = vpack.c.b16 %v1352, %v1348
    %v1541 = vpack.c.b16 %v1353, %v1349
    %v1542 = vpack.c.b16 %v1354, %v1350
    %v1543 = vpack.c.b16 %v1359, %v1355
    %v1544 = vpack.c.b16 %v1360, %v1356
    %v1545 = vpack.c.b16 %v1361, %v1357
    %v1546 = vpack.c.b16 %v1362, %v1358
    %v1547 = vpack.c.b16 %v1367, %v1363
    %v1548 = vpack.c.b16 %v1368, %v1364
    %v1549 = vpack.c.b16 %v1369, %v1365
    %v1550 = vpack.c.b16 %v1370, %v1366
    %v1551 = vpack.c.b16 %v1375, %v1371
    %v1552 = vpack.c.b16 %v1376, %v1372
    %v1553 = vpack.c.b16 %v1377, %v1373
    %v1554 = vpack.c.b16 %v1378, %v1374
    %v1555 = vpack.c.b16 %v1383, %v1379
    %v1556 = vpack.c.b16 %v1384, %v1380
    %v1557 = vpack.c.b16 %v1385, %v1381
    %v1558 = vpack.c.b16 %v1386, %v1382
    %v1559 = vpack.c.b16 %v1391, %v1387
    %v1560 = vpack.c.b16 %v1392, %v1388
    %v1561 = vpack.c.b16 %v1393, %v1389
    %v1562 = vpack.c.b16 %v1394, %v1390
    %v1563 = vpack.c.b16 %v1399, %v1395
    %v1564 = vpack.c.b16 %v1400, %v1396
    %v1565 = vpack.c.b16 %v1401, %v1397
    %v1566 = vpack.c.b16 %v1402, %v1398
    %v1567 = vpack.c.b16 %v1407, %v1403
    %v1568 = vpack.c.b16 %v1408, %v1404
    %v1569 = vpack.c.b16 %v1409, %v1405
    %v1570 = vpack.c.b16 %v1410, %v1406
    %v1571 = vpack.c.b16 %v1415, %v1411
    %v1572 = vpack.c.b16 %v1416, %v1412
    %v1573 = vpack.c.b16 %v1417, %v1413
    %v1574 = vpack.c.b16 %v1418, %v1414
    %v1575 = vpack.c.b16 %v1423, %v1419
    %v1576 = vpack.c.b16 %v1424, %v1420
    %v1577 = vpack.c.b16 %v1425, %v1421
    %v1578 = vpack.c.b16 %v1426, %v1422
    %v1579 = vpack.c.b16 %v1431, %v1427
    %v1580 = vpack.c.b16 %v1432, %v1428
    %v1581 = vpack.c.b16 %v1433, %v1429
    %v1582 = vpack.c.b16 %v1434, %v1430
    %v1583 = vpack.c.b16 %v1439, %v1435
    %v1584 = vpack.c.b16 %v1440, %v1436
    %v1585 = vpack.c.b16 %v1441, %v1437
    %v1586 = vpack.c.b16 %v1442, %v1438
    %v1587 = vpack.c.b16 %v1447, %v1443
    %v1588 = vpack.c.b16 %v1448, %v1444
    %v1589 = vpack.c.b16 %v1449, %v1445
    %v1590 = vpack.c.b16 %v1450, %v1446
    %v1591 = vpack.c.b16 %v1455, %v1451
    %v1592 = vpack.c.b16 %v1456, %v1452
    %v1593 = vpack.c.b16 %v1457, %v1453
    %v1594 = vpack.c.b16 %v1458, %v1454
    %v1595 = vpack.c.b16 %v1463, %v1459
    %v1596 = vpack.c.b16 %v1464, %v1460
    %v1597 = vpack.c.b16 %v1465, %v1461
    %v1598 = vpack.c.b16 %v1466, %v1462
    %v1599 = vpack.c.b16 %v1471, %v1467
    %v1600 = vpack.c.b16 %v1472, %v1468
    %v1601 = vpack.c.b16 %v1473, %v1469
    %v1602 = vpack.c.b16 %v1474, %v1470
    %1731 = vmatprep.subr.bf16.mxu0 %v1476
    %1732 = vmatpush1.bf16.msra.mxu0 %v1475
    %1733 = vmatprep.subr.bf16.mxu0 %v1480
    %1734 = vmatpush1.bf16.msra.mxu0 %v1479
    %1735 = vmatprep.subr.bf16.mxu0 %v1484
    %1736 = vmatpush1.bf16.msra.mxu0 %v1483
    %1737 = vmatprep.subr.bf16.mxu0 %v1488
    %1738 = vmatpush1.bf16.msra.mxu0 %v1487
    %1739 = vmatprep.subr.bf16.mxu0 %v1492
    %1740 = vmatpush1.bf16.msra.mxu0 %v1491
    %1741 = vmatprep.subr.bf16.mxu0 %v1496
    %1742 = vmatpush1.bf16.msra.mxu0 %v1495
    %1743 = vmatprep.subr.bf16.mxu0 %v1500
    %1744 = vmatpush1.bf16.msra.mxu0 %v1499
    %1745 = vmatprep.subr.bf16.mxu0 %v1504
    %1746 = vmatpush1.bf16.msra.mxu0 %v1503
    %1747 = vmatprep.subr.bf16.mxu0 %v1508
    %1748 = vmatpush1.bf16.msra.mxu0 %v1507
    %1749 = vmatprep.subr.bf16.mxu0 %v1512
    %1750 = vmatpush1.bf16.msra.mxu0 %v1511
    %1751 = vmatprep.subr.bf16.mxu0 %v1516
    %1752 = vmatpush1.bf16.msra.mxu0 %v1515
    %1753 = vmatprep.subr.bf16.mxu0 %v1520
    %1754 = vmatpush1.bf16.msra.mxu0 %v1519
    %1755 = vmatprep.subr.bf16.mxu0 %v1524
    %1756 = vmatpush1.bf16.msra.mxu0 %v1523
    %1757 = vmatprep.subr.bf16.mxu0 %v1528
    %1758 = vmatpush1.bf16.msra.mxu0 %v1527
    %1759 = vmatprep.subr.bf16.mxu0 %v1532
    %1760 = vmatpush1.bf16.msra.mxu0 %v1531
    %1761 = vmatprep.subr.bf16.mxu0 %v1536
    %1762 = vmatpush1.bf16.msra.mxu0 %v1535
    %1763 = vmatprep.mubr.bf16.mxu0 %v1067
    %1764 = vmatmul.mubr.bf16.gmra.mrb[0].mxu0 %v1066
    %v1765 = vpop.f32.mrb[0].mxu0
    %v1766 = vadd.f32 %v1074, %v1765
    %v1767 = vpop.f32.mrb[0].mxu0
    %v1768 = vadd.f32 %v1078, %v1767
    %v1769 = vpop.f32.mrb[0].mxu0
    %v1770 = vpop.f32.mrb[0].mxu0
    %1771 = vdwg.mxu0
    %1772 = vmatprep.subr.bf16.mxu0 %v1540
    %1773 = vmatpush1.bf16.msra.mxu0 %v1539
    %1774 = vmatprep.subr.bf16.mxu0 %v1544
    %1775 = vmatpush1.bf16.msra.mxu0 %v1543
    %1776 = vmatprep.subr.bf16.mxu0 %v1548
    %1777 = vmatpush1.bf16.msra.mxu0 %v1547
    %1778 = vmatprep.subr.bf16.mxu0 %v1552
    %1779 = vmatpush1.bf16.msra.mxu0 %v1551
    %1780 = vmatprep.subr.bf16.mxu0 %v1556
    %1781 = vmatpush1.bf16.msra.mxu0 %v1555
    %1782 = vmatprep.subr.bf16.mxu0 %v1560
    %1783 = vmatpush1.bf16.msra.mxu0 %v1559
    %1784 = vmatprep.subr.bf16.mxu0 %v1564
    %1785 = vmatpush1.bf16.msra.mxu0 %v1563
    %1786 = vmatprep.subr.bf16.mxu0 %v1568
    %1787 = vmatpush1.bf16.msra.mxu0 %v1567
    %1788 = vmatprep.subr.bf16.mxu0 %v1572
    %1789 = vmatpush1.bf16.msra.mxu0 %v1571
    %1790 = vmatprep.subr.bf16.mxu0 %v1576
    %1791 = vmatpush1.bf16.msra.mxu0 %v1575
    %1792 = vmatprep.subr.bf16.mxu0 %v1580
    %1793 = vmatpush1.bf16.msra.mxu0 %v1579
    %1794 = vmatprep.subr.bf16.mxu0 %v1584
    %1795 = vmatpush1.bf16.msra.mxu0 %v1583
    %1796 = vmatprep.subr.bf16.mxu0 %v1588
    %1797 = vmatpush1.bf16.msra.mxu0 %v1587
    %1798 = vmatprep.subr.bf16.mxu0 %v1592
    %1799 = vmatpush1.bf16.msra.mxu0 %v1591
    %1800 = vmatprep.subr.bf16.mxu0 %v1596
    %1801 = vmatpush1.bf16.msra.mxu0 %v1595
    %1802 = vmatprep.subr.bf16.mxu0 %v1600
    %1803 = vmatpush1.bf16.msra.mxu0 %v1599
    %1804 = vmatprep.mubr.bf16.mxu0 %v1069
    %1805 = vmatmul.mubr.bf16.gmra.mrb[0].mxu0 %v1068
    %v1806 = vpop.f32.mrb[0].mxu0
    %v1807 = vadd.f32 %v1766, %v1806
    %v1808 = vpop.f32.mrb[0].mxu0
    %v1809 = vadd.f32 %v1768, %v1808
    %v1810 = vpop.f32.mrb[0].mxu0
    %v1811 = vpop.f32.mrb[0].mxu0
    %1812 = vdwg.mxu0
    %1813 = vmatprep.subr.bf16.mxu0 %v1478
    %1814 = vmatpush1.bf16.msra.mxu0 %v1477
    %1815 = vmatprep.subr.bf16.mxu0 %v1482
    %1816 = vmatpush1.bf16.msra.mxu0 %v1481
    %1817 = vmatprep.subr.bf16.mxu0 %v1486
    %1818 = vmatpush1.bf16.msra.mxu0 %v1485
    %1819 = vmatprep.subr.bf16.mxu0 %v1490
    %1820 = vmatpush1.bf16.msra.mxu0 %v1489
    %1821 = vmatprep.subr.bf16.mxu0 %v1494
    %1822 = vmatpush1.bf16.msra.mxu0 %v1493
    %1823 = vmatprep.subr.bf16.mxu0 %v1498
    %1824 = vmatpush1.bf16.msra.mxu0 %v1497
    %1825 = vmatprep.subr.bf16.mxu0 %v1502
    %1826 = vmatpush1.bf16.msra.mxu0 %v1501
    %1827 = vmatprep.subr.bf16.mxu0 %v1506
    %1828 = vmatpush1.bf16.msra.mxu0 %v1505
    %1829 = vmatprep.subr.bf16.mxu0 %v1510
    %1830 = vmatpush1.bf16.msra.mxu0 %v1509
    %1831 = vmatprep.subr.bf16.mxu0 %v1514
    %1832 = vmatpush1.bf16.msra.mxu0 %v1513
    %1833 = vmatprep.subr.bf16.mxu0 %v1518
    %1834 = vmatpush1.bf16.msra.mxu0 %v1517
    %1835 = vmatprep.subr.bf16.mxu0 %v1522
    %1836 = vmatpush1.bf16.msra.mxu0 %v1521
    %1837 = vmatprep.subr.bf16.mxu0 %v1526
    %1838 = vmatpush1.bf16.msra.mxu0 %v1525
    %1839 = vmatprep.subr.bf16.mxu0 %v1530
    %1840 = vmatpush1.bf16.msra.mxu0 %v1529
    %1841 = vmatprep.subr.bf16.mxu0 %v1534
    %1842 = vmatpush1.bf16.msra.mxu0 %v1533
    %1843 = vmatprep.subr.bf16.mxu0 %v1538
    %1844 = vmatpush1.bf16.msra.mxu0 %v1537
    %1845 = vmatprep.mubr.bf16.mxu0 %v1067
    %1846 = vmatmul.mubr.bf16.gmra.mrb[0].mxu0 %v1066
    %v1847 = vpop.f32.mrb[0].mxu0
    %v1848 = vadd.f32 %v1082, %v1847
    %v1849 = vpop.f32.mrb[0].mxu0
    %v1850 = vadd.f32 %v1086, %v1849
    %v1851 = vpop.f32.mrb[0].mxu0
    %v1852 = vpop.f32.mrb[0].mxu0
    %1853 = vdwg.mxu0
    %1854 = vmatprep.subr.bf16.mxu0 %v1542
    %1855 = vmatpush1.bf16.msra.mxu0 %v1541
    %1856 = vmatprep.subr.bf16.mxu0 %v1546
    %1857 = vmatpush1.bf16.msra.mxu0 %v1545
    %1858 = vmatprep.subr.bf16.mxu0 %v1550
    %1859 = vmatpush1.bf16.msra.mxu0 %v1549
    %1860 = vmatprep.subr.bf16.mxu0 %v1554
    %1861 = vmatpush1.bf16.msra.mxu0 %v1553
    %1862 = vmatprep.subr.bf16.mxu0 %v1558
    %1863 = vmatpush1.bf16.msra.mxu0 %v1557
    %1864 = vmatprep.subr.bf16.mxu0 %v1562
    %1865 = vmatpush1.bf16.msra.mxu0 %v1561
    %1866 = vmatprep.subr.bf16.mxu0 %v1566
    %1867 = vmatpush1.bf16.msra.mxu0 %v1565
    %1868 = vmatprep.subr.bf16.mxu0 %v1570
    %1869 = vmatpush1.bf16.msra.mxu0 %v1569
    %1870 = vmatprep.subr.bf16.mxu0 %v1574
    %1871 = vmatpush1.bf16.msra.mxu0 %v1573
    %1872 = vmatprep.subr.bf16.mxu0 %v1578
    %1873 = vmatpush1.bf16.msra.mxu0 %v1577
    %1874 = vmatprep.subr.bf16.mxu0 %v1582
    %1875 = vmatpush1.bf16.msra.mxu0 %v1581
    %1876 = vmatprep.subr.bf16.mxu0 %v1586
    %1877 = vmatpush1.bf16.msra.mxu0 %v1585
    %1878 = vmatprep.subr.bf16.mxu0 %v1590
    %1879 = vmatpush1.bf16.msra.mxu0 %v1589
    %1880 = vmatprep.subr.bf16.mxu0 %v1594
    %1881 = vmatpush1.bf16.msra.mxu0 %v1593
    %1882 = vmatprep.subr.bf16.mxu0 %v1598
    %1883 = vmatpush1.bf16.msra.mxu0 %v1597
    %1884 = vmatprep.subr.bf16.mxu0 %v1602
    %1885 = vmatpush1.bf16.msra.mxu0 %v1601
    %1886 = vmatprep.mubr.bf16.mxu0 %v1069
    %1887 = vmatmul.mubr.bf16.gmra.mrb[0].mxu0 %v1068
    %v1888 = vpop.f32.mrb[0].mxu0
    %v1889 = vadd.f32 %v1848, %v1888
    %v1890 = vpop.f32.mrb[0].mxu0
    %v1891 = vadd.f32 %v1850, %v1890
    %v1892 = vpop.f32.mrb[0].mxu0
    %v1893 = vpop.f32.mrb[0].mxu0
    %1894 = vdwg.mxu0
    %v1895 = vpack.c.bf16 %v617, %v613
    %v1896 = vpack.c.bf16 %v619, %v615
    %v1897 = vpack.c.bf16 %v668, %v664
    %v1898 = vpack.c.bf16 %v670, %v666
    %v1900 = vlaneseq
    %v1901 = vshrl.u32 %v1900, 7
    %v1902 = vsub.s32 0, %v1901
    %v1903 = vrot.slane %v1065, %v1902
    %v1904 = vlaneseq
    %v1905 = vshrl.u32 %v1904, 7
    %v1906 = vsub.s32 1, %v1905
    %v1907 = vrot.slane %v1065, %v1906
    %v1908 = vlaneseq
    %v1909 = vshrl.u32 %v1908, 7
    %v1910 = vsub.s32 2, %v1909
    %v1911 = vrot.slane %v1065, %v1910
    %v1912 = vlaneseq
    %v1913 = vshrl.u32 %v1912, 7
    %v1914 = vsub.s32 3, %v1913
    %v1915 = vrot.slane %v1065, %v1914
    %v1916 = vlaneseq
    %v1917 = vshrl.u32 %v1916, 7
    %v1918 = vsub.s32 4, %v1917
    %v1919 = vrot.slane %v1065, %v1918
    %v1920 = vlaneseq
    %v1921 = vshrl.u32 %v1920, 7
    %v1922 = vsub.s32 5, %v1921
    %v1923 = vrot.slane %v1065, %v1922
    %v1924 = vlaneseq
    %v1925 = vshrl.u32 %v1924, 7
    %v1926 = vsub.s32 6, %v1925
    %v1927 = vrot.slane %v1065, %v1926
    %v1928 = vlaneseq
    %v1929 = vshrl.u32 %v1928, 7
    %v1930 = vsub.s32 7, %v1929
    %v1931 = vrot.slane %v1065, %v1930
    %v2196 = vunpack.c.l.b16 %v808
    %v2197 = vunpack.c.h.b16 %v808
    %v2198 = vunpack.c.l.b16 %v809
    %v2199 = vunpack.c.h.b16 %v809
    %v2200 = vunpack.c.l.b16 %v810
    %v2201 = vunpack.c.h.b16 %v810
    %v2202 = vunpack.c.l.b16 %v811
    %v2203 = vunpack.c.h.b16 %v811
    %v2204 = vunpack.c.l.b16 %v812
    %v2205 = vunpack.c.h.b16 %v812
    %v2206 = vunpack.c.l.b16 %v813
    %v2207 = vunpack.c.h.b16 %v813
    %v2208 = vunpack.c.l.b16 %v814
    %v2209 = vunpack.c.h.b16 %v814
    %v2210 = vunpack.c.l.b16 %v815
    %v2211 = vunpack.c.h.b16 %v815
    %v2212 = vunpack.c.l.b16 %v816
    %v2213 = vunpack.c.h.b16 %v816
    %v2214 = vunpack.c.l.b16 %v817
    %v2215 = vunpack.c.h.b16 %v817
    %v2216 = vunpack.c.l.b16 %v818
    %v2217 = vunpack.c.h.b16 %v818
    %v2218 = vunpack.c.l.b16 %v819
    %v2219 = vunpack.c.h.b16 %v819
    %v2220 = vunpack.c.l.b16 %v820
    %v2221 = vunpack.c.h.b16 %v820
    %v2222 = vunpack.c.l.b16 %v821
    %v2223 = vunpack.c.h.b16 %v821
    %v2224 = vunpack.c.l.b16 %v822
    %v2225 = vunpack.c.h.b16 %v822
    %v2226 = vunpack.c.l.b16 %v823
    %v2227 = vunpack.c.h.b16 %v823
    %v2228 = vunpack.c.l.b16 %v824
    %v2229 = vunpack.c.h.b16 %v824
    %v2230 = vunpack.c.l.b16 %v825
    %v2231 = vunpack.c.h.b16 %v825
    %v2232 = vunpack.c.l.b16 %v826
    %v2233 = vunpack.c.h.b16 %v826
    %v2234 = vunpack.c.l.b16 %v827
    %v2235 = vunpack.c.h.b16 %v827
    %v2236 = vunpack.c.l.b16 %v828
    %v2237 = vunpack.c.h.b16 %v828
    %v2238 = vunpack.c.l.b16 %v829
    %v2239 = vunpack.c.h.b16 %v829
    %v2240 = vunpack.c.l.b16 %v830
    %v2241 = vunpack.c.h.b16 %v830
    %v2242 = vunpack.c.l.b16 %v831
    %v2243 = vunpack.c.h.b16 %v831
    %v2244 = vunpack.c.l.b16 %v832
    %v2245 = vunpack.c.h.b16 %v832
    %v2246 = vunpack.c.l.b16 %v833
    %v2247 = vunpack.c.h.b16 %v833
    %v2248 = vunpack.c.l.b16 %v834
    %v2249 = vunpack.c.h.b16 %v834
    %v2250 = vunpack.c.l.b16 %v835
    %v2251 = vunpack.c.h.b16 %v835
    %v2252 = vunpack.c.l.b16 %v836
    %v2253 = vunpack.c.h.b16 %v836
    %v2254 = vunpack.c.l.b16 %v837
    %v2255 = vunpack.c.h.b16 %v837
    %v2256 = vunpack.c.l.b16 %v838
    %v2257 = vunpack.c.h.b16 %v838
    %v2258 = vunpack.c.l.b16 %v839
    %v2259 = vunpack.c.h.b16 %v839
    %v2260 = vunpack.c.l.b16 %v840
    %v2261 = vunpack.c.h.b16 %v840
    %v2262 = vunpack.c.l.b16 %v841
    %v2263 = vunpack.c.h.b16 %v841
    %v2264 = vunpack.c.l.b16 %v842
    %v2265 = vunpack.c.h.b16 %v842
    %v2266 = vunpack.c.l.b16 %v843
    %v2267 = vunpack.c.h.b16 %v843
    %v2268 = vunpack.c.l.b16 %v844
    %v2269 = vunpack.c.h.b16 %v844
    %v2270 = vunpack.c.l.b16 %v845
    %v2271 = vunpack.c.h.b16 %v845
    %v2272 = vunpack.c.l.b16 %v846
    %v2273 = vunpack.c.h.b16 %v846
    %v2274 = vunpack.c.l.b16 %v847
    %v2275 = vunpack.c.h.b16 %v847
    %v2276 = vunpack.c.l.b16 %v848
    %v2277 = vunpack.c.h.b16 %v848
    %v2278 = vunpack.c.l.b16 %v849
    %v2279 = vunpack.c.h.b16 %v849
    %v2280 = vunpack.c.l.b16 %v850
    %v2281 = vunpack.c.h.b16 %v850
    %v2282 = vunpack.c.l.b16 %v851
    %v2283 = vunpack.c.h.b16 %v851
    %v2284 = vunpack.c.l.b16 %v852
    %v2285 = vunpack.c.h.b16 %v852
    %v2286 = vunpack.c.l.b16 %v853
    %v2287 = vunpack.c.h.b16 %v853
    %v2288 = vunpack.c.l.b16 %v854
    %v2289 = vunpack.c.h.b16 %v854
    %v2290 = vunpack.c.l.b16 %v855
    %v2291 = vunpack.c.h.b16 %v855
    %v2292 = vunpack.c.l.b16 %v856
    %v2293 = vunpack.c.h.b16 %v856
    %v2294 = vunpack.c.l.b16 %v857
    %v2295 = vunpack.c.h.b16 %v857
    %v2296 = vunpack.c.l.b16 %v858
    %v2297 = vunpack.c.h.b16 %v858
    %v2298 = vunpack.c.l.b16 %v859
    %v2299 = vunpack.c.h.b16 %v859
    %v2300 = vunpack.c.l.b16 %v860
    %v2301 = vunpack.c.h.b16 %v860
    %v2302 = vunpack.c.l.b16 %v861
    %v2303 = vunpack.c.h.b16 %v861
    %v2304 = vunpack.c.l.b16 %v862
    %v2305 = vunpack.c.h.b16 %v862
    %v2306 = vunpack.c.l.b16 %v863
    %v2307 = vunpack.c.h.b16 %v863
    %v2308 = vunpack.c.l.b16 %v864
    %v2309 = vunpack.c.h.b16 %v864
    %v2310 = vunpack.c.l.b16 %v865
    %v2311 = vunpack.c.h.b16 %v865
    %v2312 = vunpack.c.l.b16 %v866
    %v2313 = vunpack.c.h.b16 %v866
    %v2314 = vunpack.c.l.b16 %v867
    %v2315 = vunpack.c.h.b16 %v867
    %v2316 = vunpack.c.l.b16 %v868
    %v2317 = vunpack.c.h.b16 %v868
    %v2318 = vunpack.c.l.b16 %v869
    %v2319 = vunpack.c.h.b16 %v869
    %v2320 = vunpack.c.l.b16 %v870
    %v2321 = vunpack.c.h.b16 %v870
    %v2322 = vunpack.c.l.b16 %v871
    %v2323 = vunpack.c.h.b16 %v871
    %v2324 = vunpack.c.l.b16 %v872
    %v2325 = vunpack.c.h.b16 %v872
    %v2326 = vunpack.c.l.b16 %v873
    %v2327 = vunpack.c.h.b16 %v873
    %v2328 = vunpack.c.l.b16 %v874
    %v2329 = vunpack.c.h.b16 %v874
    %v2330 = vunpack.c.l.b16 %v875
    %v2331 = vunpack.c.h.b16 %v875
    %v2332 = vunpack.c.l.b16 %v876
    %v2333 = vunpack.c.h.b16 %v876
    %v2334 = vunpack.c.l.b16 %v877
    %v2335 = vunpack.c.h.b16 %v877
    %v2336 = vunpack.c.l.b16 %v878
    %v2337 = vunpack.c.h.b16 %v878
    %v2338 = vunpack.c.l.b16 %v879
    %v2339 = vunpack.c.h.b16 %v879
    %v2340 = vunpack.c.l.b16 %v880
    %v2341 = vunpack.c.h.b16 %v880
    %v2342 = vunpack.c.l.b16 %v881
    %v2343 = vunpack.c.h.b16 %v881
    %v2344 = vunpack.c.l.b16 %v882
    %v2345 = vunpack.c.h.b16 %v882
    %v2346 = vunpack.c.l.b16 %v883
    %v2347 = vunpack.c.h.b16 %v883
    %v2348 = vunpack.c.l.b16 %v884
    %v2349 = vunpack.c.h.b16 %v884
    %v2350 = vunpack.c.l.b16 %v885
    %v2351 = vunpack.c.h.b16 %v885
    %v2352 = vunpack.c.l.b16 %v886
    %v2353 = vunpack.c.h.b16 %v886
    %v2354 = vunpack.c.l.b16 %v887
    %v2355 = vunpack.c.h.b16 %v887
    %v2356 = vunpack.c.l.b16 %v888
    %v2357 = vunpack.c.h.b16 %v888
    %v2358 = vunpack.c.l.b16 %v889
    %v2359 = vunpack.c.h.b16 %v889
    %v2360 = vunpack.c.l.b16 %v890
    %v2361 = vunpack.c.h.b16 %v890
    %v2362 = vunpack.c.l.b16 %v891
    %v2363 = vunpack.c.h.b16 %v891
    %v2364 = vunpack.c.l.b16 %v892
    %v2365 = vunpack.c.h.b16 %v892
    %v2366 = vunpack.c.l.b16 %v893
    %v2367 = vunpack.c.h.b16 %v893
    %v2368 = vunpack.c.l.b16 %v894
    %v2369 = vunpack.c.h.b16 %v894
    %v2370 = vunpack.c.l.b16 %v895
    %v2371 = vunpack.c.h.b16 %v895
    %v2372 = vunpack.c.l.b16 %v896
    %v2373 = vunpack.c.h.b16 %v896
    %v2374 = vunpack.c.l.b16 %v897
    %v2375 = vunpack.c.h.b16 %v897
    %v2376 = vunpack.c.l.b16 %v898
    %v2377 = vunpack.c.h.b16 %v898
    %v2378 = vunpack.c.l.b16 %v899
    %v2379 = vunpack.c.h.b16 %v899
    %v2380 = vunpack.c.l.b16 %v900
    %v2381 = vunpack.c.h.b16 %v900
    %v2382 = vunpack.c.l.b16 %v901
    %v2383 = vunpack.c.h.b16 %v901
    %v2384 = vunpack.c.l.b16 %v902
    %v2385 = vunpack.c.h.b16 %v902
    %v2386 = vunpack.c.l.b16 %v903
    %v2387 = vunpack.c.h.b16 %v903
    %v2388 = vunpack.c.l.b16 %v904
    %v2389 = vunpack.c.h.b16 %v904
    %v2390 = vunpack.c.l.b16 %v905
    %v2391 = vunpack.c.h.b16 %v905
    %v2392 = vunpack.c.l.b16 %v906
    %v2393 = vunpack.c.h.b16 %v906
    %v2394 = vunpack.c.l.b16 %v907
    %v2395 = vunpack.c.h.b16 %v907
    %v2396 = vunpack.c.l.b16 %v908
    %v2397 = vunpack.c.h.b16 %v908
    %v2398 = vunpack.c.l.b16 %v909
    %v2399 = vunpack.c.h.b16 %v909
    %v2400 = vunpack.c.l.b16 %v910
    %v2401 = vunpack.c.h.b16 %v910
    %v2402 = vunpack.c.l.b16 %v911
    %v2403 = vunpack.c.h.b16 %v911
    %v2404 = vunpack.c.l.b16 %v912
    %v2405 = vunpack.c.h.b16 %v912
    %v2406 = vunpack.c.l.b16 %v913
    %v2407 = vunpack.c.h.b16 %v913
    %v2408 = vunpack.c.l.b16 %v914
    %v2409 = vunpack.c.h.b16 %v914
    %v2410 = vunpack.c.l.b16 %v915
    %v2411 = vunpack.c.h.b16 %v915
    %v2412 = vunpack.c.l.b16 %v916
    %v2413 = vunpack.c.h.b16 %v916
    %v2414 = vunpack.c.l.b16 %v917
    %v2415 = vunpack.c.h.b16 %v917
    %v2416 = vunpack.c.l.b16 %v918
    %v2417 = vunpack.c.h.b16 %v918
    %v2418 = vunpack.c.l.b16 %v919
    %v2419 = vunpack.c.h.b16 %v919
    %v2420 = vunpack.c.l.b16 %v920
    %v2421 = vunpack.c.h.b16 %v920
    %v2422 = vunpack.c.l.b16 %v921
    %v2423 = vunpack.c.h.b16 %v921
    %v2424 = vunpack.c.l.b16 %v922
    %v2425 = vunpack.c.h.b16 %v922
    %v2426 = vunpack.c.l.b16 %v923
    %v2427 = vunpack.c.h.b16 %v923
    %v2428 = vunpack.c.l.b16 %v924
    %v2429 = vunpack.c.h.b16 %v924
    %v2430 = vunpack.c.l.b16 %v925
    %v2431 = vunpack.c.h.b16 %v925
    %v2432 = vunpack.c.l.b16 %v926
    %v2433 = vunpack.c.h.b16 %v926
    %v2434 = vunpack.c.l.b16 %v927
    %v2435 = vunpack.c.h.b16 %v927
    %v2436 = vunpack.c.l.b16 %v928
    %v2437 = vunpack.c.h.b16 %v928
    %v2438 = vunpack.c.l.b16 %v929
    %v2439 = vunpack.c.h.b16 %v929
    %v2440 = vunpack.c.l.b16 %v930
    %v2441 = vunpack.c.h.b16 %v930
    %v2442 = vunpack.c.l.b16 %v931
    %v2443 = vunpack.c.h.b16 %v931
    %v2444 = vunpack.c.l.b16 %v932
    %v2445 = vunpack.c.h.b16 %v932
    %v2446 = vunpack.c.l.b16 %v933
    %v2447 = vunpack.c.h.b16 %v933
    %v2448 = vunpack.c.l.b16 %v934
    %v2449 = vunpack.c.h.b16 %v934
    %v2450 = vunpack.c.l.b16 %v935
    %v2451 = vunpack.c.h.b16 %v935
    %v2452 = vunpack.c.l.b16 %v936
    %v2453 = vunpack.c.h.b16 %v936
    %v2454 = vunpack.c.l.b16 %v937
    %v2455 = vunpack.c.h.b16 %v937
    %v2456 = vunpack.c.l.b16 %v938
    %v2457 = vunpack.c.h.b16 %v938
    %v2458 = vunpack.c.l.b16 %v939
    %v2459 = vunpack.c.h.b16 %v939
    %v2460 = vunpack.c.l.b16 %v940
    %v2461 = vunpack.c.h.b16 %v940
    %v2462 = vunpack.c.l.b16 %v941
    %v2463 = vunpack.c.h.b16 %v941
    %v2464 = vunpack.c.l.b16 %v942
    %v2465 = vunpack.c.h.b16 %v942
    %v2466 = vunpack.c.l.b16 %v943
    %v2467 = vunpack.c.h.b16 %v943
    %v2468 = vunpack.c.l.b16 %v944
    %v2469 = vunpack.c.h.b16 %v944
    %v2470 = vunpack.c.l.b16 %v945
    %v2471 = vunpack.c.h.b16 %v945
    %v2472 = vunpack.c.l.b16 %v946
    %v2473 = vunpack.c.h.b16 %v946
    %v2474 = vunpack.c.l.b16 %v947
    %v2475 = vunpack.c.h.b16 %v947
    %v2476 = vunpack.c.l.b16 %v948
    %v2477 = vunpack.c.h.b16 %v948
    %v2478 = vunpack.c.l.b16 %v949
    %v2479 = vunpack.c.h.b16 %v949
    %v2480 = vunpack.c.l.b16 %v950
    %v2481 = vunpack.c.h.b16 %v950
    %v2482 = vunpack.c.l.b16 %v951
    %v2483 = vunpack.c.h.b16 %v951
    %v2484 = vunpack.c.l.b16 %v952
    %v2485 = vunpack.c.h.b16 %v952
    %v2486 = vunpack.c.l.b16 %v953
    %v2487 = vunpack.c.h.b16 %v953
    %v2488 = vunpack.c.l.b16 %v954
    %v2489 = vunpack.c.h.b16 %v954
    %v2490 = vunpack.c.l.b16 %v955
    %v2491 = vunpack.c.h.b16 %v955
    %v2492 = vunpack.c.l.b16 %v956
    %v2493 = vunpack.c.h.b16 %v956
    %v2494 = vunpack.c.l.b16 %v957
    %v2495 = vunpack.c.h.b16 %v957
    %v2496 = vunpack.c.l.b16 %v958
    %v2497 = vunpack.c.h.b16 %v958
    %v2498 = vunpack.c.l.b16 %v959
    %v2499 = vunpack.c.h.b16 %v959
    %v2500 = vunpack.c.l.b16 %v960
    %v2501 = vunpack.c.h.b16 %v960
    %v2502 = vunpack.c.l.b16 %v961
    %v2503 = vunpack.c.h.b16 %v961
    %v2504 = vunpack.c.l.b16 %v962
    %v2505 = vunpack.c.h.b16 %v962
    %v2506 = vunpack.c.l.b16 %v963
    %v2507 = vunpack.c.h.b16 %v963
    %v2508 = vunpack.c.l.b16 %v964
    %v2509 = vunpack.c.h.b16 %v964
    %v2510 = vunpack.c.l.b16 %v965
    %v2511 = vunpack.c.h.b16 %v965
    %v2512 = vunpack.c.l.b16 %v966
    %v2513 = vunpack.c.h.b16 %v966
    %v2514 = vunpack.c.l.b16 %v967
    %v2515 = vunpack.c.h.b16 %v967
    %v2516 = vunpack.c.l.b16 %v968
    %v2517 = vunpack.c.h.b16 %v968
    %v2518 = vunpack.c.l.b16 %v969
    %v2519 = vunpack.c.h.b16 %v969
    %v2520 = vunpack.c.l.b16 %v970
    %v2521 = vunpack.c.h.b16 %v970
    %v2522 = vunpack.c.l.b16 %v971
    %v2523 = vunpack.c.h.b16 %v971
    %v2524 = vunpack.c.l.b16 %v972
    %v2525 = vunpack.c.h.b16 %v972
    %v2526 = vunpack.c.l.b16 %v973
    %v2527 = vunpack.c.h.b16 %v973
    %v2528 = vunpack.c.l.b16 %v974
    %v2529 = vunpack.c.h.b16 %v974
    %v2530 = vunpack.c.l.b16 %v975
    %v2531 = vunpack.c.h.b16 %v975
    %v2532 = vunpack.c.l.b16 %v976
    %v2533 = vunpack.c.h.b16 %v976
    %v2534 = vunpack.c.l.b16 %v977
    %v2535 = vunpack.c.h.b16 %v977
    %v2536 = vunpack.c.l.b16 %v978
    %v2537 = vunpack.c.h.b16 %v978
    %v2538 = vunpack.c.l.b16 %v979
    %v2539 = vunpack.c.h.b16 %v979
    %v2540 = vunpack.c.l.b16 %v980
    %v2541 = vunpack.c.h.b16 %v980
    %v2542 = vunpack.c.l.b16 %v981
    %v2543 = vunpack.c.h.b16 %v981
    %v2544 = vunpack.c.l.b16 %v982
    %v2545 = vunpack.c.h.b16 %v982
    %v2546 = vunpack.c.l.b16 %v983
    %v2547 = vunpack.c.h.b16 %v983
    %v2548 = vunpack.c.l.b16 %v984
    %v2549 = vunpack.c.h.b16 %v984
    %v2550 = vunpack.c.l.b16 %v985
    %v2551 = vunpack.c.h.b16 %v985
    %v2552 = vunpack.c.l.b16 %v986
    %v2553 = vunpack.c.h.b16 %v986
    %v2554 = vunpack.c.l.b16 %v987
    %v2555 = vunpack.c.h.b16 %v987
    %v2556 = vunpack.c.l.b16 %v988
    %v2557 = vunpack.c.h.b16 %v988
    %v2558 = vunpack.c.l.b16 %v989
    %v2559 = vunpack.c.h.b16 %v989
    %v2560 = vunpack.c.l.b16 %v990
    %v2561 = vunpack.c.h.b16 %v990
    %v2562 = vunpack.c.l.b16 %v991
    %v2563 = vunpack.c.h.b16 %v991
    %v2564 = vunpack.c.l.b16 %v992
    %v2565 = vunpack.c.h.b16 %v992
    %v2566 = vunpack.c.l.b16 %v993
    %v2567 = vunpack.c.h.b16 %v993
    %v2568 = vunpack.c.l.b16 %v994
    %v2569 = vunpack.c.h.b16 %v994
    %v2570 = vunpack.c.l.b16 %v995
    %v2571 = vunpack.c.h.b16 %v995
    %v2572 = vunpack.c.l.b16 %v996
    %v2573 = vunpack.c.h.b16 %v996
    %v2574 = vunpack.c.l.b16 %v997
    %v2575 = vunpack.c.h.b16 %v997
    %v2576 = vunpack.c.l.b16 %v998
    %v2577 = vunpack.c.h.b16 %v998
    %v2578 = vunpack.c.l.b16 %v999
    %v2579 = vunpack.c.h.b16 %v999
    %v2580 = vunpack.c.l.b16 %v1000
    %v2581 = vunpack.c.h.b16 %v1000
    %v2582 = vunpack.c.l.b16 %v1001
    %v2583 = vunpack.c.h.b16 %v1001
    %v2584 = vunpack.c.l.b16 %v1002
    %v2585 = vunpack.c.h.b16 %v1002
    %v2586 = vunpack.c.l.b16 %v1003
    %v2587 = vunpack.c.h.b16 %v1003
    %v2588 = vunpack.c.l.b16 %v1004
    %v2589 = vunpack.c.h.b16 %v1004
    %v2590 = vunpack.c.l.b16 %v1005
    %v2591 = vunpack.c.h.b16 %v1005
    %v2592 = vunpack.c.l.b16 %v1006
    %v2593 = vunpack.c.h.b16 %v1006
    %v2594 = vunpack.c.l.b16 %v1007
    %v2595 = vunpack.c.h.b16 %v1007
    %v2596 = vunpack.c.l.b16 %v1008
    %v2597 = vunpack.c.h.b16 %v1008
    %v2598 = vunpack.c.l.b16 %v1009
    %v2599 = vunpack.c.h.b16 %v1009
    %v2600 = vunpack.c.l.b16 %v1010
    %v2601 = vunpack.c.h.b16 %v1010
    %v2602 = vunpack.c.l.b16 %v1011
    %v2603 = vunpack.c.h.b16 %v1011
    %v2604 = vunpack.c.l.b16 %v1012
    %v2605 = vunpack.c.h.b16 %v1012
    %v2606 = vunpack.c.l.b16 %v1013
    %v2607 = vunpack.c.h.b16 %v1013
    %v2608 = vunpack.c.l.b16 %v1014
    %v2609 = vunpack.c.h.b16 %v1014
    %v2610 = vunpack.c.l.b16 %v1015
    %v2611 = vunpack.c.h.b16 %v1015
    %v2612 = vunpack.c.l.b16 %v1016
    %v2613 = vunpack.c.h.b16 %v1016
    %v2614 = vunpack.c.l.b16 %v1017
    %v2615 = vunpack.c.h.b16 %v1017
    %v2616 = vunpack.c.l.b16 %v1018
    %v2617 = vunpack.c.h.b16 %v1018
    %v2618 = vunpack.c.l.b16 %v1019
    %v2619 = vunpack.c.h.b16 %v1019
    %v2620 = vunpack.c.l.b16 %v1020
    %v2621 = vunpack.c.h.b16 %v1020
    %v2622 = vunpack.c.l.b16 %v1021
    %v2623 = vunpack.c.h.b16 %v1021
    %v2624 = vunpack.c.l.b16 %v1022
    %v2625 = vunpack.c.h.b16 %v1022
    %v2626 = vunpack.c.l.b16 %v1023
    %v2627 = vunpack.c.h.b16 %v1023
    %v2628 = vunpack.c.l.b16 %v1024
    %v2629 = vunpack.c.h.b16 %v1024
    %v2630 = vunpack.c.l.b16 %v1025
    %v2631 = vunpack.c.h.b16 %v1025
    %v2632 = vunpack.c.l.b16 %v1026
    %v2633 = vunpack.c.h.b16 %v1026
    %v2634 = vunpack.c.l.b16 %v1027
    %v2635 = vunpack.c.h.b16 %v1027
    %v2636 = vunpack.c.l.b16 %v1028
    %v2637 = vunpack.c.h.b16 %v1028
    %v2638 = vunpack.c.l.b16 %v1029
    %v2639 = vunpack.c.h.b16 %v1029
    %v2640 = vunpack.c.l.b16 %v1030
    %v2641 = vunpack.c.h.b16 %v1030
    %v2642 = vunpack.c.l.b16 %v1031
    %v2643 = vunpack.c.h.b16 %v1031
    %v2644 = vunpack.c.l.b16 %v1032
    %v2645 = vunpack.c.h.b16 %v1032
    %v2646 = vunpack.c.l.b16 %v1033
    %v2647 = vunpack.c.h.b16 %v1033
    %v2648 = vunpack.c.l.b16 %v1034
    %v2649 = vunpack.c.h.b16 %v1034
    %v2650 = vunpack.c.l.b16 %v1035
    %v2651 = vunpack.c.h.b16 %v1035
    %v2652 = vunpack.c.l.b16 %v1036
    %v2653 = vunpack.c.h.b16 %v1036
    %v2654 = vunpack.c.l.b16 %v1037
    %v2655 = vunpack.c.h.b16 %v1037
    %v2656 = vunpack.c.l.b16 %v1038
    %v2657 = vunpack.c.h.b16 %v1038
    %v2658 = vunpack.c.l.b16 %v1039
    %v2659 = vunpack.c.h.b16 %v1039
    %v2660 = vunpack.c.l.b16 %v1040
    %v2661 = vunpack.c.h.b16 %v1040
    %v2662 = vunpack.c.l.b16 %v1041
    %v2663 = vunpack.c.h.b16 %v1041
    %v2664 = vunpack.c.l.b16 %v1042
    %v2665 = vunpack.c.h.b16 %v1042
    %v2666 = vunpack.c.l.b16 %v1043
    %v2667 = vunpack.c.h.b16 %v1043
    %v2668 = vunpack.c.l.b16 %v1044
    %v2669 = vunpack.c.h.b16 %v1044
    %v2670 = vunpack.c.l.b16 %v1045
    %v2671 = vunpack.c.h.b16 %v1045
    %v2672 = vunpack.c.l.b16 %v1046
    %v2673 = vunpack.c.h.b16 %v1046
    %v2674 = vunpack.c.l.b16 %v1047
    %v2675 = vunpack.c.h.b16 %v1047
    %v2676 = vunpack.c.l.b16 %v1048
    %v2677 = vunpack.c.h.b16 %v1048
    %v2678 = vunpack.c.l.b16 %v1049
    %v2679 = vunpack.c.h.b16 %v1049
    %v2680 = vunpack.c.l.b16 %v1050
    %v2681 = vunpack.c.h.b16 %v1050
    %v2682 = vunpack.c.l.b16 %v1051
    %v2683 = vunpack.c.h.b16 %v1051
    %v2684 = vunpack.c.l.b16 %v1052
    %v2685 = vunpack.c.h.b16 %v1052
    %v2686 = vunpack.c.l.b16 %v1053
    %v2687 = vunpack.c.h.b16 %v1053
    %v2688 = vunpack.c.l.b16 %v1054
    %v2689 = vunpack.c.h.b16 %v1054
    %v2690 = vunpack.c.l.b16 %v1055
    %v2691 = vunpack.c.h.b16 %v1055
    %v2692 = vunpack.c.l.b16 %v1056
    %v2693 = vunpack.c.h.b16 %v1056
    %v2694 = vunpack.c.l.b16 %v1057
    %v2695 = vunpack.c.h.b16 %v1057
    %v2696 = vunpack.c.l.b16 %v1058
    %v2697 = vunpack.c.h.b16 %v1058
    %v2698 = vunpack.c.l.b16 %v1059
    %v2699 = vunpack.c.h.b16 %v1059
    %v2700 = vunpack.c.l.b16 %v1060
    %v2701 = vunpack.c.h.b16 %v1060
    %v2702 = vunpack.c.l.b16 %v1061
    %v2703 = vunpack.c.h.b16 %v1061
    %v2704 = vunpack.c.l.b16 %v1062
    %v2705 = vunpack.c.h.b16 %v1062
    %v2706 = vunpack.c.l.b16 %v1063
    %v2707 = vunpack.c.h.b16 %v1063
    %v2708 = vpack.c.b16 %v2204, %v2196
    %v2709 = vpack.c.b16 %v2205, %v2197
    %v2710 = vpack.c.b16 %v2206, %v2198
    %v2711 = vpack.c.b16 %v2207, %v2199
    %v2712 = vpack.c.b16 %v2208, %v2200
    %v2713 = vpack.c.b16 %v2209, %v2201
    %v2714 = vpack.c.b16 %v2210, %v2202
    %v2715 = vpack.c.b16 %v2211, %v2203
    %v2716 = vpack.c.b16 %v2220, %v2212
    %v2717 = vpack.c.b16 %v2221, %v2213
    %v2718 = vpack.c.b16 %v2222, %v2214
    %v2719 = vpack.c.b16 %v2223, %v2215
    %v2720 = vpack.c.b16 %v2224, %v2216
    %v2721 = vpack.c.b16 %v2225, %v2217
    %v2722 = vpack.c.b16 %v2226, %v2218
    %v2723 = vpack.c.b16 %v2227, %v2219
    %v2724 = vpack.c.b16 %v2236, %v2228
    %v2725 = vpack.c.b16 %v2237, %v2229
    %v2726 = vpack.c.b16 %v2238, %v2230
    %v2727 = vpack.c.b16 %v2239, %v2231
    %v2728 = vpack.c.b16 %v2240, %v2232
    %v2729 = vpack.c.b16 %v2241, %v2233
    %v2730 = vpack.c.b16 %v2242, %v2234
    %v2731 = vpack.c.b16 %v2243, %v2235
    %v2732 = vpack.c.b16 %v2252, %v2244
    %v2733 = vpack.c.b16 %v2253, %v2245
    %v2734 = vpack.c.b16 %v2254, %v2246
    %v2735 = vpack.c.b16 %v2255, %v2247
    %v2736 = vpack.c.b16 %v2256, %v2248
    %v2737 = vpack.c.b16 %v2257, %v2249
    %v2738 = vpack.c.b16 %v2258, %v2250
    %v2739 = vpack.c.b16 %v2259, %v2251
    %v2740 = vpack.c.b16 %v2268, %v2260
    %v2741 = vpack.c.b16 %v2269, %v2261
    %v2742 = vpack.c.b16 %v2270, %v2262
    %v2743 = vpack.c.b16 %v2271, %v2263
    %v2744 = vpack.c.b16 %v2272, %v2264
    %v2745 = vpack.c.b16 %v2273, %v2265
    %v2746 = vpack.c.b16 %v2274, %v2266
    %v2747 = vpack.c.b16 %v2275, %v2267
    %v2748 = vpack.c.b16 %v2284, %v2276
    %v2749 = vpack.c.b16 %v2285, %v2277
    %v2750 = vpack.c.b16 %v2286, %v2278
    %v2751 = vpack.c.b16 %v2287, %v2279
    %v2752 = vpack.c.b16 %v2288, %v2280
    %v2753 = vpack.c.b16 %v2289, %v2281
    %v2754 = vpack.c.b16 %v2290, %v2282
    %v2755 = vpack.c.b16 %v2291, %v2283
    %v2756 = vpack.c.b16 %v2300, %v2292
    %v2757 = vpack.c.b16 %v2301, %v2293
    %v2758 = vpack.c.b16 %v2302, %v2294
    %v2759 = vpack.c.b16 %v2303, %v2295
    %v2760 = vpack.c.b16 %v2304, %v2296
    %v2761 = vpack.c.b16 %v2305, %v2297
    %v2762 = vpack.c.b16 %v2306, %v2298
    %v2763 = vpack.c.b16 %v2307, %v2299
    %v2764 = vpack.c.b16 %v2316, %v2308
    %v2765 = vpack.c.b16 %v2317, %v2309
    %v2766 = vpack.c.b16 %v2318, %v2310
    %v2767 = vpack.c.b16 %v2319, %v2311
    %v2768 = vpack.c.b16 %v2320, %v2312
    %v2769 = vpack.c.b16 %v2321, %v2313
    %v2770 = vpack.c.b16 %v2322, %v2314
    %v2771 = vpack.c.b16 %v2323, %v2315
    %v2772 = vpack.c.b16 %v2332, %v2324
    %v2773 = vpack.c.b16 %v2333, %v2325
    %v2774 = vpack.c.b16 %v2334, %v2326
    %v2775 = vpack.c.b16 %v2335, %v2327
    %v2776 = vpack.c.b16 %v2336, %v2328
    %v2777 = vpack.c.b16 %v2337, %v2329
    %v2778 = vpack.c.b16 %v2338, %v2330
    %v2779 = vpack.c.b16 %v2339, %v2331
    %v2780 = vpack.c.b16 %v2348, %v2340
    %v2781 = vpack.c.b16 %v2349, %v2341
    %v2782 = vpack.c.b16 %v2350, %v2342
    %v2783 = vpack.c.b16 %v2351, %v2343
    %v2784 = vpack.c.b16 %v2352, %v2344
    %v2785 = vpack.c.b16 %v2353, %v2345
    %v2786 = vpack.c.b16 %v2354, %v2346
    %v2787 = vpack.c.b16 %v2355, %v2347
    %v2788 = vpack.c.b16 %v2364, %v2356
    %v2789 = vpack.c.b16 %v2365, %v2357
    %v2790 = vpack.c.b16 %v2366, %v2358
    %v2791 = vpack.c.b16 %v2367, %v2359
    %v2792 = vpack.c.b16 %v2368, %v2360
    %v2793 = vpack.c.b16 %v2369, %v2361
    %v2794 = vpack.c.b16 %v2370, %v2362
    %v2795 = vpack.c.b16 %v2371, %v2363
    %v2796 = vpack.c.b16 %v2380, %v2372
    %v2797 = vpack.c.b16 %v2381, %v2373
    %v2798 = vpack.c.b16 %v2382, %v2374
    %v2799 = vpack.c.b16 %v2383, %v2375
    %v2800 = vpack.c.b16 %v2384, %v2376
    %v2801 = vpack.c.b16 %v2385, %v2377
    %v2802 = vpack.c.b16 %v2386, %v2378
    %v2803 = vpack.c.b16 %v2387, %v2379
    %v2804 = vpack.c.b16 %v2396, %v2388
    %v2805 = vpack.c.b16 %v2397, %v2389
    %v2806 = vpack.c.b16 %v2398, %v2390
    %v2807 = vpack.c.b16 %v2399, %v2391
    %v2808 = vpack.c.b16 %v2400, %v2392
    %v2809 = vpack.c.b16 %v2401, %v2393
    %v2810 = vpack.c.b16 %v2402, %v2394
    %v2811 = vpack.c.b16 %v2403, %v2395
    %v2812 = vpack.c.b16 %v2412, %v2404
    %v2813 = vpack.c.b16 %v2413, %v2405
    %v2814 = vpack.c.b16 %v2414, %v2406
    %v2815 = vpack.c.b16 %v2415, %v2407
    %v2816 = vpack.c.b16 %v2416, %v2408
    %v2817 = vpack.c.b16 %v2417, %v2409
    %v2818 = vpack.c.b16 %v2418, %v2410
    %v2819 = vpack.c.b16 %v2419, %v2411
    %v2820 = vpack.c.b16 %v2428, %v2420
    %v2821 = vpack.c.b16 %v2429, %v2421
    %v2822 = vpack.c.b16 %v2430, %v2422
    %v2823 = vpack.c.b16 %v2431, %v2423
    %v2824 = vpack.c.b16 %v2432, %v2424
    %v2825 = vpack.c.b16 %v2433, %v2425
    %v2826 = vpack.c.b16 %v2434, %v2426
    %v2827 = vpack.c.b16 %v2435, %v2427
    %v2828 = vpack.c.b16 %v2444, %v2436
    %v2829 = vpack.c.b16 %v2445, %v2437
    %v2830 = vpack.c.b16 %v2446, %v2438
    %v2831 = vpack.c.b16 %v2447, %v2439
    %v2832 = vpack.c.b16 %v2448, %v2440
    %v2833 = vpack.c.b16 %v2449, %v2441
    %v2834 = vpack.c.b16 %v2450, %v2442
    %v2835 = vpack.c.b16 %v2451, %v2443
    %v2836 = vpack.c.b16 %v2460, %v2452
    %v2837 = vpack.c.b16 %v2461, %v2453
    %v2838 = vpack.c.b16 %v2462, %v2454
    %v2839 = vpack.c.b16 %v2463, %v2455
    %v2840 = vpack.c.b16 %v2464, %v2456
    %v2841 = vpack.c.b16 %v2465, %v2457
    %v2842 = vpack.c.b16 %v2466, %v2458
    %v2843 = vpack.c.b16 %v2467, %v2459
    %v2844 = vpack.c.b16 %v2476, %v2468
    %v2845 = vpack.c.b16 %v2477, %v2469
    %v2846 = vpack.c.b16 %v2478, %v2470
    %v2847 = vpack.c.b16 %v2479, %v2471
    %v2848 = vpack.c.b16 %v2480, %v2472
    %v2849 = vpack.c.b16 %v2481, %v2473
    %v2850 = vpack.c.b16 %v2482, %v2474
    %v2851 = vpack.c.b16 %v2483, %v2475
    %v2852 = vpack.c.b16 %v2492, %v2484
    %v2853 = vpack.c.b16 %v2493, %v2485
    %v2854 = vpack.c.b16 %v2494, %v2486
    %v2855 = vpack.c.b16 %v2495, %v2487
    %v2856 = vpack.c.b16 %v2496, %v2488
    %v2857 = vpack.c.b16 %v2497, %v2489
    %v2858 = vpack.c.b16 %v2498, %v2490
    %v2859 = vpack.c.b16 %v2499, %v2491
    %v2860 = vpack.c.b16 %v2508, %v2500
    %v2861 = vpack.c.b16 %v2509, %v2501
    %v2862 = vpack.c.b16 %v2510, %v2502
    %v2863 = vpack.c.b16 %v2511, %v2503
    %v2864 = vpack.c.b16 %v2512, %v2504
    %v2865 = vpack.c.b16 %v2513, %v2505
    %v2866 = vpack.c.b16 %v2514, %v2506
    %v2867 = vpack.c.b16 %v2515, %v2507
    %v2868 = vpack.c.b16 %v2524, %v2516
    %v2869 = vpack.c.b16 %v2525, %v2517
    %v2870 = vpack.c.b16 %v2526, %v2518
    %v2871 = vpack.c.b16 %v2527, %v2519
    %v2872 = vpack.c.b16 %v2528, %v2520
    %v2873 = vpack.c.b16 %v2529, %v2521
    %v2874 = vpack.c.b16 %v2530, %v2522
    %v2875 = vpack.c.b16 %v2531, %v2523
    %v2876 = vpack.c.b16 %v2540, %v2532
    %v2877 = vpack.c.b16 %v2541, %v2533
    %v2878 = vpack.c.b16 %v2542, %v2534
    %v2879 = vpack.c.b16 %v2543, %v2535
    %v2880 = vpack.c.b16 %v2544, %v2536
    %v2881 = vpack.c.b16 %v2545, %v2537
    %v2882 = vpack.c.b16 %v2546, %v2538
    %v2883 = vpack.c.b16 %v2547, %v2539
    %v2884 = vpack.c.b16 %v2556, %v2548
    %v2885 = vpack.c.b16 %v2557, %v2549
    %v2886 = vpack.c.b16 %v2558, %v2550
    %v2887 = vpack.c.b16 %v2559, %v2551
    %v2888 = vpack.c.b16 %v2560, %v2552
    %v2889 = vpack.c.b16 %v2561, %v2553
    %v2890 = vpack.c.b16 %v2562, %v2554
    %v2891 = vpack.c.b16 %v2563, %v2555
    %v2892 = vpack.c.b16 %v2572, %v2564
    %v2893 = vpack.c.b16 %v2573, %v2565
    %v2894 = vpack.c.b16 %v2574, %v2566
    %v2895 = vpack.c.b16 %v2575, %v2567
    %v2896 = vpack.c.b16 %v2576, %v2568
    %v2897 = vpack.c.b16 %v2577, %v2569
    %v2898 = vpack.c.b16 %v2578, %v2570
    %v2899 = vpack.c.b16 %v2579, %v2571
    %v2900 = vpack.c.b16 %v2588, %v2580
    %v2901 = vpack.c.b16 %v2589, %v2581
    %v2902 = vpack.c.b16 %v2590, %v2582
    %v2903 = vpack.c.b16 %v2591, %v2583
    %v2904 = vpack.c.b16 %v2592, %v2584
    %v2905 = vpack.c.b16 %v2593, %v2585
    %v2906 = vpack.c.b16 %v2594, %v2586
    %v2907 = vpack.c.b16 %v2595, %v2587
    %v2908 = vpack.c.b16 %v2604, %v2596
    %v2909 = vpack.c.b16 %v2605, %v2597
    %v2910 = vpack.c.b16 %v2606, %v2598
    %v2911 = vpack.c.b16 %v2607, %v2599
    %v2912 = vpack.c.b16 %v2608, %v2600
    %v2913 = vpack.c.b16 %v2609, %v2601
    %v2914 = vpack.c.b16 %v2610, %v2602
    %v2915 = vpack.c.b16 %v2611, %v2603
    %v2916 = vpack.c.b16 %v2620, %v2612
    %v2917 = vpack.c.b16 %v2621, %v2613
    %v2918 = vpack.c.b16 %v2622, %v2614
    %v2919 = vpack.c.b16 %v2623, %v2615
    %v2920 = vpack.c.b16 %v2624, %v2616
    %v2921 = vpack.c.b16 %v2625, %v2617
    %v2922 = vpack.c.b16 %v2626, %v2618
    %v2923 = vpack.c.b16 %v2627, %v2619
    %v2924 = vpack.c.b16 %v2636, %v2628
    %v2925 = vpack.c.b16 %v2637, %v2629
    %v2926 = vpack.c.b16 %v2638, %v2630
    %v2927 = vpack.c.b16 %v2639, %v2631
    %v2928 = vpack.c.b16 %v2640, %v2632
    %v2929 = vpack.c.b16 %v2641, %v2633
    %v2930 = vpack.c.b16 %v2642, %v2634
    %v2931 = vpack.c.b16 %v2643, %v2635
    %v2932 = vpack.c.b16 %v2652, %v2644
    %v2933 = vpack.c.b16 %v2653, %v2645
    %v2934 = vpack.c.b16 %v2654, %v2646
    %v2935 = vpack.c.b16 %v2655, %v2647
    %v2936 = vpack.c.b16 %v2656, %v2648
    %v2937 = vpack.c.b16 %v2657, %v2649
    %v2938 = vpack.c.b16 %v2658, %v2650
    %v2939 = vpack.c.b16 %v2659, %v2651
    %v2940 = vpack.c.b16 %v2668, %v2660
    %v2941 = vpack.c.b16 %v2669, %v2661
    %v2942 = vpack.c.b16 %v2670, %v2662
    %v2943 = vpack.c.b16 %v2671, %v2663
    %v2944 = vpack.c.b16 %v2672, %v2664
    %v2945 = vpack.c.b16 %v2673, %v2665
    %v2946 = vpack.c.b16 %v2674, %v2666
    %v2947 = vpack.c.b16 %v2675, %v2667
    %v2948 = vpack.c.b16 %v2684, %v2676
    %v2949 = vpack.c.b16 %v2685, %v2677
    %v2950 = vpack.c.b16 %v2686, %v2678
    %v2951 = vpack.c.b16 %v2687, %v2679
    %v2952 = vpack.c.b16 %v2688, %v2680
    %v2953 = vpack.c.b16 %v2689, %v2681
    %v2954 = vpack.c.b16 %v2690, %v2682
    %v2955 = vpack.c.b16 %v2691, %v2683
    %v2956 = vpack.c.b16 %v2700, %v2692
    %v2957 = vpack.c.b16 %v2701, %v2693
    %v2958 = vpack.c.b16 %v2702, %v2694
    %v2959 = vpack.c.b16 %v2703, %v2695
    %v2960 = vpack.c.b16 %v2704, %v2696
    %v2961 = vpack.c.b16 %v2705, %v2697
    %v2962 = vpack.c.b16 %v2706, %v2698
    %v2963 = vpack.c.b16 %v2707, %v2699
    %3220 = vmatprep.subr.bf16.mxu0 %v2709
    %3221 = vmatpush1.bf16.msra.mxu0 %v2708
    %3222 = vmatprep.subr.bf16.mxu0 %v2717
    %3223 = vmatpush1.bf16.msra.mxu0 %v2716
    %3224 = vmatprep.subr.bf16.mxu0 %v2725
    %3225 = vmatpush1.bf16.msra.mxu0 %v2724
    %3226 = vmatprep.subr.bf16.mxu0 %v2733
    %3227 = vmatpush1.bf16.msra.mxu0 %v2732
    %3228 = vmatprep.subr.bf16.mxu0 %v2741
    %3229 = vmatpush1.bf16.msra.mxu0 %v2740
    %3230 = vmatprep.subr.bf16.mxu0 %v2749
    %3231 = vmatpush1.bf16.msra.mxu0 %v2748
    %3232 = vmatprep.subr.bf16.mxu0 %v2757
    %3233 = vmatpush1.bf16.msra.mxu0 %v2756
    %3234 = vmatprep.subr.bf16.mxu0 %v2765
    %3235 = vmatpush1.bf16.msra.mxu0 %v2764
    %3236 = vmatprep.subr.bf16.mxu0 %v2773
    %3237 = vmatpush1.bf16.msra.mxu0 %v2772
    %3238 = vmatprep.subr.bf16.mxu0 %v2781
    %3239 = vmatpush1.bf16.msra.mxu0 %v2780
    %3240 = vmatprep.subr.bf16.mxu0 %v2789
    %3241 = vmatpush1.bf16.msra.mxu0 %v2788
    %3242 = vmatprep.subr.bf16.mxu0 %v2797
    %3243 = vmatpush1.bf16.msra.mxu0 %v2796
    %3244 = vmatprep.subr.bf16.mxu0 %v2805
    %3245 = vmatpush1.bf16.msra.mxu0 %v2804
    %3246 = vmatprep.subr.bf16.mxu0 %v2813
    %3247 = vmatpush1.bf16.msra.mxu0 %v2812
    %3248 = vmatprep.subr.bf16.mxu0 %v2821
    %3249 = vmatpush1.bf16.msra.mxu0 %v2820
    %3250 = vmatprep.subr.bf16.mxu0 %v2829
    %3251 = vmatpush1.bf16.msra.mxu0 %v2828
    %3252 = vmatprep.mubr.bf16.mxu0 %v1896
    %3253 = vmatmul.mubr.bf16.gmra.mrb[0].mxu0 %v1895
    %v3254 = vpop.f32.mrb[0].mxu0
    %v3255 = vadd.f32 %v1903, %v3254
    %v3256 = vpop.f32.mrb[0].mxu0
    %v3257 = vadd.f32 %v1907, %v3256
    %v3258 = vpop.f32.mrb[0].mxu0
    %v3259 = vadd.f32 %v1903, %v3258
    %v3260 = vpop.f32.mrb[0].mxu0
    %v3261 = vadd.f32 %v1907, %v3260
    %3262 = vdwg.mxu0
    %3263 = vmatprep.subr.bf16.mxu0 %v2837
    %3264 = vmatpush1.bf16.msra.mxu0 %v2836
    %3265 = vmatprep.subr.bf16.mxu0 %v2845
    %3266 = vmatpush1.bf16.msra.mxu0 %v2844
    %3267 = vmatprep.subr.bf16.mxu0 %v2853
    %3268 = vmatpush1.bf16.msra.mxu0 %v2852
    %3269 = vmatprep.subr.bf16.mxu0 %v2861
    %3270 = vmatpush1.bf16.msra.mxu0 %v2860
    %3271 = vmatprep.subr.bf16.mxu0 %v2869
    %3272 = vmatpush1.bf16.msra.mxu0 %v2868
    %3273 = vmatprep.subr.bf16.mxu0 %v2877
    %3274 = vmatpush1.bf16.msra.mxu0 %v2876
    %3275 = vmatprep.subr.bf16.mxu0 %v2885
    %3276 = vmatpush1.bf16.msra.mxu0 %v2884
    %3277 = vmatprep.subr.bf16.mxu0 %v2893
    %3278 = vmatpush1.bf16.msra.mxu0 %v2892
    %3279 = vmatprep.subr.bf16.mxu0 %v2901
    %3280 = vmatpush1.bf16.msra.mxu0 %v2900
    %3281 = vmatprep.subr.bf16.mxu0 %v2909
    %3282 = vmatpush1.bf16.msra.mxu0 %v2908
    %3283 = vmatprep.subr.bf16.mxu0 %v2917
    %3284 = vmatpush1.bf16.msra.mxu0 %v2916
    %3285 = vmatprep.subr.bf16.mxu0 %v2925
    %3286 = vmatpush1.bf16.msra.mxu0 %v2924
    %3287 = vmatprep.subr.bf16.mxu0 %v2933
    %3288 = vmatpush1.bf16.msra.mxu0 %v2932
    %3289 = vmatprep.subr.bf16.mxu0 %v2941
    %3290 = vmatpush1.bf16.msra.mxu0 %v2940
    %3291 = vmatprep.subr.bf16.mxu0 %v2949
    %3292 = vmatpush1.bf16.msra.mxu0 %v2948
    %3293 = vmatprep.subr.bf16.mxu0 %v2957
    %3294 = vmatpush1.bf16.msra.mxu0 %v2956
    %3295 = vmatprep.mubr.bf16.mxu0 %v1898
    %3296 = vmatmul.mubr.bf16.gmra.mrb[0].mxu0 %v1897
    %v3297 = vpop.f32.mrb[0].mxu0
    %v3298 = vadd.f32 %v3255, %v3297
    %v3299 = vpop.f32.mrb[0].mxu0
    %v3300 = vadd.f32 %v3257, %v3299
    %v3301 = vpop.f32.mrb[0].mxu0
    %v3302 = vadd.f32 %v3259, %v3301
    %v3303 = vpop.f32.mrb[0].mxu0
    %v3304 = vadd.f32 %v3261, %v3303
    %3305 = vdwg.mxu0
    %3306 = vmatprep.subr.bf16.mxu0 %v2711
    %3307 = vmatpush1.bf16.msra.mxu0 %v2710
    %3308 = vmatprep.subr.bf16.mxu0 %v2719
    %3309 = vmatpush1.bf16.msra.mxu0 %v2718
    %3310 = vmatprep.subr.bf16.mxu0 %v2727
    %3311 = vmatpush1.bf16.msra.mxu0 %v2726
    %3312 = vmatprep.subr.bf16.mxu0 %v2735
    %3313 = vmatpush1.bf16.msra.mxu0 %v2734
    %3314 = vmatprep.subr.bf16.mxu0 %v2743
    %3315 = vmatpush1.bf16.msra.mxu0 %v2742
    %3316 = vmatprep.subr.bf16.mxu0 %v2751
    %3317 = vmatpush1.bf16.msra.mxu0 %v2750
    %3318 = vmatprep.subr.bf16.mxu0 %v2759
    %3319 = vmatpush1.bf16.msra.mxu0 %v2758
    %3320 = vmatprep.subr.bf16.mxu0 %v2767
    %3321 = vmatpush1.bf16.msra.mxu0 %v2766
    %3322 = vmatprep.subr.bf16.mxu0 %v2775
    %3323 = vmatpush1.bf16.msra.mxu0 %v2774
    %3324 = vmatprep.subr.bf16.mxu0 %v2783
    %3325 = vmatpush1.bf16.msra.mxu0 %v2782
    %3326 = vmatprep.subr.bf16.mxu0 %v2791
    %3327 = vmatpush1.bf16.msra.mxu0 %v2790
    %3328 = vmatprep.subr.bf16.mxu0 %v2799
    %3329 = vmatpush1.bf16.msra.mxu0 %v2798
    %3330 = vmatprep.subr.bf16.mxu0 %v2807
    %3331 = vmatpush1.bf16.msra.mxu0 %v2806
    %3332 = vmatprep.subr.bf16.mxu0 %v2815
    %3333 = vmatpush1.bf16.msra.mxu0 %v2814
    %3334 = vmatprep.subr.bf16.mxu0 %v2823
    %3335 = vmatpush1.bf16.msra.mxu0 %v2822
    %3336 = vmatprep.subr.bf16.mxu0 %v2831
    %3337 = vmatpush1.bf16.msra.mxu0 %v2830
    %3338 = vmatprep.mubr.bf16.mxu0 %v1896
    %3339 = vmatmul.mubr.bf16.gmra.mrb[0].mxu0 %v1895
    %v3340 = vpop.f32.mrb[0].mxu0
    %v3341 = vadd.f32 %v1911, %v3340
    %v3342 = vpop.f32.mrb[0].mxu0
    %v3343 = vadd.f32 %v1915, %v3342
    %v3344 = vpop.f32.mrb[0].mxu0
    %v3345 = vadd.f32 %v1911, %v3344
    %v3346 = vpop.f32.mrb[0].mxu0
    %v3347 = vadd.f32 %v1915, %v3346
    %3348 = vdwg.mxu0
    %3349 = vmatprep.subr.bf16.mxu0 %v2839
    %3350 = vmatpush1.bf16.msra.mxu0 %v2838
    %3351 = vmatprep.subr.bf16.mxu0 %v2847
    %3352 = vmatpush1.bf16.msra.mxu0 %v2846
    %3353 = vmatprep.subr.bf16.mxu0 %v2855
    %3354 = vmatpush1.bf16.msra.mxu0 %v2854
    %3355 = vmatprep.subr.bf16.mxu0 %v2863
    %3356 = vmatpush1.bf16.msra.mxu0 %v2862
    %3357 = vmatprep.subr.bf16.mxu0 %v2871
    %3358 = vmatpush1.bf16.msra.mxu0 %v2870
    %3359 = vmatprep.subr.bf16.mxu0 %v2879
    %3360 = vmatpush1.bf16.msra.mxu0 %v2878
    %3361 = vmatprep.subr.bf16.mxu0 %v2887
    %3362 = vmatpush1.bf16.msra.mxu0 %v2886
    %3363 = vmatprep.subr.bf16.mxu0 %v2895
    %3364 = vmatpush1.bf16.msra.mxu0 %v2894
    %3365 = vmatprep.subr.bf16.mxu0 %v2903
    %3366 = vmatpush1.bf16.msra.mxu0 %v2902
    %3367 = vmatprep.subr.bf16.mxu0 %v2911
    %3368 = vmatpush1.bf16.msra.mxu0 %v2910
    %3369 = vmatprep.subr.bf16.mxu0 %v2919
    %3370 = vmatpush1.bf16.msra.mxu0 %v2918
    %3371 = vmatprep.subr.bf16.mxu0 %v2927
    %3372 = vmatpush1.bf16.msra.mxu0 %v2926
    %3373 = vmatprep.subr.bf16.mxu0 %v2935
    %3374 = vmatpush1.bf16.msra.mxu0 %v2934
    %3375 = vmatprep.subr.bf16.mxu0 %v2943
    %3376 = vmatpush1.bf16.msra.mxu0 %v2942
    %3377 = vmatprep.subr.bf16.mxu0 %v2951
    %3378 = vmatpush1.bf16.msra.mxu0 %v2950
    %3379 = vmatprep.subr.bf16.mxu0 %v2959
    %3380 = vmatpush1.bf16.msra.mxu0 %v2958
    %3381 = vmatprep.mubr.bf16.mxu0 %v1898
    %3382 = vmatmul.mubr.bf16.gmra.mrb[0].mxu0 %v1897
    %v3383 = vpop.f32.mrb[0].mxu0
    %v3384 = vadd.f32 %v3341, %v3383
    %v3385 = vpop.f32.mrb[0].mxu0
    %v3386 = vadd.f32 %v3343, %v3385
    %v3387 = vpop.f32.mrb[0].mxu0
    %v3388 = vadd.f32 %v3345, %v3387
    %v3389 = vpop.f32.mrb[0].mxu0
    %v3390 = vadd.f32 %v3347, %v3389
    %3391 = vdwg.mxu0
    %3392 = vmatprep.subr.bf16.mxu0 %v2713
    %3393 = vmatpush1.bf16.msra.mxu0 %v2712
    %3394 = vmatprep.subr.bf16.mxu0 %v2721
    %3395 = vmatpush1.bf16.msra.mxu0 %v2720
    %3396 = vmatprep.subr.bf16.mxu0 %v2729
    %3397 = vmatpush1.bf16.msra.mxu0 %v2728
    %3398 = vmatprep.subr.bf16.mxu0 %v2737
    %3399 = vmatpush1.bf16.msra.mxu0 %v2736
    %3400 = vmatprep.subr.bf16.mxu0 %v2745
    %3401 = vmatpush1.bf16.msra.mxu0 %v2744
    %3402 = vmatprep.subr.bf16.mxu0 %v2753
    %3403 = vmatpush1.bf16.msra.mxu0 %v2752
    %3404 = vmatprep.subr.bf16.mxu0 %v2761
    %3405 = vmatpush1.bf16.msra.mxu0 %v2760
    %3406 = vmatprep.subr.bf16.mxu0 %v2769
    %3407 = vmatpush1.bf16.msra.mxu0 %v2768
    %3408 = vmatprep.subr.bf16.mxu0 %v2777
    %3409 = vmatpush1.bf16.msra.mxu0 %v2776
    %3410 = vmatprep.subr.bf16.mxu0 %v2785
    %3411 = vmatpush1.bf16.msra.mxu0 %v2784
    %3412 = vmatprep.subr.bf16.mxu0 %v2793
    %3413 = vmatpush1.bf16.msra.mxu0 %v2792
    %3414 = vmatprep.subr.bf16.mxu0 %v2801
    %3415 = vmatpush1.bf16.msra.mxu0 %v2800
    %3416 = vmatprep.subr.bf16.mxu0 %v2809
    %3417 = vmatpush1.bf16.msra.mxu0 %v2808
    %3418 = vmatprep.subr.bf16.mxu0 %v2817
    %3419 = vmatpush1.bf16.msra.mxu0 %v2816
    %3420 = vmatprep.subr.bf16.mxu0 %v2825
    %3421 = vmatpush1.bf16.msra.mxu0 %v2824
    %3422 = vmatprep.subr.bf16.mxu0 %v2833
    %3423 = vmatpush1.bf16.msra.mxu0 %v2832
    %3424 = vmatprep.mubr.bf16.mxu0 %v1896
    %3425 = vmatmul.mubr.bf16.gmra.mrb[0].mxu0 %v1895
    %v3426 = vpop.f32.mrb[0].mxu0
    %v3427 = vadd.f32 %v1919, %v3426
    %v3428 = vpop.f32.mrb[0].mxu0
    %v3429 = vadd.f32 %v1923, %v3428
    %v3430 = vpop.f32.mrb[0].mxu0
    %v3431 = vadd.f32 %v1919, %v3430
    %v3432 = vpop.f32.mrb[0].mxu0
    %v3433 = vadd.f32 %v1923, %v3432
    %3434 = vdwg.mxu0
    %3435 = vmatprep.subr.bf16.mxu0 %v2841
    %3436 = vmatpush1.bf16.msra.mxu0 %v2840
    %3437 = vmatprep.subr.bf16.mxu0 %v2849
    %3438 = vmatpush1.bf16.msra.mxu0 %v2848
    %3439 = vmatprep.subr.bf16.mxu0 %v2857
    %3440 = vmatpush1.bf16.msra.mxu0 %v2856
    %3441 = vmatprep.subr.bf16.mxu0 %v2865
    %3442 = vmatpush1.bf16.msra.mxu0 %v2864
    %3443 = vmatprep.subr.bf16.mxu0 %v2873
    %3444 = vmatpush1.bf16.msra.mxu0 %v2872
    %3445 = vmatprep.subr.bf16.mxu0 %v2881
    %3446 = vmatpush1.bf16.msra.mxu0 %v2880
    %3447 = vmatprep.subr.bf16.mxu0 %v2889
    %3448 = vmatpush1.bf16.msra.mxu0 %v2888
    %3449 = vmatprep.subr.bf16.mxu0 %v2897
    %3450 = vmatpush1.bf16.msra.mxu0 %v2896
    %3451 = vmatprep.subr.bf16.mxu0 %v2905
    %3452 = vmatpush1.bf16.msra.mxu0 %v2904
    %3453 = vmatprep.subr.bf16.mxu0 %v2913
    %3454 = vmatpush1.bf16.msra.mxu0 %v2912
    %3455 = vmatprep.subr.bf16.mxu0 %v2921
    %3456 = vmatpush1.bf16.msra.mxu0 %v2920
    %3457 = vmatprep.subr.bf16.mxu0 %v2929
    %3458 = vmatpush1.bf16.msra.mxu0 %v2928
    %3459 = vmatprep.subr.bf16.mxu0 %v2937
    %3460 = vmatpush1.bf16.msra.mxu0 %v2936
    %3461 = vmatprep.subr.bf16.mxu0 %v2945
    %3462 = vmatpush1.bf16.msra.mxu0 %v2944
    %3463 = vmatprep.subr.bf16.mxu0 %v2953
    %3464 = vmatpush1.bf16.msra.mxu0 %v2952
    %3465 = vmatprep.subr.bf16.mxu0 %v2961
    %3466 = vmatpush1.bf16.msra.mxu0 %v2960
    %3467 = vmatprep.mubr.bf16.mxu0 %v1898
    %3468 = vmatmul.mubr.bf16.gmra.mrb[0].mxu0 %v1897
    %v3469 = vpop.f32.mrb[0].mxu0
    %v3470 = vadd.f32 %v3427, %v3469
    %v3471 = vpop.f32.mrb[0].mxu0
    %v3472 = vadd.f32 %v3429, %v3471
    %v3473 = vpop.f32.mrb[0].mxu0
    %v3474 = vadd.f32 %v3431, %v3473
    %v3475 = vpop.f32.mrb[0].mxu0
    %v3476 = vadd.f32 %v3433, %v3475
    %3477 = vdwg.mxu0
    %3478 = vmatprep.subr.bf16.mxu0 %v2715
    %3479 = vmatpush1.bf16.msra.mxu0 %v2714
    %3480 = vmatprep.subr.bf16.mxu0 %v2723
    %3481 = vmatpush1.bf16.msra.mxu0 %v2722
    %3482 = vmatprep.subr.bf16.mxu0 %v2731
    %3483 = vmatpush1.bf16.msra.mxu0 %v2730
    %3484 = vmatprep.subr.bf16.mxu0 %v2739
    %3485 = vmatpush1.bf16.msra.mxu0 %v2738
    %3486 = vmatprep.subr.bf16.mxu0 %v2747
    %3487 = vmatpush1.bf16.msra.mxu0 %v2746
    %3488 = vmatprep.subr.bf16.mxu0 %v2755
    %3489 = vmatpush1.bf16.msra.mxu0 %v2754
    %3490 = vmatprep.subr.bf16.mxu0 %v2763
    %3491 = vmatpush1.bf16.msra.mxu0 %v2762
    %3492 = vmatprep.subr.bf16.mxu0 %v2771
    %3493 = vmatpush1.bf16.msra.mxu0 %v2770
    %3494 = vmatprep.subr.bf16.mxu0 %v2779
    %3495 = vmatpush1.bf16.msra.mxu0 %v2778
    %3496 = vmatprep.subr.bf16.mxu0 %v2787
    %3497 = vmatpush1.bf16.msra.mxu0 %v2786
    %3498 = vmatprep.subr.bf16.mxu0 %v2795
    %3499 = vmatpush1.bf16.msra.mxu0 %v2794
    %3500 = vmatprep.subr.bf16.mxu0 %v2803
    %3501 = vmatpush1.bf16.msra.mxu0 %v2802
    %3502 = vmatprep.subr.bf16.mxu0 %v2811
    %3503 = vmatpush1.bf16.msra.mxu0 %v2810
    %3504 = vmatprep.subr.bf16.mxu0 %v2819
    %3505 = vmatpush1.bf16.msra.mxu0 %v2818
    %3506 = vmatprep.subr.bf16.mxu0 %v2827
    %3507 = vmatpush1.bf16.msra.mxu0 %v2826
    %3508 = vmatprep.subr.bf16.mxu0 %v2835
    %3509 = vmatpush1.bf16.msra.mxu0 %v2834
    %3510 = vmatprep.mubr.bf16.mxu0 %v1896
    %3511 = vmatmul.mubr.bf16.gmra.mrb[0].mxu0 %v1895
    %v3512 = vpop.f32.mrb[0].mxu0
    %v3513 = vadd.f32 %v1927, %v3512
    %v3514 = vpop.f32.mrb[0].mxu0
    %v3515 = vadd.f32 %v1931, %v3514
    %v3516 = vpop.f32.mrb[0].mxu0
    %v3517 = vadd.f32 %v1927, %v3516
    %v3518 = vpop.f32.mrb[0].mxu0
    %v3519 = vadd.f32 %v1931, %v3518
    %3520 = vdwg.mxu0
    %3521 = vmatprep.subr.bf16.mxu0 %v2843
    %3522 = vmatpush1.bf16.msra.mxu0 %v2842
    %3523 = vmatprep.subr.bf16.mxu0 %v2851
    %3524 = vmatpush1.bf16.msra.mxu0 %v2850
    %3525 = vmatprep.subr.bf16.mxu0 %v2859
    %3526 = vmatpush1.bf16.msra.mxu0 %v2858
    %3527 = vmatprep.subr.bf16.mxu0 %v2867
    %3528 = vmatpush1.bf16.msra.mxu0 %v2866
    %3529 = vmatprep.subr.bf16.mxu0 %v2875
    %3530 = vmatpush1.bf16.msra.mxu0 %v2874
    %3531 = vmatprep.subr.bf16.mxu0 %v2883
    %3532 = vmatpush1.bf16.msra.mxu0 %v2882
    %3533 = vmatprep.subr.bf16.mxu0 %v2891
    %3534 = vmatpush1.bf16.msra.mxu0 %v2890
    %3535 = vmatprep.subr.bf16.mxu0 %v2899
    %3536 = vmatpush1.bf16.msra.mxu0 %v2898
    %3537 = vmatprep.subr.bf16.mxu0 %v2907
    %3538 = vmatpush1.bf16.msra.mxu0 %v2906
    %3539 = vmatprep.subr.bf16.mxu0 %v2915
    %3540 = vmatpush1.bf16.msra.mxu0 %v2914
    %3541 = vmatprep.subr.bf16.mxu0 %v2923
    %3542 = vmatpush1.bf16.msra.mxu0 %v2922
    %3543 = vmatprep.subr.bf16.mxu0 %v2931
    %3544 = vmatpush1.bf16.msra.mxu0 %v2930
    %3545 = vmatprep.subr.bf16.mxu0 %v2939
    %3546 = vmatpush1.bf16.msra.mxu0 %v2938
    %3547 = vmatprep.subr.bf16.mxu0 %v2947
    %3548 = vmatpush1.bf16.msra.mxu0 %v2946
    %3549 = vmatprep.subr.bf16.mxu0 %v2955
    %3550 = vmatpush1.bf16.msra.mxu0 %v2954
    %3551 = vmatprep.subr.bf16.mxu0 %v2963
    %3552 = vmatpush1.bf16.msra.mxu0 %v2962
    %3553 = vmatprep.mubr.bf16.mxu0 %v1898
    %3554 = vmatmul.mubr.bf16.gmra.mrb[0].mxu0 %v1897
    %v3555 = vpop.f32.mrb[0].mxu0
    %v3556 = vadd.f32 %v3513, %v3555
    %v3557 = vpop.f32.mrb[0].mxu0
    %v3558 = vadd.f32 %v3515, %v3557
    %v3559 = vpop.f32.mrb[0].mxu0
    %v3560 = vadd.f32 %v3517, %v3559
    %v3561 = vpop.f32.mrb[0].mxu0
    %v3562 = vadd.f32 %v3519, %v3561
    %3563 = vdwg.mxu0
    %3564 = vmatprep.subr.mxu0 %v3300
    %3565 = vmatpush1.xpose.msra.mxu0 %v3298
    %3566 = vmatprep.subr.mxu0 %v3304
    %3567 = vmatpush1.xpose.msra.mxu0 %v3302
    %3568 = vmatprep.subr.mxu0 0.0
    %3569 = vmatpush1.xpose.msra.mxu0 0.0
    %3570 = vmatprep.subr.mxu0 0.0
    %3571 = vmatpush1.xpose.msra.mxu0 0.0
    %3572 = vmatprep.subr.mxu0 0.0
    %3573 = vmatpush1.xpose.msra.mxu0 0.0
    %3574 = vmatprep.subr.mxu0 0.0
    %3575 = vmatpush1.xpose.msra.mxu0 0.0
    %3576 = vmatprep.subr.mxu0 0.0
    %3577 = vmatpush1.xpose.msra.mxu0 0.0
    %3578 = vmatprep.subr.mxu0 0.0
    %3579 = vmatpush1.xpose.msra.mxu0 0.0
    %3580 = vmatprep.subr.mxu0 0.0
    %3581 = vmatpush1.xpose.msra.mxu0 0.0
    %3582 = vmatprep.subr.mxu0 0.0
    %3583 = vmatpush1.xpose.msra.mxu0 0.0
    %3584 = vmatprep.subr.mxu0 0.0
    %3585 = vmatpush1.xpose.msra.mxu0 0.0
    %3586 = vmatprep.subr.mxu0 0.0
    %3587 = vmatpush1.xpose.msra.mxu0 0.0
    %3588 = vmatprep.subr.mxu0 0.0
    %3589 = vmatpush1.xpose.msra.mxu0 0.0
    %3590 = vmatprep.subr.mxu0 0.0
    %3591 = vmatpush1.xpose.msra.mxu0 0.0
    %3592 = vmatprep.subr.mxu0 0.0
    %3593 = vmatpush1.xpose.msra.mxu0 0.0
    %3594 = vmatprep.subr.mxu0 0.0
    %3595 = vmatpush1.xpose.msra.mxu0 0.0
    %3596 = vmatprep.subr.mxu0 0.0
    %3597 = vmatpush1.xpose.msra.mxu0 0.0
    %3598 = vmatprep.subr.mxu0 0.0
    %3599 = vmatpush1.xpose.msra.mxu0 0.0
    %3600 = vmatprep.subr.mxu0 0.0
    %3601 = vmatpush1.xpose.msra.mxu0 0.0
    %3602 = vmatprep.subr.mxu0 0.0
    %3603 = vmatpush1.xpose.msra.mxu0 0.0
    %3604 = vmatprep.subr.mxu0 0.0
    %3605 = vmatpush1.xpose.msra.mxu0 0.0
    %3606 = vmatprep.subr.mxu0 0.0
    %3607 = vmatpush1.xpose.msra.mxu0 0.0
    %3608 = vmatprep.subr.mxu0 0.0
    %3609 = vmatpush1.xpose.msra.mxu0 0.0
    %3610 = vmatprep.subr.mxu0 0.0
    %3611 = vmatpush1.xpose.msra.mxu0 0.0
    %3612 = vmatprep.subr.mxu0 0.0
    %3613 = vmatpush1.xpose.msra.mxu0 0.0
    %3614 = vmatprep.subr.mxu0 0.0
    %3615 = vmatpush1.xpose.msra.mxu0 0.0
    %3616 = vmatprep.subr.mxu0 0.0
    %3617 = vmatpush1.xpose.msra.mxu0 0.0
    %3618 = vmatprep.subr.mxu0 0.0
    %3619 = vmatpush1.xpose.msra.mxu0 0.0
    %3620 = vmatprep.subr.mxu0 0.0
    %3621 = vmatpush1.xpose.msra.mxu0 0.0
    %3622 = vmatprep.subr.mxu0 0.0
    %3623 = vmatpush1.xpose.msra.mxu0 0.0
    %3624 = vmatprep.subr.mxu0 0.0
    %3625 = vmatpush1.xpose.msra.mxu0 0.0
    %3626 = vmatprep.subr.mxu0 0.0
    %3627 = vmatpush1.xpose.msra.mxu0 0.0
    %3628 = vmatprep.mubr.f32.mxu0 %v1809
    %3629 = vmatmul.mubr.f32.gmra.mrb[0].mxu0 %v1807
    %v3630 = vpop.f32.mrb[0].mxu0
    %v3631 = vadd.f32 0.0, %v3630
    %v3632 = vpop.f32.mrb[0].mxu0
    %3633 = vdwg.mxu0
    %3634 = vmatprep.subr.mxu0 %v3386
    %3635 = vmatpush1.xpose.msra.mxu0 %v3384
    %3636 = vmatprep.subr.mxu0 %v3390
    %3637 = vmatpush1.xpose.msra.mxu0 %v3388
    %3638 = vmatprep.subr.mxu0 0.0
    %3639 = vmatpush1.xpose.msra.mxu0 0.0
    %3640 = vmatprep.subr.mxu0 0.0
    %3641 = vmatpush1.xpose.msra.mxu0 0.0
    %3642 = vmatprep.subr.mxu0 0.0
    %3643 = vmatpush1.xpose.msra.mxu0 0.0
    %3644 = vmatprep.subr.mxu0 0.0
    %3645 = vmatpush1.xpose.msra.mxu0 0.0
    %3646 = vmatprep.subr.mxu0 0.0
    %3647 = vmatpush1.xpose.msra.mxu0 0.0
    %3648 = vmatprep.subr.mxu0 0.0
    %3649 = vmatpush1.xpose.msra.mxu0 0.0
    %3650 = vmatprep.subr.mxu0 0.0
    %3651 = vmatpush1.xpose.msra.mxu0 0.0
    %3652 = vmatprep.subr.mxu0 0.0
    %3653 = vmatpush1.xpose.msra.mxu0 0.0
    %3654 = vmatprep.subr.mxu0 0.0
    %3655 = vmatpush1.xpose.msra.mxu0 0.0
    %3656 = vmatprep.subr.mxu0 0.0
    %3657 = vmatpush1.xpose.msra.mxu0 0.0
    %3658 = vmatprep.subr.mxu0 0.0
    %3659 = vmatpush1.xpose.msra.mxu0 0.0
    %3660 = vmatprep.subr.mxu0 0.0
    %3661 = vmatpush1.xpose.msra.mxu0 0.0
    %3662 = vmatprep.subr.mxu0 0.0
    %3663 = vmatpush1.xpose.msra.mxu0 0.0
    %3664 = vmatprep.subr.mxu0 0.0
    %3665 = vmatpush1.xpose.msra.mxu0 0.0
    %3666 = vmatprep.subr.mxu0 0.0
    %3667 = vmatpush1.xpose.msra.mxu0 0.0
    %3668 = vmatprep.subr.mxu0 0.0
    %3669 = vmatpush1.xpose.msra.mxu0 0.0
    %3670 = vmatprep.subr.mxu0 0.0
    %3671 = vmatpush1.xpose.msra.mxu0 0.0
    %3672 = vmatprep.subr.mxu0 0.0
    %3673 = vmatpush1.xpose.msra.mxu0 0.0
    %3674 = vmatprep.subr.mxu0 0.0
    %3675 = vmatpush1.xpose.msra.mxu0 0.0
    %3676 = vmatprep.subr.mxu0 0.0
    %3677 = vmatpush1.xpose.msra.mxu0 0.0
    %3678 = vmatprep.subr.mxu0 0.0
    %3679 = vmatpush1.xpose.msra.mxu0 0.0
    %3680 = vmatprep.subr.mxu0 0.0
    %3681 = vmatpush1.xpose.msra.mxu0 0.0
    %3682 = vmatprep.subr.mxu0 0.0
    %3683 = vmatpush1.xpose.msra.mxu0 0.0
    %3684 = vmatprep.subr.mxu0 0.0
    %3685 = vmatpush1.xpose.msra.mxu0 0.0
    %3686 = vmatprep.subr.mxu0 0.0
    %3687 = vmatpush1.xpose.msra.mxu0 0.0
    %3688 = vmatprep.subr.mxu0 0.0
    %3689 = vmatpush1.xpose.msra.mxu0 0.0
    %3690 = vmatprep.subr.mxu0 0.0
    %3691 = vmatpush1.xpose.msra.mxu0 0.0
    %3692 = vmatprep.subr.mxu0 0.0
    %3693 = vmatpush1.xpose.msra.mxu0 0.0
    %3694 = vmatprep.subr.mxu0 0.0
    %3695 = vmatpush1.xpose.msra.mxu0 0.0
    %3696 = vmatprep.subr.mxu0 0.0
    %3697 = vmatpush1.xpose.msra.mxu0 0.0
    %3698 = vmatprep.mubr.f32.mxu0 %v1891
    %3699 = vmatmul.mubr.f32.gmra.mrb[0].mxu0 %v1889
    %v3700 = vpop.f32.mrb[0].mxu0
    %v3701 = vadd.f32 %v3631, %v3700
    %v3702 = vpop.f32.mrb[0].mxu0
    %3703 = vdwg.mxu0
    %v3704 = vmul.f32 %v3701, 0.044194173
    %v3705 = vld [vmem:[#allocation16] sm:$0x1]
    %v3707 = vlaneseq
    %v3708 = vshrl.u32 %v3707, 7
    %v3709 = vsub.s32 0, %v3708
    %v3710 = vrot.slane %v3705, %v3709
    %v3712 = vadd.f32 %v3704, %v3710
    %vm3713 = vcmask 130048
    %v3714 = vsel %vm3713, %v3712, -inf
    %3715 = vmax.xlane.f32.xlu0 %v3714
    %v3716 = vpop.xlane.xlu0 %3715
    %v3717 = vsub.f32 %v3712, %v3716
    %v3718 = vmul.f32 %v3717, 1.442695
    %v3719 = vpow.pop %v3718
    %v3720 = vsel %vm3713, %v3719, 0.0
    %3721 = vadd.xlane.f32.xlu0 %v3720
    %v3722 = vpop.xlane.xlu0 %3721
    %v3723 = vrcp.pop %v3722
    %v3724 = vmul.f32 %v3719, %v3723
    %v3726 = vsel %vm3713, %v3724, 0
    %3728 = vmatprep.subr.mxu0 %v3472
    %3729 = vmatpush1.msra.mxu0 %v3470
    %3730 = vmatprep.subr.mxu0 %v3476
    %3731 = vmatpush1.msra.mxu0 %v3474
    %3732 = vmatprep.subr.mxu0 0.0
    %3733 = vmatpush1.msra.mxu0 0.0
    %3734 = vmatprep.subr.mxu0 0.0
    %3735 = vmatpush1.msra.mxu0 0.0
    %3736 = vmatprep.subr.mxu0 0.0
    %3737 = vmatpush1.msra.mxu0 0.0
    %3738 = vmatprep.subr.mxu0 0.0
    %3739 = vmatpush1.msra.mxu0 0.0
    %3740 = vmatprep.subr.mxu0 0.0
    %3741 = vmatpush1.msra.mxu0 0.0
    %3742 = vmatprep.subr.mxu0 0.0
    %3743 = vmatpush1.msra.mxu0 0.0
    %3744 = vmatprep.subr.mxu0 0.0
    %3745 = vmatpush1.msra.mxu0 0.0
    %3746 = vmatprep.subr.mxu0 0.0
    %3747 = vmatpush1.msra.mxu0 0.0
    %3748 = vmatprep.subr.mxu0 0.0
    %3749 = vmatpush1.msra.mxu0 0.0
    %3750 = vmatprep.subr.mxu0 0.0
    %3751 = vmatpush1.msra.mxu0 0.0
    %3752 = vmatprep.subr.mxu0 0.0
    %3753 = vmatpush1.msra.mxu0 0.0
    %3754 = vmatprep.subr.mxu0 0.0
    %3755 = vmatpush1.msra.mxu0 0.0
    %3756 = vmatprep.subr.mxu0 0.0
    %3757 = vmatpush1.msra.mxu0 0.0
    %3758 = vmatprep.subr.mxu0 0.0
    %3759 = vmatpush1.msra.mxu0 0.0
    %3760 = vmatprep.subr.mxu0 0.0
    %3761 = vmatpush1.msra.mxu0 0.0
    %3762 = vmatprep.subr.mxu0 0.0
    %3763 = vmatpush1.msra.mxu0 0.0
    %3764 = vmatprep.subr.mxu0 0.0
    %3765 = vmatpush1.msra.mxu0 0.0
    %3766 = vmatprep.subr.mxu0 0.0
    %3767 = vmatpush1.msra.mxu0 0.0
    %3768 = vmatprep.subr.mxu0 0.0
    %3769 = vmatpush1.msra.mxu0 0.0
    %3770 = vmatprep.subr.mxu0 0.0
    %3771 = vmatpush1.msra.mxu0 0.0
    %3772 = vmatprep.subr.mxu0 0.0
    %3773 = vmatpush1.msra.mxu0 0.0
    %3774 = vmatprep.subr.mxu0 0.0
    %3775 = vmatpush1.msra.mxu0 0.0
    %3776 = vmatprep.subr.mxu0 0.0
    %3777 = vmatpush1.msra.mxu0 0.0
    %3778 = vmatprep.subr.mxu0 0.0
    %3779 = vmatpush1.msra.mxu0 0.0
    %3780 = vmatprep.subr.mxu0 0.0
    %3781 = vmatpush1.msra.mxu0 0.0
    %3782 = vmatprep.subr.mxu0 0.0
    %3783 = vmatpush1.msra.mxu0 0.0
    %3784 = vmatprep.subr.mxu0 0.0
    %3785 = vmatpush1.msra.mxu0 0.0
    %3786 = vmatprep.subr.mxu0 0.0
    %3787 = vmatpush1.msra.mxu0 0.0
    %3788 = vmatprep.subr.mxu0 0.0
    %3789 = vmatpush1.msra.mxu0 0.0
    %3790 = vmatprep.subr.mxu0 0.0
    %3791 = vmatpush1.msra.mxu0 0.0
    %3792 = vmatprep.mubr.f32.mxu0 0.0
    %3793 = vmatmul.mubr.f32.gmra.mrb[0].mxu0 %v3726
    %v3794 = vpop.f32.mrb[0].mxu0
    %v3795 = vadd.f32 0.0, %v3794
    %v3796 = vpop.f32.mrb[0].mxu0
    %v3797 = vadd.f32 0.0, %v3796
    %3798 = vdwg.mxu0
    %3799 = vmatprep.subr.mxu0 %v3558
    %3800 = vmatpush1.msra.mxu0 %v3556
    %3801 = vmatprep.subr.mxu0 %v3562
    %3802 = vmatpush1.msra.mxu0 %v3560
    %3803 = vmatprep.subr.mxu0 0.0
    %3804 = vmatpush1.msra.mxu0 0.0
    %3805 = vmatprep.subr.mxu0 0.0
    %3806 = vmatpush1.msra.mxu0 0.0
    %3807 = vmatprep.subr.mxu0 0.0
    %3808 = vmatpush1.msra.mxu0 0.0
    %3809 = vmatprep.subr.mxu0 0.0
    %3810 = vmatpush1.msra.mxu0 0.0
    %3811 = vmatprep.subr.mxu0 0.0
    %3812 = vmatpush1.msra.mxu0 0.0
    %3813 = vmatprep.subr.mxu0 0.0
    %3814 = vmatpush1.msra.mxu0 0.0
    %3815 = vmatprep.subr.mxu0 0.0
    %3816 = vmatpush1.msra.mxu0 0.0
    %3817 = vmatprep.subr.mxu0 0.0
    %3818 = vmatpush1.msra.mxu0 0.0
    %3819 = vmatprep.subr.mxu0 0.0
    %3820 = vmatpush1.msra.mxu0 0.0
    %3821 = vmatprep.subr.mxu0 0.0
    %3822 = vmatpush1.msra.mxu0 0.0
    %3823 = vmatprep.subr.mxu0 0.0
    %3824 = vmatpush1.msra.mxu0 0.0
    %3825 = vmatprep.subr.mxu0 0.0
    %3826 = vmatpush1.msra.mxu0 0.0
    %3827 = vmatprep.subr.mxu0 0.0
    %3828 = vmatpush1.msra.mxu0 0.0
    %3829 = vmatprep.subr.mxu0 0.0
    %3830 = vmatpush1.msra.mxu0 0.0
    %3831 = vmatprep.subr.mxu0 0.0
    %3832 = vmatpush1.msra.mxu0 0.0
    %3833 = vmatprep.subr.mxu0 0.0
    %3834 = vmatpush1.msra.mxu0 0.0
    %3835 = vmatprep.subr.mxu0 0.0
    %3836 = vmatpush1.msra.mxu0 0.0
    %3837 = vmatprep.subr.mxu0 0.0
    %3838 = vmatpush1.msra.mxu0 0.0
    %3839 = vmatprep.subr.mxu0 0.0
    %3840 = vmatpush1.msra.mxu0 0.0
    %3841 = vmatprep.subr.mxu0 0.0
    %3842 = vmatpush1.msra.mxu0 0.0
    %3843 = vmatprep.subr.mxu0 0.0
    %3844 = vmatpush1.msra.mxu0 0.0
    %3845 = vmatprep.subr.mxu0 0.0
    %3846 = vmatpush1.msra.mxu0 0.0
    %3847 = vmatprep.subr.mxu0 0.0
    %3848 = vmatpush1.msra.mxu0 0.0
    %3849 = vmatprep.subr.mxu0 0.0
    %3850 = vmatpush1.msra.mxu0 0.0
    %3851 = vmatprep.subr.mxu0 0.0
    %3852 = vmatpush1.msra.mxu0 0.0
    %3853 = vmatprep.subr.mxu0 0.0
    %3854 = vmatpush1.msra.mxu0 0.0
    %3855 = vmatprep.subr.mxu0 0.0
    %3856 = vmatpush1.msra.mxu0 0.0
    %3857 = vmatprep.subr.mxu0 0.0
    %3858 = vmatpush1.msra.mxu0 0.0
    %3859 = vmatprep.subr.mxu0 0.0
    %3860 = vmatpush1.msra.mxu0 0.0
    %3861 = vmatprep.subr.mxu0 0.0
    %3862 = vmatpush1.msra.mxu0 0.0
    %3863 = vmatprep.mubr.f32.mxu0 0.0
    %3864 = vmatmul.mubr.f32.gmra.mrb[0].mxu0 %v3726
    %v3865 = vpop.f32.mrb[0].mxu0
    %v3866 = vadd.f32 0.0, %v3865
    %v3867 = vpop.f32.mrb[0].mxu0
    %v3868 = vadd.f32 0.0, %v3867
    %3869 = vdwg.mxu0
    %v3870 = vld [vmem:[#allocation13] sm:$0xff]
    %v3871 = vld [vmem:[#allocation13 + $0x8] sm:$0xff]
    %v3872 = vld [vmem:[#allocation13 + $0x10] sm:$0xff]
    %v3873 = vld [vmem:[#allocation13 + $0x18] sm:$0xff]
    %v3874 = vld [vmem:[#allocation13 + $0x20] sm:$0xff]
    %v3875 = vld [vmem:[#allocation13 + $0x28] sm:$0xff]
    %v3876 = vld [vmem:[#allocation13 + $0x30] sm:$0xff]
    %v3877 = vld [vmem:[#allocation13 + $0x38] sm:$0xff]
    %v3878 = vld [vmem:[#allocation13 + $0x40] sm:$0xff]
    %v3879 = vld [vmem:[#allocation13 + $0x48] sm:$0xff]
    %v3880 = vld [vmem:[#allocation13 + $0x50] sm:$0xff]
    %v3881 = vld [vmem:[#allocation13 + $0x58] sm:$0xff]
    %v3882 = vld [vmem:[#allocation13 + $0x60] sm:$0xff]
    %v3883 = vld [vmem:[#allocation13 + $0x68] sm:$0xff]
    %v3884 = vld [vmem:[#allocation13 + $0x70] sm:$0xff]
    %v3885 = vld [vmem:[#allocation13 + $0x78] sm:$0xff]
    %v3886 = vld [vmem:[#allocation13 + $0x80] sm:$0xff]
    %v3887 = vld [vmem:[#allocation13 + $0x88] sm:$0xff]
    %v3888 = vld [vmem:[#allocation13 + $0x90] sm:$0xff]
    %v3889 = vld [vmem:[#allocation13 + $0x98] sm:$0xff]
    %v3890 = vld [vmem:[#allocation13 + $0xa0] sm:$0xff]
    %v3891 = vld [vmem:[#allocation13 + $0xa8] sm:$0xff]
    %v3892 = vld [vmem:[#allocation13 + $0xb0] sm:$0xff]
    %v3893 = vld [vmem:[#allocation13 + $0xb8] sm:$0xff]
    %v3894 = vld [vmem:[#allocation13 + $0xc0] sm:$0xff]
    %v3895 = vld [vmem:[#allocation13 + $0xc8] sm:$0xff]
    %v3896 = vld [vmem:[#allocation13 + $0xd0] sm:$0xff]
    %v3897 = vld [vmem:[#allocation13 + $0xd8] sm:$0xff]
    %v3898 = vld [vmem:[#allocation13 + $0xe0] sm:$0xff]
    %v3899 = vld [vmem:[#allocation13 + $0xe8] sm:$0xff]
    %v3900 = vld [vmem:[#allocation13 + $0xf0] sm:$0xff]
    %v3901 = vld [vmem:[#allocation13 + $0xf8] sm:$0xff]
    %v3902 = vld [vmem:[#allocation13 + $0x100] sm:$0xff]
    %v3903 = vld [vmem:[#allocation13 + $0x108] sm:$0xff]
    %v3904 = vld [vmem:[#allocation13 + $0x110] sm:$0xff]
    %v3905 = vld [vmem:[#allocation13 + $0x118] sm:$0xff]
    %v3906 = vld [vmem:[#allocation13 + $0x120] sm:$0xff]
    %v3907 = vld [vmem:[#allocation13 + $0x128] sm:$0xff]
    %v3908 = vld [vmem:[#allocation13 + $0x130] sm:$0xff]
    %v3909 = vld [vmem:[#allocation13 + $0x138] sm:$0xff]
    %v3910 = vld [vmem:[#allocation13 + $0x140] sm:$0xff]
    %v3911 = vld [vmem:[#allocation13 + $0x148] sm:$0xff]
    %v3912 = vld [vmem:[#allocation13 + $0x150] sm:$0xff]
    %v3913 = vld [vmem:[#allocation13 + $0x158] sm:$0xff]
    %v3914 = vld [vmem:[#allocation13 + $0x160] sm:$0xff]
    %v3915 = vld [vmem:[#allocation13 + $0x168] sm:$0xff]
    %v3916 = vld [vmem:[#allocation13 + $0x170] sm:$0xff]
    %v3917 = vld [vmem:[#allocation13 + $0x178] sm:$0xff]
    %v3918 = vld [vmem:[#allocation13 + $0x180] sm:$0xff]
    %v3919 = vld [vmem:[#allocation13 + $0x188] sm:$0xff]
    %v3920 = vld [vmem:[#allocation13 + $0x190] sm:$0xff]
    %v3921 = vld [vmem:[#allocation13 + $0x198] sm:$0xff]
    %v3922 = vld [vmem:[#allocation13 + $0x1a0] sm:$0xff]
    %v3923 = vld [vmem:[#allocation13 + $0x1a8] sm:$0xff]
    %v3924 = vld [vmem:[#allocation13 + $0x1b0] sm:$0xff]
    %v3925 = vld [vmem:[#allocation13 + $0x1b8] sm:$0xff]
    %v3926 = vld [vmem:[#allocation13 + $0x1c0] sm:$0xff]
    %v3927 = vld [vmem:[#allocation13 + $0x1c8] sm:$0xff]
    %v3928 = vld [vmem:[#allocation13 + $0x1d0] sm:$0xff]
    %v3929 = vld [vmem:[#allocation13 + $0x1d8] sm:$0xff]
    %v3930 = vld [vmem:[#allocation13 + $0x1e0] sm:$0xff]
    %v3931 = vld [vmem:[#allocation13 + $0x1e8] sm:$0xff]
    %v3932 = vld [vmem:[#allocation13 + $0x1f0] sm:$0xff]
    %v3933 = vld [vmem:[#allocation13 + $0x1f8] sm:$0xff]
    %v3934 = vld [vmem:[#allocation13 + $0x200] sm:$0xff]
    %v3935 = vld [vmem:[#allocation13 + $0x208] sm:$0xff]
    %v3936 = vld [vmem:[#allocation13 + $0x210] sm:$0xff]
    %v3937 = vld [vmem:[#allocation13 + $0x218] sm:$0xff]
    %v3938 = vld [vmem:[#allocation13 + $0x220] sm:$0xff]
    %v3939 = vld [vmem:[#allocation13 + $0x228] sm:$0xff]
    %v3940 = vld [vmem:[#allocation13 + $0x230] sm:$0xff]
    %v3941 = vld [vmem:[#allocation13 + $0x238] sm:$0xff]
    %v3942 = vld [vmem:[#allocation13 + $0x240] sm:$0xff]
    %v3943 = vld [vmem:[#allocation13 + $0x248] sm:$0xff]
    %v3944 = vld [vmem:[#allocation13 + $0x250] sm:$0xff]
    %v3945 = vld [vmem:[#allocation13 + $0x258] sm:$0xff]
    %v3946 = vld [vmem:[#allocation13 + $0x260] sm:$0xff]
    %v3947 = vld [vmem:[#allocation13 + $0x268] sm:$0xff]
    %v3948 = vld [vmem:[#allocation13 + $0x270] sm:$0xff]
    %v3949 = vld [vmem:[#allocation13 + $0x278] sm:$0xff]
    %v3950 = vld [vmem:[#allocation13 + $0x280] sm:$0xff]
    %v3951 = vld [vmem:[#allocation13 + $0x288] sm:$0xff]
    %v3952 = vld [vmem:[#allocation13 + $0x290] sm:$0xff]
    %v3953 = vld [vmem:[#allocation13 + $0x298] sm:$0xff]
    %v3954 = vld [vmem:[#allocation13 + $0x2a0] sm:$0xff]
    %v3955 = vld [vmem:[#allocation13 + $0x2a8] sm:$0xff]
    %v3956 = vld [vmem:[#allocation13 + $0x2b0] sm:$0xff]
    %v3957 = vld [vmem:[#allocation13 + $0x2b8] sm:$0xff]
    %v3958 = vld [vmem:[#allocation13 + $0x2c0] sm:$0xff]
    %v3959 = vld [vmem:[#allocation13 + $0x2c8] sm:$0xff]
    %v3960 = vld [vmem:[#allocation13 + $0x2d0] sm:$0xff]
    %v3961 = vld [vmem:[#allocation13 + $0x2d8] sm:$0xff]
    %v3962 = vld [vmem:[#allocation13 + $0x2e0] sm:$0xff]
    %v3963 = vld [vmem:[#allocation13 + $0x2e8] sm:$0xff]
    %v3964 = vld [vmem:[#allocation13 + $0x2f0] sm:$0xff]
    %v3965 = vld [vmem:[#allocation13 + $0x2f8] sm:$0xff]
    %v3966 = vld [vmem:[#allocation13 + $0x300] sm:$0xff]
    %v3967 = vld [vmem:[#allocation13 + $0x308] sm:$0xff]
    %v3968 = vld [vmem:[#allocation13 + $0x310] sm:$0xff]
    %v3969 = vld [vmem:[#allocation13 + $0x318] sm:$0xff]
    %v3970 = vld [vmem:[#allocation13 + $0x320] sm:$0xff]
    %v3971 = vld [vmem:[#allocation13 + $0x328] sm:$0xff]
    %v3972 = vld [vmem:[#allocation13 + $0x330] sm:$0xff]
    %v3973 = vld [vmem:[#allocation13 + $0x338] sm:$0xff]
    %v3974 = vld [vmem:[#allocation13 + $0x340] sm:$0xff]
    %v3975 = vld [vmem:[#allocation13 + $0x348] sm:$0xff]
    %v3976 = vld [vmem:[#allocation13 + $0x350] sm:$0xff]
    %v3977 = vld [vmem:[#allocation13 + $0x358] sm:$0xff]
    %v3978 = vld [vmem:[#allocation13 + $0x360] sm:$0xff]
    %v3979 = vld [vmem:[#allocation13 + $0x368] sm:$0xff]
    %v3980 = vld [vmem:[#allocation13 + $0x370] sm:$0xff]
    %v3981 = vld [vmem:[#allocation13 + $0x378] sm:$0xff]
    %v3982 = vld [vmem:[#allocation13 + $0x380] sm:$0xff]
    %v3983 = vld [vmem:[#allocation13 + $0x388] sm:$0xff]
    %v3984 = vld [vmem:[#allocation13 + $0x390] sm:$0xff]
    %v3985 = vld [vmem:[#allocation13 + $0x398] sm:$0xff]
    %v3986 = vld [vmem:[#allocation13 + $0x3a0] sm:$0xff]
    %v3987 = vld [vmem:[#allocation13 + $0x3a8] sm:$0xff]
    %v3988 = vld [vmem:[#allocation13 + $0x3b0] sm:$0xff]
    %v3989 = vld [vmem:[#allocation13 + $0x3b8] sm:$0xff]
    %v3990 = vld [vmem:[#allocation13 + $0x3c0] sm:$0xff]
    %v3991 = vld [vmem:[#allocation13 + $0x3c8] sm:$0xff]
    %v3992 = vld [vmem:[#allocation13 + $0x3d0] sm:$0xff]
    %v3993 = vld [vmem:[#allocation13 + $0x3d8] sm:$0xff]
    %v3994 = vld [vmem:[#allocation13 + $0x3e0] sm:$0xff]
    %v3995 = vld [vmem:[#allocation13 + $0x3e8] sm:$0xff]
    %v3996 = vld [vmem:[#allocation13 + $0x3f0] sm:$0xff]
    %v3997 = vld [vmem:[#allocation13 + $0x3f8] sm:$0xff]
    %v3998 = vunpack.c.l.bf16 %v3870
    %v3999 = vunpack.c.h.bf16 %v3870
    %v4000 = vunpack.c.l.bf16 %v3871
    %v4001 = vunpack.c.h.bf16 %v3871
    %v4002 = vunpack.c.l.bf16 %v3872
    %v4003 = vunpack.c.h.bf16 %v3872
    %v4004 = vunpack.c.l.bf16 %v3873
    %v4005 = vunpack.c.h.bf16 %v3873
    %v4006 = vunpack.c.l.bf16 %v3874
    %v4007 = vunpack.c.h.bf16 %v3874
    %v4008 = vunpack.c.l.bf16 %v3875
    %v4009 = vunpack.c.h.bf16 %v3875
    %v4010 = vunpack.c.l.bf16 %v3876
    %v4011 = vunpack.c.h.bf16 %v3876
    %v4012 = vunpack.c.l.bf16 %v3877
    %v4013 = vunpack.c.h.bf16 %v3877
    %v4014 = vunpack.c.l.bf16 %v3878
    %v4015 = vunpack.c.h.bf16 %v3878
    %v4016 = vunpack.c.l.bf16 %v3879
    %v4017 = vunpack.c.h.bf16 %v3879
    %v4018 = vunpack.c.l.bf16 %v3880
    %v4019 = vunpack.c.h.bf16 %v3880
    %v4020 = vunpack.c.l.bf16 %v3881
    %v4021 = vunpack.c.h.bf16 %v3881
    %v4022 = vunpack.c.l.bf16 %v3882
    %v4023 = vunpack.c.h.bf16 %v3882
    %v4024 = vunpack.c.l.bf16 %v3883
    %v4025 = vunpack.c.h.bf16 %v3883
    %v4026 = vunpack.c.l.bf16 %v3884
    %v4027 = vunpack.c.h.bf16 %v3884
    %v4028 = vunpack.c.l.bf16 %v3885
    %v4029 = vunpack.c.h.bf16 %v3885
    %v4030 = vunpack.c.l.bf16 %v3886
    %v4031 = vunpack.c.h.bf16 %v3886
    %v4032 = vunpack.c.l.bf16 %v3887
    %v4033 = vunpack.c.h.bf16 %v3887
    %v4034 = vunpack.c.l.bf16 %v3888
    %v4035 = vunpack.c.h.bf16 %v3888
    %v4036 = vunpack.c.l.bf16 %v3889
    %v4037 = vunpack.c.h.bf16 %v3889
    %v4038 = vunpack.c.l.bf16 %v3890
    %v4039 = vunpack.c.h.bf16 %v3890
    %v4040 = vunpack.c.l.bf16 %v3891
    %v4041 = vunpack.c.h.bf16 %v3891
    %v4042 = vunpack.c.l.bf16 %v3892
    %v4043 = vunpack.c.h.bf16 %v3892
    %v4044 = vunpack.c.l.bf16 %v3893
    %v4045 = vunpack.c.h.bf16 %v3893
    %v4046 = vunpack.c.l.bf16 %v3894
    %v4047 = vunpack.c.h.bf16 %v3894
    %v4048 = vunpack.c.l.bf16 %v3895
    %v4049 = vunpack.c.h.bf16 %v3895
    %v4050 = vunpack.c.l.bf16 %v3896
    %v4051 = vunpack.c.h.bf16 %v3896
    %v4052 = vunpack.c.l.bf16 %v3897
    %v4053 = vunpack.c.h.bf16 %v3897
    %v4054 = vunpack.c.l.bf16 %v3898
    %v4055 = vunpack.c.h.bf16 %v3898
    %v4056 = vunpack.c.l.bf16 %v3899
    %v4057 = vunpack.c.h.bf16 %v3899
    %v4058 = vunpack.c.l.bf16 %v3900
    %v4059 = vunpack.c.h.bf16 %v3900
    %v4060 = vunpack.c.l.bf16 %v3901
    %v4061 = vunpack.c.h.bf16 %v3901
    %v4062 = vunpack.c.l.bf16 %v3902
    %v4063 = vunpack.c.h.bf16 %v3902
    %v4064 = vunpack.c.l.bf16 %v3903
    %v4065 = vunpack.c.h.bf16 %v3903
    %v4066 = vunpack.c.l.bf16 %v3904
    %v4067 = vunpack.c.h.bf16 %v3904
    %v4068 = vunpack.c.l.bf16 %v3905
    %v4069 = vunpack.c.h.bf16 %v3905
    %v4070 = vunpack.c.l.bf16 %v3906
    %v4071 = vunpack.c.h.bf16 %v3906
    %v4072 = vunpack.c.l.bf16 %v3907
    %v4073 = vunpack.c.h.bf16 %v3907
    %v4074 = vunpack.c.l.bf16 %v3908
    %v4075 = vunpack.c.h.bf16 %v3908
    %v4076 = vunpack.c.l.bf16 %v3909
    %v4077 = vunpack.c.h.bf16 %v3909
    %v4078 = vunpack.c.l.bf16 %v3910
    %v4079 = vunpack.c.h.bf16 %v3910
    %v4080 = vunpack.c.l.bf16 %v3911
    %v4081 = vunpack.c.h.bf16 %v3911
    %v4082 = vunpack.c.l.bf16 %v3912
    %v4083 = vunpack.c.h.bf16 %v3912
    %v4084 = vunpack.c.l.bf16 %v3913
    %v4085 = vunpack.c.h.bf16 %v3913
    %v4086 = vunpack.c.l.bf16 %v3914
    %v4087 = vunpack.c.h.bf16 %v3914
    %v4088 = vunpack.c.l.bf16 %v3915
    %v4089 = vunpack.c.h.bf16 %v3915
    %v4090 = vunpack.c.l.bf16 %v3916
    %v4091 = vunpack.c.h.bf16 %v3916
    %v4092 = vunpack.c.l.bf16 %v3917
    %v4093 = vunpack.c.h.bf16 %v3917
    %v4094 = vunpack.c.l.bf16 %v3918
    %v4095 = vunpack.c.h.bf16 %v3918
    %v4096 = vunpack.c.l.bf16 %v3919
    %v4097 = vunpack.c.h.bf16 %v3919
    %v4098 = vunpack.c.l.bf16 %v3920
    %v4099 = vunpack.c.h.bf16 %v3920
    %v4100 = vunpack.c.l.bf16 %v3921
    %v4101 = vunpack.c.h.bf16 %v3921
    %v4102 = vunpack.c.l.bf16 %v3922
    %v4103 = vunpack.c.h.bf16 %v3922
    %v4104 = vunpack.c.l.bf16 %v3923
    %v4105 = vunpack.c.h.bf16 %v3923
    %v4106 = vunpack.c.l.bf16 %v3924
    %v4107 = vunpack.c.h.bf16 %v3924
    %v4108 = vunpack.c.l.bf16 %v3925
    %v4109 = vunpack.c.h.bf16 %v3925
    %v4110 = vunpack.c.l.bf16 %v3926
    %v4111 = vunpack.c.h.bf16 %v3926
    %v4112 = vunpack.c.l.bf16 %v3927
    %v4113 = vunpack.c.h.bf16 %v3927
    %v4114 = vunpack.c.l.bf16 %v3928
    %v4115 = vunpack.c.h.bf16 %v3928
    %v4116 = vunpack.c.l.bf16 %v3929
    %v4117 = vunpack.c.h.bf16 %v3929
    %v4118 = vunpack.c.l.bf16 %v3930
    %v4119 = vunpack.c.h.bf16 %v3930
    %v4120 = vunpack.c.l.bf16 %v3931
    %v4121 = vunpack.c.h.bf16 %v3931
    %v4122 = vunpack.c.l.bf16 %v3932
    %v4123 = vunpack.c.h.bf16 %v3932
    %v4124 = vunpack.c.l.bf16 %v3933
    %v4125 = vunpack.c.h.bf16 %v3933
    %v4126 = vunpack.c.l.bf16 %v3934
    %v4127 = vunpack.c.h.bf16 %v3934
    %v4128 = vunpack.c.l.bf16 %v3935
    %v4129 = vunpack.c.h.bf16 %v3935
    %v4130 = vunpack.c.l.bf16 %v3936
    %v4131 = vunpack.c.h.bf16 %v3936
    %v4132 = vunpack.c.l.bf16 %v3937
    %v4133 = vunpack.c.h.bf16 %v3937
    %v4134 = vunpack.c.l.bf16 %v3938
    %v4135 = vunpack.c.h.bf16 %v3938
    %v4136 = vunpack.c.l.bf16 %v3939
    %v4137 = vunpack.c.h.bf16 %v3939
    %v4138 = vunpack.c.l.bf16 %v3940
    %v4139 = vunpack.c.h.bf16 %v3940
    %v4140 = vunpack.c.l.bf16 %v3941
    %v4141 = vunpack.c.h.bf16 %v3941
    %v4142 = vunpack.c.l.bf16 %v3942
    %v4143 = vunpack.c.h.bf16 %v3942
    %v4144 = vunpack.c.l.bf16 %v3943
    %v4145 = vunpack.c.h.bf16 %v3943
    %v4146 = vunpack.c.l.bf16 %v3944
    %v4147 = vunpack.c.h.bf16 %v3944
    %v4148 = vunpack.c.l.bf16 %v3945
    %v4149 = vunpack.c.h.bf16 %v3945
    %v4150 = vunpack.c.l.bf16 %v3946
    %v4151 = vunpack.c.h.bf16 %v3946
    %v4152 = vunpack.c.l.bf16 %v3947
    %v4153 = vunpack.c.h.bf16 %v3947
    %v4154 = vunpack.c.l.bf16 %v3948
    %v4155 = vunpack.c.h.bf16 %v3948
    %v4156 = vunpack.c.l.bf16 %v3949
    %v4157 = vunpack.c.h.bf16 %v3949
    %v4158 = vunpack.c.l.bf16 %v3950
    %v4159 = vunpack.c.h.bf16 %v3950
    %v4160 = vunpack.c.l.bf16 %v3951
    %v4161 = vunpack.c.h.bf16 %v3951
    %v4162 = vunpack.c.l.bf16 %v3952
    %v4163 = vunpack.c.h.bf16 %v3952
    %v4164 = vunpack.c.l.bf16 %v3953
    %v4165 = vunpack.c.h.bf16 %v3953
    %v4166 = vunpack.c.l.bf16 %v3954
    %v4167 = vunpack.c.h.bf16 %v3954
    %v4168 = vunpack.c.l.bf16 %v3955
    %v4169 = vunpack.c.h.bf16 %v3955
    %v4170 = vunpack.c.l.bf16 %v3956
    %v4171 = vunpack.c.h.bf16 %v3956
    %v4172 = vunpack.c.l.bf16 %v3957
    %v4173 = vunpack.c.h.bf16 %v3957
    %v4174 = vunpack.c.l.bf16 %v3958
    %v4175 = vunpack.c.h.bf16 %v3958
    %v4176 = vunpack.c.l.bf16 %v3959
    %v4177 = vunpack.c.h.bf16 %v3959
    %v4178 = vunpack.c.l.bf16 %v3960
    %v4179 = vunpack.c.h.bf16 %v3960
    %v4180 = vunpack.c.l.bf16 %v3961
    %v4181 = vunpack.c.h.bf16 %v3961
    %v4182 = vunpack.c.l.bf16 %v3962
    %v4183 = vunpack.c.h.bf16 %v3962
    %v4184 = vunpack.c.l.bf16 %v3963
    %v4185 = vunpack.c.h.bf16 %v3963
    %v4186 = vunpack.c.l.bf16 %v3964
    %v4187 = vunpack.c.h.bf16 %v3964
    %v4188 = vunpack.c.l.bf16 %v3965
    %v4189 = vunpack.c.h.bf16 %v3965
    %v4190 = vunpack.c.l.bf16 %v3966
    %v4191 = vunpack.c.h.bf16 %v3966
    %v4192 = vunpack.c.l.bf16 %v3967
    %v4193 = vunpack.c.h.bf16 %v3967
    %v4194 = vunpack.c.l.bf16 %v3968
    %v4195 = vunpack.c.h.bf16 %v3968
    %v4196 = vunpack.c.l.bf16 %v3969
    %v4197 = vunpack.c.h.bf16 %v3969
    %v4198 = vunpack.c.l.bf16 %v3970
    %v4199 = vunpack.c.h.bf16 %v3970
    %v4200 = vunpack.c.l.bf16 %v3971
    %v4201 = vunpack.c.h.bf16 %v3971
    %v4202 = vunpack.c.l.bf16 %v3972
    %v4203 = vunpack.c.h.bf16 %v3972
    %v4204 = vunpack.c.l.bf16 %v3973
    %v4205 = vunpack.c.h.bf16 %v3973
    %v4206 = vunpack.c.l.bf16 %v3974
    %v4207 = vunpack.c.h.bf16 %v3974
    %v4208 = vunpack.c.l.bf16 %v3975
    %v4209 = vunpack.c.h.bf16 %v3975
    %v4210 = vunpack.c.l.bf16 %v3976
    %v4211 = vunpack.c.h.bf16 %v3976
    %v4212 = vunpack.c.l.bf16 %v3977
    %v4213 = vunpack.c.h.bf16 %v3977
    %v4214 = vunpack.c.l.bf16 %v3978
    %v4215 = vunpack.c.h.bf16 %v3978
    %v4216 = vunpack.c.l.bf16 %v3979
    %v4217 = vunpack.c.h.bf16 %v3979
    %v4218 = vunpack.c.l.bf16 %v3980
    %v4219 = vunpack.c.h.bf16 %v3980
    %v4220 = vunpack.c.l.bf16 %v3981
    %v4221 = vunpack.c.h.bf16 %v3981
    %v4222 = vunpack.c.l.bf16 %v3982
    %v4223 = vunpack.c.h.bf16 %v3982
    %v4224 = vunpack.c.l.bf16 %v3983
    %v4225 = vunpack.c.h.bf16 %v3983
    %v4226 = vunpack.c.l.bf16 %v3984
    %v4227 = vunpack.c.h.bf16 %v3984
    %v4228 = vunpack.c.l.bf16 %v3985
    %v4229 = vunpack.c.h.bf16 %v3985
    %v4230 = vunpack.c.l.bf16 %v3986
    %v4231 = vunpack.c.h.bf16 %v3986
    %v4232 = vunpack.c.l.bf16 %v3987
    %v4233 = vunpack.c.h.bf16 %v3987
    %v4234 = vunpack.c.l.bf16 %v3988
    %v4235 = vunpack.c.h.bf16 %v3988
    %v4236 = vunpack.c.l.bf16 %v3989
    %v4237 = vunpack.c.h.bf16 %v3989
    %v4238 = vunpack.c.l.bf16 %v3990
    %v4239 = vunpack.c.h.bf16 %v3990
    %v4240 = vunpack.c.l.bf16 %v3991
    %v4241 = vunpack.c.h.bf16 %v3991
    %v4242 = vunpack.c.l.bf16 %v3992
    %v4243 = vunpack.c.h.bf16 %v3992
    %v4244 = vunpack.c.l.bf16 %v3993
    %v4245 = vunpack.c.h.bf16 %v3993
    %v4246 = vunpack.c.l.bf16 %v3994
    %v4247 = vunpack.c.h.bf16 %v3994
    %v4248 = vunpack.c.l.bf16 %v3995
    %v4249 = vunpack.c.h.bf16 %v3995
    %v4250 = vunpack.c.l.bf16 %v3996
    %v4251 = vunpack.c.h.bf16 %v3996
    %v4252 = vunpack.c.l.bf16 %v3997
    %v4253 = vunpack.c.h.bf16 %v3997
    %v4254 = vld [vmem:[#allocation14] sm:$0xf]
    %v4256 = vlaneseq
    %v4257 = vshrl.u32 %v4256, 7
    %v4258 = vsub.s32 0, %v4257
    %v4259 = vrot.slane %v4254, %v4258
    %v4260 = vlaneseq
    %v4261 = vshrl.u32 %v4260, 7
    %v4262 = vsub.s32 1, %v4261
    %v4263 = vrot.slane %v4254, %v4262
    %v4264 = vlaneseq
    %v4265 = vshrl.u32 %v4264, 7
    %v4266 = vsub.s32 2, %v4265
    %v4267 = vrot.slane %v4254, %v4266
    %v4268 = vlaneseq
    %v4269 = vshrl.u32 %v4268, 7
    %v4270 = vsub.s32 3, %v4269
    %v4271 = vrot.slane %v4254, %v4270
    %4276 = vmatprep.subr.mxu0 %v3999
    %4277 = vmatpush1.msra.mxu0 %v3998
    %4278 = vmatprep.subr.mxu0 %v4003
    %4279 = vmatpush1.msra.mxu0 %v4002
    %4280 = vmatprep.subr.mxu0 %v4007
    %4281 = vmatpush1.msra.mxu0 %v4006
    %4282 = vmatprep.subr.mxu0 %v4011
    %4283 = vmatpush1.msra.mxu0 %v4010
    %4284 = vmatprep.subr.mxu0 %v4015
    %4285 = vmatpush1.msra.mxu0 %v4014
    %4286 = vmatprep.subr.mxu0 %v4019
    %4287 = vmatpush1.msra.mxu0 %v4018
    %4288 = vmatprep.subr.mxu0 %v4023
    %4289 = vmatpush1.msra.mxu0 %v4022
    %4290 = vmatprep.subr.mxu0 %v4027
    %4291 = vmatpush1.msra.mxu0 %v4026
    %4292 = vmatprep.subr.mxu0 %v4031
    %4293 = vmatpush1.msra.mxu0 %v4030
    %4294 = vmatprep.subr.mxu0 %v4035
    %4295 = vmatpush1.msra.mxu0 %v4034
    %4296 = vmatprep.subr.mxu0 %v4039
    %4297 = vmatpush1.msra.mxu0 %v4038
    %4298 = vmatprep.subr.mxu0 %v4043
    %4299 = vmatpush1.msra.mxu0 %v4042
    %4300 = vmatprep.subr.mxu0 %v4047
    %4301 = vmatpush1.msra.mxu0 %v4046
    %4302 = vmatprep.subr.mxu0 %v4051
    %4303 = vmatpush1.msra.mxu0 %v4050
    %4304 = vmatprep.subr.mxu0 %v4055
    %4305 = vmatpush1.msra.mxu0 %v4054
    %4306 = vmatprep.subr.mxu0 %v4059
    %4307 = vmatpush1.msra.mxu0 %v4058
    %4308 = vmatprep.subr.mxu0 %v4063
    %4309 = vmatpush1.msra.mxu0 %v4062
    %4310 = vmatprep.subr.mxu0 %v4067
    %4311 = vmatpush1.msra.mxu0 %v4066
    %4312 = vmatprep.subr.mxu0 %v4071
    %4313 = vmatpush1.msra.mxu0 %v4070
    %4314 = vmatprep.subr.mxu0 %v4075
    %4315 = vmatpush1.msra.mxu0 %v4074
    %4316 = vmatprep.subr.mxu0 %v4079
    %4317 = vmatpush1.msra.mxu0 %v4078
    %4318 = vmatprep.subr.mxu0 %v4083
    %4319 = vmatpush1.msra.mxu0 %v4082
    %4320 = vmatprep.subr.mxu0 %v4087
    %4321 = vmatpush1.msra.mxu0 %v4086
    %4322 = vmatprep.subr.mxu0 %v4091
    %4323 = vmatpush1.msra.mxu0 %v4090
    %4324 = vmatprep.subr.mxu0 %v4095
    %4325 = vmatpush1.msra.mxu0 %v4094
    %4326 = vmatprep.subr.mxu0 %v4099
    %4327 = vmatpush1.msra.mxu0 %v4098
    %4328 = vmatprep.subr.mxu0 %v4103
    %4329 = vmatpush1.msra.mxu0 %v4102
    %4330 = vmatprep.subr.mxu0 %v4107
    %4331 = vmatpush1.msra.mxu0 %v4106
    %4332 = vmatprep.subr.mxu0 %v4111
    %4333 = vmatpush1.msra.mxu0 %v4110
    %4334 = vmatprep.subr.mxu0 %v4115
    %4335 = vmatpush1.msra.mxu0 %v4114
    %4336 = vmatprep.subr.mxu0 %v4119
    %4337 = vmatpush1.msra.mxu0 %v4118
    %4338 = vmatprep.subr.mxu0 %v4123
    %4339 = vmatpush1.msra.mxu0 %v4122
    %4340 = vmatprep.mubr.f32.mxu0 %v3797
    %4341 = vmatmul.mubr.f32.gmra.mrb[0].mxu0 %v3795
    %v4342 = vpop.f32.mrb[0].mxu0
    %v4343 = vadd.f32 %v4259, %v4342
    %v4344 = vpop.f32.mrb[0].mxu0
    %v4345 = vadd.f32 %v4263, %v4344
    %4346 = vdwg.mxu0
    %4347 = vmatprep.subr.mxu0 %v4127
    %4348 = vmatpush1.msra.mxu0 %v4126
    %4349 = vmatprep.subr.mxu0 %v4131
    %4350 = vmatpush1.msra.mxu0 %v4130
    %4351 = vmatprep.subr.mxu0 %v4135
    %4352 = vmatpush1.msra.mxu0 %v4134
    %4353 = vmatprep.subr.mxu0 %v4139
    %4354 = vmatpush1.msra.mxu0 %v4138
    %4355 = vmatprep.subr.mxu0 %v4143
    %4356 = vmatpush1.msra.mxu0 %v4142
    %4357 = vmatprep.subr.mxu0 %v4147
    %4358 = vmatpush1.msra.mxu0 %v4146
    %4359 = vmatprep.subr.mxu0 %v4151
    %4360 = vmatpush1.msra.mxu0 %v4150
    %4361 = vmatprep.subr.mxu0 %v4155
    %4362 = vmatpush1.msra.mxu0 %v4154
    %4363 = vmatprep.subr.mxu0 %v4159
    %4364 = vmatpush1.msra.mxu0 %v4158
    %4365 = vmatprep.subr.mxu0 %v4163
    %4366 = vmatpush1.msra.mxu0 %v4162
    %4367 = vmatprep.subr.mxu0 %v4167
    %4368 = vmatpush1.msra.mxu0 %v4166
    %4369 = vmatprep.subr.mxu0 %v4171
    %4370 = vmatpush1.msra.mxu0 %v4170
    %4371 = vmatprep.subr.mxu0 %v4175
    %4372 = vmatpush1.msra.mxu0 %v4174
    %4373 = vmatprep.subr.mxu0 %v4179
    %4374 = vmatpush1.msra.mxu0 %v4178
    %4375 = vmatprep.subr.mxu0 %v4183
    %4376 = vmatpush1.msra.mxu0 %v4182
    %4377 = vmatprep.subr.mxu0 %v4187
    %4378 = vmatpush1.msra.mxu0 %v4186
    %4379 = vmatprep.subr.mxu0 %v4191
    %4380 = vmatpush1.msra.mxu0 %v4190
    %4381 = vmatprep.subr.mxu0 %v4195
    %4382 = vmatpush1.msra.mxu0 %v4194
    %4383 = vmatprep.subr.mxu0 %v4199
    %4384 = vmatpush1.msra.mxu0 %v4198
    %4385 = vmatprep.subr.mxu0 %v4203
    %4386 = vmatpush1.msra.mxu0 %v4202
    %4387 = vmatprep.subr.mxu0 %v4207
    %4388 = vmatpush1.msra.mxu0 %v4206
    %4389 = vmatprep.subr.mxu0 %v4211
    %4390 = vmatpush1.msra.mxu0 %v4210
    %4391 = vmatprep.subr.mxu0 %v4215
    %4392 = vmatpush1.msra.mxu0 %v4214
    %4393 = vmatprep.subr.mxu0 %v4219
    %4394 = vmatpush1.msra.mxu0 %v4218
    %4395 = vmatprep.subr.mxu0 %v4223
    %4396 = vmatpush1.msra.mxu0 %v4222
    %4397 = vmatprep.subr.mxu0 %v4227
    %4398 = vmatpush1.msra.mxu0 %v4226
    %4399 = vmatprep.subr.mxu0 %v4231
    %4400 = vmatpush1.msra.mxu0 %v4230
    %4401 = vmatprep.subr.mxu0 %v4235
    %4402 = vmatpush1.msra.mxu0 %v4234
    %4403 = vmatprep.subr.mxu0 %v4239
    %4404 = vmatpush1.msra.mxu0 %v4238
    %4405 = vmatprep.subr.mxu0 %v4243
    %4406 = vmatpush1.msra.mxu0 %v4242
    %4407 = vmatprep.subr.mxu0 %v4247
    %4408 = vmatpush1.msra.mxu0 %v4246
    %4409 = vmatprep.subr.mxu0 %v4251
    %4410 = vmatpush1.msra.mxu0 %v4250
    %4411 = vmatprep.mubr.f32.mxu0 %v3868
    %4412 = vmatmul.mubr.f32.gmra.mrb[0].mxu0 %v3866
    %v4413 = vpop.f32.mrb[0].mxu0
    %v4414 = vadd.f32 %v4343, %v4413
    %v4415 = vpop.f32.mrb[0].mxu0
    %v4416 = vadd.f32 %v4345, %v4415
    %4417 = vdwg.mxu0
    %4418 = vmatprep.subr.mxu0 %v4001
    %4419 = vmatpush1.msra.mxu0 %v4000
    %4420 = vmatprep.subr.mxu0 %v4005
    %4421 = vmatpush1.msra.mxu0 %v4004
    %4422 = vmatprep.subr.mxu0 %v4009
    %4423 = vmatpush1.msra.mxu0 %v4008
    %4424 = vmatprep.subr.mxu0 %v4013
    %4425 = vmatpush1.msra.mxu0 %v4012
    %4426 = vmatprep.subr.mxu0 %v4017
    %4427 = vmatpush1.msra.mxu0 %v4016
    %4428 = vmatprep.subr.mxu0 %v4021
    %4429 = vmatpush1.msra.mxu0 %v4020
    %4430 = vmatprep.subr.mxu0 %v4025
    %4431 = vmatpush1.msra.mxu0 %v4024
    %4432 = vmatprep.subr.mxu0 %v4029
    %4433 = vmatpush1.msra.mxu0 %v4028
    %4434 = vmatprep.subr.mxu0 %v4033
    %4435 = vmatpush1.msra.mxu0 %v4032
    %4436 = vmatprep.subr.mxu0 %v4037
    %4437 = vmatpush1.msra.mxu0 %v4036
    %4438 = vmatprep.subr.mxu0 %v4041
    %4439 = vmatpush1.msra.mxu0 %v4040
    %4440 = vmatprep.subr.mxu0 %v4045
    %4441 = vmatpush1.msra.mxu0 %v4044
    %4442 = vmatprep.subr.mxu0 %v4049
    %4443 = vmatpush1.msra.mxu0 %v4048
    %4444 = vmatprep.subr.mxu0 %v4053
    %4445 = vmatpush1.msra.mxu0 %v4052
    %4446 = vmatprep.subr.mxu0 %v4057
    %4447 = vmatpush1.msra.mxu0 %v4056
    %4448 = vmatprep.subr.mxu0 %v4061
    %4449 = vmatpush1.msra.mxu0 %v4060
    %4450 = vmatprep.subr.mxu0 %v4065
    %4451 = vmatpush1.msra.mxu0 %v4064
    %4452 = vmatprep.subr.mxu0 %v4069
    %4453 = vmatpush1.msra.mxu0 %v4068
    %4454 = vmatprep.subr.mxu0 %v4073
    %4455 = vmatpush1.msra.mxu0 %v4072
    %4456 = vmatprep.subr.mxu0 %v4077
    %4457 = vmatpush1.msra.mxu0 %v4076
    %4458 = vmatprep.subr.mxu0 %v4081
    %4459 = vmatpush1.msra.mxu0 %v4080
    %4460 = vmatprep.subr.mxu0 %v4085
    %4461 = vmatpush1.msra.mxu0 %v4084
    %4462 = vmatprep.subr.mxu0 %v4089
    %4463 = vmatpush1.msra.mxu0 %v4088
    %4464 = vmatprep.subr.mxu0 %v4093
    %4465 = vmatpush1.msra.mxu0 %v4092
    %4466 = vmatprep.subr.mxu0 %v4097
    %4467 = vmatpush1.msra.mxu0 %v4096
    %4468 = vmatprep.subr.mxu0 %v4101
    %4469 = vmatpush1.msra.mxu0 %v4100
    %4470 = vmatprep.subr.mxu0 %v4105
    %4471 = vmatpush1.msra.mxu0 %v4104
    %4472 = vmatprep.subr.mxu0 %v4109
    %4473 = vmatpush1.msra.mxu0 %v4108
    %4474 = vmatprep.subr.mxu0 %v4113
    %4475 = vmatpush1.msra.mxu0 %v4112
    %4476 = vmatprep.subr.mxu0 %v4117
    %4477 = vmatpush1.msra.mxu0 %v4116
    %4478 = vmatprep.subr.mxu0 %v4121
    %4479 = vmatpush1.msra.mxu0 %v4120
    %4480 = vmatprep.subr.mxu0 %v4125
    %4481 = vmatpush1.msra.mxu0 %v4124
    %4482 = vmatprep.mubr.f32.mxu0 %v3797
    %4483 = vmatmul.mubr.f32.gmra.mrb[0].mxu0 %v3795
    %v4484 = vpop.f32.mrb[0].mxu0
    %v4485 = vadd.f32 %v4267, %v4484
    %v4486 = vpop.f32.mrb[0].mxu0
    %v4487 = vadd.f32 %v4271, %v4486
    %4488 = vdwg.mxu0
    %4489 = vmatprep.subr.mxu0 %v4129
    %4490 = vmatpush1.msra.mxu0 %v4128
    %4491 = vmatprep.subr.mxu0 %v4133
    %4492 = vmatpush1.msra.mxu0 %v4132
    %4493 = vmatprep.subr.mxu0 %v4137
    %4494 = vmatpush1.msra.mxu0 %v4136
    %4495 = vmatprep.subr.mxu0 %v4141
    %4496 = vmatpush1.msra.mxu0 %v4140
    %4497 = vmatprep.subr.mxu0 %v4145
    %4498 = vmatpush1.msra.mxu0 %v4144
    %4499 = vmatprep.subr.mxu0 %v4149
    %4500 = vmatpush1.msra.mxu0 %v4148
    %4501 = vmatprep.subr.mxu0 %v4153
    %4502 = vmatpush1.msra.mxu0 %v4152
    %4503 = vmatprep.subr.mxu0 %v4157
    %4504 = vmatpush1.msra.mxu0 %v4156
    %4505 = vmatprep.subr.mxu0 %v4161
    %4506 = vmatpush1.msra.mxu0 %v4160
    %4507 = vmatprep.subr.mxu0 %v4165
    %4508 = vmatpush1.msra.mxu0 %v4164
    %4509 = vmatprep.subr.mxu0 %v4169
    %4510 = vmatpush1.msra.mxu0 %v4168
    %4511 = vmatprep.subr.mxu0 %v4173
    %4512 = vmatpush1.msra.mxu0 %v4172
    %4513 = vmatprep.subr.mxu0 %v4177
    %4514 = vmatpush1.msra.mxu0 %v4176
    %4515 = vmatprep.subr.mxu0 %v4181
    %4516 = vmatpush1.msra.mxu0 %v4180
    %4517 = vmatprep.subr.mxu0 %v4185
    %4518 = vmatpush1.msra.mxu0 %v4184
    %4519 = vmatprep.subr.mxu0 %v4189
    %4520 = vmatpush1.msra.mxu0 %v4188
    %4521 = vmatprep.subr.mxu0 %v4193
    %4522 = vmatpush1.msra.mxu0 %v4192
    %4523 = vmatprep.subr.mxu0 %v4197
    %4524 = vmatpush1.msra.mxu0 %v4196
    %4525 = vmatprep.subr.mxu0 %v4201
    %4526 = vmatpush1.msra.mxu0 %v4200
    %4527 = vmatprep.subr.mxu0 %v4205
    %4528 = vmatpush1.msra.mxu0 %v4204
    %4529 = vmatprep.subr.mxu0 %v4209
    %4530 = vmatpush1.msra.mxu0 %v4208
    %4531 = vmatprep.subr.mxu0 %v4213
    %4532 = vmatpush1.msra.mxu0 %v4212
    %4533 = vmatprep.subr.mxu0 %v4217
    %4534 = vmatpush1.msra.mxu0 %v4216
    %4535 = vmatprep.subr.mxu0 %v4221
    %4536 = vmatpush1.msra.mxu0 %v4220
    %4537 = vmatprep.subr.mxu0 %v4225
    %4538 = vmatpush1.msra.mxu0 %v4224
    %4539 = vmatprep.subr.mxu0 %v4229
    %4540 = vmatpush1.msra.mxu0 %v4228
    %4541 = vmatprep.subr.mxu0 %v4233
    %4542 = vmatpush1.msra.mxu0 %v4232
    %4543 = vmatprep.subr.mxu0 %v4237
    %4544 = vmatpush1.msra.mxu0 %v4236
    %4545 = vmatprep.subr.mxu0 %v4241
    %4546 = vmatpush1.msra.mxu0 %v4240
    %4547 = vmatprep.subr.mxu0 %v4245
    %4548 = vmatpush1.msra.mxu0 %v4244
    %4549 = vmatprep.subr.mxu0 %v4249
    %4550 = vmatpush1.msra.mxu0 %v4248
    %4551 = vmatprep.subr.mxu0 %v4253
    %4552 = vmatpush1.msra.mxu0 %v4252
    %4553 = vmatprep.mubr.f32.mxu0 %v3868
    %4554 = vmatmul.mubr.f32.gmra.mrb[0].mxu0 %v3866
    %v4555 = vpop.f32.mrb[0].mxu0
    %v4556 = vadd.f32 %v4485, %v4555
    %v4557 = vpop.f32.mrb[0].mxu0
    %v4558 = vadd.f32 %v4487, %v4557
    %4559 = vdwg.mxu0
    %v4560 = vadd.f32 %v623, %v4414
    %v4561 = vadd.f32 %v625, %v4416
    %v4562 = vadd.f32 %v674, %v4556
    %v4563 = vadd.f32 %v676, %v4558
    %v4564 = vld [vmem:[%s8] sm:$0xff]
    %v4565 = vld [vmem:[%s8 + $0x8] sm:$0xff]
    %v4566 = vld [vmem:[%s8 + $0x10] sm:$0xff]
    %v4567 = vld [vmem:[%s8 + $0x18] sm:$0xff]
    %v4568 = vld [vmem:[%s8 + $0x20] sm:$0xff]
    %v4569 = vld [vmem:[%s8 + $0x28] sm:$0xff]
    %v4570 = vld [vmem:[%s8 + $0x30] sm:$0xff]
    %v4571 = vld [vmem:[%s8 + $0x38] sm:$0xff]
    %v4572 = vld [vmem:[%s8 + $0x40] sm:$0xff]
    %v4573 = vld [vmem:[%s8 + $0x48] sm:$0xff]
    %v4574 = vld [vmem:[%s8 + $0x50] sm:$0xff]
    %v4575 = vld [vmem:[%s8 + $0x58] sm:$0xff]
    %v4576 = vld [vmem:[%s8 + $0x60] sm:$0xff]
    %v4577 = vld [vmem:[%s8 + $0x68] sm:$0xff]
    %v4578 = vld [vmem:[%s8 + $0x70] sm:$0xff]
    %v4579 = vld [vmem:[%s8 + $0x78] sm:$0xff]
    %v4581 = vsel %vm3713, %v4564, 0
    %v4584 = vsel %vm3713, %v4565, 0
    %v4587 = vsel %vm3713, %v4566, 0
    %v4590 = vsel %vm3713, %v4567, 0
    %v4593 = vsel %vm3713, %v4568, 0
    %v4596 = vsel %vm3713, %v4569, 0
    %v4599 = vsel %vm3713, %v4570, 0
    %v4602 = vsel %vm3713, %v4571, 0
    %v4605 = vsel %vm3713, %v4572, 0
    %v4608 = vsel %vm3713, %v4573, 0
    %v4611 = vsel %vm3713, %v4574, 0
    %v4614 = vsel %vm3713, %v4575, 0
    %v4617 = vsel %vm3713, %v4576, 0
    %v4620 = vsel %vm3713, %v4577, 0
    %v4623 = vsel %vm3713, %v4578, 0
    %v4626 = vsel %vm3713, %v4579, 0
    %4628 = vmatprep.subr.mxu0 %v615
    %4629 = vmatpush1.msra.mxu0 %v613
    %4630 = vmatprep.subr.mxu0 %v619
    %4631 = vmatpush1.msra.mxu0 %v617
    %4632 = vmatprep.subr.mxu0 0.0
    %4633 = vmatpush1.msra.mxu0 0.0
    %4634 = vmatprep.subr.mxu0 0.0
    %4635 = vmatpush1.msra.mxu0 0.0
    %4636 = vmatprep.subr.mxu0 0.0
    %4637 = vmatpush1.msra.mxu0 0.0
    %4638 = vmatprep.subr.mxu0 0.0
    %4639 = vmatpush1.msra.mxu0 0.0
    %4640 = vmatprep.subr.mxu0 0.0
    %4641 = vmatpush1.msra.mxu0 0.0
    %4642 = vmatprep.subr.mxu0 0.0
    %4643 = vmatpush1.msra.mxu0 0.0
    %4644 = vmatprep.subr.mxu0 0.0
    %4645 = vmatpush1.msra.mxu0 0.0
    %4646 = vmatprep.subr.mxu0 0.0
    %4647 = vmatpush1.msra.mxu0 0.0
    %4648 = vmatprep.subr.mxu0 0.0
    %4649 = vmatpush1.msra.mxu0 0.0
    %4650 = vmatprep.subr.mxu0 0.0
    %4651 = vmatpush1.msra.mxu0 0.0
    %4652 = vmatprep.subr.mxu0 0.0
    %4653 = vmatpush1.msra.mxu0 0.0
    %4654 = vmatprep.subr.mxu0 0.0
    %4655 = vmatpush1.msra.mxu0 0.0
    %4656 = vmatprep.subr.mxu0 0.0
    %4657 = vmatpush1.msra.mxu0 0.0
    %4658 = vmatprep.subr.mxu0 0.0
    %4659 = vmatpush1.msra.mxu0 0.0
    %4660 = vmatprep.subr.mxu0 0.0
    %4661 = vmatpush1.msra.mxu0 0.0
    %4662 = vmatprep.subr.mxu0 0.0
    %4663 = vmatpush1.msra.mxu0 0.0
    %4664 = vmatprep.subr.mxu0 0.0
    %4665 = vmatpush1.msra.mxu0 0.0
    %4666 = vmatprep.subr.mxu0 0.0
    %4667 = vmatpush1.msra.mxu0 0.0
    %4668 = vmatprep.subr.mxu0 0.0
    %4669 = vmatpush1.msra.mxu0 0.0
    %4670 = vmatprep.subr.mxu0 0.0
    %4671 = vmatpush1.msra.mxu0 0.0
    %4672 = vmatprep.subr.mxu0 0.0
    %4673 = vmatpush1.msra.mxu0 0.0
    %4674 = vmatprep.subr.mxu0 0.0
    %4675 = vmatpush1.msra.mxu0 0.0
    %4676 = vmatprep.subr.mxu0 0.0
    %4677 = vmatpush1.msra.mxu0 0.0
    %4678 = vmatprep.subr.mxu0 0.0
    %4679 = vmatpush1.msra.mxu0 0.0
    %4680 = vmatprep.subr.mxu0 0.0
    %4681 = vmatpush1.msra.mxu0 0.0
    %4682 = vmatprep.subr.mxu0 0.0
    %4683 = vmatpush1.msra.mxu0 0.0
    %4684 = vmatprep.subr.mxu0 0.0
    %4685 = vmatpush1.msra.mxu0 0.0
    %4686 = vmatprep.subr.mxu0 0.0
    %4687 = vmatpush1.msra.mxu0 0.0
    %4688 = vmatprep.subr.mxu0 0.0
    %4689 = vmatpush1.msra.mxu0 0.0
    %4690 = vmatprep.subr.mxu0 0.0
    %4691 = vmatpush1.msra.mxu0 0.0
    %4692 = vmatprep.mubr.f32.mxu0 0.0
    %4693 = vmatmul.mubr.f32.gmra.mrb[0].mxu0 %v4581
    %v4694 = vpop.f32.mrb[0].mxu0
    %v4695 = vadd.f32 0.0, %v4694
    %v4696 = vpop.f32.mrb[0].mxu0
    %v4697 = vadd.f32 0.0, %v4696
    %4698 = vmatprep.mubr.f32.mxu0 0.0
    %4699 = vmatmul.mubr.f32.gmra.mrb[0].mxu0 %v4584
    %v4700 = vpop.f32.mrb[0].mxu0
    %v4701 = vadd.f32 0.0, %v4700
    %v4702 = vpop.f32.mrb[0].mxu0
    %v4703 = vadd.f32 0.0, %v4702
    %4704 = vmatprep.mubr.f32.mxu0 0.0
    %4705 = vmatmul.mubr.f32.gmra.mrb[0].mxu0 %v4587
    %v4706 = vpop.f32.mrb[0].mxu0
    %v4707 = vadd.f32 0.0, %v4706
    %v4708 = vpop.f32.mrb[0].mxu0
    %v4709 = vadd.f32 0.0, %v4708
    %4710 = vmatprep.mubr.f32.mxu0 0.0
    %4711 = vmatmul.mubr.f32.gmra.mrb[0].mxu0 %v4590
    %v4712 = vpop.f32.mrb[0].mxu0
    %v4713 = vadd.f32 0.0, %v4712
    %v4714 = vpop.f32.mrb[0].mxu0
    %v4715 = vadd.f32 0.0, %v4714
    %4716 = vmatprep.mubr.f32.mxu0 0.0
    %4717 = vmatmul.mubr.f32.gmra.mrb[0].mxu0 %v4593
    %v4718 = vpop.f32.mrb[0].mxu0
    %v4719 = vadd.f32 0.0, %v4718
    %v4720 = vpop.f32.mrb[0].mxu0
    %v4721 = vadd.f32 0.0, %v4720
    %4722 = vmatprep.mubr.f32.mxu0 0.0
    %4723 = vmatmul.mubr.f32.gmra.mrb[0].mxu0 %v4596
    %v4724 = vpop.f32.mrb[0].mxu0
    %v4725 = vadd.f32 0.0, %v4724
    %v4726 = vpop.f32.mrb[0].mxu0
    %v4727 = vadd.f32 0.0, %v4726
    %4728 = vmatprep.mubr.f32.mxu0 0.0
    %4729 = vmatmul.mubr.f32.gmra.mrb[0].mxu0 %v4599
    %v4730 = vpop.f32.mrb[0].mxu0
    %v4731 = vadd.f32 0.0, %v4730
    %v4732 = vpop.f32.mrb[0].mxu0
    %v4733 = vadd.f32 0.0, %v4732
    %4734 = vmatprep.mubr.f32.mxu0 0.0
    %4735 = vmatmul.mubr.f32.gmra.mrb[0].mxu0 %v4602
    %v4736 = vpop.f32.mrb[0].mxu0
    %v4737 = vadd.f32 0.0, %v4736
    %v4738 = vpop.f32.mrb[0].mxu0
    %v4739 = vadd.f32 0.0, %v4738
    %4740 = vmatprep.mubr.f32.mxu0 0.0
    %4741 = vmatmul.mubr.f32.gmra.mrb[0].mxu0 %v4605
    %v4742 = vpop.f32.mrb[0].mxu0
    %v4743 = vadd.f32 0.0, %v4742
    %v4744 = vpop.f32.mrb[0].mxu0
    %v4745 = vadd.f32 0.0, %v4744
    %4746 = vmatprep.mubr.f32.mxu0 0.0
    %4747 = vmatmul.mubr.f32.gmra.mrb[0].mxu0 %v4608
    %v4748 = vpop.f32.mrb[0].mxu0
    %v4749 = vadd.f32 0.0, %v4748
    %v4750 = vpop.f32.mrb[0].mxu0
    %v4751 = vadd.f32 0.0, %v4750
    %4752 = vmatprep.mubr.f32.mxu0 0.0
    %4753 = vmatmul.mubr.f32.gmra.mrb[0].mxu0 %v4611
    %v4754 = vpop.f32.mrb[0].mxu0
    %v4755 = vadd.f32 0.0, %v4754
    %v4756 = vpop.f32.mrb[0].mxu0
    %v4757 = vadd.f32 0.0, %v4756
    %4758 = vmatprep.mubr.f32.mxu0 0.0
    %4759 = vmatmul.mubr.f32.gmra.mrb[0].mxu0 %v4614
    %v4760 = vpop.f32.mrb[0].mxu0
    %v4761 = vadd.f32 0.0, %v4760
    %v4762 = vpop.f32.mrb[0].mxu0
    %v4763 = vadd.f32 0.0, %v4762
    %4764 = vmatprep.mubr.f32.mxu0 0.0
    %4765 = vmatmul.mubr.f32.gmra.mrb[0].mxu0 %v4617
    %v4766 = vpop.f32.mrb[0].mxu0
    %v4767 = vadd.f32 0.0, %v4766
    %v4768 = vpop.f32.mrb[0].mxu0
    %v4769 = vadd.f32 0.0, %v4768
    %4770 = vmatprep.mubr.f32.mxu0 0.0
    %4771 = vmatmul.mubr.f32.gmra.mrb[0].mxu0 %v4620
    %v4772 = vpop.f32.mrb[0].mxu0
    %v4773 = vadd.f32 0.0, %v4772
    %v4774 = vpop.f32.mrb[0].mxu0
    %v4775 = vadd.f32 0.0, %v4774
    %4776 = vmatprep.mubr.f32.mxu0 0.0
    %4777 = vmatmul.mubr.f32.gmra.mrb[0].mxu0 %v4623
    %v4778 = vpop.f32.mrb[0].mxu0
    %v4779 = vadd.f32 0.0, %v4778
    %v4780 = vpop.f32.mrb[0].mxu0
    %v4781 = vadd.f32 0.0, %v4780
    %4782 = vmatprep.mubr.f32.mxu0 0.0
    %4783 = vmatmul.mubr.f32.gmra.mrb[0].mxu0 %v4626
    %v4784 = vpop.f32.mrb[0].mxu0
    %v4785 = vadd.f32 0.0, %v4784
    %v4786 = vpop.f32.mrb[0].mxu0
    %v4787 = vadd.f32 0.0, %v4786
    %4788 = vdwg.mxu0
    %4789 = vmatprep.subr.mxu0 %v666
    %4790 = vmatpush1.msra.mxu0 %v664
    %4791 = vmatprep.subr.mxu0 %v670
    %4792 = vmatpush1.msra.mxu0 %v668
    %4793 = vmatprep.subr.mxu0 0.0
    %4794 = vmatpush1.msra.mxu0 0.0
    %4795 = vmatprep.subr.mxu0 0.0
    %4796 = vmatpush1.msra.mxu0 0.0
    %4797 = vmatprep.subr.mxu0 0.0
    %4798 = vmatpush1.msra.mxu0 0.0
    %4799 = vmatprep.subr.mxu0 0.0
    %4800 = vmatpush1.msra.mxu0 0.0
    %4801 = vmatprep.subr.mxu0 0.0
    %4802 = vmatpush1.msra.mxu0 0.0
    %4803 = vmatprep.subr.mxu0 0.0
    %4804 = vmatpush1.msra.mxu0 0.0
    %4805 = vmatprep.subr.mxu0 0.0
    %4806 = vmatpush1.msra.mxu0 0.0
    %4807 = vmatprep.subr.mxu0 0.0
    %4808 = vmatpush1.msra.mxu0 0.0
    %4809 = vmatprep.subr.mxu0 0.0
    %4810 = vmatpush1.msra.mxu0 0.0
    %4811 = vmatprep.subr.mxu0 0.0
    %4812 = vmatpush1.msra.mxu0 0.0
    %4813 = vmatprep.subr.mxu0 0.0
    %4814 = vmatpush1.msra.mxu0 0.0
    %4815 = vmatprep.subr.mxu0 0.0
    %4816 = vmatpush1.msra.mxu0 0.0
    %4817 = vmatprep.subr.mxu0 0.0
    %4818 = vmatpush1.msra.mxu0 0.0
    %4819 = vmatprep.subr.mxu0 0.0
    %4820 = vmatpush1.msra.mxu0 0.0
    %4821 = vmatprep.subr.mxu0 0.0
    %4822 = vmatpush1.msra.mxu0 0.0
    %4823 = vmatprep.subr.mxu0 0.0
    %4824 = vmatpush1.msra.mxu0 0.0
    %4825 = vmatprep.subr.mxu0 0.0
    %4826 = vmatpush1.msra.mxu0 0.0
    %4827 = vmatprep.subr.mxu0 0.0
    %4828 = vmatpush1.msra.mxu0 0.0
    %4829 = vmatprep.subr.mxu0 0.0
    %4830 = vmatpush1.msra.mxu0 0.0
    %4831 = vmatprep.subr.mxu0 0.0
    %4832 = vmatpush1.msra.mxu0 0.0
    %4833 = vmatprep.subr.mxu0 0.0
    %4834 = vmatpush1.msra.mxu0 0.0
    %4835 = vmatprep.subr.mxu0 0.0
    %4836 = vmatpush1.msra.mxu0 0.0
    %4837 = vmatprep.subr.mxu0 0.0
    %4838 = vmatpush1.msra.mxu0 0.0
    %4839 = vmatprep.subr.mxu0 0.0
    %4840 = vmatpush1.msra.mxu0 0.0
    %4841 = vmatprep.subr.mxu0 0.0
    %4842 = vmatpush1.msra.mxu0 0.0
    %4843 = vmatprep.subr.mxu0 0.0
    %4844 = vmatpush1.msra.mxu0 0.0
    %4845 = vmatprep.subr.mxu0 0.0
    %4846 = vmatpush1.msra.mxu0 0.0
    %4847 = vmatprep.subr.mxu0 0.0
    %4848 = vmatpush1.msra.mxu0 0.0
    %4849 = vmatprep.subr.mxu0 0.0
    %4850 = vmatpush1.msra.mxu0 0.0
    %4851 = vmatprep.subr.mxu0 0.0
    %4852 = vmatpush1.msra.mxu0 0.0
    %4853 = vmatprep.mubr.f32.mxu0 0.0
    %4854 = vmatmul.mubr.f32.gmra.mrb[0].mxu0 %v4581
    %v4855 = vpop.f32.mrb[0].mxu0
    %v4856 = vadd.f32 0.0, %v4855
    %v4857 = vpop.f32.mrb[0].mxu0
    %v4858 = vadd.f32 0.0, %v4857
    %4859 = vmatprep.mubr.f32.mxu0 0.0
    %4860 = vmatmul.mubr.f32.gmra.mrb[0].mxu0 %v4584
    %v4861 = vpop.f32.mrb[0].mxu0
    %v4862 = vadd.f32 0.0, %v4861
    %v4863 = vpop.f32.mrb[0].mxu0
    %v4864 = vadd.f32 0.0, %v4863
    %4865 = vmatprep.mubr.f32.mxu0 0.0
    %4866 = vmatmul.mubr.f32.gmra.mrb[0].mxu0 %v4587
    %v4867 = vpop.f32.mrb[0].mxu0
    %v4868 = vadd.f32 0.0, %v4867
    %v4869 = vpop.f32.mrb[0].mxu0
    %v4870 = vadd.f32 0.0, %v4869
    %4871 = vmatprep.mubr.f32.mxu0 0.0
    %4872 = vmatmul.mubr.f32.gmra.mrb[0].mxu0 %v4590
    %v4873 = vpop.f32.mrb[0].mxu0
    %v4874 = vadd.f32 0.0, %v4873
    %v4875 = vpop.f32.mrb[0].mxu0
    %v4876 = vadd.f32 0.0, %v4875
    %4877 = vmatprep.mubr.f32.mxu0 0.0
    %4878 = vmatmul.mubr.f32.gmra.mrb[0].mxu0 %v4593
    %v4879 = vpop.f32.mrb[0].mxu0
    %v4880 = vadd.f32 0.0, %v4879
    %v4881 = vpop.f32.mrb[0].mxu0
    %v4882 = vadd.f32 0.0, %v4881
    %4883 = vmatprep.mubr.f32.mxu0 0.0
    %4884 = vmatmul.mubr.f32.gmra.mrb[0].mxu0 %v4596
    %v4885 = vpop.f32.mrb[0].mxu0
    %v4886 = vadd.f32 0.0, %v4885
    %v4887 = vpop.f32.mrb[0].mxu0
    %v4888 = vadd.f32 0.0, %v4887
    %4889 = vmatprep.mubr.f32.mxu0 0.0
    %4890 = vmatmul.mubr.f32.gmra.mrb[0].mxu0 %v4599
    %v4891 = vpop.f32.mrb[0].mxu0
    %v4892 = vadd.f32 0.0, %v4891
    %v4893 = vpop.f32.mrb[0].mxu0
    %v4894 = vadd.f32 0.0, %v4893
    %4895 = vmatprep.mubr.f32.mxu0 0.0
    %4896 = vmatmul.mubr.f32.gmra.mrb[0].mxu0 %v4602
    %v4897 = vpop.f32.mrb[0].mxu0
    %v4898 = vadd.f32 0.0, %v4897
    %v4899 = vpop.f32.mrb[0].mxu0
    %v4900 = vadd.f32 0.0, %v4899
    %4901 = vmatprep.mubr.f32.mxu0 0.0
    %4902 = vmatmul.mubr.f32.gmra.mrb[0].mxu0 %v4605
    %v4903 = vpop.f32.mrb[0].mxu0
    %v4904 = vadd.f32 0.0, %v4903
    %v4905 = vpop.f32.mrb[0].mxu0
    %v4906 = vadd.f32 0.0, %v4905
    %4907 = vmatprep.mubr.f32.mxu0 0.0
    %4908 = vmatmul.mubr.f32.gmra.mrb[0].mxu0 %v4608
    %v4909 = vpop.f32.mrb[0].mxu0
    %v4910 = vadd.f32 0.0, %v4909
    %v4911 = vpop.f32.mrb[0].mxu0
    %v4912 = vadd.f32 0.0, %v4911
    %4913 = vmatprep.mubr.f32.mxu0 0.0
    %4914 = vmatmul.mubr.f32.gmra.mrb[0].mxu0 %v4611
    %v4915 = vpop.f32.mrb[0].mxu0
    %v4916 = vadd.f32 0.0, %v4915
    %v4917 = vpop.f32.mrb[0].mxu0
    %v4918 = vadd.f32 0.0, %v4917
    %4919 = vmatprep.mubr.f32.mxu0 0.0
    %4920 = vmatmul.mubr.f32.gmra.mrb[0].mxu0 %v4614
    %v4921 = vpop.f32.mrb[0].mxu0
    %v4922 = vadd.f32 0.0, %v4921
    %v4923 = vpop.f32.mrb[0].mxu0
    %v4924 = vadd.f32 0.0, %v4923
    %4925 = vmatprep.mubr.f32.mxu0 0.0
    %4926 = vmatmul.mubr.f32.gmra.mrb[0].mxu0 %v4617
    %v4927 = vpop.f32.mrb[0].mxu0
    %v4928 = vadd.f32 0.0, %v4927
    %v4929 = vpop.f32.mrb[0].mxu0
    %v4930 = vadd.f32 0.0, %v4929
    %4931 = vmatprep.mubr.f32.mxu0 0.0
    %4932 = vmatmul.mubr.f32.gmra.mrb[0].mxu0 %v4620
    %v4933 = vpop.f32.mrb[0].mxu0
    %v4934 = vadd.f32 0.0, %v4933
    %v4935 = vpop.f32.mrb[0].mxu0
    %v4936 = vadd.f32 0.0, %v4935
    %4937 = vmatprep.mubr.f32.mxu0 0.0
    %4938 = vmatmul.mubr.f32.gmra.mrb[0].mxu0 %v4623
    %v4939 = vpop.f32.mrb[0].mxu0
    %v4940 = vadd.f32 0.0, %v4939
    %v4941 = vpop.f32.mrb[0].mxu0
    %v4942 = vadd.f32 0.0, %v4941
    %4943 = vmatprep.mubr.f32.mxu0 0.0
    %4944 = vmatmul.mubr.f32.gmra.mrb[0].mxu0 %v4626
    %v4945 = vpop.f32.mrb[0].mxu0
    %v4946 = vadd.f32 0.0, %v4945
    %v4947 = vpop.f32.mrb[0].mxu0
    %v4948 = vadd.f32 0.0, %v4947
    %4949 = vdwg.mxu0
    %v4950 = vmul.f32 %v4695, %v4695
    %v4951 = vmul.f32 %v4697, %v4697
    %v4952 = vmul.f32 %v4856, %v4856
    %v4953 = vmul.f32 %v4858, %v4858
    %v4954 = vmul.f32 %v4701, %v4701
    %v4955 = vmul.f32 %v4703, %v4703
    %v4956 = vmul.f32 %v4862, %v4862
    %v4957 = vmul.f32 %v4864, %v4864
    %v4958 = vmul.f32 %v4707, %v4707
    %v4959 = vmul.f32 %v4709, %v4709
    %v4960 = vmul.f32 %v4868, %v4868
    %v4961 = vmul.f32 %v4870, %v4870
    %v4962 = vmul.f32 %v4713, %v4713
    %v4963 = vmul.f32 %v4715, %v4715
    %v4964 = vmul.f32 %v4874, %v4874
    %v4965 = vmul.f32 %v4876, %v4876
    %v4966 = vmul.f32 %v4719, %v4719
    %v4967 = vmul.f32 %v4721, %v4721
    %v4968 = vmul.f32 %v4880, %v4880
    %v4969 = vmul.f32 %v4882, %v4882
    %v4970 = vmul.f32 %v4725, %v4725
    %v4971 = vmul.f32 %v4727, %v4727
    %v4972 = vmul.f32 %v4886, %v4886
    %v4973 = vmul.f32 %v4888, %v4888
    %v4974 = vmul.f32 %v4731, %v4731
    %v4975 = vmul.f32 %v4733, %v4733
    %v4976 = vmul.f32 %v4892, %v4892
    %v4977 = vmul.f32 %v4894, %v4894
    %v4978 = vmul.f32 %v4737, %v4737
    %v4979 = vmul.f32 %v4739, %v4739
    %v4980 = vmul.f32 %v4898, %v4898
    %v4981 = vmul.f32 %v4900, %v4900
    %v4982 = vmul.f32 %v4743, %v4743
    %v4983 = vmul.f32 %v4745, %v4745
    %v4984 = vmul.f32 %v4904, %v4904
    %v4985 = vmul.f32 %v4906, %v4906
    %v4986 = vmul.f32 %v4749, %v4749
    %v4987 = vmul.f32 %v4751, %v4751
    %v4988 = vmul.f32 %v4910, %v4910
    %v4989 = vmul.f32 %v4912, %v4912
    %v4990 = vmul.f32 %v4755, %v4755
    %v4991 = vmul.f32 %v4757, %v4757
    %v4992 = vmul.f32 %v4916, %v4916
    %v4993 = vmul.f32 %v4918, %v4918
    %v4994 = vmul.f32 %v4761, %v4761
    %v4995 = vmul.f32 %v4763, %v4763
    %v4996 = vmul.f32 %v4922, %v4922
    %v4997 = vmul.f32 %v4924, %v4924
    %v4998 = vmul.f32 %v4767, %v4767
    %v4999 = vmul.f32 %v4769, %v4769
    %v5000 = vmul.f32 %v4928, %v4928
    %v5001 = vmul.f32 %v4930, %v4930
    %v5002 = vmul.f32 %v4773, %v4773
    %v5003 = vmul.f32 %v4775, %v4775
    %v5004 = vmul.f32 %v4934, %v4934
    %v5005 = vmul.f32 %v4936, %v4936
    %v5006 = vmul.f32 %v4779, %v4779
    %v5007 = vmul.f32 %v4781, %v4781
    %v5008 = vmul.f32 %v4940, %v4940
    %v5009 = vmul.f32 %v4942, %v4942
    %v5010 = vmul.f32 %v4785, %v4785
    %v5011 = vmul.f32 %v4787, %v4787
    %v5012 = vmul.f32 %v4946, %v4946
    %v5013 = vmul.f32 %v4948, %v4948
    %v5014 = vadd.f32 %v4950, %v4951
    %v5015 = vadd.f32 %v5014, %v4952
    %v5016 = vadd.f32 %v5015, %v4953
    %5017 = vadd.xlane.f32.xlu0 %v5016
    %v5018 = vpop.xlane.xlu0 %5017
    %v5019 = vadd.f32 %v4954, %v4955
    %v5020 = vadd.f32 %v5019, %v4956
    %v5021 = vadd.f32 %v5020, %v4957
    %5022 = vadd.xlane.f32.xlu0 %v5021
    %v5023 = vpop.xlane.xlu0 %5022
    %v5024 = vadd.f32 %v4958, %v4959
    %v5025 = vadd.f32 %v5024, %v4960
    %v5026 = vadd.f32 %v5025, %v4961
    %5027 = vadd.xlane.f32.xlu0 %v5026
    %v5028 = vpop.xlane.xlu0 %5027
    %v5029 = vadd.f32 %v4962, %v4963
    %v5030 = vadd.f32 %v5029, %v4964
    %v5031 = vadd.f32 %v5030, %v4965
    %5032 = vadd.xlane.f32.xlu0 %v5031
    %v5033 = vpop.xlane.xlu0 %5032
    %v5034 = vadd.f32 %v4966, %v4967
    %v5035 = vadd.f32 %v5034, %v4968
    %v5036 = vadd.f32 %v5035, %v4969
    %5037 = vadd.xlane.f32.xlu0 %v5036
    %v5038 = vpop.xlane.xlu0 %5037
    %v5039 = vadd.f32 %v4970, %v4971
    %v5040 = vadd.f32 %v5039, %v4972
    %v5041 = vadd.f32 %v5040, %v4973
    %5042 = vadd.xlane.f32.xlu0 %v5041
    %v5043 = vpop.xlane.xlu0 %5042
    %v5044 = vadd.f32 %v4974, %v4975
    %v5045 = vadd.f32 %v5044, %v4976
    %v5046 = vadd.f32 %v5045, %v4977
    %5047 = vadd.xlane.f32.xlu0 %v5046
    %v5048 = vpop.xlane.xlu0 %5047
    %v5049 = vadd.f32 %v4978, %v4979
    %v5050 = vadd.f32 %v5049, %v4980
    %v5051 = vadd.f32 %v5050, %v4981
    %5052 = vadd.xlane.f32.xlu0 %v5051
    %v5053 = vpop.xlane.xlu0 %5052
    %v5054 = vadd.f32 %v4982, %v4983
    %v5055 = vadd.f32 %v5054, %v4984
    %v5056 = vadd.f32 %v5055, %v4985
    %5057 = vadd.xlane.f32.xlu0 %v5056
    %v5058 = vpop.xlane.xlu0 %5057
    %v5059 = vadd.f32 %v4986, %v4987
    %v5060 = vadd.f32 %v5059, %v4988
    %v5061 = vadd.f32 %v5060, %v4989
    %5062 = vadd.xlane.f32.xlu0 %v5061
    %v5063 = vpop.xlane.xlu0 %5062
    %v5064 = vadd.f32 %v4990, %v4991
    %v5065 = vadd.f32 %v5064, %v4992
    %v5066 = vadd.f32 %v5065, %v4993
    %5067 = vadd.xlane.f32.xlu0 %v5066
    %v5068 = vpop.xlane.xlu0 %5067
    %v5069 = vadd.f32 %v4994, %v4995
    %v5070 = vadd.f32 %v5069, %v4996
    %v5071 = vadd.f32 %v5070, %v4997
    %5072 = vadd.xlane.f32.xlu0 %v5071
    %v5073 = vpop.xlane.xlu0 %5072
    %v5074 = vadd.f32 %v4998, %v4999
    %v5075 = vadd.f32 %v5074, %v5000
    %v5076 = vadd.f32 %v5075, %v5001
    %5077 = vadd.xlane.f32.xlu0 %v5076
    %v5078 = vpop.xlane.xlu0 %5077
    %v5079 = vadd.f32 %v5002, %v5003
    %v5080 = vadd.f32 %v5079, %v5004
    %v5081 = vadd.f32 %v5080, %v5005
    %5082 = vadd.xlane.f32.xlu0 %v5081
    %v5083 = vpop.xlane.xlu0 %5082
    %v5084 = vadd.f32 %v5006, %v5007
    %v5085 = vadd.f32 %v5084, %v5008
    %v5086 = vadd.f32 %v5085, %v5009
    %5087 = vadd.xlane.f32.xlu0 %v5086
    %v5088 = vpop.xlane.xlu0 %5087
    %v5089 = vadd.f32 %v5010, %v5011
    %v5090 = vadd.f32 %v5089, %v5012
    %v5091 = vadd.f32 %v5090, %v5013
    %5092 = vadd.xlane.f32.xlu0 %v5091
    %v5093 = vpop.xlane.xlu0 %5092
    %v5094 = vmax.f32 %v5018, 1e-24
    %v5095 = vmax.f32 %v5023, 1e-24
    %v5096 = vmax.f32 %v5028, 1e-24
    %v5097 = vmax.f32 %v5033, 1e-24
    %v5098 = vmax.f32 %v5038, 1e-24
    %v5099 = vmax.f32 %v5043, 1e-24
    %v5100 = vmax.f32 %v5048, 1e-24
    %v5101 = vmax.f32 %v5053, 1e-24
    %v5102 = vmax.f32 %v5058, 1e-24
    %v5103 = vmax.f32 %v5063, 1e-24
    %v5104 = vmax.f32 %v5068, 1e-24
    %v5105 = vmax.f32 %v5073, 1e-24
    %v5106 = vmax.f32 %v5078, 1e-24
    %v5107 = vmax.f32 %v5083, 1e-24
    %v5108 = vmax.f32 %v5088, 1e-24
    %v5109 = vmax.f32 %v5093, 1e-24
    %v5110 = vrsqrt.pop %v5094
    %v5111 = vrsqrt.pop %v5095
    %v5112 = vrsqrt.pop %v5096
    %v5113 = vrsqrt.pop %v5097
    %v5114 = vrsqrt.pop %v5098
    %v5115 = vrsqrt.pop %v5099
    %v5116 = vrsqrt.pop %v5100
    %v5117 = vrsqrt.pop %v5101
    %v5118 = vrsqrt.pop %v5102
    %v5119 = vrsqrt.pop %v5103
    %v5120 = vrsqrt.pop %v5104
    %v5121 = vrsqrt.pop %v5105
    %v5122 = vrsqrt.pop %v5106
    %v5123 = vrsqrt.pop %v5107
    %v5124 = vrsqrt.pop %v5108
    %v5125 = vrsqrt.pop %v5109
    %v5126 = vmul.f32 %v4695, %v5110
    %v5127 = vmul.f32 %v4697, %v5110
    %v5128 = vmul.f32 %v4856, %v5110
    %v5129 = vmul.f32 %v4858, %v5110
    %v5130 = vmul.f32 %v4701, %v5111
    %v5131 = vmul.f32 %v4703, %v5111
    %v5132 = vmul.f32 %v4862, %v5111
    %v5133 = vmul.f32 %v4864, %v5111
    %v5134 = vmul.f32 %v4707, %v5112
    %v5135 = vmul.f32 %v4709, %v5112
    %v5136 = vmul.f32 %v4868, %v5112
    %v5137 = vmul.f32 %v4870, %v5112
    %v5138 = vmul.f32 %v4713, %v5113
    %v5139 = vmul.f32 %v4715, %v5113
    %v5140 = vmul.f32 %v4874, %v5113
    %v5141 = vmul.f32 %v4876, %v5113
    %v5142 = vmul.f32 %v4719, %v5114
    %v5143 = vmul.f32 %v4721, %v5114
    %v5144 = vmul.f32 %v4880, %v5114
    %v5145 = vmul.f32 %v4882, %v5114
    %v5146 = vmul.f32 %v4725, %v5115
    %v5147 = vmul.f32 %v4727, %v5115
    %v5148 = vmul.f32 %v4886, %v5115
    %v5149 = vmul.f32 %v4888, %v5115
    %v5150 = vmul.f32 %v4731, %v5116
    %v5151 = vmul.f32 %v4733, %v5116
    %v5152 = vmul.f32 %v4892, %v5116
    %v5153 = vmul.f32 %v4894, %v5116
    %v5154 = vmul.f32 %v4737, %v5117
    %v5155 = vmul.f32 %v4739, %v5117
    %v5156 = vmul.f32 %v4898, %v5117
    %v5157 = vmul.f32 %v4900, %v5117
    %v5158 = vmul.f32 %v4743, %v5118
    %v5159 = vmul.f32 %v4745, %v5118
    %v5160 = vmul.f32 %v4904, %v5118
    %v5161 = vmul.f32 %v4906, %v5118
    %v5162 = vmul.f32 %v4749, %v5119
    %v5163 = vmul.f32 %v4751, %v5119
    %v5164 = vmul.f32 %v4910, %v5119
    %v5165 = vmul.f32 %v4912, %v5119
    %v5166 = vmul.f32 %v4755, %v5120
    %v5167 = vmul.f32 %v4757, %v5120
    %v5168 = vmul.f32 %v4916, %v5120
    %v5169 = vmul.f32 %v4918, %v5120
    %v5170 = vmul.f32 %v4761, %v5121
    %v5171 = vmul.f32 %v4763, %v5121
    %v5172 = vmul.f32 %v4922, %v5121
    %v5173 = vmul.f32 %v4924, %v5121
    %v5174 = vmul.f32 %v4767, %v5122
    %v5175 = vmul.f32 %v4769, %v5122
    %v5176 = vmul.f32 %v4928, %v5122
    %v5177 = vmul.f32 %v4930, %v5122
    %v5178 = vmul.f32 %v4773, %v5123
    %v5179 = vmul.f32 %v4775, %v5123
    %v5180 = vmul.f32 %v4934, %v5123
    %v5181 = vmul.f32 %v4936, %v5123
    %v5182 = vmul.f32 %v4779, %v5124
    %v5183 = vmul.f32 %v4781, %v5124
    %v5184 = vmul.f32 %v4940, %v5124
    %v5185 = vmul.f32 %v4942, %v5124
    %v5186 = vmul.f32 %v4785, %v5125
    %v5187 = vmul.f32 %v4787, %v5125
    %v5188 = vmul.f32 %v4946, %v5125
    %v5189 = vmul.f32 %v4948, %v5125
    %v5190 = vmul.f32 %v4560, %v4560
    %v5191 = vmul.f32 %v4561, %v4561
    %v5192 = vmul.f32 %v4562, %v4562
    %v5193 = vmul.f32 %v4563, %v4563
    %v5194 = vadd.f32 %v5190, %v5191
    %v5195 = vadd.f32 %v5194, %v5192
    %v5196 = vadd.f32 %v5195, %v5193
    %5197 = vadd.xlane.f32.xlu0 %v5196
    %v5198 = vpop.xlane.xlu0 %5197
    %v5199 = vmax.f32 %v5198, 1e-24
    %v5200 = vrsqrt.pop %v5199
    %v5201 = vmul.f32 %v4560, %v5200
    %v5202 = vmul.f32 %v4561, %v5200
    %v5203 = vmul.f32 %v4562, %v5200
    %v5204 = vmul.f32 %v4563, %v5200
    %5205 = vmatprep.subr.mxu0 %v5127
    %5206 = vmatpush1.xpose.msra.mxu0 %v5126
    %5207 = vmatprep.subr.mxu0 %v5131
    %5208 = vmatpush1.xpose.msra.mxu0 %v5130
    %5209 = vmatprep.subr.mxu0 %v5135
    %5210 = vmatpush1.xpose.msra.mxu0 %v5134
    %5211 = vmatprep.subr.mxu0 %v5139
    %5212 = vmatpush1.xpose.msra.mxu0 %v5138
    %5213 = vmatprep.subr.mxu0 %v5143
    %5214 = vmatpush1.xpose.msra.mxu0 %v5142
    %5215 = vmatprep.subr.mxu0 %v5147
    %5216 = vmatpush1.xpose.msra.mxu0 %v5146
    %5217 = vmatprep.subr.mxu0 %v5151
    %5218 = vmatpush1.xpose.msra.mxu0 %v5150
    %5219 = vmatprep.subr.mxu0 %v5155
    %5220 = vmatpush1.xpose.msra.mxu0 %v5154
    %5221 = vmatprep.subr.mxu0 %v5159
    %5222 = vmatpush1.xpose.msra.mxu0 %v5158
    %5223 = vmatprep.subr.mxu0 %v5163
    %5224 = vmatpush1.xpose.msra.mxu0 %v5162
    %5225 = vmatprep.subr.mxu0 %v5167
    %5226 = vmatpush1.xpose.msra.mxu0 %v5166
    %5227 = vmatprep.subr.mxu0 %v5171
    %5228 = vmatpush1.xpose.msra.mxu0 %v5170
    %5229 = vmatprep.subr.mxu0 %v5175
    %5230 = vmatpush1.xpose.msra.mxu0 %v5174
    %5231 = vmatprep.subr.mxu0 %v5179
    %5232 = vmatpush1.xpose.msra.mxu0 %v5178
    %5233 = vmatprep.subr.mxu0 %v5183
    %5234 = vmatpush1.xpose.msra.mxu0 %v5182
    %5235 = vmatprep.subr.mxu0 %v5187
    %5236 = vmatpush1.xpose.msra.mxu0 %v5186
    %5237 = vmatprep.subr.mxu0 0.0
    %5238 = vmatpush1.xpose.msra.mxu0 0.0
    %5239 = vmatprep.subr.mxu0 0.0
    %5240 = vmatpush1.xpose.msra.mxu0 0.0
    %5241 = vmatprep.subr.mxu0 0.0
    %5242 = vmatpush1.xpose.msra.mxu0 0.0
    %5243 = vmatprep.subr.mxu0 0.0
    %5244 = vmatpush1.xpose.msra.mxu0 0.0
    %5245 = vmatprep.subr.mxu0 0.0
    %5246 = vmatpush1.xpose.msra.mxu0 0.0
    %5247 = vmatprep.subr.mxu0 0.0
    %5248 = vmatpush1.xpose.msra.mxu0 0.0
    %5249 = vmatprep.subr.mxu0 0.0
    %5250 = vmatpush1.xpose.msra.mxu0 0.0
    %5251 = vmatprep.subr.mxu0 0.0
    %5252 = vmatpush1.xpose.msra.mxu0 0.0
    %5253 = vmatprep.subr.mxu0 0.0
    %5254 = vmatpush1.xpose.msra.mxu0 0.0
    %5255 = vmatprep.subr.mxu0 0.0
    %5256 = vmatpush1.xpose.msra.mxu0 0.0
    %5257 = vmatprep.subr.mxu0 0.0
    %5258 = vmatpush1.xpose.msra.mxu0 0.0
    %5259 = vmatprep.subr.mxu0 0.0
    %5260 = vmatpush1.xpose.msra.mxu0 0.0
    %5261 = vmatprep.subr.mxu0 0.0
    %5262 = vmatpush1.xpose.msra.mxu0 0.0
    %5263 = vmatprep.subr.mxu0 0.0
    %5264 = vmatpush1.xpose.msra.mxu0 0.0
    %5265 = vmatprep.subr.mxu0 0.0
    %5266 = vmatpush1.xpose.msra.mxu0 0.0
    %5267 = vmatprep.subr.mxu0 0.0
    %5268 = vmatpush1.xpose.msra.mxu0 0.0
    %5269 = vmatprep.mubr.f32.mxu0 %v5202
    %5270 = vmatmul.mubr.f32.gmra.mrb[0].mxu0 %v5201
    %v5271 = vpop.f32.mrb[0].mxu0
    %v5272 = vadd.f32 0.0, %v5271
    %v5273 = vpop.f32.mrb[0].mxu0
    %5274 = vdwg.mxu0
    %5275 = vmatprep.subr.mxu0 %v5129
    %5276 = vmatpush1.xpose.msra.mxu0 %v5128
    %5277 = vmatprep.subr.mxu0 %v5133
    %5278 = vmatpush1.xpose.msra.mxu0 %v5132
    %5279 = vmatprep.subr.mxu0 %v5137
    %5280 = vmatpush1.xpose.msra.mxu0 %v5136
    %5281 = vmatprep.subr.mxu0 %v5141
    %5282 = vmatpush1.xpose.msra.mxu0 %v5140
    %5283 = vmatprep.subr.mxu0 %v5145
    %5284 = vmatpush1.xpose.msra.mxu0 %v5144
    %5285 = vmatprep.subr.mxu0 %v5149
    %5286 = vmatpush1.xpose.msra.mxu0 %v5148
    %5287 = vmatprep.subr.mxu0 %v5153
    %5288 = vmatpush1.xpose.msra.mxu0 %v5152
    %5289 = vmatprep.subr.mxu0 %v5157
    %5290 = vmatpush1.xpose.msra.mxu0 %v5156
    %5291 = vmatprep.subr.mxu0 %v5161
    %5292 = vmatpush1.xpose.msra.mxu0 %v5160
    %5293 = vmatprep.subr.mxu0 %v5165
    %5294 = vmatpush1.xpose.msra.mxu0 %v5164
    %5295 = vmatprep.subr.mxu0 %v5169
    %5296 = vmatpush1.xpose.msra.mxu0 %v5168
    %5297 = vmatprep.subr.mxu0 %v5173
    %5298 = vmatpush1.xpose.msra.mxu0 %v5172
    %5299 = vmatprep.subr.mxu0 %v5177
    %5300 = vmatpush1.xpose.msra.mxu0 %v5176
    %5301 = vmatprep.subr.mxu0 %v5181
    %5302 = vmatpush1.xpose.msra.mxu0 %v5180
    %5303 = vmatprep.subr.mxu0 %v5185
    %5304 = vmatpush1.xpose.msra.mxu0 %v5184
    %5305 = vmatprep.subr.mxu0 %v5189
    %5306 = vmatpush1.xpose.msra.mxu0 %v5188
    %5307 = vmatprep.subr.mxu0 0.0
    %5308 = vmatpush1.xpose.msra.mxu0 0.0
    %5309 = vmatprep.subr.mxu0 0.0
    %5310 = vmatpush1.xpose.msra.mxu0 0.0
    %5311 = vmatprep.subr.mxu0 0.0
    %5312 = vmatpush1.xpose.msra.mxu0 0.0
    %5313 = vmatprep.subr.mxu0 0.0
    %5314 = vmatpush1.xpose.msra.mxu0 0.0
    %5315 = vmatprep.subr.mxu0 0.0
    %5316 = vmatpush1.xpose.msra.mxu0 0.0
    %5317 = vmatprep.subr.mxu0 0.0
    %5318 = vmatpush1.xpose.msra.mxu0 0.0
    %5319 = vmatprep.subr.mxu0 0.0
    %5320 = vmatpush1.xpose.msra.mxu0 0.0
    %5321 = vmatprep.subr.mxu0 0.0
    %5322 = vmatpush1.xpose.msra.mxu0 0.0
    %5323 = vmatprep.subr.mxu0 0.0
    %5324 = vmatpush1.xpose.msra.mxu0 0.0
    %5325 = vmatprep.subr.mxu0 0.0
    %5326 = vmatpush1.xpose.msra.mxu0 0.0
    %5327 = vmatprep.subr.mxu0 0.0
    %5328 = vmatpush1.xpose.msra.mxu0 0.0
    %5329 = vmatprep.subr.mxu0 0.0
    %5330 = vmatpush1.xpose.msra.mxu0 0.0
    %5331 = vmatprep.subr.mxu0 0.0
    %5332 = vmatpush1.xpose.msra.mxu0 0.0
    %5333 = vmatprep.subr.mxu0 0.0
    %5334 = vmatpush1.xpose.msra.mxu0 0.0
    %5335 = vmatprep.subr.mxu0 0.0
    %5336 = vmatpush1.xpose.msra.mxu0 0.0
    %5337 = vmatprep.subr.mxu0 0.0
    %5338 = vmatpush1.xpose.msra.mxu0 0.0
    %5339 = vmatprep.mubr.f32.mxu0 %v5204
    %5340 = vmatmul.mubr.f32.gmra.mrb[0].mxu0 %v5203
    %v5341 = vpop.f32.mrb[0].mxu0
    %v5342 = vadd.f32 %v5272, %v5341
    %v5343 = vpop.f32.mrb[0].mxu0
    %5344 = vdwg.mxu0
    %v5345 = vmul.f32 %v5342, 10.0
    %5346 = vst [vmem:[#allocation17] sm:$0xff] %v5345
    %5347 = vst [vmem:[#allocation18] sm:$0xff] %v613
    %5348 = vst [vmem:[#allocation18 + $0x8] sm:$0xff] %v615
    %5349 = vst [vmem:[#allocation18 + $0x10] sm:$0xff] %v664
    %5350 = vst [vmem:[#allocation18 + $0x18] sm:$0xff] %v666
    %5351 = vst [vmem:[#allocation18 + $0x20] sm:$0xff] %v617
    %5352 = vst [vmem:[#allocation18 + $0x28] sm:$0xff] %v619
    %5353 = vst [vmem:[#allocation18 + $0x30] sm:$0xff] %v668
    %5354 = vst [vmem:[#allocation18 + $0x38] sm:$0xff] %v670
    %5355 = vst [vmem:[#allocation20] sm:$0xff] %v4560
    %5356 = vst [vmem:[#allocation20 + $0x8] sm:$0xff] %v4561
    %5357 = vst [vmem:[#allocation20 + $0x10] sm:$0xff] %v4562
    %5358 = vst [vmem:[#allocation20 + $0x18] sm:$0xff] %v4563
    // Predicated region
    $region78: #{tpu_custom_call.1} parent=1 // pred_check
      _
    $region79: #{tpu_custom_call.1} parent=1 // pred_check_branch
      %5360 = sbr.rel (0) target = $region81
    $region80: #{tpu_custom_call.1} parent=1 // pred_region
      %s5362 = ssub.s32 128, 128
      %5363 = vsyncadd [#allocation4], %s5362
      %s5365 = sshll.u32 [#allocation17], 4
      %s5366 = int_to_ptr.vmem [resolvable:$true] %s5365
      %5368 = dma.vmem_to_hbm [thread:$0]  %s5366, 128, %s10, [#allocation4]
    $region81: #{tpu_custom_call.1} parent=1 // pred_fallthru
      _
    // Predicated region
    $region82: #{tpu_custom_call.1} parent=1 // pred_check
      _
    $region83: #{tpu_custom_call.1} parent=1 // pred_check_branch
      %5370 = sbr.rel (0) target = $region85
    $region84: #{tpu_custom_call.1} parent=1 // pred_region
      %s5372 = ssub.s32 1024, 1024
      %5373 = vsyncadd [#allocation19], %s5372
      %s5374 = sshll.u32 [#allocation18], 4
      %s5375 = int_to_ptr.vmem [resolvable:$true] %s5374
      %5380 = dma.vmem_to_hbm [thread:$0]  %s5375, 1024, %s11, [#allocation19], 512, 512, 32
    $region85: #{tpu_custom_call.1} parent=1 // pred_fallthru
      _
    // Predicated region
    $region86: #{tpu_custom_call.1} parent=1 // pred_check
      _
    $region87: #{tpu_custom_call.1} parent=1 // pred_check_branch
      %5382 = sbr.rel (0) target = $region89
    $region88: #{tpu_custom_call.1} parent=1 // pred_region
      %s5384 = ssub.s32 512, 512
      %5385 = vsyncadd [#allocation19], %s5384
      %s5387 = sshll.u32 [#allocation20], 4
      %s5388 = int_to_ptr.vmem [resolvable:$true] %s5387
      %5390 = dma.vmem_to_hbm [thread:$0]  %s5388, 512, %s12, [#allocation19]
    $region89: #{tpu_custom_call.1} parent=1 // pred_fallthru
      _
    // Predicated region
    $region90: #{tpu_custom_call.1} parent=1 // pred_check
      _
    $region91: #{tpu_custom_call.1} parent=1 // pred_check_branch
      %5392 = sbr.rel (0) target = $region93
    $region92: #{tpu_custom_call.1} parent=1 // pred_region
      %5393 = dma.done [#allocation4], 128
    $region93: #{tpu_custom_call.1} parent=1 // pred_fallthru
      _
    // Predicated region
    $region94: #{tpu_custom_call.1} parent=1 // pred_check
      _
    $region95: #{tpu_custom_call.1} parent=1 // pred_check_branch
      %5395 = sbr.rel (0) target = $region97
    $region96: #{tpu_custom_call.1} parent=1 // pred_region
      %5396 = dma.done [#allocation19], 1024
    $region97: #{tpu_custom_call.1} parent=1 // pred_fallthru
      _
    // Predicated region
    $region98: #{tpu_custom_call.1} parent=1 // pred_check
      _
    $region99: #{tpu_custom_call.1} parent=1 // pred_check_branch
      %5398 = sbr.rel (0) target = $region101
    $region100: #{tpu_custom_call.1} parent=1 // pred_region
      %5399 = dma.done [#allocation19], 512
    $region101: #{tpu_custom_call.1} parent=1 // pred_fallthru
      _
    %5400 = vsyncpa [#allocation3], 1
    %5401 = vsyncpa [#allocation6], 1
    %5402 = vsyncpa [#allocation9], 1
    %5403 = vsyncpa [#allocation12], 1
    %5404 = vsyncpa [#allocation15], 1
    %5405 = vsyncpa [#allocation4], 1
    %5406 = vsyncpa [#allocation19], 1

</llo_original>
